<compile_context>
chip_gen: v6e
topology: v6e:2x2x1
jax: 0.10.0
libtpu: 0.0.40
codegen_flags: <defaults>
</compile_context>

<pallas_src>
import math
import jax
import jax.numpy as jnp
from jax.experimental import pallas as pl
from jax.experimental.pallas import tpu as pltpu

# ----------------------------- configuration -------------------------------
IMG = 16                  # input spatial size (already "resized / cropped")
C = 3                     # channels
P = 8                     # ViT patch size
GRID_HW = IMG // P        # patches per side
N_PATCH = GRID_HW * GRID_HW
T = N_PATCH + 1           # tokens incl. CLS
T_PAD = 8                 # tokens padded to a full sublane group
WIDTH = 32                # transformer width
HEADS = 4
HEAD_DIM = WIDTH // HEADS
LAYERS = 2
MLP_DIM = 4 * WIDTH
EMBED = 32                # output embedding dim
PATCH_FEAT = C * P * P    # conv-as-matmul feature size (c, ph, pw) ordering
LN_EPS = 1e-5

B_TILE = 8                # images folded into one grid step (multiple of 8)

# CLIP preprocessing constants
CLIP_MEAN = (0.48145466, 0.4578275, 0.40821073)
CLIP_STD = (0.26862954, 0.26130258, 0.27577711)


# ------------------------------ kernel helpers ------------------------------
def _layer_norm(x, g, b):
    mu = jnp.mean(x, axis=-1, keepdims=True)
    var = jnp.mean((x - mu) ** 2, axis=-1, keepdims=True)
    return (x - mu) * jax.lax.rsqrt(var + LN_EPS) * g + b


def _quick_gelu(x):
    # CLIP uses QuickGELU: x * sigmoid(1.702 x); kept in f32 (no bf16 EUP on v5e)
    sig = pl.reciprocal(1.0 + jnp.exp(-1.702 * x), approx=True)
    return x * sig


# --------------------------------- kernel -----------------------------------
def vit_kernel(patch_ref, w_patch_ref, add_ref, g_pre_ref, b_pre_ref,
               g1_ref, b1_ref, wqkv_ref, bqkv_ref, wo_ref, bo_ref,
               g2_ref, b2_ref, wfc_ref, bfc_ref, wpr_ref, bpr_ref,
               g_post_ref, b_post_ref, wout_ref,
               out_ref):
    f32 = jnp.float32
    bf16 = jnp.bfloat16
    BT = B_TILE * T_PAD

    # --- patch embedding (Normalize folded into weights; CLS/pos/bias folded
    #     into the additive table; CLS + pad rows are zero in the input) ---
    x2d = patch_ref[...]                                       # [BT, PF]
    tok = jnp.dot(x2d.astype(bf16), w_patch_ref[...],
                  preferred_element_type=f32)                  # [BT, W]
    tok = tok + add_ref[...]

    h = _layer_norm(tok, g_pre_ref[...], b_pre_ref[...])       # ln_pre

    # additive key mask: padded token rows (t >= T) must not be attended to
    kmask = jnp.where(
        jax.lax.broadcasted_iota(jnp.int32, (B_TILE, T_PAD, T_PAD), 2) < T,
        0.0, -1e30).astype(f32)

    scale = 1.0 / math.sqrt(HEAD_DIM)
    for l in range(LAYERS):
        # ---------------- multi-head self-attention ----------------
        xa = _layer_norm(h, g1_ref[l], b1_ref[l])
        qkv = jnp.dot(xa.astype(bf16), wqkv_ref[l],
                      preferred_element_type=f32) + bqkv_ref[l]   # [BT, 3W]
        w_o_l = wo_ref[l]                                         # [W, W] bf16

        attn = jnp.zeros((BT, WIDTH), f32)
        for hh in range(HEADS):
            q3 = qkv[:, 0 * WIDTH + hh * HEAD_DIM:
                        0 * WIDTH + (hh + 1) * HEAD_DIM]
            k3 = qkv[:, 1 * WIDTH + hh * HEAD_DIM:
                        1 * WIDTH + (hh + 1) * HEAD_DIM]
            v3 = qkv[:, 2 * WIDTH + hh * HEAD_DIM:
                        2 * WIDTH + (hh + 1) * HEAD_DIM]
            q3 = q3.reshape(B_TILE, T_PAD, HEAD_DIM).astype(bf16)
            k3 = k3.reshape(B_TILE, T_PAD, HEAD_DIM).astype(bf16)
            v3 = v3.reshape(B_TILE, T_PAD, HEAD_DIM).astype(bf16)

            s = jnp.einsum('btd,bsd->bts', q3, k3,
                           preferred_element_type=f32)            # [B,T,T]
            s = s * scale + kmask
            s = s - jnp.max(s, axis=-1, keepdims=True)
            p = jnp.exp(s)
            p = p * pl.reciprocal(jnp.sum(p, axis=-1, keepdims=True),
                                  approx=True)
            ctx = jnp.einsum('bts,bsd->btd', p.astype(bf16), v3,
                             preferred_element_type=f32)          # [B,T,Dh]
            # fold this head's output directly into the output projection
            w_o_h = w_o_l[hh * HEAD_DIM:(hh + 1) * HEAD_DIM, :]
            attn = attn + jnp.dot(ctx.reshape(BT, HEAD_DIM).astype(bf16),
                                  w_o_h, preferred_element_type=f32)
        h = h + attn + bo_ref[l]

        # --------------------------- MLP ----------------------------
        xm = _layer_norm(h, g2_ref[l], b2_ref[l])
        hid = jnp.dot(xm.astype(bf16), wfc_ref[l],
                      preferred_element_type=f32) + bfc_ref[l]
        hid = _quick_gelu(hid)
        h = h + jnp.dot(hid.astype(bf16), wpr_ref[l],
                        preferred_element_type=f32) + bpr_ref[l]

    # --- CLS token -> ln_post -> projection ---
    cls_tok = h.reshape(B_TILE, T_PAD, WIDTH)[:, 0:1, :].reshape(B_TILE, WIDTH)
    cls_tok = _layer_norm(cls_tok, g_post_ref[...], b_post_ref[...])
    out = jnp.dot(cls_tok.astype(bf16), wout_ref[...],
                  preferred_element_type=f32)                     # [B_TILE, E]
    out_ref[...] = out.astype(out_ref.dtype)


# ------------------------------ parameter init -------------------------------
def init_params(key):
    ks = jax.random.split(key, 8)
    sc = 0.02
    bf16 = jnp.bfloat16

    w_patch = sc * jax.random.normal(ks[0], (PATCH_FEAT, WIDTH), jnp.float32)
    cls = sc * jax.random.normal(ks[1], (WIDTH,), jnp.float32)
    pos = sc * jax.random.normal(ks[2], (T, WIDTH), jnp.float32)

    # CLIP Normalize constants in (c, ph, pw) patch-feature ordering
    mean_vec = jnp.repeat(jnp.asarray(CLIP_MEAN, jnp.float32), P * P)
    std_vec = jnp.repeat(jnp.asarray(CLIP_STD, jnp.float32), P * P)

    # fold Normalize into the patch embedding:
    #   ((x - m) / s) @ W == x @ (W / s[:,None]) - m @ (W / s[:,None])
    w_patch_eff = w_patch / std_vec[:, None]
    b_patch_eff = -(mean_vec @ w_patch_eff)                     # [WIDTH]

    # additive token table (per image): row 0 = CLS + pos[0];
    # rows 1..N_PATCH = pos[t] + patch bias; padded rows = 0.
    tbl = jnp.zeros((T_PAD, WIDTH), jnp.float32)
    tbl = tbl.at[0].set(cls + pos[0])
    tbl = tbl.at[1:T].set(pos[1:] + b_patch_eff[None, :])
    add_table = jnp.tile(tbl, (B_TILE, 1))                      # [B_TILE*T_PAD, W]

    p = {}
    p["w_patch"] = w_patch_eff.astype(bf16)
    p["add_table"] = add_table
    p["g_pre"] = jnp.ones((1, WIDTH), jnp.float32)
    p["b_pre"] = jnp.zeros((1, WIDTH), jnp.float32)
    p["g1"] = jnp.ones((LAYERS, 1, WIDTH), jnp.float32)
    p["b1"] = jnp.zeros((LAYERS, 1, WIDTH), jnp.float32)
    p["w_qkv"] = (sc * jax.random.normal(ks[3], (LAYERS, WIDTH, 3 * WIDTH),
                                         jnp.float32)).astype(bf16)
    p["b_qkv"] = jnp.zeros((LAYERS, 1, 3 * WIDTH), jnp.float32)
    p["w_o"] = (sc * jax.random.normal(ks[4], (LAYERS, WIDTH, WIDTH),
                                       jnp.float32)).astype(bf16)
    p["b_o"] = jnp.zeros((LAYERS, 1, WIDTH), jnp.float32)
    p["g2"] = jnp.ones((LAYERS, 1, WIDTH), jnp.float32)
    p["b2"] = jnp.zeros((LAYERS, 1, WIDTH), jnp.float32)
    p["w_fc"] = (sc * jax.random.normal(ks[5], (LAYERS, WIDTH, MLP_DIM),
                                        jnp.float32)).astype(bf16)
    p["b_fc"] = jnp.zeros((LAYERS, 1, MLP_DIM), jnp.float32)
    p["w_pr"] = (sc * jax.random.normal(ks[6], (LAYERS, MLP_DIM, WIDTH),
                                        jnp.float32)).astype(bf16)
    p["b_pr"] = jnp.zeros((LAYERS, 1, WIDTH), jnp.float32)
    p["g_post"] = jnp.ones((1, WIDTH), jnp.float32)
    p["b_post"] = jnp.zeros((1, WIDTH), jnp.float32)
    p["w_out"] = (sc * jax.random.normal(ks[7], (WIDTH, EMBED),
                                         jnp.float32)).astype(bf16)
    return p


# ------------------------------- JAX glue ------------------------------------
def _patchify_nchw(x):
    """[B, C, H, W] -> [B, N_PATCH, C*P*P] with (c, ph, pw) feature ordering."""
    B = x.shape[0]
    x = x.reshape(B, C, GRID_HW, P, GRID_HW, P)
    x = x.transpose(0, 2, 4, 1, 3, 5)
    return x.reshape(B, N_PATCH, PATCH_FEAT)


def _full_spec(shape):
    nd = len(shape)
    return pl.BlockSpec(shape, lambda b, _nd=nd: (0,) * _nd)


def _cost_estimate(b_total, weights):
    per_img = (2 * T_PAD * PATCH_FEAT * WIDTH
               + LAYERS * (2 * T_PAD * WIDTH * 3 * WIDTH       # qkv proj
                           + 2 * 2 * T_PAD * T_PAD * WIDTH     # scores + ctx
                           + 2 * T_PAD * WIDTH * WIDTH         # out proj
                           + 2 * 2 * T_PAD * WIDTH * MLP_DIM)  # fc + proj
               + 2 * WIDTH * EMBED)
    flops = b_total * per_img
    transc = b_total * LAYERS * (HEADS * T_PAD * T_PAD + T_PAD * MLP_DIM)
    w_bytes = sum(int(w.size) * w.dtype.itemsize for w in weights)
    bytes_acc = (b_total * T_PAD * PATCH_FEAT * 4
                 + w_bytes * max(1, b_total // B_TILE)
                 + b_total * EMBED * 4)
    return pl.CostEstimate(flops=int(flops), transcendentals=int(transc),
                           bytes_accessed=int(bytes_acc))


def vision_backbone_forward(observations, params):
    # mirror torch forward(): permute NHWC -> NCHW if channel axis is not dim 1.
    # TODO(synk): shape-based layout detect is ambiguous when H == 3; an
    # explicit layout flag would be safer (kept to match the torch module).
    if observations.shape[1] != C:
        observations = jnp.transpose(observations, (0, 3, 1, 2))
    observations = observations.astype(jnp.float32)

    patches = _patchify_nchw(observations)                      # [B, N_PATCH, PF]
    B = patches.shape[0]
    # token padding: row 0 is the CLS slot (zeros), trailing rows are padding
    patches = jnp.pad(patches, ((0, 0), (1, T_PAD - 1 - N_PATCH), (0, 0)))
    # batch padding to a multiple of B_TILE
    b_extra = (-B) % B_TILE
    if b_extra:
        patches = jnp.pad(patches, ((0, b_extra), (0, 0), (0, 0)))
    b_total = B + b_extra
    n_tiles = b_total // B_TILE
    # flatten (batch, token) so the kernel block is the flat 2-D MXU operand
    patches = patches.reshape(b_total * T_PAD, PATCH_FEAT)

    weight_order = ["w_patch", "add_table", "g_pre", "b_pre",
                    "g1", "b1", "w_qkv", "b_qkv", "w_o", "b_o",
                    "g2", "b2", "w_fc", "b_fc", "w_pr", "b_pr",
                    "g_post", "b_post", "w_out"]
    weights = [params[k] for k in weight_order]

    in_specs = [pl.BlockSpec((B_TILE * T_PAD, PATCH_FEAT), lambda b: (b, 0))]
    in_specs += [_full_spec(w.shape) for w in weights]

    out = pl.pallas_call(
        vit_kernel,
        out_shape=jax.ShapeDtypeStruct((b_total, EMBED), jnp.float32),
        grid_spec=pltpu.PrefetchScalarGridSpec(
            num_scalar_prefetch=0,
            grid=(n_tiles,),
            in_specs=in_specs,
            out_specs=pl.BlockSpec((B_TILE, EMBED), lambda b: (b, 0)),
        ),
        compiler_params=pltpu.CompilerParams(
            dimension_semantics=("parallel",),
            vmem_limit_bytes=32 * 1024 * 1024),
        cost_estimate=_cost_estimate(b_total, weights),
    )(patches, *weights)
    return out[:B]  # float32, matching .float() in the torch module


# --------------------------------- main --------------------------------------
if __name__ == "__main__":
    key = jax.random.PRNGKey(0)
    k_img, k_par = jax.random.split(key)
    # NCHW image batch in [0, 1] at the "preprocessed" resolution; B = 16 gives
    # two parallel grid steps (B_TILE = 8) so both v7x TensorCores are used.
    B = 16
    x = jax.random.uniform(k_img, (B, C, IMG, IMG), dtype=jnp.float32)
    params = init_params(k_par)

    out = vision_backbone_forward(x, params)
    out = jax.block_until_ready(out)
    assert out.shape == (B, EMBED) and out.dtype == jnp.float32
    assert bool(jnp.all(jnp.isfinite(out)))
    print("KERNEL_OK")
</pallas_src>

<mosaic_0001>
module attributes {stable_mosaic.version = 11 : i64} {
  func.func @vit_kernel(%arg0: i32, %arg1: memref<64x192xf32, #tpu.memory_space<vmem>>, %arg2: memref<192x32xbf16, #tpu.memory_space<vmem>>, %arg3: memref<64x32xf32, #tpu.memory_space<vmem>>, %arg4: memref<1x32xf32, #tpu.memory_space<vmem>>, %arg5: memref<1x32xf32, #tpu.memory_space<vmem>>, %arg6: memref<2x1x32xf32, #tpu.memory_space<vmem>>, %arg7: memref<2x1x32xf32, #tpu.memory_space<vmem>>, %arg8: memref<2x32x96xbf16, #tpu.memory_space<vmem>>, %arg9: memref<2x1x96xf32, #tpu.memory_space<vmem>>, %arg10: memref<2x32x32xbf16, #tpu.memory_space<vmem>>, %arg11: memref<2x1x32xf32, #tpu.memory_space<vmem>>, %arg12: memref<2x1x32xf32, #tpu.memory_space<vmem>>, %arg13: memref<2x1x32xf32, #tpu.memory_space<vmem>>, %arg14: memref<2x32x128xbf16, #tpu.memory_space<vmem>>, %arg15: memref<2x1x128xf32, #tpu.memory_space<vmem>>, %arg16: memref<2x128x32xbf16, #tpu.memory_space<vmem>>, %arg17: memref<2x1x32xf32, #tpu.memory_space<vmem>>, %arg18: memref<1x32xf32, #tpu.memory_space<vmem>>, %arg19: memref<1x32xf32, #tpu.memory_space<vmem>>, %arg20: memref<32x32xbf16, #tpu.memory_space<vmem>>, %arg21: memref<8x32xf32, #tpu.memory_space<vmem>>) attributes {dimension_semantics = [#tpu.dimension_semantics<parallel>], iteration_bounds = array<i64: 2>, scalar_prefetch = 0 : i64, scratch_operands = 0 : i64, tpu.core_type = #tpu.core_type<tc>, window_params = [{transform_indices = @transform_0, window_bounds = array<i64: 64, 192>}, {pipeline_mode = #tpu.pipeline_mode<synchronous>, transform_indices = @transform_1, window_bounds = array<i64: 192, 32>}, {pipeline_mode = #tpu.pipeline_mode<synchronous>, transform_indices = @transform_2, window_bounds = array<i64: 64, 32>}, {pipeline_mode = #tpu.pipeline_mode<synchronous>, transform_indices = @transform_3, window_bounds = array<i64: 1, 32>}, {pipeline_mode = #tpu.pipeline_mode<synchronous>, transform_indices = @transform_4, window_bounds = array<i64: 1, 32>}, {pipeline_mode = #tpu.pipeline_mode<synchronous>, transform_indices = @transform_5, window_bounds = array<i64: 2, 1, 32>}, {pipeline_mode = #tpu.pipeline_mode<synchronous>, transform_indices = @transform_6, window_bounds = array<i64: 2, 1, 32>}, {pipeline_mode = #tpu.pipeline_mode<synchronous>, transform_indices = @transform_7, window_bounds = array<i64: 2, 32, 96>}, {pipeline_mode = #tpu.pipeline_mode<synchronous>, transform_indices = @transform_8, window_bounds = array<i64: 2, 1, 96>}, {pipeline_mode = #tpu.pipeline_mode<synchronous>, transform_indices = @transform_9, window_bounds = array<i64: 2, 32, 32>}, {pipeline_mode = #tpu.pipeline_mode<synchronous>, transform_indices = @transform_10, window_bounds = array<i64: 2, 1, 32>}, {pipeline_mode = #tpu.pipeline_mode<synchronous>, transform_indices = @transform_11, window_bounds = array<i64: 2, 1, 32>}, {pipeline_mode = #tpu.pipeline_mode<synchronous>, transform_indices = @transform_12, window_bounds = array<i64: 2, 1, 32>}, {pipeline_mode = #tpu.pipeline_mode<synchronous>, transform_indices = @transform_13, window_bounds = array<i64: 2, 32, 128>}, {pipeline_mode = #tpu.pipeline_mode<synchronous>, transform_indices = @transform_14, window_bounds = array<i64: 2, 1, 128>}, {pipeline_mode = #tpu.pipeline_mode<synchronous>, transform_indices = @transform_15, window_bounds = array<i64: 2, 128, 32>}, {pipeline_mode = #tpu.pipeline_mode<synchronous>, transform_indices = @transform_16, window_bounds = array<i64: 2, 1, 32>}, {pipeline_mode = #tpu.pipeline_mode<synchronous>, transform_indices = @transform_17, window_bounds = array<i64: 1, 32>}, {pipeline_mode = #tpu.pipeline_mode<synchronous>, transform_indices = @transform_18, window_bounds = array<i64: 1, 32>}, {pipeline_mode = #tpu.pipeline_mode<synchronous>, transform_indices = @transform_19, window_bounds = array<i64: 32, 32>}, {transform_indices = @transform_20, window_bounds = array<i64: 8, 32>}]} {
    %c0 = arith.constant 0 : index
    %c0_0 = arith.constant 0 : index
    %0 = vector.load %arg1[%c0, %c0_0] : memref<64x192xf32, #tpu.memory_space<vmem>>, vector<64x192xf32>
    %1 = arith.truncf %0 : vector<64x192xf32> to vector<64x192xbf16>
    %c0_1 = arith.constant 0 : index
    %c0_2 = arith.constant 0 : index
    %2 = vector.load %arg2[%c0_1, %c0_2] : memref<192x32xbf16, #tpu.memory_space<vmem>>, vector<192x32xbf16>
    %cst = arith.constant dense<0.000000e+00> : vector<64x32xf32>
    %3 = tpu.matmul %1, %2, %cst {dimension_numbers = #tpu.dot_dimension_numbers<[1], [0], [0], [1], [0, 0, 1, 1], [], []>} : vector<64x192xbf16>, vector<192x32xbf16>, vector<64x32xf32> -> vector<64x32xf32>
    %c0_3 = arith.constant 0 : index
    %c0_4 = arith.constant 0 : index
    %4 = vector.load %arg3[%c0_3, %c0_4] : memref<64x32xf32, #tpu.memory_space<vmem>>, vector<64x32xf32>
    %5 = arith.addf %3, %4 : vector<64x32xf32>
    %c0_5 = arith.constant 0 : index
    %c0_6 = arith.constant 0 : index
    %6 = vector.load %arg4[%c0_5, %c0_6] : memref<1x32xf32, #tpu.memory_space<vmem>>, vector<1x32xf32>
    %c0_7 = arith.constant 0 : index
    %c0_8 = arith.constant 0 : index
    %7 = vector.load %arg5[%c0_7, %c0_8] : memref<1x32xf32, #tpu.memory_space<vmem>>, vector<1x32xf32>
    %cst_9 = arith.constant dense<0.000000e+00> : vector<64xf32>
    %8 = vector.multi_reduction <add>, %5, %cst_9 [1] : vector<64x32xf32> to vector<64xf32>
    %9 = vector.shape_cast %8 : vector<64xf32> to vector<64x1xf32>
    %cst_10 = arith.constant 3.200000e+01 : f32
    %10 = vector.broadcast %cst_10 : f32 to vector<64x1xf32>
    %11 = arith.divf %9, %10 : vector<64x1xf32>
    %12 = vector.broadcast %11 : vector<64x1xf32> to vector<64x32xf32>
    %13 = arith.subf %5, %12 : vector<64x32xf32>
    %14 = arith.mulf %13, %13 : vector<64x32xf32>
    %cst_11 = arith.constant dense<0.000000e+00> : vector<64xf32>
    %15 = vector.multi_reduction <add>, %14, %cst_11 [1] : vector<64x32xf32> to vector<64xf32>
    %16 = vector.shape_cast %15 : vector<64xf32> to vector<64x1xf32>
    %cst_12 = arith.constant 3.200000e+01 : f32
    %17 = vector.broadcast %cst_12 : f32 to vector<64x1xf32>
    %18 = arith.divf %16, %17 : vector<64x1xf32>
    %19 = vector.broadcast %11 : vector<64x1xf32> to vector<64x32xf32>
    %20 = arith.subf %5, %19 : vector<64x32xf32>
    %cst_13 = arith.constant 9.99999974E-6 : f32
    %21 = vector.broadcast %cst_13 : f32 to vector<64x1xf32>
    %22 = arith.addf %18, %21 : vector<64x1xf32>
    %23 = math.rsqrt %22 : vector<64x1xf32>
    %24 = vector.broadcast %23 : vector<64x1xf32> to vector<64x32xf32>
    %25 = arith.mulf %20, %24 : vector<64x32xf32>
    %26 = vector.broadcast %6 : vector<1x32xf32> to vector<64x32xf32>
    %27 = arith.mulf %25, %26 : vector<64x32xf32>
    %28 = vector.broadcast %7 : vector<1x32xf32> to vector<64x32xf32>
    %29 = arith.addf %27, %28 : vector<64x32xf32>
    %30 = tpu.iota {dimensions = array<i32: 2>} : vector<8x8x8xi32>
    %c5_i32 = arith.constant 5 : i32
    %31 = vector.broadcast %c5_i32 : i32 to vector<8x8x8xi32>
    %32 = arith.cmpi slt, %30, %31 : vector<8x8x8xi32>
    %cst_14 = arith.constant 0.000000e+00 : f32
    %cst_15 = arith.constant -1.000000e+30 : f32
    %33 = vector.broadcast %cst_14 : f32 to vector<8x8x8xf32>
    %34 = vector.broadcast %cst_15 : f32 to vector<8x8x8xf32>
    %35 = arith.select %32, %33, %34 : vector<8x8x8xi1>, vector<8x8x8xf32>
    %c0_16 = arith.constant 0 : index
    %c0_17 = arith.constant 0 : index
    %c0_18 = arith.constant 0 : index
    %36 = vector.load %arg6[%c0_16, %c0_17, %c0_18] : memref<2x1x32xf32, #tpu.memory_space<vmem>>, vector<1x1x32xf32>
    %37 = vector.shape_cast %36 : vector<1x1x32xf32> to vector<1x32xf32>
    %c0_19 = arith.constant 0 : index
    %c0_20 = arith.constant 0 : index
    %c0_21 = arith.constant 0 : index
    %38 = vector.load %arg7[%c0_19, %c0_20, %c0_21] : memref<2x1x32xf32, #tpu.memory_space<vmem>>, vector<1x1x32xf32>
    %39 = vector.shape_cast %38 : vector<1x1x32xf32> to vector<1x32xf32>
    %cst_22 = arith.constant dense<0.000000e+00> : vector<64xf32>
    %40 = vector.multi_reduction <add>, %29, %cst_22 [1] : vector<64x32xf32> to vector<64xf32>
    %41 = vector.shape_cast %40 : vector<64xf32> to vector<64x1xf32>
    %cst_23 = arith.constant 3.200000e+01 : f32
    %42 = vector.broadcast %cst_23 : f32 to vector<64x1xf32>
    %43 = arith.divf %41, %42 : vector<64x1xf32>
    %44 = vector.broadcast %43 : vector<64x1xf32> to vector<64x32xf32>
    %45 = arith.subf %29, %44 : vector<64x32xf32>
    %46 = arith.mulf %45, %45 : vector<64x32xf32>
    %cst_24 = arith.constant dense<0.000000e+00> : vector<64xf32>
    %47 = vector.multi_reduction <add>, %46, %cst_24 [1] : vector<64x32xf32> to vector<64xf32>
    %48 = vector.shape_cast %47 : vector<64xf32> to vector<64x1xf32>
    %cst_25 = arith.constant 3.200000e+01 : f32
    %49 = vector.broadcast %cst_25 : f32 to vector<64x1xf32>
    %50 = arith.divf %48, %49 : vector<64x1xf32>
    %51 = vector.broadcast %43 : vector<64x1xf32> to vector<64x32xf32>
    %52 = arith.subf %29, %51 : vector<64x32xf32>
    %cst_26 = arith.constant 9.99999974E-6 : f32
    %53 = vector.broadcast %cst_26 : f32 to vector<64x1xf32>
    %54 = arith.addf %50, %53 : vector<64x1xf32>
    %55 = math.rsqrt %54 : vector<64x1xf32>
    %56 = vector.broadcast %55 : vector<64x1xf32> to vector<64x32xf32>
    %57 = arith.mulf %52, %56 : vector<64x32xf32>
    %58 = vector.broadcast %37 : vector<1x32xf32> to vector<64x32xf32>
    %59 = arith.mulf %57, %58 : vector<64x32xf32>
    %60 = vector.broadcast %39 : vector<1x32xf32> to vector<64x32xf32>
    %61 = arith.addf %59, %60 : vector<64x32xf32>
    %62 = arith.truncf %61 : vector<64x32xf32> to vector<64x32xbf16>
    %c0_27 = arith.constant 0 : index
    %c0_28 = arith.constant 0 : index
    %c0_29 = arith.constant 0 : index
    %63 = vector.load %arg8[%c0_27, %c0_28, %c0_29] : memref<2x32x96xbf16, #tpu.memory_space<vmem>>, vector<1x32x96xbf16>
    %64 = vector.shape_cast %63 : vector<1x32x96xbf16> to vector<32x96xbf16>
    %cst_30 = arith.constant dense<0.000000e+00> : vector<64x96xf32>
    %65 = tpu.matmul %62, %64, %cst_30 {dimension_numbers = #tpu.dot_dimension_numbers<[1], [0], [0], [1], [0, 0, 1, 1], [], []>} : vector<64x32xbf16>, vector<32x96xbf16>, vector<64x96xf32> -> vector<64x96xf32>
    %c0_31 = arith.constant 0 : index
    %c0_32 = arith.constant 0 : index
    %c0_33 = arith.constant 0 : index
    %66 = vector.load %arg9[%c0_31, %c0_32, %c0_33] : memref<2x1x96xf32, #tpu.memory_space<vmem>>, vector<1x1x96xf32>
    %67 = vector.shape_cast %66 : vector<1x1x96xf32> to vector<1x96xf32>
    %68 = vector.broadcast %67 : vector<1x96xf32> to vector<64x96xf32>
    %69 = arith.addf %65, %68 : vector<64x96xf32>
    %c0_34 = arith.constant 0 : index
    %c0_35 = arith.constant 0 : index
    %c0_36 = arith.constant 0 : index
    %70 = vector.load %arg10[%c0_34, %c0_35, %c0_36] : memref<2x32x32xbf16, #tpu.memory_space<vmem>>, vector<1x32x32xbf16>
    %71 = vector.shape_cast %70 : vector<1x32x32xbf16> to vector<32x32xbf16>
    %cst_37 = arith.constant 0.000000e+00 : f32
    %72 = vector.broadcast %cst_37 : f32 to vector<64x32xf32>
    %73 = vector.extract_strided_slice %69 {offsets = [0, 0], sizes = [64, 8], strides = [1, 1]} : vector<64x96xf32> to vector<64x8xf32>
    %74 = vector.extract_strided_slice %69 {offsets = [0, 32], sizes = [64, 8], strides = [1, 1]} : vector<64x96xf32> to vector<64x8xf32>
    %75 = vector.extract_strided_slice %69 {offsets = [0, 64], sizes = [64, 8], strides = [1, 1]} : vector<64x96xf32> to vector<64x8xf32>
    %76 = vector.shape_cast %73 : vector<64x8xf32> to vector<8x8x8xf32>
    %77 = arith.truncf %76 : vector<8x8x8xf32> to vector<8x8x8xbf16>
    %78 = vector.shape_cast %74 : vector<64x8xf32> to vector<8x8x8xf32>
    %79 = arith.truncf %78 : vector<8x8x8xf32> to vector<8x8x8xbf16>
    %80 = vector.shape_cast %75 : vector<64x8xf32> to vector<8x8x8xf32>
    %81 = arith.truncf %80 : vector<8x8x8xf32> to vector<8x8x8xbf16>
    "tpu.trace_start"() <{level = 10 : i32, message = "btd,bsd->bts"}> : () -> ()
    %cst_38 = arith.constant dense<0.000000e+00> : vector<8x8x8xf32>
    %82 = tpu.matmul %77, %79, %cst_38 {dimension_numbers = #tpu.dot_dimension_numbers<[2], [2], [1], [1], [0, 0, 0, 1, 1, 1], [0], [0]>} : vector<8x8x8xbf16>, vector<8x8x8xbf16>, vector<8x8x8xf32> -> vector<8x8x8xf32>
    "tpu.trace_stop"() : () -> ()
    %cst_39 = arith.constant 0.353553385 : f32
    %83 = vector.broadcast %cst_39 : f32 to vector<8x8x8xf32>
    %84 = arith.mulf %82, %83 : vector<8x8x8xf32>
    %85 = arith.addf %84, %35 : vector<8x8x8xf32>
    %cst_40 = arith.constant dense<0xFF800000> : vector<8x8xf32>
    %86 = vector.multi_reduction <maximumf>, %85, %cst_40 [2] : vector<8x8x8xf32> to vector<8x8xf32>
    %87 = vector.shape_cast %86 : vector<8x8xf32> to vector<8x8x1xf32>
    %88 = vector.broadcast %87 : vector<8x8x1xf32> to vector<8x8x8xf32>
    %89 = arith.subf %85, %88 : vector<8x8x8xf32>
    %90 = math.exp %89 : vector<8x8x8xf32>
    %cst_41 = arith.constant dense<0.000000e+00> : vector<8x8xf32>
    %91 = vector.multi_reduction <add>, %90, %cst_41 [2] : vector<8x8x8xf32> to vector<8x8xf32>
    %92 = vector.shape_cast %91 : vector<8x8xf32> to vector<8x8x1xf32>
    %93 = tpu.reciprocal %92 {approx = true} : vector<8x8x1xf32> -> vector<8x8x1xf32>
    %94 = vector.broadcast %93 : vector<8x8x1xf32> to vector<8x8x8xf32>
    %95 = arith.mulf %90, %94 : vector<8x8x8xf32>
    %96 = arith.truncf %95 : vector<8x8x8xf32> to vector<8x8x8xbf16>
    "tpu.trace_start"() <{level = 10 : i32, message = "bts,bsd->btd"}> : () -> ()
    %cst_42 = arith.constant dense<0.000000e+00> : vector<8x8x8xf32>
    %97 = tpu.matmul %96, %81, %cst_42 {dimension_numbers = #tpu.dot_dimension_numbers<[2], [1], [1], [2], [0, 0, 0, 1, 1, 2], [0], [0]>} : vector<8x8x8xbf16>, vector<8x8x8xbf16>, vector<8x8x8xf32> -> vector<8x8x8xf32>
    "tpu.trace_stop"() : () -> ()
    %98 = vector.extract_strided_slice %71 {offsets = [0, 0], sizes = [8, 32], strides = [1, 1]} : vector<32x32xbf16> to vector<8x32xbf16>
    %99 = vector.shape_cast %97 : vector<8x8x8xf32> to vector<64x8xf32>
    %100 = arith.truncf %99 : vector<64x8xf32> to vector<64x8xbf16>
    %cst_43 = arith.constant dense<0.000000e+00> : vector<64x32xf32>
    %101 = tpu.matmul %100, %98, %cst_43 {dimension_numbers = #tpu.dot_dimension_numbers<[1], [0], [0], [1], [0, 0, 1, 1], [], []>} : vector<64x8xbf16>, vector<8x32xbf16>, vector<64x32xf32> -> vector<64x32xf32>
    %102 = arith.addf %72, %101 : vector<64x32xf32>
    %103 = vector.extract_strided_slice %69 {offsets = [0, 8], sizes = [64, 8], strides = [1, 1]} : vector<64x96xf32> to vector<64x8xf32>
    %104 = vector.extract_strided_slice %69 {offsets = [0, 40], sizes = [64, 8], strides = [1, 1]} : vector<64x96xf32> to vector<64x8xf32>
    %105 = vector.extract_strided_slice %69 {offsets = [0, 72], sizes = [64, 8], strides = [1, 1]} : vector<64x96xf32> to vector<64x8xf32>
    %106 = vector.shape_cast %103 : vector<64x8xf32> to vector<8x8x8xf32>
    %107 = arith.truncf %106 : vector<8x8x8xf32> to vector<8x8x8xbf16>
    %108 = vector.shape_cast %104 : vector<64x8xf32> to vector<8x8x8xf32>
    %109 = arith.truncf %108 : vector<8x8x8xf32> to vector<8x8x8xbf16>
    %110 = vector.shape_cast %105 : vector<64x8xf32> to vector<8x8x8xf32>
    %111 = arith.truncf %110 : vector<8x8x8xf32> to vector<8x8x8xbf16>
    "tpu.trace_start"() <{level = 10 : i32, message = "btd,bsd->bts"}> : () -> ()
    %cst_44 = arith.constant dense<0.000000e+00> : vector<8x8x8xf32>
    %112 = tpu.matmul %107, %109, %cst_44 {dimension_numbers = #tpu.dot_dimension_numbers<[2], [2], [1], [1], [0, 0, 0, 1, 1, 1], [0], [0]>} : vector<8x8x8xbf16>, vector<8x8x8xbf16>, vector<8x8x8xf32> -> vector<8x8x8xf32>
    "tpu.trace_stop"() : () -> ()
    %cst_45 = arith.constant 0.353553385 : f32
    %113 = vector.broadcast %cst_45 : f32 to vector<8x8x8xf32>
    %114 = arith.mulf %112, %113 : vector<8x8x8xf32>
    %115 = arith.addf %114, %35 : vector<8x8x8xf32>
    %cst_46 = arith.constant dense<0xFF800000> : vector<8x8xf32>
    %116 = vector.multi_reduction <maximumf>, %115, %cst_46 [2] : vector<8x8x8xf32> to vector<8x8xf32>
    %117 = vector.shape_cast %116 : vector<8x8xf32> to vector<8x8x1xf32>
    %118 = vector.broadcast %117 : vector<8x8x1xf32> to vector<8x8x8xf32>
    %119 = arith.subf %115, %118 : vector<8x8x8xf32>
    %120 = math.exp %119 : vector<8x8x8xf32>
    %cst_47 = arith.constant dense<0.000000e+00> : vector<8x8xf32>
    %121 = vector.multi_reduction <add>, %120, %cst_47 [2] : vector<8x8x8xf32> to vector<8x8xf32>
    %122 = vector.shape_cast %121 : vector<8x8xf32> to vector<8x8x1xf32>
    %123 = tpu.reciprocal %122 {approx = true} : vector<8x8x1xf32> -> vector<8x8x1xf32>
    %124 = vector.broadcast %123 : vector<8x8x1xf32> to vector<8x8x8xf32>
    %125 = arith.mulf %120, %124 : vector<8x8x8xf32>
    %126 = arith.truncf %125 : vector<8x8x8xf32> to vector<8x8x8xbf16>
    "tpu.trace_start"() <{level = 10 : i32, message = "bts,bsd->btd"}> : () -> ()
    %cst_48 = arith.constant dense<0.000000e+00> : vector<8x8x8xf32>
    %127 = tpu.matmul %126, %111, %cst_48 {dimension_numbers = #tpu.dot_dimension_numbers<[2], [1], [1], [2], [0, 0, 0, 1, 1, 2], [0], [0]>} : vector<8x8x8xbf16>, vector<8x8x8xbf16>, vector<8x8x8xf32> -> vector<8x8x8xf32>
    "tpu.trace_stop"() : () -> ()
    %128 = vector.extract_strided_slice %71 {offsets = [8, 0], sizes = [8, 32], strides = [1, 1]} : vector<32x32xbf16> to vector<8x32xbf16>
    %129 = vector.shape_cast %127 : vector<8x8x8xf32> to vector<64x8xf32>
    %130 = arith.truncf %129 : vector<64x8xf32> to vector<64x8xbf16>
    %cst_49 = arith.constant dense<0.000000e+00> : vector<64x32xf32>
    %131 = tpu.matmul %130, %128, %cst_49 {dimension_numbers = #tpu.dot_dimension_numbers<[1], [0], [0], [1], [0, 0, 1, 1], [], []>} : vector<64x8xbf16>, vector<8x32xbf16>, vector<64x32xf32> -> vector<64x32xf32>
    %132 = arith.addf %102, %131 : vector<64x32xf32>
    %133 = vector.extract_strided_slice %69 {offsets = [0, 16], sizes = [64, 8], strides = [1, 1]} : vector<64x96xf32> to vector<64x8xf32>
    %134 = vector.extract_strided_slice %69 {offsets = [0, 48], sizes = [64, 8], strides = [1, 1]} : vector<64x96xf32> to vector<64x8xf32>
    %135 = vector.extract_strided_slice %69 {offsets = [0, 80], sizes = [64, 8], strides = [1, 1]} : vector<64x96xf32> to vector<64x8xf32>
    %136 = vector.shape_cast %133 : vector<64x8xf32> to vector<8x8x8xf32>
    %137 = arith.truncf %136 : vector<8x8x8xf32> to vector<8x8x8xbf16>
    %138 = vector.shape_cast %134 : vector<64x8xf32> to vector<8x8x8xf32>
    %139 = arith.truncf %138 : vector<8x8x8xf32> to vector<8x8x8xbf16>
    %140 = vector.shape_cast %135 : vector<64x8xf32> to vector<8x8x8xf32>
    %141 = arith.truncf %140 : vector<8x8x8xf32> to vector<8x8x8xbf16>
    "tpu.trace_start"() <{level = 10 : i32, message = "btd,bsd->bts"}> : () -> ()
    %cst_50 = arith.constant dense<0.000000e+00> : vector<8x8x8xf32>
    %142 = tpu.matmul %137, %139, %cst_50 {dimension_numbers = #tpu.dot_dimension_numbers<[2], [2], [1], [1], [0, 0, 0, 1, 1, 1], [0], [0]>} : vector<8x8x8xbf16>, vector<8x8x8xbf16>, vector<8x8x8xf32> -> vector<8x8x8xf32>
    "tpu.trace_stop"() : () -> ()
    %cst_51 = arith.constant 0.353553385 : f32
    %143 = vector.broadcast %cst_51 : f32 to vector<8x8x8xf32>
    %144 = arith.mulf %142, %143 : vector<8x8x8xf32>
    %145 = arith.addf %144, %35 : vector<8x8x8xf32>
    %cst_52 = arith.constant dense<0xFF800000> : vector<8x8xf32>
    %146 = vector.multi_reduction <maximumf>, %145, %cst_52 [2] : vector<8x8x8xf32> to vector<8x8xf32>
    %147 = vector.shape_cast %146 : vector<8x8xf32> to vector<8x8x1xf32>
    %148 = vector.broadcast %147 : vector<8x8x1xf32> to vector<8x8x8xf32>
    %149 = arith.subf %145, %148 : vector<8x8x8xf32>
    %150 = math.exp %149 : vector<8x8x8xf32>
    %cst_53 = arith.constant dense<0.000000e+00> : vector<8x8xf32>
    %151 = vector.multi_reduction <add>, %150, %cst_53 [2] : vector<8x8x8xf32> to vector<8x8xf32>
    %152 = vector.shape_cast %151 : vector<8x8xf32> to vector<8x8x1xf32>
    %153 = tpu.reciprocal %152 {approx = true} : vector<8x8x1xf32> -> vector<8x8x1xf32>
    %154 = vector.broadcast %153 : vector<8x8x1xf32> to vector<8x8x8xf32>
    %155 = arith.mulf %150, %154 : vector<8x8x8xf32>
    %156 = arith.truncf %155 : vector<8x8x8xf32> to vector<8x8x8xbf16>
    "tpu.trace_start"() <{level = 10 : i32, message = "bts,bsd->btd"}> : () -> ()
    %cst_54 = arith.constant dense<0.000000e+00> : vector<8x8x8xf32>
    %157 = tpu.matmul %156, %141, %cst_54 {dimension_numbers = #tpu.dot_dimension_numbers<[2], [1], [1], [2], [0, 0, 0, 1, 1, 2], [0], [0]>} : vector<8x8x8xbf16>, vector<8x8x8xbf16>, vector<8x8x8xf32> -> vector<8x8x8xf32>
    "tpu.trace_stop"() : () -> ()
    %158 = vector.extract_strided_slice %71 {offsets = [16, 0], sizes = [8, 32], strides = [1, 1]} : vector<32x32xbf16> to vector<8x32xbf16>
    %159 = vector.shape_cast %157 : vector<8x8x8xf32> to vector<64x8xf32>
    %160 = arith.truncf %159 : vector<64x8xf32> to vector<64x8xbf16>
    %cst_55 = arith.constant dense<0.000000e+00> : vector<64x32xf32>
    %161 = tpu.matmul %160, %158, %cst_55 {dimension_numbers = #tpu.dot_dimension_numbers<[1], [0], [0], [1], [0, 0, 1, 1], [], []>} : vector<64x8xbf16>, vector<8x32xbf16>, vector<64x32xf32> -> vector<64x32xf32>
    %162 = arith.addf %132, %161 : vector<64x32xf32>
    %163 = vector.extract_strided_slice %69 {offsets = [0, 24], sizes = [64, 8], strides = [1, 1]} : vector<64x96xf32> to vector<64x8xf32>
    %164 = vector.extract_strided_slice %69 {offsets = [0, 56], sizes = [64, 8], strides = [1, 1]} : vector<64x96xf32> to vector<64x8xf32>
    %165 = vector.extract_strided_slice %69 {offsets = [0, 88], sizes = [64, 8], strides = [1, 1]} : vector<64x96xf32> to vector<64x8xf32>
    %166 = vector.shape_cast %163 : vector<64x8xf32> to vector<8x8x8xf32>
    %167 = arith.truncf %166 : vector<8x8x8xf32> to vector<8x8x8xbf16>
    %168 = vector.shape_cast %164 : vector<64x8xf32> to vector<8x8x8xf32>
    %169 = arith.truncf %168 : vector<8x8x8xf32> to vector<8x8x8xbf16>
    %170 = vector.shape_cast %165 : vector<64x8xf32> to vector<8x8x8xf32>
    %171 = arith.truncf %170 : vector<8x8x8xf32> to vector<8x8x8xbf16>
    "tpu.trace_start"() <{level = 10 : i32, message = "btd,bsd->bts"}> : () -> ()
    %cst_56 = arith.constant dense<0.000000e+00> : vector<8x8x8xf32>
    %172 = tpu.matmul %167, %169, %cst_56 {dimension_numbers = #tpu.dot_dimension_numbers<[2], [2], [1], [1], [0, 0, 0, 1, 1, 1], [0], [0]>} : vector<8x8x8xbf16>, vector<8x8x8xbf16>, vector<8x8x8xf32> -> vector<8x8x8xf32>
    "tpu.trace_stop"() : () -> ()
    %cst_57 = arith.constant 0.353553385 : f32
    %173 = vector.broadcast %cst_57 : f32 to vector<8x8x8xf32>
    %174 = arith.mulf %172, %173 : vector<8x8x8xf32>
    %175 = arith.addf %174, %35 : vector<8x8x8xf32>
    %cst_58 = arith.constant dense<0xFF800000> : vector<8x8xf32>
    %176 = vector.multi_reduction <maximumf>, %175, %cst_58 [2] : vector<8x8x8xf32> to vector<8x8xf32>
    %177 = vector.shape_cast %176 : vector<8x8xf32> to vector<8x8x1xf32>
    %178 = vector.broadcast %177 : vector<8x8x1xf32> to vector<8x8x8xf32>
    %179 = arith.subf %175, %178 : vector<8x8x8xf32>
    %180 = math.exp %179 : vector<8x8x8xf32>
    %cst_59 = arith.constant dense<0.000000e+00> : vector<8x8xf32>
    %181 = vector.multi_reduction <add>, %180, %cst_59 [2] : vector<8x8x8xf32> to vector<8x8xf32>
    %182 = vector.shape_cast %181 : vector<8x8xf32> to vector<8x8x1xf32>
    %183 = tpu.reciprocal %182 {approx = true} : vector<8x8x1xf32> -> vector<8x8x1xf32>
    %184 = vector.broadcast %183 : vector<8x8x1xf32> to vector<8x8x8xf32>
    %185 = arith.mulf %180, %184 : vector<8x8x8xf32>
    %186 = arith.truncf %185 : vector<8x8x8xf32> to vector<8x8x8xbf16>
    "tpu.trace_start"() <{level = 10 : i32, message = "bts,bsd->btd"}> : () -> ()
    %cst_60 = arith.constant dense<0.000000e+00> : vector<8x8x8xf32>
    %187 = tpu.matmul %186, %171, %cst_60 {dimension_numbers = #tpu.dot_dimension_numbers<[2], [1], [1], [2], [0, 0, 0, 1, 1, 2], [0], [0]>} : vector<8x8x8xbf16>, vector<8x8x8xbf16>, vector<8x8x8xf32> -> vector<8x8x8xf32>
    "tpu.trace_stop"() : () -> ()
    %188 = vector.extract_strided_slice %71 {offsets = [24, 0], sizes = [8, 32], strides = [1, 1]} : vector<32x32xbf16> to vector<8x32xbf16>
    %189 = vector.shape_cast %187 : vector<8x8x8xf32> to vector<64x8xf32>
    %190 = arith.truncf %189 : vector<64x8xf32> to vector<64x8xbf16>
    %cst_61 = arith.constant dense<0.000000e+00> : vector<64x32xf32>
    %191 = tpu.matmul %190, %188, %cst_61 {dimension_numbers = #tpu.dot_dimension_numbers<[1], [0], [0], [1], [0, 0, 1, 1], [], []>} : vector<64x8xbf16>, vector<8x32xbf16>, vector<64x32xf32> -> vector<64x32xf32>
    %192 = arith.addf %162, %191 : vector<64x32xf32>
    %193 = arith.addf %29, %192 : vector<64x32xf32>
    %c0_62 = arith.constant 0 : index
    %c0_63 = arith.constant 0 : index
    %c0_64 = arith.constant 0 : index
    %194 = vector.load %arg11[%c0_62, %c0_63, %c0_64] : memref<2x1x32xf32, #tpu.memory_space<vmem>>, vector<1x1x32xf32>
    %195 = vector.shape_cast %194 : vector<1x1x32xf32> to vector<1x32xf32>
    %196 = vector.broadcast %195 : vector<1x32xf32> to vector<64x32xf32>
    %197 = arith.addf %193, %196 : vector<64x32xf32>
    %c0_65 = arith.constant 0 : index
    %c0_66 = arith.constant 0 : index
    %c0_67 = arith.constant 0 : index
    %198 = vector.load %arg12[%c0_65, %c0_66, %c0_67] : memref<2x1x32xf32, #tpu.memory_space<vmem>>, vector<1x1x32xf32>
    %199 = vector.shape_cast %198 : vector<1x1x32xf32> to vector<1x32xf32>
    %c0_68 = arith.constant 0 : index
    %c0_69 = arith.constant 0 : index
    %c0_70 = arith.constant 0 : index
    %200 = vector.load %arg13[%c0_68, %c0_69, %c0_70] : memref<2x1x32xf32, #tpu.memory_space<vmem>>, vector<1x1x32xf32>
    %201 = vector.shape_cast %200 : vector<1x1x32xf32> to vector<1x32xf32>
    %cst_71 = arith.constant dense<0.000000e+00> : vector<64xf32>
    %202 = vector.multi_reduction <add>, %197, %cst_71 [1] : vector<64x32xf32> to vector<64xf32>
    %203 = vector.shape_cast %202 : vector<64xf32> to vector<64x1xf32>
    %cst_72 = arith.constant 3.200000e+01 : f32
    %204 = vector.broadcast %cst_72 : f32 to vector<64x1xf32>
    %205 = arith.divf %203, %204 : vector<64x1xf32>
    %206 = vector.broadcast %205 : vector<64x1xf32> to vector<64x32xf32>
    %207 = arith.subf %197, %206 : vector<64x32xf32>
    %208 = arith.mulf %207, %207 : vector<64x32xf32>
    %cst_73 = arith.constant dense<0.000000e+00> : vector<64xf32>
    %209 = vector.multi_reduction <add>, %208, %cst_73 [1] : vector<64x32xf32> to vector<64xf32>
    %210 = vector.shape_cast %209 : vector<64xf32> to vector<64x1xf32>
    %cst_74 = arith.constant 3.200000e+01 : f32
    %211 = vector.broadcast %cst_74 : f32 to vector<64x1xf32>
    %212 = arith.divf %210, %211 : vector<64x1xf32>
    %213 = vector.broadcast %205 : vector<64x1xf32> to vector<64x32xf32>
    %214 = arith.subf %197, %213 : vector<64x32xf32>
    %cst_75 = arith.constant 9.99999974E-6 : f32
    %215 = vector.broadcast %cst_75 : f32 to vector<64x1xf32>
    %216 = arith.addf %212, %215 : vector<64x1xf32>
    %217 = math.rsqrt %216 : vector<64x1xf32>
    %218 = vector.broadcast %217 : vector<64x1xf32> to vector<64x32xf32>
    %219 = arith.mulf %214, %218 : vector<64x32xf32>
    %220 = vector.broadcast %199 : vector<1x32xf32> to vector<64x32xf32>
    %221 = arith.mulf %219, %220 : vector<64x32xf32>
    %222 = vector.broadcast %201 : vector<1x32xf32> to vector<64x32xf32>
    %223 = arith.addf %221, %222 : vector<64x32xf32>
    %224 = arith.truncf %223 : vector<64x32xf32> to vector<64x32xbf16>
    %c0_76 = arith.constant 0 : index
    %c0_77 = arith.constant 0 : index
    %c0_78 = arith.constant 0 : index
    %225 = vector.load %arg14[%c0_76, %c0_77, %c0_78] : memref<2x32x128xbf16, #tpu.memory_space<vmem>>, vector<1x32x128xbf16>
    %226 = vector.shape_cast %225 : vector<1x32x128xbf16> to vector<32x128xbf16>
    %cst_79 = arith.constant dense<0.000000e+00> : vector<64x128xf32>
    %227 = tpu.matmul %224, %226, %cst_79 {dimension_numbers = #tpu.dot_dimension_numbers<[1], [0], [0], [1], [0, 0, 1, 1], [], []>} : vector<64x32xbf16>, vector<32x128xbf16>, vector<64x128xf32> -> vector<64x128xf32>
    %c0_80 = arith.constant 0 : index
    %c0_81 = arith.constant 0 : index
    %c0_82 = arith.constant 0 : index
    %228 = vector.load %arg15[%c0_80, %c0_81, %c0_82] : memref<2x1x128xf32, #tpu.memory_space<vmem>>, vector<1x1x128xf32>
    %229 = vector.shape_cast %228 : vector<1x1x128xf32> to vector<1x128xf32>
    %230 = vector.broadcast %229 : vector<1x128xf32> to vector<64x128xf32>
    %231 = arith.addf %227, %230 : vector<64x128xf32>
    %cst_83 = arith.constant -1.702000e+00 : f32
    %232 = vector.broadcast %cst_83 : f32 to vector<64x128xf32>
    %233 = arith.mulf %232, %231 : vector<64x128xf32>
    %234 = math.exp %233 : vector<64x128xf32>
    %cst_84 = arith.constant 1.000000e+00 : f32
    %235 = vector.broadcast %cst_84 : f32 to vector<64x128xf32>
    %236 = arith.addf %235, %234 : vector<64x128xf32>
    %237 = tpu.reciprocal %236 {approx = true} : vector<64x128xf32> -> vector<64x128xf32>
    %238 = arith.mulf %231, %237 : vector<64x128xf32>
    %239 = arith.truncf %238 : vector<64x128xf32> to vector<64x128xbf16>
    %c0_85 = arith.constant 0 : index
    %c0_86 = arith.constant 0 : index
    %c0_87 = arith.constant 0 : index
    %240 = vector.load %arg16[%c0_85, %c0_86, %c0_87] : memref<2x128x32xbf16, #tpu.memory_space<vmem>>, vector<1x128x32xbf16>
    %241 = vector.shape_cast %240 : vector<1x128x32xbf16> to vector<128x32xbf16>
    %cst_88 = arith.constant dense<0.000000e+00> : vector<64x32xf32>
    %242 = tpu.matmul %239, %241, %cst_88 {dimension_numbers = #tpu.dot_dimension_numbers<[1], [0], [0], [1], [0, 0, 1, 1], [], []>} : vector<64x128xbf16>, vector<128x32xbf16>, vector<64x32xf32> -> vector<64x32xf32>
    %243 = arith.addf %197, %242 : vector<64x32xf32>
    %c0_89 = arith.constant 0 : index
    %c0_90 = arith.constant 0 : index
    %c0_91 = arith.constant 0 : index
    %244 = vector.load %arg17[%c0_89, %c0_90, %c0_91] : memref<2x1x32xf32, #tpu.memory_space<vmem>>, vector<1x1x32xf32>
    %245 = vector.shape_cast %244 : vector<1x1x32xf32> to vector<1x32xf32>
    %246 = vector.broadcast %245 : vector<1x32xf32> to vector<64x32xf32>
    %247 = arith.addf %243, %246 : vector<64x32xf32>
    %c1 = arith.constant 1 : index
    %c0_92 = arith.constant 0 : index
    %c0_93 = arith.constant 0 : index
    %248 = vector.load %arg6[%c1, %c0_92, %c0_93] : memref<2x1x32xf32, #tpu.memory_space<vmem>>, vector<1x1x32xf32>
    %249 = vector.shape_cast %248 : vector<1x1x32xf32> to vector<1x32xf32>
    %c1_94 = arith.constant 1 : index
    %c0_95 = arith.constant 0 : index
    %c0_96 = arith.constant 0 : index
    %250 = vector.load %arg7[%c1_94, %c0_95, %c0_96] : memref<2x1x32xf32, #tpu.memory_space<vmem>>, vector<1x1x32xf32>
    %251 = vector.shape_cast %250 : vector<1x1x32xf32> to vector<1x32xf32>
    %cst_97 = arith.constant dense<0.000000e+00> : vector<64xf32>
    %252 = vector.multi_reduction <add>, %247, %cst_97 [1] : vector<64x32xf32> to vector<64xf32>
    %253 = vector.shape_cast %252 : vector<64xf32> to vector<64x1xf32>
    %cst_98 = arith.constant 3.200000e+01 : f32
    %254 = vector.broadcast %cst_98 : f32 to vector<64x1xf32>
    %255 = arith.divf %253, %254 : vector<64x1xf32>
    %256 = vector.broadcast %255 : vector<64x1xf32> to vector<64x32xf32>
    %257 = arith.subf %247, %256 : vector<64x32xf32>
    %258 = arith.mulf %257, %257 : vector<64x32xf32>
    %cst_99 = arith.constant dense<0.000000e+00> : vector<64xf32>
    %259 = vector.multi_reduction <add>, %258, %cst_99 [1] : vector<64x32xf32> to vector<64xf32>
    %260 = vector.shape_cast %259 : vector<64xf32> to vector<64x1xf32>
    %cst_100 = arith.constant 3.200000e+01 : f32
    %261 = vector.broadcast %cst_100 : f32 to vector<64x1xf32>
    %262 = arith.divf %260, %261 : vector<64x1xf32>
    %263 = vector.broadcast %255 : vector<64x1xf32> to vector<64x32xf32>
    %264 = arith.subf %247, %263 : vector<64x32xf32>
    %cst_101 = arith.constant 9.99999974E-6 : f32
    %265 = vector.broadcast %cst_101 : f32 to vector<64x1xf32>
    %266 = arith.addf %262, %265 : vector<64x1xf32>
    %267 = math.rsqrt %266 : vector<64x1xf32>
    %268 = vector.broadcast %267 : vector<64x1xf32> to vector<64x32xf32>
    %269 = arith.mulf %264, %268 : vector<64x32xf32>
    %270 = vector.broadcast %249 : vector<1x32xf32> to vector<64x32xf32>
    %271 = arith.mulf %269, %270 : vector<64x32xf32>
    %272 = vector.broadcast %251 : vector<1x32xf32> to vector<64x32xf32>
    %273 = arith.addf %271, %272 : vector<64x32xf32>
    %274 = arith.truncf %273 : vector<64x32xf32> to vector<64x32xbf16>
    %c1_102 = arith.constant 1 : index
    %c0_103 = arith.constant 0 : index
    %c0_104 = arith.constant 0 : index
    %275 = vector.load %arg8[%c1_102, %c0_103, %c0_104] : memref<2x32x96xbf16, #tpu.memory_space<vmem>>, vector<1x32x96xbf16>
    %276 = vector.shape_cast %275 : vector<1x32x96xbf16> to vector<32x96xbf16>
    %cst_105 = arith.constant dense<0.000000e+00> : vector<64x96xf32>
    %277 = tpu.matmul %274, %276, %cst_105 {dimension_numbers = #tpu.dot_dimension_numbers<[1], [0], [0], [1], [0, 0, 1, 1], [], []>} : vector<64x32xbf16>, vector<32x96xbf16>, vector<64x96xf32> -> vector<64x96xf32>
    %c1_106 = arith.constant 1 : index
    %c0_107 = arith.constant 0 : index
    %c0_108 = arith.constant 0 : index
    %278 = vector.load %arg9[%c1_106, %c0_107, %c0_108] : memref<2x1x96xf32, #tpu.memory_space<vmem>>, vector<1x1x96xf32>
    %279 = vector.shape_cast %278 : vector<1x1x96xf32> to vector<1x96xf32>
    %280 = vector.broadcast %279 : vector<1x96xf32> to vector<64x96xf32>
    %281 = arith.addf %277, %280 : vector<64x96xf32>
    %c1_109 = arith.constant 1 : index
    %c0_110 = arith.constant 0 : index
    %c0_111 = arith.constant 0 : index
    %282 = vector.load %arg10[%c1_109, %c0_110, %c0_111] : memref<2x32x32xbf16, #tpu.memory_space<vmem>>, vector<1x32x32xbf16>
    %283 = vector.shape_cast %282 : vector<1x32x32xbf16> to vector<32x32xbf16>
    %cst_112 = arith.constant 0.000000e+00 : f32
    %284 = vector.broadcast %cst_112 : f32 to vector<64x32xf32>
    %285 = vector.extract_strided_slice %281 {offsets = [0, 0], sizes = [64, 8], strides = [1, 1]} : vector<64x96xf32> to vector<64x8xf32>
    %286 = vector.extract_strided_slice %281 {offsets = [0, 32], sizes = [64, 8], strides = [1, 1]} : vector<64x96xf32> to vector<64x8xf32>
    %287 = vector.extract_strided_slice %281 {offsets = [0, 64], sizes = [64, 8], strides = [1, 1]} : vector<64x96xf32> to vector<64x8xf32>
    %288 = vector.shape_cast %285 : vector<64x8xf32> to vector<8x8x8xf32>
    %289 = arith.truncf %288 : vector<8x8x8xf32> to vector<8x8x8xbf16>
    %290 = vector.shape_cast %286 : vector<64x8xf32> to vector<8x8x8xf32>
    %291 = arith.truncf %290 : vector<8x8x8xf32> to vector<8x8x8xbf16>
    %292 = vector.shape_cast %287 : vector<64x8xf32> to vector<8x8x8xf32>
    %293 = arith.truncf %292 : vector<8x8x8xf32> to vector<8x8x8xbf16>
    "tpu.trace_start"() <{level = 10 : i32, message = "btd,bsd->bts"}> : () -> ()
    %cst_113 = arith.constant dense<0.000000e+00> : vector<8x8x8xf32>
    %294 = tpu.matmul %289, %291, %cst_113 {dimension_numbers = #tpu.dot_dimension_numbers<[2], [2], [1], [1], [0, 0, 0, 1, 1, 1], [0], [0]>} : vector<8x8x8xbf16>, vector<8x8x8xbf16>, vector<8x8x8xf32> -> vector<8x8x8xf32>
    "tpu.trace_stop"() : () -> ()
    %cst_114 = arith.constant 0.353553385 : f32
    %295 = vector.broadcast %cst_114 : f32 to vector<8x8x8xf32>
    %296 = arith.mulf %294, %295 : vector<8x8x8xf32>
    %297 = arith.addf %296, %35 : vector<8x8x8xf32>
    %cst_115 = arith.constant dense<0xFF800000> : vector<8x8xf32>
    %298 = vector.multi_reduction <maximumf>, %297, %cst_115 [2] : vector<8x8x8xf32> to vector<8x8xf32>
    %299 = vector.shape_cast %298 : vector<8x8xf32> to vector<8x8x1xf32>
    %300 = vector.broadcast %299 : vector<8x8x1xf32> to vector<8x8x8xf32>
    %301 = arith.subf %297, %300 : vector<8x8x8xf32>
    %302 = math.exp %301 : vector<8x8x8xf32>
    %cst_116 = arith.constant dense<0.000000e+00> : vector<8x8xf32>
    %303 = vector.multi_reduction <add>, %302, %cst_116 [2] : vector<8x8x8xf32> to vector<8x8xf32>
    %304 = vector.shape_cast %303 : vector<8x8xf32> to vector<8x8x1xf32>
    %305 = tpu.reciprocal %304 {approx = true} : vector<8x8x1xf32> -> vector<8x8x1xf32>
    %306 = vector.broadcast %305 : vector<8x8x1xf32> to vector<8x8x8xf32>
    %307 = arith.mulf %302, %306 : vector<8x8x8xf32>
    %308 = arith.truncf %307 : vector<8x8x8xf32> to vector<8x8x8xbf16>
    "tpu.trace_start"() <{level = 10 : i32, message = "bts,bsd->btd"}> : () -> ()
    %cst_117 = arith.constant dense<0.000000e+00> : vector<8x8x8xf32>
    %309 = tpu.matmul %308, %293, %cst_117 {dimension_numbers = #tpu.dot_dimension_numbers<[2], [1], [1], [2], [0, 0, 0, 1, 1, 2], [0], [0]>} : vector<8x8x8xbf16>, vector<8x8x8xbf16>, vector<8x8x8xf32> -> vector<8x8x8xf32>
    "tpu.trace_stop"() : () -> ()
    %310 = vector.extract_strided_slice %283 {offsets = [0, 0], sizes = [8, 32], strides = [1, 1]} : vector<32x32xbf16> to vector<8x32xbf16>
    %311 = vector.shape_cast %309 : vector<8x8x8xf32> to vector<64x8xf32>
    %312 = arith.truncf %311 : vector<64x8xf32> to vector<64x8xbf16>
    %cst_118 = arith.constant dense<0.000000e+00> : vector<64x32xf32>
    %313 = tpu.matmul %312, %310, %cst_118 {dimension_numbers = #tpu.dot_dimension_numbers<[1], [0], [0], [1], [0, 0, 1, 1], [], []>} : vector<64x8xbf16>, vector<8x32xbf16>, vector<64x32xf32> -> vector<64x32xf32>
    %314 = arith.addf %284, %313 : vector<64x32xf32>
    %315 = vector.extract_strided_slice %281 {offsets = [0, 8], sizes = [64, 8], strides = [1, 1]} : vector<64x96xf32> to vector<64x8xf32>
    %316 = vector.extract_strided_slice %281 {offsets = [0, 40], sizes = [64, 8], strides = [1, 1]} : vector<64x96xf32> to vector<64x8xf32>
    %317 = vector.extract_strided_slice %281 {offsets = [0, 72], sizes = [64, 8], strides = [1, 1]} : vector<64x96xf32> to vector<64x8xf32>
    %318 = vector.shape_cast %315 : vector<64x8xf32> to vector<8x8x8xf32>
    %319 = arith.truncf %318 : vector<8x8x8xf32> to vector<8x8x8xbf16>
    %320 = vector.shape_cast %316 : vector<64x8xf32> to vector<8x8x8xf32>
    %321 = arith.truncf %320 : vector<8x8x8xf32> to vector<8x8x8xbf16>
    %322 = vector.shape_cast %317 : vector<64x8xf32> to vector<8x8x8xf32>
    %323 = arith.truncf %322 : vector<8x8x8xf32> to vector<8x8x8xbf16>
    "tpu.trace_start"() <{level = 10 : i32, message = "btd,bsd->bts"}> : () -> ()
    %cst_119 = arith.constant dense<0.000000e+00> : vector<8x8x8xf32>
    %324 = tpu.matmul %319, %321, %cst_119 {dimension_numbers = #tpu.dot_dimension_numbers<[2], [2], [1], [1], [0, 0, 0, 1, 1, 1], [0], [0]>} : vector<8x8x8xbf16>, vector<8x8x8xbf16>, vector<8x8x8xf32> -> vector<8x8x8xf32>
    "tpu.trace_stop"() : () -> ()
    %cst_120 = arith.constant 0.353553385 : f32
    %325 = vector.broadcast %cst_120 : f32 to vector<8x8x8xf32>
    %326 = arith.mulf %324, %325 : vector<8x8x8xf32>
    %327 = arith.addf %326, %35 : vector<8x8x8xf32>
    %cst_121 = arith.constant dense<0xFF800000> : vector<8x8xf32>
    %328 = vector.multi_reduction <maximumf>, %327, %cst_121 [2] : vector<8x8x8xf32> to vector<8x8xf32>
    %329 = vector.shape_cast %328 : vector<8x8xf32> to vector<8x8x1xf32>
    %330 = vector.broadcast %329 : vector<8x8x1xf32> to vector<8x8x8xf32>
    %331 = arith.subf %327, %330 : vector<8x8x8xf32>
    %332 = math.exp %331 : vector<8x8x8xf32>
    %cst_122 = arith.constant dense<0.000000e+00> : vector<8x8xf32>
    %333 = vector.multi_reduction <add>, %332, %cst_122 [2] : vector<8x8x8xf32> to vector<8x8xf32>
    %334 = vector.shape_cast %333 : vector<8x8xf32> to vector<8x8x1xf32>
    %335 = tpu.reciprocal %334 {approx = true} : vector<8x8x1xf32> -> vector<8x8x1xf32>
    %336 = vector.broadcast %335 : vector<8x8x1xf32> to vector<8x8x8xf32>
    %337 = arith.mulf %332, %336 : vector<8x8x8xf32>
    %338 = arith.truncf %337 : vector<8x8x8xf32> to vector<8x8x8xbf16>
    "tpu.trace_start"() <{level = 10 : i32, message = "bts,bsd->btd"}> : () -> ()
    %cst_123 = arith.constant dense<0.000000e+00> : vector<8x8x8xf32>
    %339 = tpu.matmul %338, %323, %cst_123 {dimension_numbers = #tpu.dot_dimension_numbers<[2], [1], [1], [2], [0, 0, 0, 1, 1, 2], [0], [0]>} : vector<8x8x8xbf16>, vector<8x8x8xbf16>, vector<8x8x8xf32> -> vector<8x8x8xf32>
    "tpu.trace_stop"() : () -> ()
    %340 = vector.extract_strided_slice %283 {offsets = [8, 0], sizes = [8, 32], strides = [1, 1]} : vector<32x32xbf16> to vector<8x32xbf16>
    %341 = vector.shape_cast %339 : vector<8x8x8xf32> to vector<64x8xf32>
    %342 = arith.truncf %341 : vector<64x8xf32> to vector<64x8xbf16>
    %cst_124 = arith.constant dense<0.000000e+00> : vector<64x32xf32>
    %343 = tpu.matmul %342, %340, %cst_124 {dimension_numbers = #tpu.dot_dimension_numbers<[1], [0], [0], [1], [0, 0, 1, 1], [], []>} : vector<64x8xbf16>, vector<8x32xbf16>, vector<64x32xf32> -> vector<64x32xf32>
    %344 = arith.addf %314, %343 : vector<64x32xf32>
    %345 = vector.extract_strided_slice %281 {offsets = [0, 16], sizes = [64, 8], strides = [1, 1]} : vector<64x96xf32> to vector<64x8xf32>
    %346 = vector.extract_strided_slice %281 {offsets = [0, 48], sizes = [64, 8], strides = [1, 1]} : vector<64x96xf32> to vector<64x8xf32>
    %347 = vector.extract_strided_slice %281 {offsets = [0, 80], sizes = [64, 8], strides = [1, 1]} : vector<64x96xf32> to vector<64x8xf32>
    %348 = vector.shape_cast %345 : vector<64x8xf32> to vector<8x8x8xf32>
    %349 = arith.truncf %348 : vector<8x8x8xf32> to vector<8x8x8xbf16>
    %350 = vector.shape_cast %346 : vector<64x8xf32> to vector<8x8x8xf32>
    %351 = arith.truncf %350 : vector<8x8x8xf32> to vector<8x8x8xbf16>
    %352 = vector.shape_cast %347 : vector<64x8xf32> to vector<8x8x8xf32>
    %353 = arith.truncf %352 : vector<8x8x8xf32> to vector<8x8x8xbf16>
    "tpu.trace_start"() <{level = 10 : i32, message = "btd,bsd->bts"}> : () -> ()
    %cst_125 = arith.constant dense<0.000000e+00> : vector<8x8x8xf32>
    %354 = tpu.matmul %349, %351, %cst_125 {dimension_numbers = #tpu.dot_dimension_numbers<[2], [2], [1], [1], [0, 0, 0, 1, 1, 1], [0], [0]>} : vector<8x8x8xbf16>, vector<8x8x8xbf16>, vector<8x8x8xf32> -> vector<8x8x8xf32>
    "tpu.trace_stop"() : () -> ()
    %cst_126 = arith.constant 0.353553385 : f32
    %355 = vector.broadcast %cst_126 : f32 to vector<8x8x8xf32>
    %356 = arith.mulf %354, %355 : vector<8x8x8xf32>
    %357 = arith.addf %356, %35 : vector<8x8x8xf32>
    %cst_127 = arith.constant dense<0xFF800000> : vector<8x8xf32>
    %358 = vector.multi_reduction <maximumf>, %357, %cst_127 [2] : vector<8x8x8xf32> to vector<8x8xf32>
    %359 = vector.shape_cast %358 : vector<8x8xf32> to vector<8x8x1xf32>
    %360 = vector.broadcast %359 : vector<8x8x1xf32> to vector<8x8x8xf32>
    %361 = arith.subf %357, %360 : vector<8x8x8xf32>
    %362 = math.exp %361 : vector<8x8x8xf32>
    %cst_128 = arith.constant dense<0.000000e+00> : vector<8x8xf32>
    %363 = vector.multi_reduction <add>, %362, %cst_128 [2] : vector<8x8x8xf32> to vector<8x8xf32>
    %364 = vector.shape_cast %363 : vector<8x8xf32> to vector<8x8x1xf32>
    %365 = tpu.reciprocal %364 {approx = true} : vector<8x8x1xf32> -> vector<8x8x1xf32>
    %366 = vector.broadcast %365 : vector<8x8x1xf32> to vector<8x8x8xf32>
    %367 = arith.mulf %362, %366 : vector<8x8x8xf32>
    %368 = arith.truncf %367 : vector<8x8x8xf32> to vector<8x8x8xbf16>
    "tpu.trace_start"() <{level = 10 : i32, message = "bts,bsd->btd"}> : () -> ()
    %cst_129 = arith.constant dense<0.000000e+00> : vector<8x8x8xf32>
    %369 = tpu.matmul %368, %353, %cst_129 {dimension_numbers = #tpu.dot_dimension_numbers<[2], [1], [1], [2], [0, 0, 0, 1, 1, 2], [0], [0]>} : vector<8x8x8xbf16>, vector<8x8x8xbf16>, vector<8x8x8xf32> -> vector<8x8x8xf32>
    "tpu.trace_stop"() : () -> ()
    %370 = vector.extract_strided_slice %283 {offsets = [16, 0], sizes = [8, 32], strides = [1, 1]} : vector<32x32xbf16> to vector<8x32xbf16>
    %371 = vector.shape_cast %369 : vector<8x8x8xf32> to vector<64x8xf32>
    %372 = arith.truncf %371 : vector<64x8xf32> to vector<64x8xbf16>
    %cst_130 = arith.constant dense<0.000000e+00> : vector<64x32xf32>
    %373 = tpu.matmul %372, %370, %cst_130 {dimension_numbers = #tpu.dot_dimension_numbers<[1], [0], [0], [1], [0, 0, 1, 1], [], []>} : vector<64x8xbf16>, vector<8x32xbf16>, vector<64x32xf32> -> vector<64x32xf32>
    %374 = arith.addf %344, %373 : vector<64x32xf32>
    %375 = vector.extract_strided_slice %281 {offsets = [0, 24], sizes = [64, 8], strides = [1, 1]} : vector<64x96xf32> to vector<64x8xf32>
    %376 = vector.extract_strided_slice %281 {offsets = [0, 56], sizes = [64, 8], strides = [1, 1]} : vector<64x96xf32> to vector<64x8xf32>
    %377 = vector.extract_strided_slice %281 {offsets = [0, 88], sizes = [64, 8], strides = [1, 1]} : vector<64x96xf32> to vector<64x8xf32>
    %378 = vector.shape_cast %375 : vector<64x8xf32> to vector<8x8x8xf32>
    %379 = arith.truncf %378 : vector<8x8x8xf32> to vector<8x8x8xbf16>
    %380 = vector.shape_cast %376 : vector<64x8xf32> to vector<8x8x8xf32>
    %381 = arith.truncf %380 : vector<8x8x8xf32> to vector<8x8x8xbf16>
    %382 = vector.shape_cast %377 : vector<64x8xf32> to vector<8x8x8xf32>
    %383 = arith.truncf %382 : vector<8x8x8xf32> to vector<8x8x8xbf16>
    "tpu.trace_start"() <{level = 10 : i32, message = "btd,bsd->bts"}> : () -> ()
    %cst_131 = arith.constant dense<0.000000e+00> : vector<8x8x8xf32>
    %384 = tpu.matmul %379, %381, %cst_131 {dimension_numbers = #tpu.dot_dimension_numbers<[2], [2], [1], [1], [0, 0, 0, 1, 1, 1], [0], [0]>} : vector<8x8x8xbf16>, vector<8x8x8xbf16>, vector<8x8x8xf32> -> vector<8x8x8xf32>
    "tpu.trace_stop"() : () -> ()
    %cst_132 = arith.constant 0.353553385 : f32
    %385 = vector.broadcast %cst_132 : f32 to vector<8x8x8xf32>
    %386 = arith.mulf %384, %385 : vector<8x8x8xf32>
    %387 = arith.addf %386, %35 : vector<8x8x8xf32>
    %cst_133 = arith.constant dense<0xFF800000> : vector<8x8xf32>
    %388 = vector.multi_reduction <maximumf>, %387, %cst_133 [2] : vector<8x8x8xf32> to vector<8x8xf32>
    %389 = vector.shape_cast %388 : vector<8x8xf32> to vector<8x8x1xf32>
    %390 = vector.broadcast %389 : vector<8x8x1xf32> to vector<8x8x8xf32>
    %391 = arith.subf %387, %390 : vector<8x8x8xf32>
    %392 = math.exp %391 : vector<8x8x8xf32>
    %cst_134 = arith.constant dense<0.000000e+00> : vector<8x8xf32>
    %393 = vector.multi_reduction <add>, %392, %cst_134 [2] : vector<8x8x8xf32> to vector<8x8xf32>
    %394 = vector.shape_cast %393 : vector<8x8xf32> to vector<8x8x1xf32>
    %395 = tpu.reciprocal %394 {approx = true} : vector<8x8x1xf32> -> vector<8x8x1xf32>
    %396 = vector.broadcast %395 : vector<8x8x1xf32> to vector<8x8x8xf32>
    %397 = arith.mulf %392, %396 : vector<8x8x8xf32>
    %398 = arith.truncf %397 : vector<8x8x8xf32> to vector<8x8x8xbf16>
    "tpu.trace_start"() <{level = 10 : i32, message = "bts,bsd->btd"}> : () -> ()
    %cst_135 = arith.constant dense<0.000000e+00> : vector<8x8x8xf32>
    %399 = tpu.matmul %398, %383, %cst_135 {dimension_numbers = #tpu.dot_dimension_numbers<[2], [1], [1], [2], [0, 0, 0, 1, 1, 2], [0], [0]>} : vector<8x8x8xbf16>, vector<8x8x8xbf16>, vector<8x8x8xf32> -> vector<8x8x8xf32>
    "tpu.trace_stop"() : () -> ()
    %400 = vector.extract_strided_slice %283 {offsets = [24, 0], sizes = [8, 32], strides = [1, 1]} : vector<32x32xbf16> to vector<8x32xbf16>
    %401 = vector.shape_cast %399 : vector<8x8x8xf32> to vector<64x8xf32>
    %402 = arith.truncf %401 : vector<64x8xf32> to vector<64x8xbf16>
    %cst_136 = arith.constant dense<0.000000e+00> : vector<64x32xf32>
    %403 = tpu.matmul %402, %400, %cst_136 {dimension_numbers = #tpu.dot_dimension_numbers<[1], [0], [0], [1], [0, 0, 1, 1], [], []>} : vector<64x8xbf16>, vector<8x32xbf16>, vector<64x32xf32> -> vector<64x32xf32>
    %404 = arith.addf %374, %403 : vector<64x32xf32>
    %405 = arith.addf %247, %404 : vector<64x32xf32>
    %c1_137 = arith.constant 1 : index
    %c0_138 = arith.constant 0 : index
    %c0_139 = arith.constant 0 : index
    %406 = vector.load %arg11[%c1_137, %c0_138, %c0_139] : memref<2x1x32xf32, #tpu.memory_space<vmem>>, vector<1x1x32xf32>
    %407 = vector.shape_cast %406 : vector<1x1x32xf32> to vector<1x32xf32>
    %408 = vector.broadcast %407 : vector<1x32xf32> to vector<64x32xf32>
    %409 = arith.addf %405, %408 : vector<64x32xf32>
    %c1_140 = arith.constant 1 : index
    %c0_141 = arith.constant 0 : index
    %c0_142 = arith.constant 0 : index
    %410 = vector.load %arg12[%c1_140, %c0_141, %c0_142] : memref<2x1x32xf32, #tpu.memory_space<vmem>>, vector<1x1x32xf32>
    %411 = vector.shape_cast %410 : vector<1x1x32xf32> to vector<1x32xf32>
    %c1_143 = arith.constant 1 : index
    %c0_144 = arith.constant 0 : index
    %c0_145 = arith.constant 0 : index
    %412 = vector.load %arg13[%c1_143, %c0_144, %c0_145] : memref<2x1x32xf32, #tpu.memory_space<vmem>>, vector<1x1x32xf32>
    %413 = vector.shape_cast %412 : vector<1x1x32xf32> to vector<1x32xf32>
    %cst_146 = arith.constant dense<0.000000e+00> : vector<64xf32>
    %414 = vector.multi_reduction <add>, %409, %cst_146 [1] : vector<64x32xf32> to vector<64xf32>
    %415 = vector.shape_cast %414 : vector<64xf32> to vector<64x1xf32>
    %cst_147 = arith.constant 3.200000e+01 : f32
    %416 = vector.broadcast %cst_147 : f32 to vector<64x1xf32>
    %417 = arith.divf %415, %416 : vector<64x1xf32>
    %418 = vector.broadcast %417 : vector<64x1xf32> to vector<64x32xf32>
    %419 = arith.subf %409, %418 : vector<64x32xf32>
    %420 = arith.mulf %419, %419 : vector<64x32xf32>
    %cst_148 = arith.constant dense<0.000000e+00> : vector<64xf32>
    %421 = vector.multi_reduction <add>, %420, %cst_148 [1] : vector<64x32xf32> to vector<64xf32>
    %422 = vector.shape_cast %421 : vector<64xf32> to vector<64x1xf32>
    %cst_149 = arith.constant 3.200000e+01 : f32
    %423 = vector.broadcast %cst_149 : f32 to vector<64x1xf32>
    %424 = arith.divf %422, %423 : vector<64x1xf32>
    %425 = vector.broadcast %417 : vector<64x1xf32> to vector<64x32xf32>
    %426 = arith.subf %409, %425 : vector<64x32xf32>
    %cst_150 = arith.constant 9.99999974E-6 : f32
    %427 = vector.broadcast %cst_150 : f32 to vector<64x1xf32>
    %428 = arith.addf %424, %427 : vector<64x1xf32>
    %429 = math.rsqrt %428 : vector<64x1xf32>
    %430 = vector.broadcast %429 : vector<64x1xf32> to vector<64x32xf32>
    %431 = arith.mulf %426, %430 : vector<64x32xf32>
    %432 = vector.broadcast %411 : vector<1x32xf32> to vector<64x32xf32>
    %433 = arith.mulf %431, %432 : vector<64x32xf32>
    %434 = vector.broadcast %413 : vector<1x32xf32> to vector<64x32xf32>
    %435 = arith.addf %433, %434 : vector<64x32xf32>
    %436 = arith.truncf %435 : vector<64x32xf32> to vector<64x32xbf16>
    %c1_151 = arith.constant 1 : index
    %c0_152 = arith.constant 0 : index
    %c0_153 = arith.constant 0 : index
    %437 = vector.load %arg14[%c1_151, %c0_152, %c0_153] : memref<2x32x128xbf16, #tpu.memory_space<vmem>>, vector<1x32x128xbf16>
    %438 = vector.shape_cast %437 : vector<1x32x128xbf16> to vector<32x128xbf16>
    %cst_154 = arith.constant dense<0.000000e+00> : vector<64x128xf32>
    %439 = tpu.matmul %436, %438, %cst_154 {dimension_numbers = #tpu.dot_dimension_numbers<[1], [0], [0], [1], [0, 0, 1, 1], [], []>} : vector<64x32xbf16>, vector<32x128xbf16>, vector<64x128xf32> -> vector<64x128xf32>
    %c1_155 = arith.constant 1 : index
    %c0_156 = arith.constant 0 : index
    %c0_157 = arith.constant 0 : index
    %440 = vector.load %arg15[%c1_155, %c0_156, %c0_157] : memref<2x1x128xf32, #tpu.memory_space<vmem>>, vector<1x1x128xf32>
    %441 = vector.shape_cast %440 : vector<1x1x128xf32> to vector<1x128xf32>
    %442 = vector.broadcast %441 : vector<1x128xf32> to vector<64x128xf32>
    %443 = arith.addf %439, %442 : vector<64x128xf32>
    %cst_158 = arith.constant -1.702000e+00 : f32
    %444 = vector.broadcast %cst_158 : f32 to vector<64x128xf32>
    %445 = arith.mulf %444, %443 : vector<64x128xf32>
    %446 = math.exp %445 : vector<64x128xf32>
    %cst_159 = arith.constant 1.000000e+00 : f32
    %447 = vector.broadcast %cst_159 : f32 to vector<64x128xf32>
    %448 = arith.addf %447, %446 : vector<64x128xf32>
    %449 = tpu.reciprocal %448 {approx = true} : vector<64x128xf32> -> vector<64x128xf32>
    %450 = arith.mulf %443, %449 : vector<64x128xf32>
    %451 = arith.truncf %450 : vector<64x128xf32> to vector<64x128xbf16>
    %c1_160 = arith.constant 1 : index
    %c0_161 = arith.constant 0 : index
    %c0_162 = arith.constant 0 : index
    %452 = vector.load %arg16[%c1_160, %c0_161, %c0_162] : memref<2x128x32xbf16, #tpu.memory_space<vmem>>, vector<1x128x32xbf16>
    %453 = vector.shape_cast %452 : vector<1x128x32xbf16> to vector<128x32xbf16>
    %cst_163 = arith.constant dense<0.000000e+00> : vector<64x32xf32>
    %454 = tpu.matmul %451, %453, %cst_163 {dimension_numbers = #tpu.dot_dimension_numbers<[1], [0], [0], [1], [0, 0, 1, 1], [], []>} : vector<64x128xbf16>, vector<128x32xbf16>, vector<64x32xf32> -> vector<64x32xf32>
    %455 = arith.addf %409, %454 : vector<64x32xf32>
    %c1_164 = arith.constant 1 : index
    %c0_165 = arith.constant 0 : index
    %c0_166 = arith.constant 0 : index
    %456 = vector.load %arg17[%c1_164, %c0_165, %c0_166] : memref<2x1x32xf32, #tpu.memory_space<vmem>>, vector<1x1x32xf32>
    %457 = vector.shape_cast %456 : vector<1x1x32xf32> to vector<1x32xf32>
    %458 = vector.broadcast %457 : vector<1x32xf32> to vector<64x32xf32>
    %459 = arith.addf %455, %458 : vector<64x32xf32>
    %460 = vector.shape_cast %459 : vector<64x32xf32> to vector<8x8x32xf32>
    %461 = vector.extract_strided_slice %460 {offsets = [0, 0, 0], sizes = [8, 1, 32], strides = [1, 1, 1]} : vector<8x8x32xf32> to vector<8x1x32xf32>
    %462 = vector.shape_cast %461 : vector<8x1x32xf32> to vector<8x32xf32>
    %c0_167 = arith.constant 0 : index
    %c0_168 = arith.constant 0 : index
    %463 = vector.load %arg18[%c0_167, %c0_168] : memref<1x32xf32, #tpu.memory_space<vmem>>, vector<1x32xf32>
    %c0_169 = arith.constant 0 : index
    %c0_170 = arith.constant 0 : index
    %464 = vector.load %arg19[%c0_169, %c0_170] : memref<1x32xf32, #tpu.memory_space<vmem>>, vector<1x32xf32>
    %cst_171 = arith.constant dense<0.000000e+00> : vector<8xf32>
    %465 = vector.multi_reduction <add>, %462, %cst_171 [1] : vector<8x32xf32> to vector<8xf32>
    %466 = vector.shape_cast %465 : vector<8xf32> to vector<8x1xf32>
    %cst_172 = arith.constant 3.200000e+01 : f32
    %467 = vector.broadcast %cst_172 : f32 to vector<8x1xf32>
    %468 = arith.divf %466, %467 : vector<8x1xf32>
    %469 = vector.broadcast %468 : vector<8x1xf32> to vector<8x32xf32>
    %470 = arith.subf %462, %469 : vector<8x32xf32>
    %471 = arith.mulf %470, %470 : vector<8x32xf32>
    %cst_173 = arith.constant dense<0.000000e+00> : vector<8xf32>
    %472 = vector.multi_reduction <add>, %471, %cst_173 [1] : vector<8x32xf32> to vector<8xf32>
    %473 = vector.shape_cast %472 : vector<8xf32> to vector<8x1xf32>
    %cst_174 = arith.constant 3.200000e+01 : f32
    %474 = vector.broadcast %cst_174 : f32 to vector<8x1xf32>
    %475 = arith.divf %473, %474 : vector<8x1xf32>
    %476 = vector.broadcast %468 : vector<8x1xf32> to vector<8x32xf32>
    %477 = arith.subf %462, %476 : vector<8x32xf32>
    %cst_175 = arith.constant 9.99999974E-6 : f32
    %478 = vector.broadcast %cst_175 : f32 to vector<8x1xf32>
    %479 = arith.addf %475, %478 : vector<8x1xf32>
    %480 = math.rsqrt %479 : vector<8x1xf32>
    %481 = vector.broadcast %480 : vector<8x1xf32> to vector<8x32xf32>
    %482 = arith.mulf %477, %481 : vector<8x32xf32>
    %483 = vector.broadcast %463 : vector<1x32xf32> to vector<8x32xf32>
    %484 = arith.mulf %482, %483 : vector<8x32xf32>
    %485 = vector.broadcast %464 : vector<1x32xf32> to vector<8x32xf32>
    %486 = arith.addf %484, %485 : vector<8x32xf32>
    %487 = arith.truncf %486 : vector<8x32xf32> to vector<8x32xbf16>
    %c0_176 = arith.constant 0 : index
    %c0_177 = arith.constant 0 : index
    %488 = vector.load %arg20[%c0_176, %c0_177] : memref<32x32xbf16, #tpu.memory_space<vmem>>, vector<32x32xbf16>
    %cst_178 = arith.constant dense<0.000000e+00> : vector<8x32xf32>
    %489 = tpu.matmul %487, %488, %cst_178 {dimension_numbers = #tpu.dot_dimension_numbers<[1], [0], [0], [1], [0, 0, 1, 1], [], []>} : vector<8x32xbf16>, vector<32x32xbf16>, vector<8x32xf32> -> vector<8x32xf32>
    %c0_179 = arith.constant 0 : index
    %c0_180 = arith.constant 0 : index
    %490 = vector.load %arg21[%c0_179, %c0_180] : memref<8x32xf32, #tpu.memory_space<vmem>>, vector<8x32xf32>
    tpu.vector_store %arg21[%c0_179, %c0_180], %489 {strides = array<i32>} : memref<8x32xf32, #tpu.memory_space<vmem>>, vector<8x32xf32>,
    return
  }
  func.func @transform_0(%arg0: i32) -> (i32, i32) {
    %c0_i32 = arith.constant 0 : i32
    %c0_i32_0 = arith.constant 0 : i32
    return %arg0, %c0_i32 : i32, i32
  }
  func.func @transform_1(%arg0: i32) -> (i32, i32) {
    %c0_i32 = arith.constant 0 : i32
    %c0_i32_0 = arith.constant 0 : i32
    %c0_i32_1 = arith.constant 0 : i32
    return %c0_i32, %c0_i32_0 : i32, i32
  }
  func.func @transform_2(%arg0: i32) -> (i32, i32) {
    %c0_i32 = arith.constant 0 : i32
    %c0_i32_0 = arith.constant 0 : i32
    %c0_i32_1 = arith.constant 0 : i32
    return %c0_i32, %c0_i32_0 : i32, i32
  }
  func.func @transform_3(%arg0: i32) -> (i32, i32) {
    %c0_i32 = arith.constant 0 : i32
    %c0_i32_0 = arith.constant 0 : i32
    %c0_i32_1 = arith.constant 0 : i32
    return %c0_i32, %c0_i32_0 : i32, i32
  }
  func.func @transform_4(%arg0: i32) -> (i32, i32) {
    %c0_i32 = arith.constant 0 : i32
    %c0_i32_0 = arith.constant 0 : i32
    %c0_i32_1 = arith.constant 0 : i32
    return %c0_i32, %c0_i32_0 : i32, i32
  }
  func.func @transform_5(%arg0: i32) -> (i32, i32, i32) {
    %c0_i32 = arith.constant 0 : i32
    %c0_i32_0 = arith.constant 0 : i32
    %c0_i32_1 = arith.constant 0 : i32
    %c0_i32_2 = arith.constant 0 : i32
    return %c0_i32, %c0_i32_0, %c0_i32_1 : i32, i32, i32
  }
  func.func @transform_6(%arg0: i32) -> (i32, i32, i32) {
    %c0_i32 = arith.constant 0 : i32
    %c0_i32_0 = arith.constant 0 : i32
    %c0_i32_1 = arith.constant 0 : i32
    %c0_i32_2 = arith.constant 0 : i32
    return %c0_i32, %c0_i32_0, %c0_i32_1 : i32, i32, i32
  }
  func.func @transform_7(%arg0: i32) -> (i32, i32, i32) {
    %c0_i32 = arith.constant 0 : i32
    %c0_i32_0 = arith.constant 0 : i32
    %c0_i32_1 = arith.constant 0 : i32
    %c0_i32_2 = arith.constant 0 : i32
    return %c0_i32, %c0_i32_0, %c0_i32_1 : i32, i32, i32
  }
  func.func @transform_8(%arg0: i32) -> (i32, i32, i32) {
    %c0_i32 = arith.constant 0 : i32
    %c0_i32_0 = arith.constant 0 : i32
    %c0_i32_1 = arith.constant 0 : i32
    %c0_i32_2 = arith.constant 0 : i32
    return %c0_i32, %c0_i32_0, %c0_i32_1 : i32, i32, i32
  }
  func.func @transform_9(%arg0: i32) -> (i32, i32, i32) {
    %c0_i32 = arith.constant 0 : i32
    %c0_i32_0 = arith.constant 0 : i32
    %c0_i32_1 = arith.constant 0 : i32
    %c0_i32_2 = arith.constant 0 : i32
    return %c0_i32, %c0_i32_0, %c0_i32_1 : i32, i32, i32
  }
  func.func @transform_10(%arg0: i32) -> (i32, i32, i32) {
    %c0_i32 = arith.constant 0 : i32
    %c0_i32_0 = arith.constant 0 : i32
    %c0_i32_1 = arith.constant 0 : i32
    %c0_i32_2 = arith.constant 0 : i32
    return %c0_i32, %c0_i32_0, %c0_i32_1 : i32, i32, i32
  }
  func.func @transform_11(%arg0: i32) -> (i32, i32, i32) {
    %c0_i32 = arith.constant 0 : i32
    %c0_i32_0 = arith.constant 0 : i32
    %c0_i32_1 = arith.constant 0 : i32
    %c0_i32_2 = arith.constant 0 : i32
    return %c0_i32, %c0_i32_0, %c0_i32_1 : i32, i32, i32
  }
  func.func @transform_12(%arg0: i32) -> (i32, i32, i32) {
    %c0_i32 = arith.constant 0 : i32
    %c0_i32_0 = arith.constant 0 : i32
    %c0_i32_1 = arith.constant 0 : i32
    %c0_i32_2 = arith.constant 0 : i32
    return %c0_i32, %c0_i32_0, %c0_i32_1 : i32, i32, i32
  }
  func.func @transform_13(%arg0: i32) -> (i32, i32, i32) {
    %c0_i32 = arith.constant 0 : i32
    %c0_i32_0 = arith.constant 0 : i32
    %c0_i32_1 = arith.constant 0 : i32
    %c0_i32_2 = arith.constant 0 : i32
    return %c0_i32, %c0_i32_0, %c0_i32_1 : i32, i32, i32
  }
  func.func @transform_14(%arg0: i32) -> (i32, i32, i32) {
    %c0_i32 = arith.constant 0 : i32
    %c0_i32_0 = arith.constant 0 : i32
    %c0_i32_1 = arith.constant 0 : i32
    %c0_i32_2 = arith.constant 0 : i32
    return %c0_i32, %c0_i32_0, %c0_i32_1 : i32, i32, i32
  }
  func.func @transform_15(%arg0: i32) -> (i32, i32, i32) {
    %c0_i32 = arith.constant 0 : i32
    %c0_i32_0 = arith.constant 0 : i32
    %c0_i32_1 = arith.constant 0 : i32
    %c0_i32_2 = arith.constant 0 : i32
    return %c0_i32, %c0_i32_0, %c0_i32_1 : i32, i32, i32
  }
  func.func @transform_16(%arg0: i32) -> (i32, i32, i32) {
    %c0_i32 = arith.constant 0 : i32
    %c0_i32_0 = arith.constant 0 : i32
    %c0_i32_1 = arith.constant 0 : i32
    %c0_i32_2 = arith.constant 0 : i32
    return %c0_i32, %c0_i32_0, %c0_i32_1 : i32, i32, i32
  }
  func.func @transform_17(%arg0: i32) -> (i32, i32) {
    %c0_i32 = arith.constant 0 : i32
    %c0_i32_0 = arith.constant 0 : i32
    %c0_i32_1 = arith.constant 0 : i32
    return %c0_i32, %c0_i32_0 : i32, i32
  }
  func.func @transform_18(%arg0: i32) -> (i32, i32) {
    %c0_i32 = arith.constant 0 : i32
    %c0_i32_0 = arith.constant 0 : i32
    %c0_i32_1 = arith.constant 0 : i32
    return %c0_i32, %c0_i32_0 : i32, i32
  }
  func.func @transform_19(%arg0: i32) -> (i32, i32) {
    %c0_i32 = arith.constant 0 : i32
    %c0_i32_0 = arith.constant 0 : i32
    %c0_i32_1 = arith.constant 0 : i32
    return %c0_i32, %c0_i32_0 : i32, i32
  }
  func.func @transform_20(%arg0: i32) -> (i32, i32) {
    %c0_i32 = arith.constant 0 : i32
    %c0_i32_0 = arith.constant 0 : i32
    return %arg0, %c0_i32 : i32, i32
  }
}

</mosaic_0001>

<llo_original>
// kernel: tpu_custom_call.1
$region0: #{tpu_custom_call.1}
  #allocation0 [shape = 'u32[]', space=smem, size = 0x4, offset = 0x4, fixed_abs, tag = 'smem constant byte address 0x4 - core index']
  #allocation1 [shape = 'u32[144,128]{1,0:T(1,128)}', space=vmem, size = 0x12000, scoped, tag = 'internal scratch']
  %s0 = inlined_call_operand.vmem [shape: f32[128,192], index: 0, kind: input, shape index: {}]
  %s1 = inlined_call_operand.vmem [shape: bf16[192,32], index: 1, kind: input, shape index: {}]
  %s2 = inlined_call_operand.vmem [shape: f32[64,32], index: 2, kind: input, shape index: {}]
  %s3 = inlined_call_operand.vmem [shape: f32[1,32], index: 3, kind: input, shape index: {}]
  %s4 = inlined_call_operand.vmem [shape: f32[1,32], index: 4, kind: input, shape index: {}]
  %s5 = inlined_call_operand.vmem [shape: f32[2,1,32], index: 5, kind: input, shape index: {}]
  %s6 = inlined_call_operand.vmem [shape: f32[2,1,32], index: 6, kind: input, shape index: {}]
  %s7 = inlined_call_operand.vmem [shape: bf16[2,32,96], index: 7, kind: input, shape index: {}]
  %s8 = inlined_call_operand.vmem [shape: f32[2,1,96], index: 8, kind: input, shape index: {}]
  %s9 = inlined_call_operand.vmem [shape: bf16[2,32,32], index: 9, kind: input, shape index: {}]
  %s10 = inlined_call_operand.vmem [shape: f32[2,1,32], index: 10, kind: input, shape index: {}]
  %s11 = inlined_call_operand.vmem [shape: f32[2,1,32], index: 11, kind: input, shape index: {}]
  %s12 = inlined_call_operand.vmem [shape: f32[2,1,32], index: 12, kind: input, shape index: {}]
  %s13 = inlined_call_operand.vmem [shape: bf16[2,32,128], index: 13, kind: input, shape index: {}]
  %s14 = inlined_call_operand.vmem [shape: f32[2,1,128], index: 14, kind: input, shape index: {}]
  %s15 = inlined_call_operand.vmem [shape: bf16[2,128,32], index: 15, kind: input, shape index: {}]
  %s16 = inlined_call_operand.vmem [shape: f32[2,1,32], index: 16, kind: input, shape index: {}]
  %s17 = inlined_call_operand.vmem [shape: f32[1,32], index: 17, kind: input, shape index: {}]
  %s18 = inlined_call_operand.vmem [shape: f32[1,32], index: 18, kind: input, shape index: {}]
  %s19 = inlined_call_operand.vmem [shape: bf16[32,32], index: 19, kind: input, shape index: {}]
  %s20 = inlined_call_operand.hbm [shape: f32[16,32], index: 20, kind: output, shape index: {}]
  %s21 = sld [smem:[#allocation0]]
  $region113: #{tpu_custom_call.1} parent=0
    _
  %s23 = ssub.s32 1, %s21
  %s24 = scalar_select 0, %s23, %s21
  $region1: #{tpu_custom_call.1} parent=0
    #allocation2 [shape = 'u8[8192]{0}', space=vmem, size = 0x2000, scoped, tag = 'output window, operand 0']
    #allocation3 [shape = 's32[2]{0}', space=sflag, size = 0x8, scoped, tag = 'scoped memory for tpu_custom_call.1']
    %25 = vsyncpa [#allocation3], 0
    %s26 = scalar_lea.sflag [#allocation3], 1
    %27 = vsyncpa %s26, 0
    loop: start=0, step=1, limit=4
    $region2: #{tpu_custom_call.1} parent=1 // loop_pre_header
      _
    $region3: #{tpu_custom_call.1} parent=1 // loop_header
      %s29 = sphi 0, %s33
      %p30 = scmp.ge.s32.totalorder %s29, 4
      %s39 = sphi 0, %s41
      %s42 = sphi 0, %s39
      %s43 = sphi 0, %s42
      %s59 = sphi 0, %s43
      %s63 = sphi 0, %s63
      %s65 = sphi 0, %s63
      %s66 = sphi 0, %s65
      %s80 = sphi 0, %s66
      %s84 = sphi 0, %s84
      %s86 = sphi 0, %s84
      %s87 = sphi 0, %s86
      %s101 = sphi 0, %s87
      %s105 = sphi 0, %s105
      %s107 = sphi 0, %s105
      %s108 = sphi 0, %s107
      %s122 = sphi 0, %s108
      %s126 = sphi 0, %s126
      %s128 = sphi 0, %s126
      %s129 = sphi 0, %s128
      %s143 = sphi 0, %s129
      %s147 = sphi 0, %s147
      %s149 = sphi 0, %s147
      %s150 = sphi 0, %s149
      %s164 = sphi 0, %s150
      %s168 = sphi 0, %s168
      %s170 = sphi 0, %s168
      %s171 = sphi 0, %s170
      %s185 = sphi 0, %s171
      %s189 = sphi 0, %s189
      %s191 = sphi 0, %s189
      %s192 = sphi 0, %s191
      %s206 = sphi 0, %s192
      %s210 = sphi 0, %s210
      %s212 = sphi 0, %s210
      %s213 = sphi 0, %s212
      %s227 = sphi 0, %s213
      %s231 = sphi 0, %s231
      %s233 = sphi 0, %s231
      %s234 = sphi 0, %s233
      %s248 = sphi 0, %s234
      %s252 = sphi 0, %s252
      %s254 = sphi 0, %s252
      %s255 = sphi 0, %s254
      %s269 = sphi 0, %s255
      %s273 = sphi 0, %s273
      %s275 = sphi 0, %s273
      %s276 = sphi 0, %s275
      %s290 = sphi 0, %s276
      %s294 = sphi 0, %s294
      %s296 = sphi 0, %s294
      %s297 = sphi 0, %s296
      %s311 = sphi 0, %s297
      %s315 = sphi 0, %s315
      %s317 = sphi 0, %s315
      %s318 = sphi 0, %s317
      %s332 = sphi 0, %s318
      %s336 = sphi 0, %s336
      %s338 = sphi 0, %s336
      %s339 = sphi 0, %s338
      %s353 = sphi 0, %s339
      %s357 = sphi 0, %s357
      %s359 = sphi 0, %s357
      %s360 = sphi 0, %s359
      %s374 = sphi 0, %s360
      %s378 = sphi 0, %s378
      %s380 = sphi 0, %s378
      %s381 = sphi 0, %s380
      %s395 = sphi 0, %s381
      %s399 = sphi 0, %s399
      %s401 = sphi 0, %s399
      %s402 = sphi 0, %s401
      %s416 = sphi 0, %s402
      %s420 = sphi 0, %s420
      %s422 = sphi 0, %s420
      %s423 = sphi 0, %s422
      %s437 = sphi 0, %s423
      %s441 = sphi 0, %s441
      %s443 = sphi 0, %s441
      %s444 = sphi 0, %s443
      %s458 = sphi 0, %s444
      %s464 = sphi 0, %s466
      %s467 = sphi 0, %s464
      %s468 = sphi 0, %s467
      %s484 = sphi 0, %s468
    $region4: #{tpu_custom_call.1} parent=1 // loop_header_branch
      %32 = sbr.rel (%p30) target = $region8
    $region5: #{tpu_custom_call.1} parent=1 // loop_body
      %s34 = ssub.s32 %s29, 1
      %s35 = ssub.s32 %s29, 2
      %s36 = sadd.s32 %s29, 1
      %s37 = ssub.s32 %s29, %s36
      %p38 = scmp.eq.s32.totalorder %s37, 0
      %s40 = sadd.s32 %s39, 1
      %s41 = scalar_select %p38, %s39, %s40
      %p44 = pneg %p38
      %p45 = scmp.eq.s32.totalorder %s29, 1
      %p46 = por %p44, %p45
      %p47 = scmp.ne.s32.totalorder %s39, %s42
      %p48 = scmp.eq.s32.totalorder %s29, 0
      %p49 = por %p47, %p48
      %p50 = scmp.ne.s32.totalorder %s39, %s42
      %p51 = scmp.eq.s32.totalorder %s34, 1
      %p52 = por %p50, %p51
      %p53 = scmp.ne.s32.totalorder %s42, %s43
      %p54 = scmp.eq.s32.totalorder %s34, 0
      %p55 = por %p53, %p54
      %p56 = scmp.ne.s32.totalorder %s42, %s43
      %p57 = scmp.eq.s32.totalorder %s35, 1
      %p58 = por %p56, %p57
      %p60 = scmp.ne.s32.totalorder %s43, %s59
      %p61 = scmp.eq.s32.totalorder %s35, 0
      %p62 = por %p60, %p61
      %s64 = sadd.s32 %s63, 1
      %p67 = scmp.eq.s32.totalorder %s29, 1
      %p68 = scmp.ne.s32.totalorder %s63, %s65
      %p69 = scmp.eq.s32.totalorder %s29, 0
      %p70 = por %p68, %p69
      %p71 = scmp.ne.s32.totalorder %s63, %s65
      %p72 = scmp.eq.s32.totalorder %s34, 1
      %p73 = por %p71, %p72
      %p74 = scmp.ne.s32.totalorder %s65, %s66
      %p75 = scmp.eq.s32.totalorder %s34, 0
      %p76 = por %p74, %p75
      %p77 = scmp.ne.s32.totalorder %s65, %s66
      %p78 = scmp.eq.s32.totalorder %s35, 1
      %p79 = por %p77, %p78
      %p81 = scmp.ne.s32.totalorder %s66, %s80
      %p82 = scmp.eq.s32.totalorder %s35, 0
      %p83 = por %p81, %p82
      %s85 = sadd.s32 %s84, 1
      %p88 = scmp.eq.s32.totalorder %s29, 1
      %p89 = scmp.ne.s32.totalorder %s84, %s86
      %p90 = scmp.eq.s32.totalorder %s29, 0
      %p91 = por %p89, %p90
      %p92 = scmp.ne.s32.totalorder %s84, %s86
      %p93 = scmp.eq.s32.totalorder %s34, 1
      %p94 = por %p92, %p93
      %p95 = scmp.ne.s32.totalorder %s86, %s87
      %p96 = scmp.eq.s32.totalorder %s34, 0
      %p97 = por %p95, %p96
      %p98 = scmp.ne.s32.totalorder %s86, %s87
      %p99 = scmp.eq.s32.totalorder %s35, 1
      %p100 = por %p98, %p99
      %p102 = scmp.ne.s32.totalorder %s87, %s101
      %p103 = scmp.eq.s32.totalorder %s35, 0
      %p104 = por %p102, %p103
      %s106 = sadd.s32 %s105, 1
      %p109 = scmp.eq.s32.totalorder %s29, 1
      %p110 = scmp.ne.s32.totalorder %s105, %s107
      %p111 = scmp.eq.s32.totalorder %s29, 0
      %p112 = por %p110, %p111
      %p113 = scmp.ne.s32.totalorder %s105, %s107
      %p114 = scmp.eq.s32.totalorder %s34, 1
      %p115 = por %p113, %p114
      %p116 = scmp.ne.s32.totalorder %s107, %s108
      %p117 = scmp.eq.s32.totalorder %s34, 0
      %p118 = por %p116, %p117
      %p119 = scmp.ne.s32.totalorder %s107, %s108
      %p120 = scmp.eq.s32.totalorder %s35, 1
      %p121 = por %p119, %p120
      %p123 = scmp.ne.s32.totalorder %s108, %s122
      %p124 = scmp.eq.s32.totalorder %s35, 0
      %p125 = por %p123, %p124
      %s127 = sadd.s32 %s126, 1
      %p130 = scmp.eq.s32.totalorder %s29, 1
      %p131 = scmp.ne.s32.totalorder %s126, %s128
      %p132 = scmp.eq.s32.totalorder %s29, 0
      %p133 = por %p131, %p132
      %p134 = scmp.ne.s32.totalorder %s126, %s128
      %p135 = scmp.eq.s32.totalorder %s34, 1
      %p136 = por %p134, %p135
      %p137 = scmp.ne.s32.totalorder %s128, %s129
      %p138 = scmp.eq.s32.totalorder %s34, 0
      %p139 = por %p137, %p138
      %p140 = scmp.ne.s32.totalorder %s128, %s129
      %p141 = scmp.eq.s32.totalorder %s35, 1
      %p142 = por %p140, %p141
      %p144 = scmp.ne.s32.totalorder %s129, %s143
      %p145 = scmp.eq.s32.totalorder %s35, 0
      %p146 = por %p144, %p145
      %s148 = sadd.s32 %s147, 1
      %p151 = scmp.eq.s32.totalorder %s29, 1
      %p152 = scmp.ne.s32.totalorder %s147, %s149
      %p153 = scmp.eq.s32.totalorder %s29, 0
      %p154 = por %p152, %p153
      %p155 = scmp.ne.s32.totalorder %s147, %s149
      %p156 = scmp.eq.s32.totalorder %s34, 1
      %p157 = por %p155, %p156
      %p158 = scmp.ne.s32.totalorder %s149, %s150
      %p159 = scmp.eq.s32.totalorder %s34, 0
      %p160 = por %p158, %p159
      %p161 = scmp.ne.s32.totalorder %s149, %s150
      %p162 = scmp.eq.s32.totalorder %s35, 1
      %p163 = por %p161, %p162
      %p165 = scmp.ne.s32.totalorder %s150, %s164
      %p166 = scmp.eq.s32.totalorder %s35, 0
      %p167 = por %p165, %p166
      %s169 = sadd.s32 %s168, 1
      %p172 = scmp.eq.s32.totalorder %s29, 1
      %p173 = scmp.ne.s32.totalorder %s168, %s170
      %p174 = scmp.eq.s32.totalorder %s29, 0
      %p175 = por %p173, %p174
      %p176 = scmp.ne.s32.totalorder %s168, %s170
      %p177 = scmp.eq.s32.totalorder %s34, 1
      %p178 = por %p176, %p177
      %p179 = scmp.ne.s32.totalorder %s170, %s171
      %p180 = scmp.eq.s32.totalorder %s34, 0
      %p181 = por %p179, %p180
      %p182 = scmp.ne.s32.totalorder %s170, %s171
      %p183 = scmp.eq.s32.totalorder %s35, 1
      %p184 = por %p182, %p183
      %p186 = scmp.ne.s32.totalorder %s171, %s185
      %p187 = scmp.eq.s32.totalorder %s35, 0
      %p188 = por %p186, %p187
      %s190 = sadd.s32 %s189, 1
      %p193 = scmp.eq.s32.totalorder %s29, 1
      %p194 = scmp.ne.s32.totalorder %s189, %s191
      %p195 = scmp.eq.s32.totalorder %s29, 0
      %p196 = por %p194, %p195
      %p197 = scmp.ne.s32.totalorder %s189, %s191
      %p198 = scmp.eq.s32.totalorder %s34, 1
      %p199 = por %p197, %p198
      %p200 = scmp.ne.s32.totalorder %s191, %s192
      %p201 = scmp.eq.s32.totalorder %s34, 0
      %p202 = por %p200, %p201
      %p203 = scmp.ne.s32.totalorder %s191, %s192
      %p204 = scmp.eq.s32.totalorder %s35, 1
      %p205 = por %p203, %p204
      %p207 = scmp.ne.s32.totalorder %s192, %s206
      %p208 = scmp.eq.s32.totalorder %s35, 0
      %p209 = por %p207, %p208
      %s211 = sadd.s32 %s210, 1
      %p214 = scmp.eq.s32.totalorder %s29, 1
      %p215 = scmp.ne.s32.totalorder %s210, %s212
      %p216 = scmp.eq.s32.totalorder %s29, 0
      %p217 = por %p215, %p216
      %p218 = scmp.ne.s32.totalorder %s210, %s212
      %p219 = scmp.eq.s32.totalorder %s34, 1
      %p220 = por %p218, %p219
      %p221 = scmp.ne.s32.totalorder %s212, %s213
      %p222 = scmp.eq.s32.totalorder %s34, 0
      %p223 = por %p221, %p222
      %p224 = scmp.ne.s32.totalorder %s212, %s213
      %p225 = scmp.eq.s32.totalorder %s35, 1
      %p226 = por %p224, %p225
      %p228 = scmp.ne.s32.totalorder %s213, %s227
      %p229 = scmp.eq.s32.totalorder %s35, 0
      %p230 = por %p228, %p229
      %s232 = sadd.s32 %s231, 1
      %p235 = scmp.eq.s32.totalorder %s29, 1
      %p236 = scmp.ne.s32.totalorder %s231, %s233
      %p237 = scmp.eq.s32.totalorder %s29, 0
      %p238 = por %p236, %p237
      %p239 = scmp.ne.s32.totalorder %s231, %s233
      %p240 = scmp.eq.s32.totalorder %s34, 1
      %p241 = por %p239, %p240
      %p242 = scmp.ne.s32.totalorder %s233, %s234
      %p243 = scmp.eq.s32.totalorder %s34, 0
      %p244 = por %p242, %p243
      %p245 = scmp.ne.s32.totalorder %s233, %s234
      %p246 = scmp.eq.s32.totalorder %s35, 1
      %p247 = por %p245, %p246
      %p249 = scmp.ne.s32.totalorder %s234, %s248
      %p250 = scmp.eq.s32.totalorder %s35, 0
      %p251 = por %p249, %p250
      %s253 = sadd.s32 %s252, 1
      %p256 = scmp.eq.s32.totalorder %s29, 1
      %p257 = scmp.ne.s32.totalorder %s252, %s254
      %p258 = scmp.eq.s32.totalorder %s29, 0
      %p259 = por %p257, %p258
      %p260 = scmp.ne.s32.totalorder %s252, %s254
      %p261 = scmp.eq.s32.totalorder %s34, 1
      %p262 = por %p260, %p261
      %p263 = scmp.ne.s32.totalorder %s254, %s255
      %p264 = scmp.eq.s32.totalorder %s34, 0
      %p265 = por %p263, %p264
      %p266 = scmp.ne.s32.totalorder %s254, %s255
      %p267 = scmp.eq.s32.totalorder %s35, 1
      %p268 = por %p266, %p267
      %p270 = scmp.ne.s32.totalorder %s255, %s269
      %p271 = scmp.eq.s32.totalorder %s35, 0
      %p272 = por %p270, %p271
      %s274 = sadd.s32 %s273, 1
      %p277 = scmp.eq.s32.totalorder %s29, 1
      %p278 = scmp.ne.s32.totalorder %s273, %s275
      %p279 = scmp.eq.s32.totalorder %s29, 0
      %p280 = por %p278, %p279
      %p281 = scmp.ne.s32.totalorder %s273, %s275
      %p282 = scmp.eq.s32.totalorder %s34, 1
      %p283 = por %p281, %p282
      %p284 = scmp.ne.s32.totalorder %s275, %s276
      %p285 = scmp.eq.s32.totalorder %s34, 0
      %p286 = por %p284, %p285
      %p287 = scmp.ne.s32.totalorder %s275, %s276
      %p288 = scmp.eq.s32.totalorder %s35, 1
      %p289 = por %p287, %p288
      %p291 = scmp.ne.s32.totalorder %s276, %s290
      %p292 = scmp.eq.s32.totalorder %s35, 0
      %p293 = por %p291, %p292
      %s295 = sadd.s32 %s294, 1
      %p298 = scmp.eq.s32.totalorder %s29, 1
      %p299 = scmp.ne.s32.totalorder %s294, %s296
      %p300 = scmp.eq.s32.totalorder %s29, 0
      %p301 = por %p299, %p300
      %p302 = scmp.ne.s32.totalorder %s294, %s296
      %p303 = scmp.eq.s32.totalorder %s34, 1
      %p304 = por %p302, %p303
      %p305 = scmp.ne.s32.totalorder %s296, %s297
      %p306 = scmp.eq.s32.totalorder %s34, 0
      %p307 = por %p305, %p306
      %p308 = scmp.ne.s32.totalorder %s296, %s297
      %p309 = scmp.eq.s32.totalorder %s35, 1
      %p310 = por %p308, %p309
      %p312 = scmp.ne.s32.totalorder %s297, %s311
      %p313 = scmp.eq.s32.totalorder %s35, 0
      %p314 = por %p312, %p313
      %s316 = sadd.s32 %s315, 1
      %p319 = scmp.eq.s32.totalorder %s29, 1
      %p320 = scmp.ne.s32.totalorder %s315, %s317
      %p321 = scmp.eq.s32.totalorder %s29, 0
      %p322 = por %p320, %p321
      %p323 = scmp.ne.s32.totalorder %s315, %s317
      %p324 = scmp.eq.s32.totalorder %s34, 1
      %p325 = por %p323, %p324
      %p326 = scmp.ne.s32.totalorder %s317, %s318
      %p327 = scmp.eq.s32.totalorder %s34, 0
      %p328 = por %p326, %p327
      %p329 = scmp.ne.s32.totalorder %s317, %s318
      %p330 = scmp.eq.s32.totalorder %s35, 1
      %p331 = por %p329, %p330
      %p333 = scmp.ne.s32.totalorder %s318, %s332
      %p334 = scmp.eq.s32.totalorder %s35, 0
      %p335 = por %p333, %p334
      %s337 = sadd.s32 %s336, 1
      %p340 = scmp.eq.s32.totalorder %s29, 1
      %p341 = scmp.ne.s32.totalorder %s336, %s338
      %p342 = scmp.eq.s32.totalorder %s29, 0
      %p343 = por %p341, %p342
      %p344 = scmp.ne.s32.totalorder %s336, %s338
      %p345 = scmp.eq.s32.totalorder %s34, 1
      %p346 = por %p344, %p345
      %p347 = scmp.ne.s32.totalorder %s338, %s339
      %p348 = scmp.eq.s32.totalorder %s34, 0
      %p349 = por %p347, %p348
      %p350 = scmp.ne.s32.totalorder %s338, %s339
      %p351 = scmp.eq.s32.totalorder %s35, 1
      %p352 = por %p350, %p351
      %p354 = scmp.ne.s32.totalorder %s339, %s353
      %p355 = scmp.eq.s32.totalorder %s35, 0
      %p356 = por %p354, %p355
      %s358 = sadd.s32 %s357, 1
      %p361 = scmp.eq.s32.totalorder %s29, 1
      %p362 = scmp.ne.s32.totalorder %s357, %s359
      %p363 = scmp.eq.s32.totalorder %s29, 0
      %p364 = por %p362, %p363
      %p365 = scmp.ne.s32.totalorder %s357, %s359
      %p366 = scmp.eq.s32.totalorder %s34, 1
      %p367 = por %p365, %p366
      %p368 = scmp.ne.s32.totalorder %s359, %s360
      %p369 = scmp.eq.s32.totalorder %s34, 0
      %p370 = por %p368, %p369
      %p371 = scmp.ne.s32.totalorder %s359, %s360
      %p372 = scmp.eq.s32.totalorder %s35, 1
      %p373 = por %p371, %p372
      %p375 = scmp.ne.s32.totalorder %s360, %s374
      %p376 = scmp.eq.s32.totalorder %s35, 0
      %p377 = por %p375, %p376
      %s379 = sadd.s32 %s378, 1
      %p382 = scmp.eq.s32.totalorder %s29, 1
      %p383 = scmp.ne.s32.totalorder %s378, %s380
      %p384 = scmp.eq.s32.totalorder %s29, 0
      %p385 = por %p383, %p384
      %p386 = scmp.ne.s32.totalorder %s378, %s380
      %p387 = scmp.eq.s32.totalorder %s34, 1
      %p388 = por %p386, %p387
      %p389 = scmp.ne.s32.totalorder %s380, %s381
      %p390 = scmp.eq.s32.totalorder %s34, 0
      %p391 = por %p389, %p390
      %p392 = scmp.ne.s32.totalorder %s380, %s381
      %p393 = scmp.eq.s32.totalorder %s35, 1
      %p394 = por %p392, %p393
      %p396 = scmp.ne.s32.totalorder %s381, %s395
      %p397 = scmp.eq.s32.totalorder %s35, 0
      %p398 = por %p396, %p397
      %s400 = sadd.s32 %s399, 1
      %p403 = scmp.eq.s32.totalorder %s29, 1
      %p404 = scmp.ne.s32.totalorder %s399, %s401
      %p405 = scmp.eq.s32.totalorder %s29, 0
      %p406 = por %p404, %p405
      %p407 = scmp.ne.s32.totalorder %s399, %s401
      %p408 = scmp.eq.s32.totalorder %s34, 1
      %p409 = por %p407, %p408
      %p410 = scmp.ne.s32.totalorder %s401, %s402
      %p411 = scmp.eq.s32.totalorder %s34, 0
      %p412 = por %p410, %p411
      %p413 = scmp.ne.s32.totalorder %s401, %s402
      %p414 = scmp.eq.s32.totalorder %s35, 1
      %p415 = por %p413, %p414
      %p417 = scmp.ne.s32.totalorder %s402, %s416
      %p418 = scmp.eq.s32.totalorder %s35, 0
      %p419 = por %p417, %p418
      %s421 = sadd.s32 %s420, 1
      %p424 = scmp.eq.s32.totalorder %s29, 1
      %p425 = scmp.ne.s32.totalorder %s420, %s422
      %p426 = scmp.eq.s32.totalorder %s29, 0
      %p427 = por %p425, %p426
      %p428 = scmp.ne.s32.totalorder %s420, %s422
      %p429 = scmp.eq.s32.totalorder %s34, 1
      %p430 = por %p428, %p429
      %p431 = scmp.ne.s32.totalorder %s422, %s423
      %p432 = scmp.eq.s32.totalorder %s34, 0
      %p433 = por %p431, %p432
      %p434 = scmp.ne.s32.totalorder %s422, %s423
      %p435 = scmp.eq.s32.totalorder %s35, 1
      %p436 = por %p434, %p435
      %p438 = scmp.ne.s32.totalorder %s423, %s437
      %p439 = scmp.eq.s32.totalorder %s35, 0
      %p440 = por %p438, %p439
      %s442 = sadd.s32 %s441, 1
      %p445 = scmp.eq.s32.totalorder %s29, 1
      %p446 = scmp.ne.s32.totalorder %s441, %s443
      %p447 = scmp.eq.s32.totalorder %s29, 0
      %p448 = por %p446, %p447
      %p449 = scmp.ne.s32.totalorder %s441, %s443
      %p450 = scmp.eq.s32.totalorder %s34, 1
      %p451 = por %p449, %p450
      %p452 = scmp.ne.s32.totalorder %s443, %s444
      %p453 = scmp.eq.s32.totalorder %s34, 0
      %p454 = por %p452, %p453
      %p455 = scmp.ne.s32.totalorder %s443, %s444
      %p456 = scmp.eq.s32.totalorder %s35, 1
      %p457 = por %p455, %p456
      %p459 = scmp.ne.s32.totalorder %s444, %s458
      %p460 = scmp.eq.s32.totalorder %s35, 0
      %p461 = por %p459, %p460
      %s462 = ssub.s32 %s29, %s36
      %p463 = scmp.eq.s32.totalorder %s462, 0
      %s465 = sadd.s32 %s464, 1
      %s466 = scalar_select %p463, %s464, %s465
      %p469 = pneg %p463
      %p470 = scmp.eq.s32.totalorder %s29, 1
      %p471 = por %p469, %p470
      %p472 = scmp.ne.s32.totalorder %s464, %s467
      %p473 = scmp.eq.s32.totalorder %s29, 0
      %p474 = por %p472, %p473
      %p475 = scmp.ne.s32.totalorder %s464, %s467
      %p476 = scmp.eq.s32.totalorder %s34, 1
      %p477 = por %p475, %p476
      %p478 = scmp.ne.s32.totalorder %s467, %s468
      %p479 = scmp.eq.s32.totalorder %s34, 0
      %p480 = por %p478, %p479
      %p481 = scmp.ne.s32.totalorder %s467, %s468
      %p482 = scmp.eq.s32.totalorder %s35, 1
      %p483 = por %p481, %p482
      %p485 = scmp.ne.s32.totalorder %s468, %s484
      %p486 = scmp.eq.s32.totalorder %s35, 0
      %p487 = por %p485, %p486
      %p488 = scmp.le.s32.totalorder 1, %s29
      %p489 = scmp.lt.s32.totalorder %s29, 3
      %p490 = pnand %p488, %p489
      %p491 = pneg %p490
      // Predicated region
      $region9: #{tpu_custom_call.1} parent=5 // pred_check
        _
      $region10: #{tpu_custom_call.1} parent=5 // pred_check_branch
        %493 = sbr.rel (%p490) target = $region12
      $region11: #{tpu_custom_call.1} parent=5 // pred_region
        %s494 = ssub.s32 %s29, 1
        // Predicated region
        $region13: #{tpu_custom_call.1} parent=11 // pred_check
          %p495 = pneg %p76
        $region14: #{tpu_custom_call.1} parent=11 // pred_check_branch
          %497 = sbr.rel (%p495) target = $region16
        $region15: #{tpu_custom_call.1} parent=11 // pred_region
          _
        $region16: #{tpu_custom_call.1} parent=11 // pred_fallthru
          _
        // Predicated region
        $region17: #{tpu_custom_call.1} parent=11 // pred_check
          %p498 = pneg %p97
        $region18: #{tpu_custom_call.1} parent=11 // pred_check_branch
          %500 = sbr.rel (%p498) target = $region20
        $region19: #{tpu_custom_call.1} parent=11 // pred_region
          _
        $region20: #{tpu_custom_call.1} parent=11 // pred_fallthru
          _
        // Predicated region
        $region21: #{tpu_custom_call.1} parent=11 // pred_check
          %p501 = pneg %p118
        $region22: #{tpu_custom_call.1} parent=11 // pred_check_branch
          %503 = sbr.rel (%p501) target = $region24
        $region23: #{tpu_custom_call.1} parent=11 // pred_region
          _
        $region24: #{tpu_custom_call.1} parent=11 // pred_fallthru
          _
        // Predicated region
        $region25: #{tpu_custom_call.1} parent=11 // pred_check
          %p504 = pneg %p139
        $region26: #{tpu_custom_call.1} parent=11 // pred_check_branch
          %506 = sbr.rel (%p504) target = $region28
        $region27: #{tpu_custom_call.1} parent=11 // pred_region
          _
        $region28: #{tpu_custom_call.1} parent=11 // pred_fallthru
          _
        // Predicated region
        $region29: #{tpu_custom_call.1} parent=11 // pred_check
          %p507 = pneg %p160
        $region30: #{tpu_custom_call.1} parent=11 // pred_check_branch
          %509 = sbr.rel (%p507) target = $region32
        $region31: #{tpu_custom_call.1} parent=11 // pred_region
          _
        $region32: #{tpu_custom_call.1} parent=11 // pred_fallthru
          _
        // Predicated region
        $region33: #{tpu_custom_call.1} parent=11 // pred_check
          %p510 = pneg %p181
        $region34: #{tpu_custom_call.1} parent=11 // pred_check_branch
          %512 = sbr.rel (%p510) target = $region36
        $region35: #{tpu_custom_call.1} parent=11 // pred_region
          _
        $region36: #{tpu_custom_call.1} parent=11 // pred_fallthru
          _
        // Predicated region
        $region37: #{tpu_custom_call.1} parent=11 // pred_check
          %p513 = pneg %p202
        $region38: #{tpu_custom_call.1} parent=11 // pred_check_branch
          %515 = sbr.rel (%p513) target = $region40
        $region39: #{tpu_custom_call.1} parent=11 // pred_region
          _
        $region40: #{tpu_custom_call.1} parent=11 // pred_fallthru
          _
        // Predicated region
        $region41: #{tpu_custom_call.1} parent=11 // pred_check
          %p516 = pneg %p223
        $region42: #{tpu_custom_call.1} parent=11 // pred_check_branch
          %518 = sbr.rel (%p516) target = $region44
        $region43: #{tpu_custom_call.1} parent=11 // pred_region
          _
        $region44: #{tpu_custom_call.1} parent=11 // pred_fallthru
          _
        // Predicated region
        $region45: #{tpu_custom_call.1} parent=11 // pred_check
          %p519 = pneg %p244
        $region46: #{tpu_custom_call.1} parent=11 // pred_check_branch
          %521 = sbr.rel (%p519) target = $region48
        $region47: #{tpu_custom_call.1} parent=11 // pred_region
          _
        $region48: #{tpu_custom_call.1} parent=11 // pred_fallthru
          _
        // Predicated region
        $region49: #{tpu_custom_call.1} parent=11 // pred_check
          %p522 = pneg %p265
        $region50: #{tpu_custom_call.1} parent=11 // pred_check_branch
          %524 = sbr.rel (%p522) target = $region52
        $region51: #{tpu_custom_call.1} parent=11 // pred_region
          _
        $region52: #{tpu_custom_call.1} parent=11 // pred_fallthru
          _
        // Predicated region
        $region53: #{tpu_custom_call.1} parent=11 // pred_check
          %p525 = pneg %p286
        $region54: #{tpu_custom_call.1} parent=11 // pred_check_branch
          %527 = sbr.rel (%p525) target = $region56
        $region55: #{tpu_custom_call.1} parent=11 // pred_region
          _
        $region56: #{tpu_custom_call.1} parent=11 // pred_fallthru
          _
        // Predicated region
        $region57: #{tpu_custom_call.1} parent=11 // pred_check
          %p528 = pneg %p307
        $region58: #{tpu_custom_call.1} parent=11 // pred_check_branch
          %530 = sbr.rel (%p528) target = $region60
        $region59: #{tpu_custom_call.1} parent=11 // pred_region
          _
        $region60: #{tpu_custom_call.1} parent=11 // pred_fallthru
          _
        // Predicated region
        $region61: #{tpu_custom_call.1} parent=11 // pred_check
          %p531 = pneg %p328
        $region62: #{tpu_custom_call.1} parent=11 // pred_check_branch
          %533 = sbr.rel (%p531) target = $region64
        $region63: #{tpu_custom_call.1} parent=11 // pred_region
          _
        $region64: #{tpu_custom_call.1} parent=11 // pred_fallthru
          _
        // Predicated region
        $region65: #{tpu_custom_call.1} parent=11 // pred_check
          %p534 = pneg %p349
        $region66: #{tpu_custom_call.1} parent=11 // pred_check_branch
          %536 = sbr.rel (%p534) target = $region68
        $region67: #{tpu_custom_call.1} parent=11 // pred_region
          _
        $region68: #{tpu_custom_call.1} parent=11 // pred_fallthru
          _
        // Predicated region
        $region69: #{tpu_custom_call.1} parent=11 // pred_check
          %p537 = pneg %p370
        $region70: #{tpu_custom_call.1} parent=11 // pred_check_branch
          %539 = sbr.rel (%p537) target = $region72
        $region71: #{tpu_custom_call.1} parent=11 // pred_region
          _
        $region72: #{tpu_custom_call.1} parent=11 // pred_fallthru
          _
        // Predicated region
        $region73: #{tpu_custom_call.1} parent=11 // pred_check
          %p540 = pneg %p391
        $region74: #{tpu_custom_call.1} parent=11 // pred_check_branch
          %542 = sbr.rel (%p540) target = $region76
        $region75: #{tpu_custom_call.1} parent=11 // pred_region
          _
        $region76: #{tpu_custom_call.1} parent=11 // pred_fallthru
          _
        // Predicated region
        $region77: #{tpu_custom_call.1} parent=11 // pred_check
          %p543 = pneg %p412
        $region78: #{tpu_custom_call.1} parent=11 // pred_check_branch
          %545 = sbr.rel (%p543) target = $region80
        $region79: #{tpu_custom_call.1} parent=11 // pred_region
          _
        $region80: #{tpu_custom_call.1} parent=11 // pred_fallthru
          _
        // Predicated region
        $region81: #{tpu_custom_call.1} parent=11 // pred_check
          %p546 = pneg %p433
        $region82: #{tpu_custom_call.1} parent=11 // pred_check_branch
          %548 = sbr.rel (%p546) target = $region84
        $region83: #{tpu_custom_call.1} parent=11 // pred_region
          _
        $region84: #{tpu_custom_call.1} parent=11 // pred_fallthru
          _
        // Predicated region
        $region85: #{tpu_custom_call.1} parent=11 // pred_check
          %p549 = pneg %p454
        $region86: #{tpu_custom_call.1} parent=11 // pred_check_branch
          %551 = sbr.rel (%p549) target = $region88
        $region87: #{tpu_custom_call.1} parent=11 // pred_region
          _
        $region88: #{tpu_custom_call.1} parent=11 // pred_fallthru
          _
      $region12: #{tpu_custom_call.1} parent=5 // pred_fallthru
        _
      %p552 = scmp.lt.s32.totalorder %s29, 2
      // Predicated region
      $region89: #{tpu_custom_call.1} parent=5 // pred_check
        %p553 = pneg %p552
      $region90: #{tpu_custom_call.1} parent=5 // pred_check_branch
        %555 = sbr.rel (%p553) target = $region92
      $region91: #{tpu_custom_call.1} parent=5 // pred_region
        // Predicated region
        $region93: #{tpu_custom_call.1} parent=91 // pred_check
          %p556 = pneg %p49
        $region94: #{tpu_custom_call.1} parent=91 // pred_check_branch
          %558 = sbr.rel (%p556) target = $region96
        $region95: #{tpu_custom_call.1} parent=91 // pred_region
          %s559 = smul.u32 8, %s29
          %p560 = scmp.lt.s32.totalorder %s559, 15
          %s561 = scalar_select %p560, %s559, 15
          %s562 = smul.addr %s561, 2
          %s563 = smul.addr %s562, 8
          %s564 = scalar_lea.vmem %s0, %s563
          %s565 = smul.u32 8, %s29
        $region96: #{tpu_custom_call.1} parent=91 // pred_fallthru
          _
      $region92: #{tpu_custom_call.1} parent=5 // pred_fallthru
        _
      %p566 = scmp.le.s32.totalorder 1, %s29
      %p567 = scmp.lt.s32.totalorder %s29, 3
      %p568 = pnand %p566, %p567
      %p569 = pneg %p568
      // Predicated region
      $region97: #{tpu_custom_call.1} parent=5 // pred_check
        _
      $region98: #{tpu_custom_call.1} parent=5 // pred_check_branch
        %571 = sbr.rel (%p568) target = $region100
      $region99: #{tpu_custom_call.1} parent=5 // pred_region
        %s572 = ssub.s32 %s29, 1
        %s573 = smul.u32 8, %s34
        %p574 = scmp.lt.s32.totalorder %s573, 15
        %s575 = scalar_select %p574, %s573, 15
        %s576 = smul.addr %s575, 2
        %s577 = smul.addr %s576, 8
        %s578 = scalar_lea.vmem %s0, %s577
        %p579 = pneg %p55
        %p580 = pneg %p52
        %p581 = pneg %p76
        %p582 = pneg %p73
        %p583 = pneg %p97
        %p584 = pneg %p94
        %p585 = pneg %p118
        %p586 = pneg %p115
        %p587 = pneg %p139
        %p588 = pneg %p136
        %p589 = pneg %p160
        %p590 = pneg %p157
        %p591 = pneg %p181
        %p592 = pneg %p178
        %p593 = pneg %p202
        %p594 = pneg %p199
        %p595 = pneg %p223
        %p596 = pneg %p220
        %p597 = pneg %p244
        %p598 = pneg %p241
        %p599 = pneg %p265
        %p600 = pneg %p262
        %p601 = pneg %p286
        %p602 = pneg %p283
        %p603 = pneg %p307
        %p604 = pneg %p304
        %p605 = pneg %p328
        %p606 = pneg %p325
        %p607 = pneg %p349
        %p608 = pneg %p346
        %p609 = pneg %p370
        %p610 = pneg %p367
        %p611 = pneg %p391
        %p612 = pneg %p388
        %p613 = pneg %p412
        %p614 = pneg %p409
        %p615 = pneg %p433
        %p616 = pneg %p430
        %p617 = pneg %p454
        %p618 = pneg %p451
        %p619 = pneg %p480
        %p620 = pneg %p477
        %s621 = sand.u32 %s467, 1
        %s622 = scalar_lea.sflag [#allocation3], %s621
        %s623 = sand.u32 %s467, 1
        %s624 = smul.addr %s623, 8
        %s625 = scalar_lea.vmem [#allocation2], %s624
        %s626 = smul.u32 8, %s34
        %p627 = scmp.lt.s32.totalorder %s626, 15
        %s628 = scalar_select %p627, %s626, 15
        %s629 = smul.addr %s628, 2
        %s630 = smul.addr %s629, 8
        %s631 = scalar_lea.vmem %s0, %s630
        %s632 = smul.u32 8, %s34
        %v634 = vld [vmem:[%s631] sm:$0xff]
        %v635 = vld [vmem:[%s631 + $0x8] sm:$0xff]
        %v636 = vld [vmem:[%s631 + $0x10] sm:$0xff]
        %v637 = vld [vmem:[%s631 + $0x18] sm:$0xff]
        %v638 = vld [vmem:[%s631 + $0x20] sm:$0xff]
        %v639 = vld [vmem:[%s631 + $0x28] sm:$0xff]
        %v640 = vld [vmem:[%s631 + $0x30] sm:$0xff]
        %v641 = vld [vmem:[%s631 + $0x38] sm:$0xff]
        %v642 = vld [vmem:[%s631 + $0x40] sm:$0xff]
        %v643 = vld [vmem:[%s631 + $0x48] sm:$0xff]
        %v644 = vld [vmem:[%s631 + $0x50] sm:$0xff]
        %v645 = vld [vmem:[%s631 + $0x58] sm:$0xff]
        %v646 = vld [vmem:[%s631 + $0x60] sm:$0xff]
        %v647 = vld [vmem:[%s631 + $0x68] sm:$0xff]
        %v648 = vld [vmem:[%s631 + $0x70] sm:$0xff]
        %v649 = vld [vmem:[%s631 + $0x78] sm:$0xff]
        %v650 = vpack.c.bf16 %v636, %v634
        %v651 = vpack.c.bf16 %v637, %v635
        %v652 = vpack.c.bf16 %v640, %v638
        %v653 = vpack.c.bf16 %v641, %v639
        %v654 = vpack.c.bf16 %v644, %v642
        %v655 = vpack.c.bf16 %v645, %v643
        %v656 = vpack.c.bf16 %v648, %v646
        %v657 = vpack.c.bf16 %v649, %v647
        %v658 = vld [vmem:[%s1] sm:$0xf]
        %v659 = vld [vmem:[%s1 + $0x4] sm:$0xf]
        %v660 = vld [vmem:[%s1 + $0x8] sm:$0xf]
        %v661 = vld [vmem:[%s1 + $0xc] sm:$0xf]
        %v662 = vld [vmem:[%s1 + $0x10] sm:$0xf]
        %v663 = vld [vmem:[%s1 + $0x14] sm:$0xf]
        %v664 = vld [vmem:[%s1 + $0x18] sm:$0xf]
        %v665 = vld [vmem:[%s1 + $0x1c] sm:$0xf]
        %v666 = vld [vmem:[%s1 + $0x20] sm:$0xf]
        %v667 = vld [vmem:[%s1 + $0x24] sm:$0xf]
        %v668 = vld [vmem:[%s1 + $0x28] sm:$0xf]
        %v669 = vld [vmem:[%s1 + $0x2c] sm:$0xf]
        %v670 = vld [vmem:[%s1 + $0x30] sm:$0xf]
        %v671 = vld [vmem:[%s1 + $0x34] sm:$0xf]
        %v672 = vld [vmem:[%s1 + $0x38] sm:$0xf]
        %v673 = vld [vmem:[%s1 + $0x3c] sm:$0xf]
        %v674 = vld [vmem:[%s1 + $0x40] sm:$0xf]
        %v675 = vld [vmem:[%s1 + $0x44] sm:$0xf]
        %v676 = vld [vmem:[%s1 + $0x48] sm:$0xf]
        %v677 = vld [vmem:[%s1 + $0x4c] sm:$0xf]
        %v678 = vld [vmem:[%s1 + $0x50] sm:$0xf]
        %v679 = vld [vmem:[%s1 + $0x54] sm:$0xf]
        %v680 = vld [vmem:[%s1 + $0x58] sm:$0xf]
        %v681 = vld [vmem:[%s1 + $0x5c] sm:$0xf]
        %v682 = vld [vmem:[%s2] sm:$0xff]
        %v683 = vld [vmem:[%s2 + $0x8] sm:$0xff]
        %v684 = vld [vmem:[%s2 + $0x10] sm:$0xff]
        %v685 = vld [vmem:[%s2 + $0x18] sm:$0xff]
        %v686 = vld [vmem:[%s2 + $0x20] sm:$0xff]
        %v687 = vld [vmem:[%s2 + $0x28] sm:$0xff]
        %v688 = vld [vmem:[%s2 + $0x30] sm:$0xff]
        %v689 = vld [vmem:[%s2 + $0x38] sm:$0xff]
        %v714 = vunpack.c.l.b16 %v658
        %v715 = vunpack.c.l.b16 %v659
        %v716 = vunpack.c.l.b16 %v660
        %v717 = vunpack.c.l.b16 %v661
        %v718 = vunpack.c.l.b16 %v662
        %v719 = vunpack.c.l.b16 %v663
        %v720 = vunpack.c.l.b16 %v664
        %v721 = vunpack.c.l.b16 %v665
        %v722 = vunpack.c.l.b16 %v666
        %v723 = vunpack.c.l.b16 %v667
        %v724 = vunpack.c.l.b16 %v668
        %v725 = vunpack.c.l.b16 %v669
        %v726 = vunpack.c.l.b16 %v670
        %v727 = vunpack.c.l.b16 %v671
        %v728 = vunpack.c.l.b16 %v672
        %v729 = vunpack.c.l.b16 %v673
        %v730 = vunpack.c.l.b16 %v674
        %v731 = vunpack.c.l.b16 %v675
        %v732 = vunpack.c.l.b16 %v676
        %v733 = vunpack.c.l.b16 %v677
        %v734 = vunpack.c.l.b16 %v678
        %v735 = vunpack.c.l.b16 %v679
        %v736 = vunpack.c.l.b16 %v680
        %v737 = vunpack.c.l.b16 %v681
        %v738 = vpack.c.b16 %v715, %v714
        %v739 = vpack.c.b16 %v717, %v716
        %v740 = vpack.c.b16 %v719, %v718
        %v741 = vpack.c.b16 %v721, %v720
        %v742 = vpack.c.b16 %v723, %v722
        %v743 = vpack.c.b16 %v725, %v724
        %v744 = vpack.c.b16 %v727, %v726
        %v745 = vpack.c.b16 %v729, %v728
        %v746 = vpack.c.b16 %v731, %v730
        %v747 = vpack.c.b16 %v733, %v732
        %v748 = vpack.c.b16 %v735, %v734
        %v749 = vpack.c.b16 %v737, %v736
        %vm762 = vcmask 523264
        %v764 = vsel %vm762, %v651, 0
        %v767 = vsel %vm762, %v653, 0
        %v770 = vsel %vm762, %v655, 0
        %v773 = vsel %vm762, %v657, 0
        %775 = vmatprep.subr.bf16.mxu0 0
        %776 = vmatpush1.bf16.msra.mxu0 %v745
        %777 = vmatprep.subr.bf16.mxu0 0
        %778 = vmatpush1.bf16.msra.mxu0 %v744
        %779 = vmatprep.subr.bf16.mxu0 0
        %780 = vmatpush1.bf16.msra.mxu0 %v743
        %781 = vmatprep.subr.bf16.mxu0 0
        %782 = vmatpush1.bf16.msra.mxu0 %v742
        %783 = vmatprep.subr.bf16.mxu0 0
        %784 = vmatpush1.bf16.msra.mxu0 %v741
        %785 = vmatprep.subr.bf16.mxu0 0
        %786 = vmatpush1.bf16.msra.mxu0 %v740
        %787 = vmatprep.subr.bf16.mxu0 0
        %788 = vmatpush1.bf16.msra.mxu0 %v739
        %789 = vmatprep.subr.bf16.mxu0 0
        %790 = vmatpush1.bf16.msra.mxu0 %v738
        %791 = vmatprep.subr.bf16.mxu0 0
        %792 = vmatpush2.bf16.msra.mxu0 0
        %793 = vmatprep.subr.bf16.mxu0 0
        %794 = vmatpush2.bf16.msra.mxu0 0
        %795 = vmatprep.subr.bf16.mxu0 0
        %796 = vmatpush2.bf16.msra.mxu0 0
        %797 = vmatprep.subr.bf16.mxu0 0
        %798 = vmatpush2.bf16.msra.mxu0 0
        %799 = vmatprep.subr.bf16.mxu0 0
        %800 = vmatpush2.bf16.msra.mxu0 %v749
        %801 = vmatprep.subr.bf16.mxu0 0
        %802 = vmatpush2.bf16.msra.mxu0 %v748
        %803 = vmatprep.subr.bf16.mxu0 0
        %804 = vmatpush2.bf16.msra.mxu0 %v747
        %805 = vmatprep.subr.bf16.mxu0 0
        %806 = vmatpush2.bf16.msra.mxu0 %v746
        %807 = vmatprep.mubr.bf16.mxu0 %v764
        %808 = vmatmul.mubr.bf16.gmra.mxu0 %v650
        %v809 = vpop.f32.mrf.mxu0
        %v810 = vadd.f32 %v682, %v809
        %v811 = vpop.f32.mrf.mxu0
        %v812 = vpop.f32.mrf.mxu0
        %v813 = vadd.f32 %v683, %v812
        %v814 = vpop.f32.mrf.mxu0
        %815 = vmatprep.mubr.bf16.mxu0 %v767
        %816 = vmatmul.mubr.bf16.gmra.mxu0 %v652
        %v817 = vpop.f32.mrf.mxu0
        %v818 = vadd.f32 %v684, %v817
        %v819 = vpop.f32.mrf.mxu0
        %v820 = vpop.f32.mrf.mxu0
        %v821 = vadd.f32 %v685, %v820
        %v822 = vpop.f32.mrf.mxu0
        %823 = vmatprep.mubr.bf16.mxu0 %v770
        %824 = vmatmul.mubr.bf16.gmra.mxu0 %v654
        %v825 = vpop.f32.mrf.mxu0
        %v826 = vadd.f32 %v686, %v825
        %v827 = vpop.f32.mrf.mxu0
        %v828 = vpop.f32.mrf.mxu0
        %v829 = vadd.f32 %v687, %v828
        %v830 = vpop.f32.mrf.mxu0
        %831 = vmatprep.mubr.bf16.mxu0 %v773
        %832 = vmatmul.mubr.bf16.gmra.mxu0 %v656
        %v833 = vpop.f32.mrf.mxu0
        %v834 = vadd.f32 %v688, %v833
        %v835 = vpop.f32.mrf.mxu0
        %v836 = vpop.f32.mrf.mxu0
        %v837 = vadd.f32 %v689, %v836
        %v838 = vpop.f32.mrf.mxu0
        %839 = vdwg.mxu0
        %v840 = vld [vmem:[%s3] sm:$0x1]
        %v841 = vld [vmem:[%s4] sm:$0x1]
        %vm842 = vcmask 261120
        %v843 = vsel %vm842, %v810, 0.0
        %844 = vadd.xlane.f32.xlu0 %v843
        %v845 = vpop.xlane.xlu0 %844
        %v846 = vsel %vm842, %v813, 0.0
        %847 = vadd.xlane.f32.xlu0 %v846
        %v848 = vpop.xlane.xlu0 %847
        %v849 = vsel %vm842, %v818, 0.0
        %850 = vadd.xlane.f32.xlu0 %v849
        %v851 = vpop.xlane.xlu0 %850
        %v852 = vsel %vm842, %v821, 0.0
        %853 = vadd.xlane.f32.xlu0 %v852
        %v854 = vpop.xlane.xlu0 %853
        %v855 = vsel %vm842, %v826, 0.0
        %856 = vadd.xlane.f32.xlu0 %v855
        %v857 = vpop.xlane.xlu0 %856
        %v858 = vsel %vm842, %v829, 0.0
        %859 = vadd.xlane.f32.xlu0 %v858
        %v860 = vpop.xlane.xlu0 %859
        %v861 = vsel %vm842, %v834, 0.0
        %862 = vadd.xlane.f32.xlu0 %v861
        %v863 = vpop.xlane.xlu0 %862
        %v864 = vsel %vm842, %v837, 0.0
        %865 = vadd.xlane.f32.xlu0 %v864
        %v866 = vpop.xlane.xlu0 %865
        %v867 = vrcp.pop 32.0
        %v868 = vmul.f32 %v845, %v867
        %v869 = vmul.f32 %v848, %v867
        %v870 = vmul.f32 %v851, %v867
        %v871 = vmul.f32 %v854, %v867
        %v872 = vmul.f32 %v857, %v867
        %v873 = vmul.f32 %v860, %v867
        %v874 = vmul.f32 %v863, %v867
        %v875 = vmul.f32 %v866, %v867
        %v876 = vsub.f32 %v810, %v868
        %v877 = vsub.f32 %v813, %v869
        %v878 = vsub.f32 %v818, %v870
        %v879 = vsub.f32 %v821, %v871
        %v880 = vsub.f32 %v826, %v872
        %v881 = vsub.f32 %v829, %v873
        %v882 = vsub.f32 %v834, %v874
        %v883 = vsub.f32 %v837, %v875
        %v884 = vmul.f32 %v876, %v876
        %v885 = vmul.f32 %v877, %v877
        %v886 = vmul.f32 %v878, %v878
        %v887 = vmul.f32 %v879, %v879
        %v888 = vmul.f32 %v880, %v880
        %v889 = vmul.f32 %v881, %v881
        %v890 = vmul.f32 %v882, %v882
        %v891 = vmul.f32 %v883, %v883
        %v892 = vsel %vm842, %v884, 0.0
        %893 = vadd.xlane.f32.xlu0 %v892
        %v894 = vpop.xlane.xlu0 %893
        %v895 = vsel %vm842, %v885, 0.0
        %896 = vadd.xlane.f32.xlu0 %v895
        %v897 = vpop.xlane.xlu0 %896
        %v898 = vsel %vm842, %v886, 0.0
        %899 = vadd.xlane.f32.xlu0 %v898
        %v900 = vpop.xlane.xlu0 %899
        %v901 = vsel %vm842, %v887, 0.0
        %902 = vadd.xlane.f32.xlu0 %v901
        %v903 = vpop.xlane.xlu0 %902
        %v904 = vsel %vm842, %v888, 0.0
        %905 = vadd.xlane.f32.xlu0 %v904
        %v906 = vpop.xlane.xlu0 %905
        %v907 = vsel %vm842, %v889, 0.0
        %908 = vadd.xlane.f32.xlu0 %v907
        %v909 = vpop.xlane.xlu0 %908
        %v910 = vsel %vm842, %v890, 0.0
        %911 = vadd.xlane.f32.xlu0 %v910
        %v912 = vpop.xlane.xlu0 %911
        %v913 = vsel %vm842, %v891, 0.0
        %914 = vadd.xlane.f32.xlu0 %v913
        %v915 = vpop.xlane.xlu0 %914
        %v916 = vmul.f32 %v894, %v867
        %v917 = vmul.f32 %v897, %v867
        %v918 = vmul.f32 %v900, %v867
        %v919 = vmul.f32 %v903, %v867
        %v920 = vmul.f32 %v906, %v867
        %v921 = vmul.f32 %v909, %v867
        %v922 = vmul.f32 %v912, %v867
        %v923 = vmul.f32 %v915, %v867
        %v924 = vadd.f32 %v916, 1e-05
        %v925 = vadd.f32 %v917, 1e-05
        %v926 = vadd.f32 %v918, 1e-05
        %v927 = vadd.f32 %v919, 1e-05
        %v928 = vadd.f32 %v920, 1e-05
        %v929 = vadd.f32 %v921, 1e-05
        %v930 = vadd.f32 %v922, 1e-05
        %v931 = vadd.f32 %v923, 1e-05
        %v932 = vrsqrt.pop %v924
        %v933 = vrsqrt.pop %v925
        %v934 = vrsqrt.pop %v926
        %v935 = vrsqrt.pop %v927
        %v936 = vrsqrt.pop %v928
        %v937 = vrsqrt.pop %v929
        %v938 = vrsqrt.pop %v930
        %v939 = vrsqrt.pop %v931
        %v940 = vmul.f32 %v876, %v932
        %v941 = vmul.f32 %v877, %v933
        %v942 = vmul.f32 %v878, %v934
        %v943 = vmul.f32 %v879, %v935
        %v944 = vmul.f32 %v880, %v936
        %v945 = vmul.f32 %v881, %v937
        %v946 = vmul.f32 %v882, %v938
        %v947 = vmul.f32 %v883, %v939
        %v949 = vlaneseq
        %v950 = vshrl.u32 %v949, 7
        %v951 = vsub.s32 0, %v950
        %v952 = vrot.slane %v840, %v951
        %v954 = vmul.f32 %v940, %v952
        %v955 = vmul.f32 %v941, %v952
        %v956 = vmul.f32 %v942, %v952
        %v957 = vmul.f32 %v943, %v952
        %v958 = vmul.f32 %v944, %v952
        %v959 = vmul.f32 %v945, %v952
        %v960 = vmul.f32 %v946, %v952
        %v961 = vmul.f32 %v947, %v952
        %v963 = vlaneseq
        %v964 = vshrl.u32 %v963, 7
        %v965 = vsub.s32 0, %v964
        %v966 = vrot.slane %v841, %v965
        %v968 = vadd.f32 %v954, %v966
        %v969 = vadd.f32 %v955, %v966
        %v970 = vadd.f32 %v956, %v966
        %v971 = vadd.f32 %v957, %v966
        %v972 = vadd.f32 %v958, %v966
        %v973 = vadd.f32 %v959, %v966
        %v974 = vadd.f32 %v960, %v966
        %v975 = vadd.f32 %v961, %v966
        %v976 = vlaneseq
        %v977 = vand.u32 %v976, 127
        %vm978 = vcmp.lt.s32.totalorder %v977, 5
        %v979 = vsel %vm978, 0.0, -1e+30
        %v980 = vld [vmem:[%s5] sm:$0x1]
        %v981 = vld [vmem:[%s6] sm:$0x1]
        %v982 = vsel %vm842, %v968, 0.0
        %983 = vadd.xlane.f32.xlu0 %v982
        %v984 = vpop.xlane.xlu0 %983
        %v985 = vsel %vm842, %v969, 0.0
        %986 = vadd.xlane.f32.xlu0 %v985
        %v987 = vpop.xlane.xlu0 %986
        %v988 = vsel %vm842, %v970, 0.0
        %989 = vadd.xlane.f32.xlu0 %v988
        %v990 = vpop.xlane.xlu0 %989
        %v991 = vsel %vm842, %v971, 0.0
        %992 = vadd.xlane.f32.xlu0 %v991
        %v993 = vpop.xlane.xlu0 %992
        %v994 = vsel %vm842, %v972, 0.0
        %995 = vadd.xlane.f32.xlu0 %v994
        %v996 = vpop.xlane.xlu0 %995
        %v997 = vsel %vm842, %v973, 0.0
        %998 = vadd.xlane.f32.xlu0 %v997
        %v999 = vpop.xlane.xlu0 %998
        %v1000 = vsel %vm842, %v974, 0.0
        %1001 = vadd.xlane.f32.xlu0 %v1000
        %v1002 = vpop.xlane.xlu0 %1001
        %v1003 = vsel %vm842, %v975, 0.0
        %1004 = vadd.xlane.f32.xlu0 %v1003
        %v1005 = vpop.xlane.xlu0 %1004
        %v1006 = vmul.f32 %v984, %v867
        %v1007 = vmul.f32 %v987, %v867
        %v1008 = vmul.f32 %v990, %v867
        %v1009 = vmul.f32 %v993, %v867
        %v1010 = vmul.f32 %v996, %v867
        %v1011 = vmul.f32 %v999, %v867
        %v1012 = vmul.f32 %v1002, %v867
        %v1013 = vmul.f32 %v1005, %v867
        %v1014 = vsub.f32 %v968, %v1006
        %v1015 = vsub.f32 %v969, %v1007
        %v1016 = vsub.f32 %v970, %v1008
        %v1017 = vsub.f32 %v971, %v1009
        %v1018 = vsub.f32 %v972, %v1010
        %v1019 = vsub.f32 %v973, %v1011
        %v1020 = vsub.f32 %v974, %v1012
        %v1021 = vsub.f32 %v975, %v1013
        %v1022 = vmul.f32 %v1014, %v1014
        %v1023 = vmul.f32 %v1015, %v1015
        %v1024 = vmul.f32 %v1016, %v1016
        %v1025 = vmul.f32 %v1017, %v1017
        %v1026 = vmul.f32 %v1018, %v1018
        %v1027 = vmul.f32 %v1019, %v1019
        %v1028 = vmul.f32 %v1020, %v1020
        %v1029 = vmul.f32 %v1021, %v1021
        %v1030 = vsel %vm842, %v1022, 0.0
        %1031 = vadd.xlane.f32.xlu0 %v1030
        %v1032 = vpop.xlane.xlu0 %1031
        %v1033 = vsel %vm842, %v1023, 0.0
        %1034 = vadd.xlane.f32.xlu0 %v1033
        %v1035 = vpop.xlane.xlu0 %1034
        %v1036 = vsel %vm842, %v1024, 0.0
        %1037 = vadd.xlane.f32.xlu0 %v1036
        %v1038 = vpop.xlane.xlu0 %1037
        %v1039 = vsel %vm842, %v1025, 0.0
        %1040 = vadd.xlane.f32.xlu0 %v1039
        %v1041 = vpop.xlane.xlu0 %1040
        %v1042 = vsel %vm842, %v1026, 0.0
        %1043 = vadd.xlane.f32.xlu0 %v1042
        %v1044 = vpop.xlane.xlu0 %1043
        %v1045 = vsel %vm842, %v1027, 0.0
        %1046 = vadd.xlane.f32.xlu0 %v1045
        %v1047 = vpop.xlane.xlu0 %1046
        %v1048 = vsel %vm842, %v1028, 0.0
        %1049 = vadd.xlane.f32.xlu0 %v1048
        %v1050 = vpop.xlane.xlu0 %1049
        %v1051 = vsel %vm842, %v1029, 0.0
        %1052 = vadd.xlane.f32.xlu0 %v1051
        %v1053 = vpop.xlane.xlu0 %1052
        %v1054 = vmul.f32 %v1032, %v867
        %v1055 = vmul.f32 %v1035, %v867
        %v1056 = vmul.f32 %v1038, %v867
        %v1057 = vmul.f32 %v1041, %v867
        %v1058 = vmul.f32 %v1044, %v867
        %v1059 = vmul.f32 %v1047, %v867
        %v1060 = vmul.f32 %v1050, %v867
        %v1061 = vmul.f32 %v1053, %v867
        %v1062 = vadd.f32 %v1054, 1e-05
        %v1063 = vadd.f32 %v1055, 1e-05
        %v1064 = vadd.f32 %v1056, 1e-05
        %v1065 = vadd.f32 %v1057, 1e-05
        %v1066 = vadd.f32 %v1058, 1e-05
        %v1067 = vadd.f32 %v1059, 1e-05
        %v1068 = vadd.f32 %v1060, 1e-05
        %v1069 = vadd.f32 %v1061, 1e-05
        %v1070 = vrsqrt.pop %v1062
        %v1071 = vrsqrt.pop %v1063
        %v1072 = vrsqrt.pop %v1064
        %v1073 = vrsqrt.pop %v1065
        %v1074 = vrsqrt.pop %v1066
        %v1075 = vrsqrt.pop %v1067
        %v1076 = vrsqrt.pop %v1068
        %v1077 = vrsqrt.pop %v1069
        %v1078 = vmul.f32 %v1014, %v1070
        %v1079 = vmul.f32 %v1015, %v1071
        %v1080 = vmul.f32 %v1016, %v1072
        %v1081 = vmul.f32 %v1017, %v1073
        %v1082 = vmul.f32 %v1018, %v1074
        %v1083 = vmul.f32 %v1019, %v1075
        %v1084 = vmul.f32 %v1020, %v1076
        %v1085 = vmul.f32 %v1021, %v1077
        %v1087 = vlaneseq
        %v1088 = vshrl.u32 %v1087, 7
        %v1089 = vsub.s32 0, %v1088
        %v1090 = vrot.slane %v980, %v1089
        %v1092 = vmul.f32 %v1078, %v1090
        %v1093 = vmul.f32 %v1079, %v1090
        %v1094 = vmul.f32 %v1080, %v1090
        %v1095 = vmul.f32 %v1081, %v1090
        %v1096 = vmul.f32 %v1082, %v1090
        %v1097 = vmul.f32 %v1083, %v1090
        %v1098 = vmul.f32 %v1084, %v1090
        %v1099 = vmul.f32 %v1085, %v1090
        %v1101 = vlaneseq
        %v1102 = vshrl.u32 %v1101, 7
        %v1103 = vsub.s32 0, %v1102
        %v1104 = vrot.slane %v981, %v1103
        %v1106 = vadd.f32 %v1092, %v1104
        %v1107 = vadd.f32 %v1093, %v1104
        %v1108 = vadd.f32 %v1094, %v1104
        %v1109 = vadd.f32 %v1095, %v1104
        %v1110 = vadd.f32 %v1096, %v1104
        %v1111 = vadd.f32 %v1097, %v1104
        %v1112 = vadd.f32 %v1098, %v1104
        %v1113 = vadd.f32 %v1099, %v1104
        %v1114 = vpack.c.bf16 %v1107, %v1106
        %v1115 = vpack.c.bf16 %v1109, %v1108
        %v1116 = vpack.c.bf16 %v1111, %v1110
        %v1117 = vpack.c.bf16 %v1113, %v1112
        %v1118 = vld [vmem:[%s7] sm:$0xf]
        %v1119 = vld [vmem:[%s7 + $0x4] sm:$0xf]
        %v1120 = vld [vmem:[%s7 + $0x8] sm:$0xf]
        %v1121 = vld [vmem:[%s7 + $0xc] sm:$0xf]
        %v1122 = vld [vmem:[%s8] sm:$0x1]
        %v1124 = vlaneseq
        %v1125 = vshrl.u32 %v1124, 7
        %v1126 = vsub.s32 0, %v1125
        %v1127 = vrot.slane %v1122, %v1126
        %v1133 = vunpack.c.l.b16 %v1118
        %v1134 = vunpack.c.l.b16 %v1119
        %v1135 = vunpack.c.l.b16 %v1120
        %v1136 = vunpack.c.l.b16 %v1121
        %v1137 = vpack.c.b16 %v1134, %v1133
        %v1138 = vpack.c.b16 %v1136, %v1135
        %v1142 = vsel %vm842, %v1114, 0
        %v1145 = vsel %vm842, %v1115, 0
        %v1148 = vsel %vm842, %v1116, 0
        %v1151 = vsel %vm842, %v1117, 0
        %1153 = vmatprep.subr.bf16.mxu0 0
        %1154 = vmatpush1.bf16.msra.mxu0 0
        %1155 = vmatprep.subr.bf16.mxu0 0
        %1156 = vmatpush1.bf16.msra.mxu0 0
        %1157 = vmatprep.subr.bf16.mxu0 0
        %1158 = vmatpush1.bf16.msra.mxu0 0
        %1159 = vmatprep.subr.bf16.mxu0 0
        %1160 = vmatpush1.bf16.msra.mxu0 0
        %1161 = vmatprep.subr.bf16.mxu0 0
        %1162 = vmatpush1.bf16.msra.mxu0 0
        %1163 = vmatprep.subr.bf16.mxu0 0
        %1164 = vmatpush1.bf16.msra.mxu0 0
        %1165 = vmatprep.subr.bf16.mxu0 0
        %1166 = vmatpush1.bf16.msra.mxu0 %v1138
        %1167 = vmatprep.subr.bf16.mxu0 0
        %1168 = vmatpush1.bf16.msra.mxu0 %v1137
        %1169 = vmatprep.subr.bf16.mxu0 0
        %1170 = vmatpush2.bf16.msra.mxu0 0
        %1171 = vmatprep.subr.bf16.mxu0 0
        %1172 = vmatpush2.bf16.msra.mxu0 0
        %1173 = vmatprep.subr.bf16.mxu0 0
        %1174 = vmatpush2.bf16.msra.mxu0 0
        %1175 = vmatprep.subr.bf16.mxu0 0
        %1176 = vmatpush2.bf16.msra.mxu0 0
        %1177 = vmatprep.subr.bf16.mxu0 0
        %1178 = vmatpush2.bf16.msra.mxu0 0
        %1179 = vmatprep.subr.bf16.mxu0 0
        %1180 = vmatpush2.bf16.msra.mxu0 0
        %1181 = vmatprep.subr.bf16.mxu0 0
        %1182 = vmatpush2.bf16.msra.mxu0 0
        %1183 = vmatprep.subr.bf16.mxu0 0
        %1184 = vmatpush2.bf16.msra.mxu0 0
        %1185 = vmatprep.mubr.bf16.mxu0 0
        %1186 = vmatmul.mubr.bf16.gmra.mxu0 %v1142
        %v1187 = vpop.f32.mrf.mxu0
        %v1188 = vadd.f32 %v1127, %v1187
        %v1189 = vpop.f32.mrf.mxu0
        %v1190 = vpop.f32.mrf.mxu0
        %v1191 = vadd.f32 %v1127, %v1190
        %v1192 = vpop.f32.mrf.mxu0
        %1193 = vmatprep.mubr.bf16.mxu0 0
        %1194 = vmatmul.mubr.bf16.gmra.mxu0 %v1145
        %v1195 = vpop.f32.mrf.mxu0
        %v1196 = vadd.f32 %v1127, %v1195
        %v1197 = vpop.f32.mrf.mxu0
        %v1198 = vpop.f32.mrf.mxu0
        %v1199 = vadd.f32 %v1127, %v1198
        %v1200 = vpop.f32.mrf.mxu0
        %1201 = vmatprep.mubr.bf16.mxu0 0
        %1202 = vmatmul.mubr.bf16.gmra.mxu0 %v1148
        %v1203 = vpop.f32.mrf.mxu0
        %v1204 = vadd.f32 %v1127, %v1203
        %v1205 = vpop.f32.mrf.mxu0
        %v1206 = vpop.f32.mrf.mxu0
        %v1207 = vadd.f32 %v1127, %v1206
        %v1208 = vpop.f32.mrf.mxu0
        %1209 = vmatprep.mubr.bf16.mxu0 0
        %1210 = vmatmul.mubr.bf16.gmra.mxu0 %v1151
        %v1211 = vpop.f32.mrf.mxu0
        %v1212 = vadd.f32 %v1127, %v1211
        %v1213 = vpop.f32.mrf.mxu0
        %v1214 = vpop.f32.mrf.mxu0
        %v1215 = vadd.f32 %v1127, %v1214
        %v1216 = vpop.f32.mrf.mxu0
        %1217 = vdwg.mxu0
        %v1218 = vld [vmem:[%s9] sm:$0xf]
        %v1219 = vld [vmem:[%s9 + $0x4] sm:$0xf]
        %v1220 = vld [vmem:[%s9 + $0x8] sm:$0xf]
        %v1221 = vld [vmem:[%s9 + $0xc] sm:$0xf]
        %v1222 = vpack.c.bf16 %v1188, %v1188
        %v1223 = vpack.c.bf16 %v1191, %v1191
        %v1224 = vpack.c.bf16 %v1196, %v1196
        %v1225 = vpack.c.bf16 %v1199, %v1199
        %v1226 = vpack.c.bf16 %v1204, %v1204
        %v1227 = vpack.c.bf16 %v1207, %v1207
        %v1228 = vpack.c.bf16 %v1212, %v1212
        %v1229 = vpack.c.bf16 %v1215, %v1215
        %1231 = vrot.lane.b32.xlu0 %v1222, 96
        %v1232 = vpop.permute.xlu0 %1231
        %vm1233 = vcmask 64512
        %v1235 = vsel %vm1233, %v1222, 0
        %v1238 = vsel %vm1233, %v1232, 0
        %1240 = vmatprep.subr.bf16.mxu0 0
        %1241 = vmatpush1.bf16.xpose.msra.mxu0 0
        %1242 = vmatprep.subr.bf16.mxu0 0
        %1243 = vmatpush1.bf16.xpose.msra.mxu0 0
        %1244 = vmatprep.subr.bf16.mxu0 0
        %1245 = vmatpush1.bf16.xpose.msra.mxu0 0
        %1246 = vmatprep.subr.bf16.mxu0 0
        %1247 = vmatpush1.bf16.xpose.msra.mxu0 0
        %1248 = vmatprep.subr.bf16.mxu0 0
        %1249 = vmatpush1.bf16.xpose.msra.mxu0 0
        %1250 = vmatprep.subr.bf16.mxu0 0
        %1251 = vmatpush1.bf16.xpose.msra.mxu0 0
        %1252 = vmatprep.subr.bf16.mxu0 0
        %1253 = vmatpush1.bf16.xpose.msra.mxu0 0
        %1254 = vmatprep.subr.bf16.mxu0 0
        %1255 = vmatpush1.bf16.xpose.msra.mxu0 %v1238
        %1256 = vmatprep.subr.bf16.mxu0 0
        %1257 = vmatpush2.bf16.xpose.msra.mxu0 0
        %1258 = vmatprep.subr.bf16.mxu0 0
        %1259 = vmatpush2.bf16.xpose.msra.mxu0 0
        %1260 = vmatprep.subr.bf16.mxu0 0
        %1261 = vmatpush2.bf16.xpose.msra.mxu0 0
        %1262 = vmatprep.subr.bf16.mxu0 0
        %1263 = vmatpush2.bf16.xpose.msra.mxu0 0
        %1264 = vmatprep.subr.bf16.mxu0 0
        %1265 = vmatpush2.bf16.xpose.msra.mxu0 0
        %1266 = vmatprep.subr.bf16.mxu0 0
        %1267 = vmatpush2.bf16.xpose.msra.mxu0 0
        %1268 = vmatprep.subr.bf16.mxu0 0
        %1269 = vmatpush2.bf16.xpose.msra.mxu0 0
        %1270 = vmatprep.subr.bf16.mxu0 0
        %1271 = vmatpush2.bf16.xpose.msra.mxu0 0
        %1272 = vmatprep.mubr.bf16.mxu0 0
        %1273 = vmatmul.mubr.bf16.gmra.mxu0 %v1235
        %v1274 = vpop.f32.mrf.mxu0
        %v1275 = vadd.f32 0.0, %v1274
        %v1276 = vpop.f32.mrf.mxu0
        %v1277 = vpop.f32.mrf.mxu0
        %v1278 = vpop.f32.mrf.mxu0
        %1279 = vdwg.mxu0
        %1281 = vrot.lane.b32.xlu0 %v1223, 96
        %v1282 = vpop.permute.xlu0 %1281
        %v1284 = vsel %vm1233, %v1223, 0
        %v1287 = vsel %vm1233, %v1282, 0
        %1289 = vmatprep.subr.bf16.mxu0 0
        %1290 = vmatpush1.bf16.xpose.msra.mxu0 0
        %1291 = vmatprep.subr.bf16.mxu0 0
        %1292 = vmatpush1.bf16.xpose.msra.mxu0 0
        %1293 = vmatprep.subr.bf16.mxu0 0
        %1294 = vmatpush1.bf16.xpose.msra.mxu0 0
        %1295 = vmatprep.subr.bf16.mxu0 0
        %1296 = vmatpush1.bf16.xpose.msra.mxu0 0
        %1297 = vmatprep.subr.bf16.mxu0 0
        %1298 = vmatpush1.bf16.xpose.msra.mxu0 0
        %1299 = vmatprep.subr.bf16.mxu0 0
        %1300 = vmatpush1.bf16.xpose.msra.mxu0 0
        %1301 = vmatprep.subr.bf16.mxu0 0
        %1302 = vmatpush1.bf16.xpose.msra.mxu0 0
        %1303 = vmatprep.subr.bf16.mxu0 0
        %1304 = vmatpush1.bf16.xpose.msra.mxu0 %v1287
        %1305 = vmatprep.subr.bf16.mxu0 0
        %1306 = vmatpush2.bf16.xpose.msra.mxu0 0
        %1307 = vmatprep.subr.bf16.mxu0 0
        %1308 = vmatpush2.bf16.xpose.msra.mxu0 0
        %1309 = vmatprep.subr.bf16.mxu0 0
        %1310 = vmatpush2.bf16.xpose.msra.mxu0 0
        %1311 = vmatprep.subr.bf16.mxu0 0
        %1312 = vmatpush2.bf16.xpose.msra.mxu0 0
        %1313 = vmatprep.subr.bf16.mxu0 0
        %1314 = vmatpush2.bf16.xpose.msra.mxu0 0
        %1315 = vmatprep.subr.bf16.mxu0 0
        %1316 = vmatpush2.bf16.xpose.msra.mxu0 0
        %1317 = vmatprep.subr.bf16.mxu0 0
        %1318 = vmatpush2.bf16.xpose.msra.mxu0 0
        %1319 = vmatprep.subr.bf16.mxu0 0
        %1320 = vmatpush2.bf16.xpose.msra.mxu0 0
        %1321 = vmatprep.mubr.bf16.mxu0 0
        %1322 = vmatmul.mubr.bf16.gmra.mxu0 %v1284
        %v1323 = vpop.f32.mrf.mxu0
        %v1324 = vadd.f32 0.0, %v1323
        %v1325 = vpop.f32.mrf.mxu0
        %v1326 = vpop.f32.mrf.mxu0
        %v1327 = vpop.f32.mrf.mxu0
        %1328 = vdwg.mxu0
        %1330 = vrot.lane.b32.xlu0 %v1224, 96
        %v1331 = vpop.permute.xlu0 %1330
        %v1333 = vsel %vm1233, %v1224, 0
        %v1336 = vsel %vm1233, %v1331, 0
        %1338 = vmatprep.subr.bf16.mxu0 0
        %1339 = vmatpush1.bf16.xpose.msra.mxu0 0
        %1340 = vmatprep.subr.bf16.mxu0 0
        %1341 = vmatpush1.bf16.xpose.msra.mxu0 0
        %1342 = vmatprep.subr.bf16.mxu0 0
        %1343 = vmatpush1.bf16.xpose.msra.mxu0 0
        %1344 = vmatprep.subr.bf16.mxu0 0
        %1345 = vmatpush1.bf16.xpose.msra.mxu0 0
        %1346 = vmatprep.subr.bf16.mxu0 0
        %1347 = vmatpush1.bf16.xpose.msra.mxu0 0
        %1348 = vmatprep.subr.bf16.mxu0 0
        %1349 = vmatpush1.bf16.xpose.msra.mxu0 0
        %1350 = vmatprep.subr.bf16.mxu0 0
        %1351 = vmatpush1.bf16.xpose.msra.mxu0 0
        %1352 = vmatprep.subr.bf16.mxu0 0
        %1353 = vmatpush1.bf16.xpose.msra.mxu0 %v1336
        %1354 = vmatprep.subr.bf16.mxu0 0
        %1355 = vmatpush2.bf16.xpose.msra.mxu0 0
        %1356 = vmatprep.subr.bf16.mxu0 0
        %1357 = vmatpush2.bf16.xpose.msra.mxu0 0
        %1358 = vmatprep.subr.bf16.mxu0 0
        %1359 = vmatpush2.bf16.xpose.msra.mxu0 0
        %1360 = vmatprep.subr.bf16.mxu0 0
        %1361 = vmatpush2.bf16.xpose.msra.mxu0 0
        %1362 = vmatprep.subr.bf16.mxu0 0
        %1363 = vmatpush2.bf16.xpose.msra.mxu0 0
        %1364 = vmatprep.subr.bf16.mxu0 0
        %1365 = vmatpush2.bf16.xpose.msra.mxu0 0
        %1366 = vmatprep.subr.bf16.mxu0 0
        %1367 = vmatpush2.bf16.xpose.msra.mxu0 0
        %1368 = vmatprep.subr.bf16.mxu0 0
        %1369 = vmatpush2.bf16.xpose.msra.mxu0 0
        %1370 = vmatprep.mubr.bf16.mxu0 0
        %1371 = vmatmul.mubr.bf16.gmra.mxu0 %v1333
        %v1372 = vpop.f32.mrf.mxu0
        %v1373 = vadd.f32 0.0, %v1372
        %v1374 = vpop.f32.mrf.mxu0
        %v1375 = vpop.f32.mrf.mxu0
        %v1376 = vpop.f32.mrf.mxu0
        %1377 = vdwg.mxu0
        %1379 = vrot.lane.b32.xlu0 %v1225, 96
        %v1380 = vpop.permute.xlu0 %1379
        %v1382 = vsel %vm1233, %v1225, 0
        %v1385 = vsel %vm1233, %v1380, 0
        %1387 = vmatprep.subr.bf16.mxu0 0
        %1388 = vmatpush1.bf16.xpose.msra.mxu0 0
        %1389 = vmatprep.subr.bf16.mxu0 0
        %1390 = vmatpush1.bf16.xpose.msra.mxu0 0
        %1391 = vmatprep.subr.bf16.mxu0 0
        %1392 = vmatpush1.bf16.xpose.msra.mxu0 0
        %1393 = vmatprep.subr.bf16.mxu0 0
        %1394 = vmatpush1.bf16.xpose.msra.mxu0 0
        %1395 = vmatprep.subr.bf16.mxu0 0
        %1396 = vmatpush1.bf16.xpose.msra.mxu0 0
        %1397 = vmatprep.subr.bf16.mxu0 0
        %1398 = vmatpush1.bf16.xpose.msra.mxu0 0
        %1399 = vmatprep.subr.bf16.mxu0 0
        %1400 = vmatpush1.bf16.xpose.msra.mxu0 0
        %1401 = vmatprep.subr.bf16.mxu0 0
        %1402 = vmatpush1.bf16.xpose.msra.mxu0 %v1385
        %1403 = vmatprep.subr.bf16.mxu0 0
        %1404 = vmatpush2.bf16.xpose.msra.mxu0 0
        %1405 = vmatprep.subr.bf16.mxu0 0
        %1406 = vmatpush2.bf16.xpose.msra.mxu0 0
        %1407 = vmatprep.subr.bf16.mxu0 0
        %1408 = vmatpush2.bf16.xpose.msra.mxu0 0
        %1409 = vmatprep.subr.bf16.mxu0 0
        %1410 = vmatpush2.bf16.xpose.msra.mxu0 0
        %1411 = vmatprep.subr.bf16.mxu0 0
        %1412 = vmatpush2.bf16.xpose.msra.mxu0 0
        %1413 = vmatprep.subr.bf16.mxu0 0
        %1414 = vmatpush2.bf16.xpose.msra.mxu0 0
        %1415 = vmatprep.subr.bf16.mxu0 0
        %1416 = vmatpush2.bf16.xpose.msra.mxu0 0
        %1417 = vmatprep.subr.bf16.mxu0 0
        %1418 = vmatpush2.bf16.xpose.msra.mxu0 0
        %1419 = vmatprep.mubr.bf16.mxu0 0
        %1420 = vmatmul.mubr.bf16.gmra.mxu0 %v1382
        %v1421 = vpop.f32.mrf.mxu0
        %v1422 = vadd.f32 0.0, %v1421
        %v1423 = vpop.f32.mrf.mxu0
        %v1424 = vpop.f32.mrf.mxu0
        %v1425 = vpop.f32.mrf.mxu0
        %1426 = vdwg.mxu0
        %1428 = vrot.lane.b32.xlu0 %v1226, 96
        %v1429 = vpop.permute.xlu0 %1428
        %v1431 = vsel %vm1233, %v1226, 0
        %v1434 = vsel %vm1233, %v1429, 0
        %1436 = vmatprep.subr.bf16.mxu0 0
        %1437 = vmatpush1.bf16.xpose.msra.mxu0 0
        %1438 = vmatprep.subr.bf16.mxu0 0
        %1439 = vmatpush1.bf16.xpose.msra.mxu0 0
        %1440 = vmatprep.subr.bf16.mxu0 0
        %1441 = vmatpush1.bf16.xpose.msra.mxu0 0
        %1442 = vmatprep.subr.bf16.mxu0 0
        %1443 = vmatpush1.bf16.xpose.msra.mxu0 0
        %1444 = vmatprep.subr.bf16.mxu0 0
        %1445 = vmatpush1.bf16.xpose.msra.mxu0 0
        %1446 = vmatprep.subr.bf16.mxu0 0
        %1447 = vmatpush1.bf16.xpose.msra.mxu0 0
        %1448 = vmatprep.subr.bf16.mxu0 0
        %1449 = vmatpush1.bf16.xpose.msra.mxu0 0
        %1450 = vmatprep.subr.bf16.mxu0 0
        %1451 = vmatpush1.bf16.xpose.msra.mxu0 %v1434
        %1452 = vmatprep.subr.bf16.mxu0 0
        %1453 = vmatpush2.bf16.xpose.msra.mxu0 0
        %1454 = vmatprep.subr.bf16.mxu0 0
        %1455 = vmatpush2.bf16.xpose.msra.mxu0 0
        %1456 = vmatprep.subr.bf16.mxu0 0
        %1457 = vmatpush2.bf16.xpose.msra.mxu0 0
        %1458 = vmatprep.subr.bf16.mxu0 0
        %1459 = vmatpush2.bf16.xpose.msra.mxu0 0
        %1460 = vmatprep.subr.bf16.mxu0 0
        %1461 = vmatpush2.bf16.xpose.msra.mxu0 0
        %1462 = vmatprep.subr.bf16.mxu0 0
        %1463 = vmatpush2.bf16.xpose.msra.mxu0 0
        %1464 = vmatprep.subr.bf16.mxu0 0
        %1465 = vmatpush2.bf16.xpose.msra.mxu0 0
        %1466 = vmatprep.subr.bf16.mxu0 0
        %1467 = vmatpush2.bf16.xpose.msra.mxu0 0
        %1468 = vmatprep.mubr.bf16.mxu0 0
        %1469 = vmatmul.mubr.bf16.gmra.mxu0 %v1431
        %v1470 = vpop.f32.mrf.mxu0
        %v1471 = vadd.f32 0.0, %v1470
        %v1472 = vpop.f32.mrf.mxu0
        %v1473 = vpop.f32.mrf.mxu0
        %v1474 = vpop.f32.mrf.mxu0
        %1475 = vdwg.mxu0
        %1477 = vrot.lane.b32.xlu0 %v1227, 96
        %v1478 = vpop.permute.xlu0 %1477
        %v1480 = vsel %vm1233, %v1227, 0
        %v1483 = vsel %vm1233, %v1478, 0
        %1485 = vmatprep.subr.bf16.mxu0 0
        %1486 = vmatpush1.bf16.xpose.msra.mxu0 0
        %1487 = vmatprep.subr.bf16.mxu0 0
        %1488 = vmatpush1.bf16.xpose.msra.mxu0 0
        %1489 = vmatprep.subr.bf16.mxu0 0
        %1490 = vmatpush1.bf16.xpose.msra.mxu0 0
        %1491 = vmatprep.subr.bf16.mxu0 0
        %1492 = vmatpush1.bf16.xpose.msra.mxu0 0
        %1493 = vmatprep.subr.bf16.mxu0 0
        %1494 = vmatpush1.bf16.xpose.msra.mxu0 0
        %1495 = vmatprep.subr.bf16.mxu0 0
        %1496 = vmatpush1.bf16.xpose.msra.mxu0 0
        %1497 = vmatprep.subr.bf16.mxu0 0
        %1498 = vmatpush1.bf16.xpose.msra.mxu0 0
        %1499 = vmatprep.subr.bf16.mxu0 0
        %1500 = vmatpush1.bf16.xpose.msra.mxu0 %v1483
        %1501 = vmatprep.subr.bf16.mxu0 0
        %1502 = vmatpush2.bf16.xpose.msra.mxu0 0
        %1503 = vmatprep.subr.bf16.mxu0 0
        %1504 = vmatpush2.bf16.xpose.msra.mxu0 0
        %1505 = vmatprep.subr.bf16.mxu0 0
        %1506 = vmatpush2.bf16.xpose.msra.mxu0 0
        %1507 = vmatprep.subr.bf16.mxu0 0
        %1508 = vmatpush2.bf16.xpose.msra.mxu0 0
        %1509 = vmatprep.subr.bf16.mxu0 0
        %1510 = vmatpush2.bf16.xpose.msra.mxu0 0
        %1511 = vmatprep.subr.bf16.mxu0 0
        %1512 = vmatpush2.bf16.xpose.msra.mxu0 0
        %1513 = vmatprep.subr.bf16.mxu0 0
        %1514 = vmatpush2.bf16.xpose.msra.mxu0 0
        %1515 = vmatprep.subr.bf16.mxu0 0
        %1516 = vmatpush2.bf16.xpose.msra.mxu0 0
        %1517 = vmatprep.mubr.bf16.mxu0 0
        %1518 = vmatmul.mubr.bf16.gmra.mxu0 %v1480
        %v1519 = vpop.f32.mrf.mxu0
        %v1520 = vadd.f32 0.0, %v1519
        %v1521 = vpop.f32.mrf.mxu0
        %v1522 = vpop.f32.mrf.mxu0
        %v1523 = vpop.f32.mrf.mxu0
        %1524 = vdwg.mxu0
        %1526 = vrot.lane.b32.xlu0 %v1228, 96
        %v1527 = vpop.permute.xlu0 %1526
        %v1529 = vsel %vm1233, %v1228, 0
        %v1532 = vsel %vm1233, %v1527, 0
        %1534 = vmatprep.subr.bf16.mxu0 0
        %1535 = vmatpush1.bf16.xpose.msra.mxu0 0
        %1536 = vmatprep.subr.bf16.mxu0 0
        %1537 = vmatpush1.bf16.xpose.msra.mxu0 0
        %1538 = vmatprep.subr.bf16.mxu0 0
        %1539 = vmatpush1.bf16.xpose.msra.mxu0 0
        %1540 = vmatprep.subr.bf16.mxu0 0
        %1541 = vmatpush1.bf16.xpose.msra.mxu0 0
        %1542 = vmatprep.subr.bf16.mxu0 0
        %1543 = vmatpush1.bf16.xpose.msra.mxu0 0
        %1544 = vmatprep.subr.bf16.mxu0 0
        %1545 = vmatpush1.bf16.xpose.msra.mxu0 0
        %1546 = vmatprep.subr.bf16.mxu0 0
        %1547 = vmatpush1.bf16.xpose.msra.mxu0 0
        %1548 = vmatprep.subr.bf16.mxu0 0
        %1549 = vmatpush1.bf16.xpose.msra.mxu0 %v1532
        %1550 = vmatprep.subr.bf16.mxu0 0
        %1551 = vmatpush2.bf16.xpose.msra.mxu0 0
        %1552 = vmatprep.subr.bf16.mxu0 0
        %1553 = vmatpush2.bf16.xpose.msra.mxu0 0
        %1554 = vmatprep.subr.bf16.mxu0 0
        %1555 = vmatpush2.bf16.xpose.msra.mxu0 0
        %1556 = vmatprep.subr.bf16.mxu0 0
        %1557 = vmatpush2.bf16.xpose.msra.mxu0 0
        %1558 = vmatprep.subr.bf16.mxu0 0
        %1559 = vmatpush2.bf16.xpose.msra.mxu0 0
        %1560 = vmatprep.subr.bf16.mxu0 0
        %1561 = vmatpush2.bf16.xpose.msra.mxu0 0
        %1562 = vmatprep.subr.bf16.mxu0 0
        %1563 = vmatpush2.bf16.xpose.msra.mxu0 0
        %1564 = vmatprep.subr.bf16.mxu0 0
        %1565 = vmatpush2.bf16.xpose.msra.mxu0 0
        %1566 = vmatprep.mubr.bf16.mxu0 0
        %1567 = vmatmul.mubr.bf16.gmra.mxu0 %v1529
        %v1568 = vpop.f32.mrf.mxu0
        %v1569 = vadd.f32 0.0, %v1568
        %v1570 = vpop.f32.mrf.mxu0
        %v1571 = vpop.f32.mrf.mxu0
        %v1572 = vpop.f32.mrf.mxu0
        %1573 = vdwg.mxu0
        %1575 = vrot.lane.b32.xlu0 %v1229, 96
        %v1576 = vpop.permute.xlu0 %1575
        %v1578 = vsel %vm1233, %v1229, 0
        %v1581 = vsel %vm1233, %v1576, 0
        %1583 = vmatprep.subr.bf16.mxu0 0
        %1584 = vmatpush1.bf16.xpose.msra.mxu0 0
        %1585 = vmatprep.subr.bf16.mxu0 0
        %1586 = vmatpush1.bf16.xpose.msra.mxu0 0
        %1587 = vmatprep.subr.bf16.mxu0 0
        %1588 = vmatpush1.bf16.xpose.msra.mxu0 0
        %1589 = vmatprep.subr.bf16.mxu0 0
        %1590 = vmatpush1.bf16.xpose.msra.mxu0 0
        %1591 = vmatprep.subr.bf16.mxu0 0
        %1592 = vmatpush1.bf16.xpose.msra.mxu0 0
        %1593 = vmatprep.subr.bf16.mxu0 0
        %1594 = vmatpush1.bf16.xpose.msra.mxu0 0
        %1595 = vmatprep.subr.bf16.mxu0 0
        %1596 = vmatpush1.bf16.xpose.msra.mxu0 0
        %1597 = vmatprep.subr.bf16.mxu0 0
        %1598 = vmatpush1.bf16.xpose.msra.mxu0 %v1581
        %1599 = vmatprep.subr.bf16.mxu0 0
        %1600 = vmatpush2.bf16.xpose.msra.mxu0 0
        %1601 = vmatprep.subr.bf16.mxu0 0
        %1602 = vmatpush2.bf16.xpose.msra.mxu0 0
        %1603 = vmatprep.subr.bf16.mxu0 0
        %1604 = vmatpush2.bf16.xpose.msra.mxu0 0
        %1605 = vmatprep.subr.bf16.mxu0 0
        %1606 = vmatpush2.bf16.xpose.msra.mxu0 0
        %1607 = vmatprep.subr.bf16.mxu0 0
        %1608 = vmatpush2.bf16.xpose.msra.mxu0 0
        %1609 = vmatprep.subr.bf16.mxu0 0
        %1610 = vmatpush2.bf16.xpose.msra.mxu0 0
        %1611 = vmatprep.subr.bf16.mxu0 0
        %1612 = vmatpush2.bf16.xpose.msra.mxu0 0
        %1613 = vmatprep.subr.bf16.mxu0 0
        %1614 = vmatpush2.bf16.xpose.msra.mxu0 0
        %1615 = vmatprep.mubr.bf16.mxu0 0
        %1616 = vmatmul.mubr.bf16.gmra.mxu0 %v1578
        %v1617 = vpop.f32.mrf.mxu0
        %v1618 = vadd.f32 0.0, %v1617
        %v1619 = vpop.f32.mrf.mxu0
        %v1620 = vpop.f32.mrf.mxu0
        %v1621 = vpop.f32.mrf.mxu0
        %1622 = vdwg.mxu0
        %v1623 = vmul.f32 %v1275, 0.35355338
        %v1624 = vmul.f32 %v1324, 0.35355338
        %v1625 = vmul.f32 %v1373, 0.35355338
        %v1626 = vmul.f32 %v1422, 0.35355338
        %v1627 = vmul.f32 %v1471, 0.35355338
        %v1628 = vmul.f32 %v1520, 0.35355338
        %v1629 = vmul.f32 %v1569, 0.35355338
        %v1630 = vmul.f32 %v1618, 0.35355338
        %v1631 = vadd.f32 %v1623, %v979
        %v1632 = vadd.f32 %v1624, %v979
        %v1633 = vadd.f32 %v1625, %v979
        %v1634 = vadd.f32 %v1626, %v979
        %v1635 = vadd.f32 %v1627, %v979
        %v1636 = vadd.f32 %v1628, %v979
        %v1637 = vadd.f32 %v1629, %v979
        %v1638 = vadd.f32 %v1630, %v979
        %v1639 = vsel %vm1233, %v1631, -inf
        %1640 = vmax.xlane.f32.xlu0 %v1639
        %v1641 = vpop.xlane.xlu0 %1640
        %v1642 = vsel %vm1233, %v1632, -inf
        %1643 = vmax.xlane.f32.xlu0 %v1642
        %v1644 = vpop.xlane.xlu0 %1643
        %v1645 = vsel %vm1233, %v1633, -inf
        %1646 = vmax.xlane.f32.xlu0 %v1645
        %v1647 = vpop.xlane.xlu0 %1646
        %v1648 = vsel %vm1233, %v1634, -inf
        %1649 = vmax.xlane.f32.xlu0 %v1648
        %v1650 = vpop.xlane.xlu0 %1649
        %v1651 = vsel %vm1233, %v1635, -inf
        %1652 = vmax.xlane.f32.xlu0 %v1651
        %v1653 = vpop.xlane.xlu0 %1652
        %v1654 = vsel %vm1233, %v1636, -inf
        %1655 = vmax.xlane.f32.xlu0 %v1654
        %v1656 = vpop.xlane.xlu0 %1655
        %v1657 = vsel %vm1233, %v1637, -inf
        %1658 = vmax.xlane.f32.xlu0 %v1657
        %v1659 = vpop.xlane.xlu0 %1658
        %v1660 = vsel %vm1233, %v1638, -inf
        %1661 = vmax.xlane.f32.xlu0 %v1660
        %v1662 = vpop.xlane.xlu0 %1661
        %v1663 = vsub.f32 %v1631, %v1641
        %v1664 = vsub.f32 %v1632, %v1644
        %v1665 = vsub.f32 %v1633, %v1647
        %v1666 = vsub.f32 %v1634, %v1650
        %v1667 = vsub.f32 %v1635, %v1653
        %v1668 = vsub.f32 %v1636, %v1656
        %v1669 = vsub.f32 %v1637, %v1659
        %v1670 = vsub.f32 %v1638, %v1662
        %v1671 = vmul.f32 %v1663, 1.442695
        %v1672 = vpow.pop %v1671
        %v1673 = vmul.f32 %v1664, 1.442695
        %v1674 = vpow.pop %v1673
        %v1675 = vmul.f32 %v1665, 1.442695
        %v1676 = vpow.pop %v1675
        %v1677 = vmul.f32 %v1666, 1.442695
        %v1678 = vpow.pop %v1677
        %v1679 = vmul.f32 %v1667, 1.442695
        %v1680 = vpow.pop %v1679
        %v1681 = vmul.f32 %v1668, 1.442695
        %v1682 = vpow.pop %v1681
        %v1683 = vmul.f32 %v1669, 1.442695
        %v1684 = vpow.pop %v1683
        %v1685 = vmul.f32 %v1670, 1.442695
        %v1686 = vpow.pop %v1685
        %v1687 = vsel %vm1233, %v1672, 0.0
        %1688 = vadd.xlane.f32.xlu0 %v1687
        %v1689 = vpop.xlane.xlu0 %1688
        %v1690 = vsel %vm1233, %v1674, 0.0
        %1691 = vadd.xlane.f32.xlu0 %v1690
        %v1692 = vpop.xlane.xlu0 %1691
        %v1693 = vsel %vm1233, %v1676, 0.0
        %1694 = vadd.xlane.f32.xlu0 %v1693
        %v1695 = vpop.xlane.xlu0 %1694
        %v1696 = vsel %vm1233, %v1678, 0.0
        %1697 = vadd.xlane.f32.xlu0 %v1696
        %v1698 = vpop.xlane.xlu0 %1697
        %v1699 = vsel %vm1233, %v1680, 0.0
        %1700 = vadd.xlane.f32.xlu0 %v1699
        %v1701 = vpop.xlane.xlu0 %1700
        %v1702 = vsel %vm1233, %v1682, 0.0
        %1703 = vadd.xlane.f32.xlu0 %v1702
        %v1704 = vpop.xlane.xlu0 %1703
        %v1705 = vsel %vm1233, %v1684, 0.0
        %1706 = vadd.xlane.f32.xlu0 %v1705
        %v1707 = vpop.xlane.xlu0 %1706
        %v1708 = vsel %vm1233, %v1686, 0.0
        %1709 = vadd.xlane.f32.xlu0 %v1708
        %v1710 = vpop.xlane.xlu0 %1709
        %v1711 = vrcp.pop %v1689
        %v1712 = vrcp.pop %v1692
        %v1713 = vrcp.pop %v1695
        %v1714 = vrcp.pop %v1698
        %v1715 = vrcp.pop %v1701
        %v1716 = vrcp.pop %v1704
        %v1717 = vrcp.pop %v1707
        %v1718 = vrcp.pop %v1710
        %v1719 = vmul.f32 %v1672, %v1711
        %v1720 = vmul.f32 %v1674, %v1712
        %v1721 = vmul.f32 %v1676, %v1713
        %v1722 = vmul.f32 %v1678, %v1714
        %v1723 = vmul.f32 %v1680, %v1715
        %v1724 = vmul.f32 %v1682, %v1716
        %v1725 = vmul.f32 %v1684, %v1717
        %v1726 = vmul.f32 %v1686, %v1718
        %v1727 = vpack.c.bf16 %v1719, %v1719
        %v1728 = vpack.c.bf16 %v1720, %v1720
        %v1729 = vpack.c.bf16 %v1721, %v1721
        %v1730 = vpack.c.bf16 %v1722, %v1722
        %v1731 = vpack.c.bf16 %v1723, %v1723
        %v1732 = vpack.c.bf16 %v1724, %v1724
        %v1733 = vpack.c.bf16 %v1725, %v1725
        %v1734 = vpack.c.bf16 %v1726, %v1726
        %1735 = vrot.lane.b32.xlu0 %v1222, 64
        %v1736 = vpop.permute.xlu0 %1735
        %v1738 = vsel %vm1233, %v1727, 0
        %vm1740 = vcmask 1043456
        %v1742 = vsel %vm1740, %v1736, 0
        %1744 = vmatprep.subr.bf16.mxu0 0
        %1745 = vmatpush1.bf16.msra.mxu0 0
        %1746 = vmatprep.subr.bf16.mxu0 0
        %1747 = vmatpush1.bf16.msra.mxu0 0
        %1748 = vmatprep.subr.bf16.mxu0 0
        %1749 = vmatpush1.bf16.msra.mxu0 0
        %1750 = vmatprep.subr.bf16.mxu0 0
        %1751 = vmatpush1.bf16.msra.mxu0 0
        %1752 = vmatprep.subr.bf16.mxu0 0
        %1753 = vmatpush1.bf16.msra.mxu0 0
        %1754 = vmatprep.subr.bf16.mxu0 0
        %1755 = vmatpush1.bf16.msra.mxu0 0
        %1756 = vmatprep.subr.bf16.mxu0 0
        %1757 = vmatpush1.bf16.msra.mxu0 0
        %1758 = vmatprep.subr.bf16.mxu0 0
        %1759 = vmatpush1.bf16.msra.mxu0 %v1742
        %1760 = vmatprep.subr.bf16.mxu0 0
        %1761 = vmatpush2.bf16.msra.mxu0 0
        %1762 = vmatprep.subr.bf16.mxu0 0
        %1763 = vmatpush2.bf16.msra.mxu0 0
        %1764 = vmatprep.subr.bf16.mxu0 0
        %1765 = vmatpush2.bf16.msra.mxu0 0
        %1766 = vmatprep.subr.bf16.mxu0 0
        %1767 = vmatpush2.bf16.msra.mxu0 0
        %1768 = vmatprep.subr.bf16.mxu0 0
        %1769 = vmatpush2.bf16.msra.mxu0 0
        %1770 = vmatprep.subr.bf16.mxu0 0
        %1771 = vmatpush2.bf16.msra.mxu0 0
        %1772 = vmatprep.subr.bf16.mxu0 0
        %1773 = vmatpush2.bf16.msra.mxu0 0
        %1774 = vmatprep.subr.bf16.mxu0 0
        %1775 = vmatpush2.bf16.msra.mxu0 0
        %1776 = vmatprep.mubr.bf16.mxu0 0
        %1777 = vmatmul.mubr.bf16.gmra.mxu0 %v1738
        %v1778 = vpop.f32.mrf.mxu0
        %v1779 = vadd.f32 0.0, %v1778
        %v1780 = vpop.f32.mrf.mxu0
        %v1781 = vpop.f32.mrf.mxu0
        %v1782 = vpop.f32.mrf.mxu0
        %1783 = vdwg.mxu0
        %1784 = vrot.lane.b32.xlu0 %v1223, 64
        %v1785 = vpop.permute.xlu0 %1784
        %v1787 = vsel %vm1233, %v1728, 0
        %v1790 = vsel %vm1740, %v1785, 0
        %1792 = vmatprep.subr.bf16.mxu0 0
        %1793 = vmatpush1.bf16.msra.mxu0 0
        %1794 = vmatprep.subr.bf16.mxu0 0
        %1795 = vmatpush1.bf16.msra.mxu0 0
        %1796 = vmatprep.subr.bf16.mxu0 0
        %1797 = vmatpush1.bf16.msra.mxu0 0
        %1798 = vmatprep.subr.bf16.mxu0 0
        %1799 = vmatpush1.bf16.msra.mxu0 0
        %1800 = vmatprep.subr.bf16.mxu0 0
        %1801 = vmatpush1.bf16.msra.mxu0 0
        %1802 = vmatprep.subr.bf16.mxu0 0
        %1803 = vmatpush1.bf16.msra.mxu0 0
        %1804 = vmatprep.subr.bf16.mxu0 0
        %1805 = vmatpush1.bf16.msra.mxu0 0
        %1806 = vmatprep.subr.bf16.mxu0 0
        %1807 = vmatpush1.bf16.msra.mxu0 %v1790
        %1808 = vmatprep.subr.bf16.mxu0 0
        %1809 = vmatpush2.bf16.msra.mxu0 0
        %1810 = vmatprep.subr.bf16.mxu0 0
        %1811 = vmatpush2.bf16.msra.mxu0 0
        %1812 = vmatprep.subr.bf16.mxu0 0
        %1813 = vmatpush2.bf16.msra.mxu0 0
        %1814 = vmatprep.subr.bf16.mxu0 0
        %1815 = vmatpush2.bf16.msra.mxu0 0
        %1816 = vmatprep.subr.bf16.mxu0 0
        %1817 = vmatpush2.bf16.msra.mxu0 0
        %1818 = vmatprep.subr.bf16.mxu0 0
        %1819 = vmatpush2.bf16.msra.mxu0 0
        %1820 = vmatprep.subr.bf16.mxu0 0
        %1821 = vmatpush2.bf16.msra.mxu0 0
        %1822 = vmatprep.subr.bf16.mxu0 0
        %1823 = vmatpush2.bf16.msra.mxu0 0
        %1824 = vmatprep.mubr.bf16.mxu0 0
        %1825 = vmatmul.mubr.bf16.gmra.mxu0 %v1787
        %v1826 = vpop.f32.mrf.mxu0
        %v1827 = vadd.f32 0.0, %v1826
        %v1828 = vpop.f32.mrf.mxu0
        %v1829 = vpop.f32.mrf.mxu0
        %v1830 = vpop.f32.mrf.mxu0
        %1831 = vdwg.mxu0
        %1832 = vrot.lane.b32.xlu0 %v1224, 64
        %v1833 = vpop.permute.xlu0 %1832
        %v1835 = vsel %vm1233, %v1729, 0
        %v1838 = vsel %vm1740, %v1833, 0
        %1840 = vmatprep.subr.bf16.mxu0 0
        %1841 = vmatpush1.bf16.msra.mxu0 0
        %1842 = vmatprep.subr.bf16.mxu0 0
        %1843 = vmatpush1.bf16.msra.mxu0 0
        %1844 = vmatprep.subr.bf16.mxu0 0
        %1845 = vmatpush1.bf16.msra.mxu0 0
        %1846 = vmatprep.subr.bf16.mxu0 0
        %1847 = vmatpush1.bf16.msra.mxu0 0
        %1848 = vmatprep.subr.bf16.mxu0 0
        %1849 = vmatpush1.bf16.msra.mxu0 0
        %1850 = vmatprep.subr.bf16.mxu0 0
        %1851 = vmatpush1.bf16.msra.mxu0 0
        %1852 = vmatprep.subr.bf16.mxu0 0
        %1853 = vmatpush1.bf16.msra.mxu0 0
        %1854 = vmatprep.subr.bf16.mxu0 0
        %1855 = vmatpush1.bf16.msra.mxu0 %v1838
        %1856 = vmatprep.subr.bf16.mxu0 0
        %1857 = vmatpush2.bf16.msra.mxu0 0
        %1858 = vmatprep.subr.bf16.mxu0 0
        %1859 = vmatpush2.bf16.msra.mxu0 0
        %1860 = vmatprep.subr.bf16.mxu0 0
        %1861 = vmatpush2.bf16.msra.mxu0 0
        %1862 = vmatprep.subr.bf16.mxu0 0
        %1863 = vmatpush2.bf16.msra.mxu0 0
        %1864 = vmatprep.subr.bf16.mxu0 0
        %1865 = vmatpush2.bf16.msra.mxu0 0
        %1866 = vmatprep.subr.bf16.mxu0 0
        %1867 = vmatpush2.bf16.msra.mxu0 0
        %1868 = vmatprep.subr.bf16.mxu0 0
        %1869 = vmatpush2.bf16.msra.mxu0 0
        %1870 = vmatprep.subr.bf16.mxu0 0
        %1871 = vmatpush2.bf16.msra.mxu0 0
        %1872 = vmatprep.mubr.bf16.mxu0 0
        %1873 = vmatmul.mubr.bf16.gmra.mxu0 %v1835
        %v1874 = vpop.f32.mrf.mxu0
        %v1875 = vadd.f32 0.0, %v1874
        %v1876 = vpop.f32.mrf.mxu0
        %v1877 = vpop.f32.mrf.mxu0
        %v1878 = vpop.f32.mrf.mxu0
        %1879 = vdwg.mxu0
        %1880 = vrot.lane.b32.xlu0 %v1225, 64
        %v1881 = vpop.permute.xlu0 %1880
        %v1883 = vsel %vm1233, %v1730, 0
        %v1886 = vsel %vm1740, %v1881, 0
        %1888 = vmatprep.subr.bf16.mxu0 0
        %1889 = vmatpush1.bf16.msra.mxu0 0
        %1890 = vmatprep.subr.bf16.mxu0 0
        %1891 = vmatpush1.bf16.msra.mxu0 0
        %1892 = vmatprep.subr.bf16.mxu0 0
        %1893 = vmatpush1.bf16.msra.mxu0 0
        %1894 = vmatprep.subr.bf16.mxu0 0
        %1895 = vmatpush1.bf16.msra.mxu0 0
        %1896 = vmatprep.subr.bf16.mxu0 0
        %1897 = vmatpush1.bf16.msra.mxu0 0
        %1898 = vmatprep.subr.bf16.mxu0 0
        %1899 = vmatpush1.bf16.msra.mxu0 0
        %1900 = vmatprep.subr.bf16.mxu0 0
        %1901 = vmatpush1.bf16.msra.mxu0 0
        %1902 = vmatprep.subr.bf16.mxu0 0
        %1903 = vmatpush1.bf16.msra.mxu0 %v1886
        %1904 = vmatprep.subr.bf16.mxu0 0
        %1905 = vmatpush2.bf16.msra.mxu0 0
        %1906 = vmatprep.subr.bf16.mxu0 0
        %1907 = vmatpush2.bf16.msra.mxu0 0
        %1908 = vmatprep.subr.bf16.mxu0 0
        %1909 = vmatpush2.bf16.msra.mxu0 0
        %1910 = vmatprep.subr.bf16.mxu0 0
        %1911 = vmatpush2.bf16.msra.mxu0 0
        %1912 = vmatprep.subr.bf16.mxu0 0
        %1913 = vmatpush2.bf16.msra.mxu0 0
        %1914 = vmatprep.subr.bf16.mxu0 0
        %1915 = vmatpush2.bf16.msra.mxu0 0
        %1916 = vmatprep.subr.bf16.mxu0 0
        %1917 = vmatpush2.bf16.msra.mxu0 0
        %1918 = vmatprep.subr.bf16.mxu0 0
        %1919 = vmatpush2.bf16.msra.mxu0 0
        %1920 = vmatprep.mubr.bf16.mxu0 0
        %1921 = vmatmul.mubr.bf16.gmra.mxu0 %v1883
        %v1922 = vpop.f32.mrf.mxu0
        %v1923 = vadd.f32 0.0, %v1922
        %v1924 = vpop.f32.mrf.mxu0
        %v1925 = vpop.f32.mrf.mxu0
        %v1926 = vpop.f32.mrf.mxu0
        %1927 = vdwg.mxu0
        %1928 = vrot.lane.b32.xlu0 %v1226, 64
        %v1929 = vpop.permute.xlu0 %1928
        %v1931 = vsel %vm1233, %v1731, 0
        %v1934 = vsel %vm1740, %v1929, 0
        %1936 = vmatprep.subr.bf16.mxu0 0
        %1937 = vmatpush1.bf16.msra.mxu0 0
        %1938 = vmatprep.subr.bf16.mxu0 0
        %1939 = vmatpush1.bf16.msra.mxu0 0
        %1940 = vmatprep.subr.bf16.mxu0 0
        %1941 = vmatpush1.bf16.msra.mxu0 0
        %1942 = vmatprep.subr.bf16.mxu0 0
        %1943 = vmatpush1.bf16.msra.mxu0 0
        %1944 = vmatprep.subr.bf16.mxu0 0
        %1945 = vmatpush1.bf16.msra.mxu0 0
        %1946 = vmatprep.subr.bf16.mxu0 0
        %1947 = vmatpush1.bf16.msra.mxu0 0
        %1948 = vmatprep.subr.bf16.mxu0 0
        %1949 = vmatpush1.bf16.msra.mxu0 0
        %1950 = vmatprep.subr.bf16.mxu0 0
        %1951 = vmatpush1.bf16.msra.mxu0 %v1934
        %1952 = vmatprep.subr.bf16.mxu0 0
        %1953 = vmatpush2.bf16.msra.mxu0 0
        %1954 = vmatprep.subr.bf16.mxu0 0
        %1955 = vmatpush2.bf16.msra.mxu0 0
        %1956 = vmatprep.subr.bf16.mxu0 0
        %1957 = vmatpush2.bf16.msra.mxu0 0
        %1958 = vmatprep.subr.bf16.mxu0 0
        %1959 = vmatpush2.bf16.msra.mxu0 0
        %1960 = vmatprep.subr.bf16.mxu0 0
        %1961 = vmatpush2.bf16.msra.mxu0 0
        %1962 = vmatprep.subr.bf16.mxu0 0
        %1963 = vmatpush2.bf16.msra.mxu0 0
        %1964 = vmatprep.subr.bf16.mxu0 0
        %1965 = vmatpush2.bf16.msra.mxu0 0
        %1966 = vmatprep.subr.bf16.mxu0 0
        %1967 = vmatpush2.bf16.msra.mxu0 0
        %1968 = vmatprep.mubr.bf16.mxu0 0
        %1969 = vmatmul.mubr.bf16.gmra.mxu0 %v1931
        %v1970 = vpop.f32.mrf.mxu0
        %v1971 = vadd.f32 0.0, %v1970
        %v1972 = vpop.f32.mrf.mxu0
        %v1973 = vpop.f32.mrf.mxu0
        %v1974 = vpop.f32.mrf.mxu0
        %1975 = vdwg.mxu0
        %1976 = vrot.lane.b32.xlu0 %v1227, 64
        %v1977 = vpop.permute.xlu0 %1976
        %v1979 = vsel %vm1233, %v1732, 0
        %v1982 = vsel %vm1740, %v1977, 0
        %1984 = vmatprep.subr.bf16.mxu0 0
        %1985 = vmatpush1.bf16.msra.mxu0 0
        %1986 = vmatprep.subr.bf16.mxu0 0
        %1987 = vmatpush1.bf16.msra.mxu0 0
        %1988 = vmatprep.subr.bf16.mxu0 0
        %1989 = vmatpush1.bf16.msra.mxu0 0
        %1990 = vmatprep.subr.bf16.mxu0 0
        %1991 = vmatpush1.bf16.msra.mxu0 0
        %1992 = vmatprep.subr.bf16.mxu0 0
        %1993 = vmatpush1.bf16.msra.mxu0 0
        %1994 = vmatprep.subr.bf16.mxu0 0
        %1995 = vmatpush1.bf16.msra.mxu0 0
        %1996 = vmatprep.subr.bf16.mxu0 0
        %1997 = vmatpush1.bf16.msra.mxu0 0
        %1998 = vmatprep.subr.bf16.mxu0 0
        %1999 = vmatpush1.bf16.msra.mxu0 %v1982
        %2000 = vmatprep.subr.bf16.mxu0 0
        %2001 = vmatpush2.bf16.msra.mxu0 0
        %2002 = vmatprep.subr.bf16.mxu0 0
        %2003 = vmatpush2.bf16.msra.mxu0 0
        %2004 = vmatprep.subr.bf16.mxu0 0
        %2005 = vmatpush2.bf16.msra.mxu0 0
        %2006 = vmatprep.subr.bf16.mxu0 0
        %2007 = vmatpush2.bf16.msra.mxu0 0
        %2008 = vmatprep.subr.bf16.mxu0 0
        %2009 = vmatpush2.bf16.msra.mxu0 0
        %2010 = vmatprep.subr.bf16.mxu0 0
        %2011 = vmatpush2.bf16.msra.mxu0 0
        %2012 = vmatprep.subr.bf16.mxu0 0
        %2013 = vmatpush2.bf16.msra.mxu0 0
        %2014 = vmatprep.subr.bf16.mxu0 0
        %2015 = vmatpush2.bf16.msra.mxu0 0
        %2016 = vmatprep.mubr.bf16.mxu0 0
        %2017 = vmatmul.mubr.bf16.gmra.mxu0 %v1979
        %v2018 = vpop.f32.mrf.mxu0
        %v2019 = vadd.f32 0.0, %v2018
        %v2020 = vpop.f32.mrf.mxu0
        %v2021 = vpop.f32.mrf.mxu0
        %v2022 = vpop.f32.mrf.mxu0
        %2023 = vdwg.mxu0
        %2024 = vrot.lane.b32.xlu0 %v1228, 64
        %v2025 = vpop.permute.xlu0 %2024
        %v2027 = vsel %vm1233, %v1733, 0
        %v2030 = vsel %vm1740, %v2025, 0
        %2032 = vmatprep.subr.bf16.mxu0 0
        %2033 = vmatpush1.bf16.msra.mxu0 0
        %2034 = vmatprep.subr.bf16.mxu0 0
        %2035 = vmatpush1.bf16.msra.mxu0 0
        %2036 = vmatprep.subr.bf16.mxu0 0
        %2037 = vmatpush1.bf16.msra.mxu0 0
        %2038 = vmatprep.subr.bf16.mxu0 0
        %2039 = vmatpush1.bf16.msra.mxu0 0
        %2040 = vmatprep.subr.bf16.mxu0 0
        %2041 = vmatpush1.bf16.msra.mxu0 0
        %2042 = vmatprep.subr.bf16.mxu0 0
        %2043 = vmatpush1.bf16.msra.mxu0 0
        %2044 = vmatprep.subr.bf16.mxu0 0
        %2045 = vmatpush1.bf16.msra.mxu0 0
        %2046 = vmatprep.subr.bf16.mxu0 0
        %2047 = vmatpush1.bf16.msra.mxu0 %v2030
        %2048 = vmatprep.subr.bf16.mxu0 0
        %2049 = vmatpush2.bf16.msra.mxu0 0
        %2050 = vmatprep.subr.bf16.mxu0 0
        %2051 = vmatpush2.bf16.msra.mxu0 0
        %2052 = vmatprep.subr.bf16.mxu0 0
        %2053 = vmatpush2.bf16.msra.mxu0 0
        %2054 = vmatprep.subr.bf16.mxu0 0
        %2055 = vmatpush2.bf16.msra.mxu0 0
        %2056 = vmatprep.subr.bf16.mxu0 0
        %2057 = vmatpush2.bf16.msra.mxu0 0
        %2058 = vmatprep.subr.bf16.mxu0 0
        %2059 = vmatpush2.bf16.msra.mxu0 0
        %2060 = vmatprep.subr.bf16.mxu0 0
        %2061 = vmatpush2.bf16.msra.mxu0 0
        %2062 = vmatprep.subr.bf16.mxu0 0
        %2063 = vmatpush2.bf16.msra.mxu0 0
        %2064 = vmatprep.mubr.bf16.mxu0 0
        %2065 = vmatmul.mubr.bf16.gmra.mxu0 %v2027
        %v2066 = vpop.f32.mrf.mxu0
        %v2067 = vadd.f32 0.0, %v2066
        %v2068 = vpop.f32.mrf.mxu0
        %v2069 = vpop.f32.mrf.mxu0
        %v2070 = vpop.f32.mrf.mxu0
        %2071 = vdwg.mxu0
        %2072 = vrot.lane.b32.xlu0 %v1229, 64
        %v2073 = vpop.permute.xlu0 %2072
        %v2075 = vsel %vm1233, %v1734, 0
        %v2078 = vsel %vm1740, %v2073, 0
        %2080 = vmatprep.subr.bf16.mxu0 0
        %2081 = vmatpush1.bf16.msra.mxu0 0
        %2082 = vmatprep.subr.bf16.mxu0 0
        %2083 = vmatpush1.bf16.msra.mxu0 0
        %2084 = vmatprep.subr.bf16.mxu0 0
        %2085 = vmatpush1.bf16.msra.mxu0 0
        %2086 = vmatprep.subr.bf16.mxu0 0
        %2087 = vmatpush1.bf16.msra.mxu0 0
        %2088 = vmatprep.subr.bf16.mxu0 0
        %2089 = vmatpush1.bf16.msra.mxu0 0
        %2090 = vmatprep.subr.bf16.mxu0 0
        %2091 = vmatpush1.bf16.msra.mxu0 0
        %2092 = vmatprep.subr.bf16.mxu0 0
        %2093 = vmatpush1.bf16.msra.mxu0 0
        %2094 = vmatprep.subr.bf16.mxu0 0
        %2095 = vmatpush1.bf16.msra.mxu0 %v2078
        %2096 = vmatprep.subr.bf16.mxu0 0
        %2097 = vmatpush2.bf16.msra.mxu0 0
        %2098 = vmatprep.subr.bf16.mxu0 0
        %2099 = vmatpush2.bf16.msra.mxu0 0
        %2100 = vmatprep.subr.bf16.mxu0 0
        %2101 = vmatpush2.bf16.msra.mxu0 0
        %2102 = vmatprep.subr.bf16.mxu0 0
        %2103 = vmatpush2.bf16.msra.mxu0 0
        %2104 = vmatprep.subr.bf16.mxu0 0
        %2105 = vmatpush2.bf16.msra.mxu0 0
        %2106 = vmatprep.subr.bf16.mxu0 0
        %2107 = vmatpush2.bf16.msra.mxu0 0
        %2108 = vmatprep.subr.bf16.mxu0 0
        %2109 = vmatpush2.bf16.msra.mxu0 0
        %2110 = vmatprep.subr.bf16.mxu0 0
        %2111 = vmatpush2.bf16.msra.mxu0 0
        %2112 = vmatprep.mubr.bf16.mxu0 0
        %2113 = vmatmul.mubr.bf16.gmra.mxu0 %v2075
        %v2114 = vpop.f32.mrf.mxu0
        %v2115 = vadd.f32 0.0, %v2114
        %v2116 = vpop.f32.mrf.mxu0
        %v2117 = vpop.f32.mrf.mxu0
        %v2118 = vpop.f32.mrf.mxu0
        %2119 = vdwg.mxu0
        %v2120 = vpack.c.bf16 %v1827, %v1779
        %v2121 = vpack.c.bf16 %v1923, %v1875
        %v2122 = vpack.c.bf16 %v2019, %v1971
        %v2123 = vpack.c.bf16 %v2115, %v2067
        %2124 = vrot.lane.b32.xlu0 %v1222, 120
        %v2125 = vpop.permute.xlu0 %2124
        %2126 = vrot.lane.b32.xlu0 %v1222, 88
        %v2127 = vpop.permute.xlu0 %2126
        %v2129 = vsel %vm1233, %v2125, 0
        %v2132 = vsel %vm1233, %v2127, 0
        %2134 = vmatprep.subr.bf16.mxu0 0
        %2135 = vmatpush1.bf16.xpose.msra.mxu0 0
        %2136 = vmatprep.subr.bf16.mxu0 0
        %2137 = vmatpush1.bf16.xpose.msra.mxu0 0
        %2138 = vmatprep.subr.bf16.mxu0 0
        %2139 = vmatpush1.bf16.xpose.msra.mxu0 0
        %2140 = vmatprep.subr.bf16.mxu0 0
        %2141 = vmatpush1.bf16.xpose.msra.mxu0 0
        %2142 = vmatprep.subr.bf16.mxu0 0
        %2143 = vmatpush1.bf16.xpose.msra.mxu0 0
        %2144 = vmatprep.subr.bf16.mxu0 0
        %2145 = vmatpush1.bf16.xpose.msra.mxu0 0
        %2146 = vmatprep.subr.bf16.mxu0 0
        %2147 = vmatpush1.bf16.xpose.msra.mxu0 0
        %2148 = vmatprep.subr.bf16.mxu0 0
        %2149 = vmatpush1.bf16.xpose.msra.mxu0 %v2132
        %2150 = vmatprep.subr.bf16.mxu0 0
        %2151 = vmatpush2.bf16.xpose.msra.mxu0 0
        %2152 = vmatprep.subr.bf16.mxu0 0
        %2153 = vmatpush2.bf16.xpose.msra.mxu0 0
        %2154 = vmatprep.subr.bf16.mxu0 0
        %2155 = vmatpush2.bf16.xpose.msra.mxu0 0
        %2156 = vmatprep.subr.bf16.mxu0 0
        %2157 = vmatpush2.bf16.xpose.msra.mxu0 0
        %2158 = vmatprep.subr.bf16.mxu0 0
        %2159 = vmatpush2.bf16.xpose.msra.mxu0 0
        %2160 = vmatprep.subr.bf16.mxu0 0
        %2161 = vmatpush2.bf16.xpose.msra.mxu0 0
        %2162 = vmatprep.subr.bf16.mxu0 0
        %2163 = vmatpush2.bf16.xpose.msra.mxu0 0
        %2164 = vmatprep.subr.bf16.mxu0 0
        %2165 = vmatpush2.bf16.xpose.msra.mxu0 0
        %2166 = vmatprep.mubr.bf16.mxu0 0
        %2167 = vmatmul.mubr.bf16.gmra.mxu0 %v2129
        %v2168 = vpop.f32.mrf.mxu0
        %v2169 = vadd.f32 0.0, %v2168
        %v2170 = vpop.f32.mrf.mxu0
        %v2171 = vpop.f32.mrf.mxu0
        %v2172 = vpop.f32.mrf.mxu0
        %2173 = vdwg.mxu0
        %2174 = vrot.lane.b32.xlu0 %v1223, 120
        %v2175 = vpop.permute.xlu0 %2174
        %2176 = vrot.lane.b32.xlu0 %v1223, 88
        %v2177 = vpop.permute.xlu0 %2176
        %v2179 = vsel %vm1233, %v2175, 0
        %v2182 = vsel %vm1233, %v2177, 0
        %2184 = vmatprep.subr.bf16.mxu0 0
        %2185 = vmatpush1.bf16.xpose.msra.mxu0 0
        %2186 = vmatprep.subr.bf16.mxu0 0
        %2187 = vmatpush1.bf16.xpose.msra.mxu0 0
        %2188 = vmatprep.subr.bf16.mxu0 0
        %2189 = vmatpush1.bf16.xpose.msra.mxu0 0
        %2190 = vmatprep.subr.bf16.mxu0 0
        %2191 = vmatpush1.bf16.xpose.msra.mxu0 0
        %2192 = vmatprep.subr.bf16.mxu0 0
        %2193 = vmatpush1.bf16.xpose.msra.mxu0 0
        %2194 = vmatprep.subr.bf16.mxu0 0
        %2195 = vmatpush1.bf16.xpose.msra.mxu0 0
        %2196 = vmatprep.subr.bf16.mxu0 0
        %2197 = vmatpush1.bf16.xpose.msra.mxu0 0
        %2198 = vmatprep.subr.bf16.mxu0 0
        %2199 = vmatpush1.bf16.xpose.msra.mxu0 %v2182
        %2200 = vmatprep.subr.bf16.mxu0 0
        %2201 = vmatpush2.bf16.xpose.msra.mxu0 0
        %2202 = vmatprep.subr.bf16.mxu0 0
        %2203 = vmatpush2.bf16.xpose.msra.mxu0 0
        %2204 = vmatprep.subr.bf16.mxu0 0
        %2205 = vmatpush2.bf16.xpose.msra.mxu0 0
        %2206 = vmatprep.subr.bf16.mxu0 0
        %2207 = vmatpush2.bf16.xpose.msra.mxu0 0
        %2208 = vmatprep.subr.bf16.mxu0 0
        %2209 = vmatpush2.bf16.xpose.msra.mxu0 0
        %2210 = vmatprep.subr.bf16.mxu0 0
        %2211 = vmatpush2.bf16.xpose.msra.mxu0 0
        %2212 = vmatprep.subr.bf16.mxu0 0
        %2213 = vmatpush2.bf16.xpose.msra.mxu0 0
        %2214 = vmatprep.subr.bf16.mxu0 0
        %2215 = vmatpush2.bf16.xpose.msra.mxu0 0
        %2216 = vmatprep.mubr.bf16.mxu0 0
        %2217 = vmatmul.mubr.bf16.gmra.mxu0 %v2179
        %v2218 = vpop.f32.mrf.mxu0
        %v2219 = vadd.f32 0.0, %v2218
        %v2220 = vpop.f32.mrf.mxu0
        %v2221 = vpop.f32.mrf.mxu0
        %v2222 = vpop.f32.mrf.mxu0
        %2223 = vdwg.mxu0
        %2224 = vrot.lane.b32.xlu0 %v1224, 120
        %v2225 = vpop.permute.xlu0 %2224
        %2226 = vrot.lane.b32.xlu0 %v1224, 88
        %v2227 = vpop.permute.xlu0 %2226
        %v2229 = vsel %vm1233, %v2225, 0
        %v2232 = vsel %vm1233, %v2227, 0
        %2234 = vmatprep.subr.bf16.mxu0 0
        %2235 = vmatpush1.bf16.xpose.msra.mxu0 0
        %2236 = vmatprep.subr.bf16.mxu0 0
        %2237 = vmatpush1.bf16.xpose.msra.mxu0 0
        %2238 = vmatprep.subr.bf16.mxu0 0
        %2239 = vmatpush1.bf16.xpose.msra.mxu0 0
        %2240 = vmatprep.subr.bf16.mxu0 0
        %2241 = vmatpush1.bf16.xpose.msra.mxu0 0
        %2242 = vmatprep.subr.bf16.mxu0 0
        %2243 = vmatpush1.bf16.xpose.msra.mxu0 0
        %2244 = vmatprep.subr.bf16.mxu0 0
        %2245 = vmatpush1.bf16.xpose.msra.mxu0 0
        %2246 = vmatprep.subr.bf16.mxu0 0
        %2247 = vmatpush1.bf16.xpose.msra.mxu0 0
        %2248 = vmatprep.subr.bf16.mxu0 0
        %2249 = vmatpush1.bf16.xpose.msra.mxu0 %v2232
        %2250 = vmatprep.subr.bf16.mxu0 0
        %2251 = vmatpush2.bf16.xpose.msra.mxu0 0
        %2252 = vmatprep.subr.bf16.mxu0 0
        %2253 = vmatpush2.bf16.xpose.msra.mxu0 0
        %2254 = vmatprep.subr.bf16.mxu0 0
        %2255 = vmatpush2.bf16.xpose.msra.mxu0 0
        %2256 = vmatprep.subr.bf16.mxu0 0
        %2257 = vmatpush2.bf16.xpose.msra.mxu0 0
        %2258 = vmatprep.subr.bf16.mxu0 0
        %2259 = vmatpush2.bf16.xpose.msra.mxu0 0
        %2260 = vmatprep.subr.bf16.mxu0 0
        %2261 = vmatpush2.bf16.xpose.msra.mxu0 0
        %2262 = vmatprep.subr.bf16.mxu0 0
        %2263 = vmatpush2.bf16.xpose.msra.mxu0 0
        %2264 = vmatprep.subr.bf16.mxu0 0
        %2265 = vmatpush2.bf16.xpose.msra.mxu0 0
        %2266 = vmatprep.mubr.bf16.mxu0 0
        %2267 = vmatmul.mubr.bf16.gmra.mxu0 %v2229
        %v2268 = vpop.f32.mrf.mxu0
        %v2269 = vadd.f32 0.0, %v2268
        %v2270 = vpop.f32.mrf.mxu0
        %v2271 = vpop.f32.mrf.mxu0
        %v2272 = vpop.f32.mrf.mxu0
        %2273 = vdwg.mxu0
        %2274 = vrot.lane.b32.xlu0 %v1225, 120
        %v2275 = vpop.permute.xlu0 %2274
        %2276 = vrot.lane.b32.xlu0 %v1225, 88
        %v2277 = vpop.permute.xlu0 %2276
        %v2279 = vsel %vm1233, %v2275, 0
        %v2282 = vsel %vm1233, %v2277, 0
        %2284 = vmatprep.subr.bf16.mxu0 0
        %2285 = vmatpush1.bf16.xpose.msra.mxu0 0
        %2286 = vmatprep.subr.bf16.mxu0 0
        %2287 = vmatpush1.bf16.xpose.msra.mxu0 0
        %2288 = vmatprep.subr.bf16.mxu0 0
        %2289 = vmatpush1.bf16.xpose.msra.mxu0 0
        %2290 = vmatprep.subr.bf16.mxu0 0
        %2291 = vmatpush1.bf16.xpose.msra.mxu0 0
        %2292 = vmatprep.subr.bf16.mxu0 0
        %2293 = vmatpush1.bf16.xpose.msra.mxu0 0
        %2294 = vmatprep.subr.bf16.mxu0 0
        %2295 = vmatpush1.bf16.xpose.msra.mxu0 0
        %2296 = vmatprep.subr.bf16.mxu0 0
        %2297 = vmatpush1.bf16.xpose.msra.mxu0 0
        %2298 = vmatprep.subr.bf16.mxu0 0
        %2299 = vmatpush1.bf16.xpose.msra.mxu0 %v2282
        %2300 = vmatprep.subr.bf16.mxu0 0
        %2301 = vmatpush2.bf16.xpose.msra.mxu0 0
        %2302 = vmatprep.subr.bf16.mxu0 0
        %2303 = vmatpush2.bf16.xpose.msra.mxu0 0
        %2304 = vmatprep.subr.bf16.mxu0 0
        %2305 = vmatpush2.bf16.xpose.msra.mxu0 0
        %2306 = vmatprep.subr.bf16.mxu0 0
        %2307 = vmatpush2.bf16.xpose.msra.mxu0 0
        %2308 = vmatprep.subr.bf16.mxu0 0
        %2309 = vmatpush2.bf16.xpose.msra.mxu0 0
        %2310 = vmatprep.subr.bf16.mxu0 0
        %2311 = vmatpush2.bf16.xpose.msra.mxu0 0
        %2312 = vmatprep.subr.bf16.mxu0 0
        %2313 = vmatpush2.bf16.xpose.msra.mxu0 0
        %2314 = vmatprep.subr.bf16.mxu0 0
        %2315 = vmatpush2.bf16.xpose.msra.mxu0 0
        %2316 = vmatprep.mubr.bf16.mxu0 0
        %2317 = vmatmul.mubr.bf16.gmra.mxu0 %v2279
        %v2318 = vpop.f32.mrf.mxu0
        %v2319 = vadd.f32 0.0, %v2318
        %v2320 = vpop.f32.mrf.mxu0
        %v2321 = vpop.f32.mrf.mxu0
        %v2322 = vpop.f32.mrf.mxu0
        %2323 = vdwg.mxu0
        %2324 = vrot.lane.b32.xlu0 %v1226, 120
        %v2325 = vpop.permute.xlu0 %2324
        %2326 = vrot.lane.b32.xlu0 %v1226, 88
        %v2327 = vpop.permute.xlu0 %2326
        %v2329 = vsel %vm1233, %v2325, 0
        %v2332 = vsel %vm1233, %v2327, 0
        %2334 = vmatprep.subr.bf16.mxu0 0
        %2335 = vmatpush1.bf16.xpose.msra.mxu0 0
        %2336 = vmatprep.subr.bf16.mxu0 0
        %2337 = vmatpush1.bf16.xpose.msra.mxu0 0
        %2338 = vmatprep.subr.bf16.mxu0 0
        %2339 = vmatpush1.bf16.xpose.msra.mxu0 0
        %2340 = vmatprep.subr.bf16.mxu0 0
        %2341 = vmatpush1.bf16.xpose.msra.mxu0 0
        %2342 = vmatprep.subr.bf16.mxu0 0
        %2343 = vmatpush1.bf16.xpose.msra.mxu0 0
        %2344 = vmatprep.subr.bf16.mxu0 0
        %2345 = vmatpush1.bf16.xpose.msra.mxu0 0
        %2346 = vmatprep.subr.bf16.mxu0 0
        %2347 = vmatpush1.bf16.xpose.msra.mxu0 0
        %2348 = vmatprep.subr.bf16.mxu0 0
        %2349 = vmatpush1.bf16.xpose.msra.mxu0 %v2332
        %2350 = vmatprep.subr.bf16.mxu0 0
        %2351 = vmatpush2.bf16.xpose.msra.mxu0 0
        %2352 = vmatprep.subr.bf16.mxu0 0
        %2353 = vmatpush2.bf16.xpose.msra.mxu0 0
        %2354 = vmatprep.subr.bf16.mxu0 0
        %2355 = vmatpush2.bf16.xpose.msra.mxu0 0
        %2356 = vmatprep.subr.bf16.mxu0 0
        %2357 = vmatpush2.bf16.xpose.msra.mxu0 0
        %2358 = vmatprep.subr.bf16.mxu0 0
        %2359 = vmatpush2.bf16.xpose.msra.mxu0 0
        %2360 = vmatprep.subr.bf16.mxu0 0
        %2361 = vmatpush2.bf16.xpose.msra.mxu0 0
        %2362 = vmatprep.subr.bf16.mxu0 0
        %2363 = vmatpush2.bf16.xpose.msra.mxu0 0
        %2364 = vmatprep.subr.bf16.mxu0 0
        %2365 = vmatpush2.bf16.xpose.msra.mxu0 0
        %2366 = vmatprep.mubr.bf16.mxu0 0
        %2367 = vmatmul.mubr.bf16.gmra.mxu0 %v2329
        %v2368 = vpop.f32.mrf.mxu0
        %v2369 = vadd.f32 0.0, %v2368
        %v2370 = vpop.f32.mrf.mxu0
        %v2371 = vpop.f32.mrf.mxu0
        %v2372 = vpop.f32.mrf.mxu0
        %2373 = vdwg.mxu0
        %2374 = vrot.lane.b32.xlu0 %v1227, 120
        %v2375 = vpop.permute.xlu0 %2374
        %2376 = vrot.lane.b32.xlu0 %v1227, 88
        %v2377 = vpop.permute.xlu0 %2376
        %v2379 = vsel %vm1233, %v2375, 0
        %v2382 = vsel %vm1233, %v2377, 0
        %2384 = vmatprep.subr.bf16.mxu0 0
        %2385 = vmatpush1.bf16.xpose.msra.mxu0 0
        %2386 = vmatprep.subr.bf16.mxu0 0
        %2387 = vmatpush1.bf16.xpose.msra.mxu0 0
        %2388 = vmatprep.subr.bf16.mxu0 0
        %2389 = vmatpush1.bf16.xpose.msra.mxu0 0
        %2390 = vmatprep.subr.bf16.mxu0 0
        %2391 = vmatpush1.bf16.xpose.msra.mxu0 0
        %2392 = vmatprep.subr.bf16.mxu0 0
        %2393 = vmatpush1.bf16.xpose.msra.mxu0 0
        %2394 = vmatprep.subr.bf16.mxu0 0
        %2395 = vmatpush1.bf16.xpose.msra.mxu0 0
        %2396 = vmatprep.subr.bf16.mxu0 0
        %2397 = vmatpush1.bf16.xpose.msra.mxu0 0
        %2398 = vmatprep.subr.bf16.mxu0 0
        %2399 = vmatpush1.bf16.xpose.msra.mxu0 %v2382
        %2400 = vmatprep.subr.bf16.mxu0 0
        %2401 = vmatpush2.bf16.xpose.msra.mxu0 0
        %2402 = vmatprep.subr.bf16.mxu0 0
        %2403 = vmatpush2.bf16.xpose.msra.mxu0 0
        %2404 = vmatprep.subr.bf16.mxu0 0
        %2405 = vmatpush2.bf16.xpose.msra.mxu0 0
        %2406 = vmatprep.subr.bf16.mxu0 0
        %2407 = vmatpush2.bf16.xpose.msra.mxu0 0
        %2408 = vmatprep.subr.bf16.mxu0 0
        %2409 = vmatpush2.bf16.xpose.msra.mxu0 0
        %2410 = vmatprep.subr.bf16.mxu0 0
        %2411 = vmatpush2.bf16.xpose.msra.mxu0 0
        %2412 = vmatprep.subr.bf16.mxu0 0
        %2413 = vmatpush2.bf16.xpose.msra.mxu0 0
        %2414 = vmatprep.subr.bf16.mxu0 0
        %2415 = vmatpush2.bf16.xpose.msra.mxu0 0
        %2416 = vmatprep.mubr.bf16.mxu0 0
        %2417 = vmatmul.mubr.bf16.gmra.mxu0 %v2379
        %v2418 = vpop.f32.mrf.mxu0
        %v2419 = vadd.f32 0.0, %v2418
        %v2420 = vpop.f32.mrf.mxu0
        %v2421 = vpop.f32.mrf.mxu0
        %v2422 = vpop.f32.mrf.mxu0
        %2423 = vdwg.mxu0
        %2424 = vrot.lane.b32.xlu0 %v1228, 120
        %v2425 = vpop.permute.xlu0 %2424
        %2426 = vrot.lane.b32.xlu0 %v1228, 88
        %v2427 = vpop.permute.xlu0 %2426
        %v2429 = vsel %vm1233, %v2425, 0
        %v2432 = vsel %vm1233, %v2427, 0
        %2434 = vmatprep.subr.bf16.mxu0 0
        %2435 = vmatpush1.bf16.xpose.msra.mxu0 0
        %2436 = vmatprep.subr.bf16.mxu0 0
        %2437 = vmatpush1.bf16.xpose.msra.mxu0 0
        %2438 = vmatprep.subr.bf16.mxu0 0
        %2439 = vmatpush1.bf16.xpose.msra.mxu0 0
        %2440 = vmatprep.subr.bf16.mxu0 0
        %2441 = vmatpush1.bf16.xpose.msra.mxu0 0
        %2442 = vmatprep.subr.bf16.mxu0 0
        %2443 = vmatpush1.bf16.xpose.msra.mxu0 0
        %2444 = vmatprep.subr.bf16.mxu0 0
        %2445 = vmatpush1.bf16.xpose.msra.mxu0 0
        %2446 = vmatprep.subr.bf16.mxu0 0
        %2447 = vmatpush1.bf16.xpose.msra.mxu0 0
        %2448 = vmatprep.subr.bf16.mxu0 0
        %2449 = vmatpush1.bf16.xpose.msra.mxu0 %v2432
        %2450 = vmatprep.subr.bf16.mxu0 0
        %2451 = vmatpush2.bf16.xpose.msra.mxu0 0
        %2452 = vmatprep.subr.bf16.mxu0 0
        %2453 = vmatpush2.bf16.xpose.msra.mxu0 0
        %2454 = vmatprep.subr.bf16.mxu0 0
        %2455 = vmatpush2.bf16.xpose.msra.mxu0 0
        %2456 = vmatprep.subr.bf16.mxu0 0
        %2457 = vmatpush2.bf16.xpose.msra.mxu0 0
        %2458 = vmatprep.subr.bf16.mxu0 0
        %2459 = vmatpush2.bf16.xpose.msra.mxu0 0
        %2460 = vmatprep.subr.bf16.mxu0 0
        %2461 = vmatpush2.bf16.xpose.msra.mxu0 0
        %2462 = vmatprep.subr.bf16.mxu0 0
        %2463 = vmatpush2.bf16.xpose.msra.mxu0 0
        %2464 = vmatprep.subr.bf16.mxu0 0
        %2465 = vmatpush2.bf16.xpose.msra.mxu0 0
        %2466 = vmatprep.mubr.bf16.mxu0 0
        %2467 = vmatmul.mubr.bf16.gmra.mxu0 %v2429
        %v2468 = vpop.f32.mrf.mxu0
        %v2469 = vadd.f32 0.0, %v2468
        %v2470 = vpop.f32.mrf.mxu0
        %v2471 = vpop.f32.mrf.mxu0
        %v2472 = vpop.f32.mrf.mxu0
        %2473 = vdwg.mxu0
        %2474 = vrot.lane.b32.xlu0 %v1229, 120
        %v2475 = vpop.permute.xlu0 %2474
        %2476 = vrot.lane.b32.xlu0 %v1229, 88
        %v2477 = vpop.permute.xlu0 %2476
        %v2479 = vsel %vm1233, %v2475, 0
        %v2482 = vsel %vm1233, %v2477, 0
        %2484 = vmatprep.subr.bf16.mxu0 0
        %2485 = vmatpush1.bf16.xpose.msra.mxu0 0
        %2486 = vmatprep.subr.bf16.mxu0 0
        %2487 = vmatpush1.bf16.xpose.msra.mxu0 0
        %2488 = vmatprep.subr.bf16.mxu0 0
        %2489 = vmatpush1.bf16.xpose.msra.mxu0 0
        %2490 = vmatprep.subr.bf16.mxu0 0
        %2491 = vmatpush1.bf16.xpose.msra.mxu0 0
        %2492 = vmatprep.subr.bf16.mxu0 0
        %2493 = vmatpush1.bf16.xpose.msra.mxu0 0
        %2494 = vmatprep.subr.bf16.mxu0 0
        %2495 = vmatpush1.bf16.xpose.msra.mxu0 0
        %2496 = vmatprep.subr.bf16.mxu0 0
        %2497 = vmatpush1.bf16.xpose.msra.mxu0 0
        %2498 = vmatprep.subr.bf16.mxu0 0
        %2499 = vmatpush1.bf16.xpose.msra.mxu0 %v2482
        %2500 = vmatprep.subr.bf16.mxu0 0
        %2501 = vmatpush2.bf16.xpose.msra.mxu0 0
        %2502 = vmatprep.subr.bf16.mxu0 0
        %2503 = vmatpush2.bf16.xpose.msra.mxu0 0
        %2504 = vmatprep.subr.bf16.mxu0 0
        %2505 = vmatpush2.bf16.xpose.msra.mxu0 0
        %2506 = vmatprep.subr.bf16.mxu0 0
        %2507 = vmatpush2.bf16.xpose.msra.mxu0 0
        %2508 = vmatprep.subr.bf16.mxu0 0
        %2509 = vmatpush2.bf16.xpose.msra.mxu0 0
        %2510 = vmatprep.subr.bf16.mxu0 0
        %2511 = vmatpush2.bf16.xpose.msra.mxu0 0
        %2512 = vmatprep.subr.bf16.mxu0 0
        %2513 = vmatpush2.bf16.xpose.msra.mxu0 0
        %2514 = vmatprep.subr.bf16.mxu0 0
        %2515 = vmatpush2.bf16.xpose.msra.mxu0 0
        %2516 = vmatprep.mubr.bf16.mxu0 0
        %2517 = vmatmul.mubr.bf16.gmra.mxu0 %v2479
        %v2518 = vpop.f32.mrf.mxu0
        %v2519 = vadd.f32 0.0, %v2518
        %v2520 = vpop.f32.mrf.mxu0
        %v2521 = vpop.f32.mrf.mxu0
        %v2522 = vpop.f32.mrf.mxu0
        %2523 = vdwg.mxu0
        %v2524 = vmul.f32 %v2169, 0.35355338
        %v2525 = vmul.f32 %v2219, 0.35355338
        %v2526 = vmul.f32 %v2269, 0.35355338
        %v2527 = vmul.f32 %v2319, 0.35355338
        %v2528 = vmul.f32 %v2369, 0.35355338
        %v2529 = vmul.f32 %v2419, 0.35355338
        %v2530 = vmul.f32 %v2469, 0.35355338
        %v2531 = vmul.f32 %v2519, 0.35355338
        %v2532 = vadd.f32 %v2524, %v979
        %v2533 = vadd.f32 %v2525, %v979
        %v2534 = vadd.f32 %v2526, %v979
        %v2535 = vadd.f32 %v2527, %v979
        %v2536 = vadd.f32 %v2528, %v979
        %v2537 = vadd.f32 %v2529, %v979
        %v2538 = vadd.f32 %v2530, %v979
        %v2539 = vadd.f32 %v2531, %v979
        %v2540 = vsel %vm1233, %v2532, -inf
        %2541 = vmax.xlane.f32.xlu0 %v2540
        %v2542 = vpop.xlane.xlu0 %2541
        %v2543 = vsel %vm1233, %v2533, -inf
        %2544 = vmax.xlane.f32.xlu0 %v2543
        %v2545 = vpop.xlane.xlu0 %2544
        %v2546 = vsel %vm1233, %v2534, -inf
        %2547 = vmax.xlane.f32.xlu0 %v2546
        %v2548 = vpop.xlane.xlu0 %2547
        %v2549 = vsel %vm1233, %v2535, -inf
        %2550 = vmax.xlane.f32.xlu0 %v2549
        %v2551 = vpop.xlane.xlu0 %2550
        %v2552 = vsel %vm1233, %v2536, -inf
        %2553 = vmax.xlane.f32.xlu0 %v2552
        %v2554 = vpop.xlane.xlu0 %2553
        %v2555 = vsel %vm1233, %v2537, -inf
        %2556 = vmax.xlane.f32.xlu0 %v2555
        %v2557 = vpop.xlane.xlu0 %2556
        %v2558 = vsel %vm1233, %v2538, -inf
        %2559 = vmax.xlane.f32.xlu0 %v2558
        %v2560 = vpop.xlane.xlu0 %2559
        %v2561 = vsel %vm1233, %v2539, -inf
        %2562 = vmax.xlane.f32.xlu0 %v2561
        %v2563 = vpop.xlane.xlu0 %2562
        %v2564 = vsub.f32 %v2532, %v2542
        %v2565 = vsub.f32 %v2533, %v2545
        %v2566 = vsub.f32 %v2534, %v2548
        %v2567 = vsub.f32 %v2535, %v2551
        %v2568 = vsub.f32 %v2536, %v2554
        %v2569 = vsub.f32 %v2537, %v2557
        %v2570 = vsub.f32 %v2538, %v2560
        %v2571 = vsub.f32 %v2539, %v2563
        %v2572 = vmul.f32 %v2564, 1.442695
        %v2573 = vpow.pop %v2572
        %v2574 = vmul.f32 %v2565, 1.442695
        %v2575 = vpow.pop %v2574
        %v2576 = vmul.f32 %v2566, 1.442695
        %v2577 = vpow.pop %v2576
        %v2578 = vmul.f32 %v2567, 1.442695
        %v2579 = vpow.pop %v2578
        %v2580 = vmul.f32 %v2568, 1.442695
        %v2581 = vpow.pop %v2580
        %v2582 = vmul.f32 %v2569, 1.442695
        %v2583 = vpow.pop %v2582
        %v2584 = vmul.f32 %v2570, 1.442695
        %v2585 = vpow.pop %v2584
        %v2586 = vmul.f32 %v2571, 1.442695
        %v2587 = vpow.pop %v2586
        %v2588 = vsel %vm1233, %v2573, 0.0
        %2589 = vadd.xlane.f32.xlu0 %v2588
        %v2590 = vpop.xlane.xlu0 %2589
        %v2591 = vsel %vm1233, %v2575, 0.0
        %2592 = vadd.xlane.f32.xlu0 %v2591
        %v2593 = vpop.xlane.xlu0 %2592
        %v2594 = vsel %vm1233, %v2577, 0.0
        %2595 = vadd.xlane.f32.xlu0 %v2594
        %v2596 = vpop.xlane.xlu0 %2595
        %v2597 = vsel %vm1233, %v2579, 0.0
        %2598 = vadd.xlane.f32.xlu0 %v2597
        %v2599 = vpop.xlane.xlu0 %2598
        %v2600 = vsel %vm1233, %v2581, 0.0
        %2601 = vadd.xlane.f32.xlu0 %v2600
        %v2602 = vpop.xlane.xlu0 %2601
        %v2603 = vsel %vm1233, %v2583, 0.0
        %2604 = vadd.xlane.f32.xlu0 %v2603
        %v2605 = vpop.xlane.xlu0 %2604
        %v2606 = vsel %vm1233, %v2585, 0.0
        %2607 = vadd.xlane.f32.xlu0 %v2606
        %v2608 = vpop.xlane.xlu0 %2607
        %v2609 = vsel %vm1233, %v2587, 0.0
        %2610 = vadd.xlane.f32.xlu0 %v2609
        %v2611 = vpop.xlane.xlu0 %2610
        %v2612 = vrcp.pop %v2590
        %v2613 = vrcp.pop %v2593
        %v2614 = vrcp.pop %v2596
        %v2615 = vrcp.pop %v2599
        %v2616 = vrcp.pop %v2602
        %v2617 = vrcp.pop %v2605
        %v2618 = vrcp.pop %v2608
        %v2619 = vrcp.pop %v2611
        %v2620 = vmul.f32 %v2573, %v2612
        %v2621 = vmul.f32 %v2575, %v2613
        %v2622 = vmul.f32 %v2577, %v2614
        %v2623 = vmul.f32 %v2579, %v2615
        %v2624 = vmul.f32 %v2581, %v2616
        %v2625 = vmul.f32 %v2583, %v2617
        %v2626 = vmul.f32 %v2585, %v2618
        %v2627 = vmul.f32 %v2587, %v2619
        %v2628 = vpack.c.bf16 %v2620, %v2620
        %v2629 = vpack.c.bf16 %v2621, %v2621
        %v2630 = vpack.c.bf16 %v2622, %v2622
        %v2631 = vpack.c.bf16 %v2623, %v2623
        %v2632 = vpack.c.bf16 %v2624, %v2624
        %v2633 = vpack.c.bf16 %v2625, %v2625
        %v2634 = vpack.c.bf16 %v2626, %v2626
        %v2635 = vpack.c.bf16 %v2627, %v2627
        %2636 = vrot.lane.b32.xlu0 %v1222, 56
        %v2637 = vpop.permute.xlu0 %2636
        %v2639 = vsel %vm1233, %v2628, 0
        %v2642 = vsel %vm1740, %v2637, 0
        %2644 = vmatprep.subr.bf16.mxu0 0
        %2645 = vmatpush1.bf16.msra.mxu0 0
        %2646 = vmatprep.subr.bf16.mxu0 0
        %2647 = vmatpush1.bf16.msra.mxu0 0
        %2648 = vmatprep.subr.bf16.mxu0 0
        %2649 = vmatpush1.bf16.msra.mxu0 0
        %2650 = vmatprep.subr.bf16.mxu0 0
        %2651 = vmatpush1.bf16.msra.mxu0 0
        %2652 = vmatprep.subr.bf16.mxu0 0
        %2653 = vmatpush1.bf16.msra.mxu0 0
        %2654 = vmatprep.subr.bf16.mxu0 0
        %2655 = vmatpush1.bf16.msra.mxu0 0
        %2656 = vmatprep.subr.bf16.mxu0 0
        %2657 = vmatpush1.bf16.msra.mxu0 0
        %2658 = vmatprep.subr.bf16.mxu0 0
        %2659 = vmatpush1.bf16.msra.mxu0 %v2642
        %2660 = vmatprep.subr.bf16.mxu0 0
        %2661 = vmatpush2.bf16.msra.mxu0 0
        %2662 = vmatprep.subr.bf16.mxu0 0
        %2663 = vmatpush2.bf16.msra.mxu0 0
        %2664 = vmatprep.subr.bf16.mxu0 0
        %2665 = vmatpush2.bf16.msra.mxu0 0
        %2666 = vmatprep.subr.bf16.mxu0 0
        %2667 = vmatpush2.bf16.msra.mxu0 0
        %2668 = vmatprep.subr.bf16.mxu0 0
        %2669 = vmatpush2.bf16.msra.mxu0 0
        %2670 = vmatprep.subr.bf16.mxu0 0
        %2671 = vmatpush2.bf16.msra.mxu0 0
        %2672 = vmatprep.subr.bf16.mxu0 0
        %2673 = vmatpush2.bf16.msra.mxu0 0
        %2674 = vmatprep.subr.bf16.mxu0 0
        %2675 = vmatpush2.bf16.msra.mxu0 0
        %2676 = vmatprep.mubr.bf16.mxu0 0
        %2677 = vmatmul.mubr.bf16.gmra.mxu0 %v2639
        %v2678 = vpop.f32.mrf.mxu0
        %v2679 = vadd.f32 0.0, %v2678
        %v2680 = vpop.f32.mrf.mxu0
        %v2681 = vpop.f32.mrf.mxu0
        %v2682 = vpop.f32.mrf.mxu0
        %2683 = vdwg.mxu0
        %2684 = vrot.lane.b32.xlu0 %v1223, 56
        %v2685 = vpop.permute.xlu0 %2684
        %v2687 = vsel %vm1233, %v2629, 0
        %v2690 = vsel %vm1740, %v2685, 0
        %2692 = vmatprep.subr.bf16.mxu0 0
        %2693 = vmatpush1.bf16.msra.mxu0 0
        %2694 = vmatprep.subr.bf16.mxu0 0
        %2695 = vmatpush1.bf16.msra.mxu0 0
        %2696 = vmatprep.subr.bf16.mxu0 0
        %2697 = vmatpush1.bf16.msra.mxu0 0
        %2698 = vmatprep.subr.bf16.mxu0 0
        %2699 = vmatpush1.bf16.msra.mxu0 0
        %2700 = vmatprep.subr.bf16.mxu0 0
        %2701 = vmatpush1.bf16.msra.mxu0 0
        %2702 = vmatprep.subr.bf16.mxu0 0
        %2703 = vmatpush1.bf16.msra.mxu0 0
        %2704 = vmatprep.subr.bf16.mxu0 0
        %2705 = vmatpush1.bf16.msra.mxu0 0
        %2706 = vmatprep.subr.bf16.mxu0 0
        %2707 = vmatpush1.bf16.msra.mxu0 %v2690
        %2708 = vmatprep.subr.bf16.mxu0 0
        %2709 = vmatpush2.bf16.msra.mxu0 0
        %2710 = vmatprep.subr.bf16.mxu0 0
        %2711 = vmatpush2.bf16.msra.mxu0 0
        %2712 = vmatprep.subr.bf16.mxu0 0
        %2713 = vmatpush2.bf16.msra.mxu0 0
        %2714 = vmatprep.subr.bf16.mxu0 0
        %2715 = vmatpush2.bf16.msra.mxu0 0
        %2716 = vmatprep.subr.bf16.mxu0 0
        %2717 = vmatpush2.bf16.msra.mxu0 0
        %2718 = vmatprep.subr.bf16.mxu0 0
        %2719 = vmatpush2.bf16.msra.mxu0 0
        %2720 = vmatprep.subr.bf16.mxu0 0
        %2721 = vmatpush2.bf16.msra.mxu0 0
        %2722 = vmatprep.subr.bf16.mxu0 0
        %2723 = vmatpush2.bf16.msra.mxu0 0
        %2724 = vmatprep.mubr.bf16.mxu0 0
        %2725 = vmatmul.mubr.bf16.gmra.mxu0 %v2687
        %v2726 = vpop.f32.mrf.mxu0
        %v2727 = vadd.f32 0.0, %v2726
        %v2728 = vpop.f32.mrf.mxu0
        %v2729 = vpop.f32.mrf.mxu0
        %v2730 = vpop.f32.mrf.mxu0
        %2731 = vdwg.mxu0
        %2732 = vrot.lane.b32.xlu0 %v1224, 56
        %v2733 = vpop.permute.xlu0 %2732
        %v2735 = vsel %vm1233, %v2630, 0
        %v2738 = vsel %vm1740, %v2733, 0
        %2740 = vmatprep.subr.bf16.mxu0 0
        %2741 = vmatpush1.bf16.msra.mxu0 0
        %2742 = vmatprep.subr.bf16.mxu0 0
        %2743 = vmatpush1.bf16.msra.mxu0 0
        %2744 = vmatprep.subr.bf16.mxu0 0
        %2745 = vmatpush1.bf16.msra.mxu0 0
        %2746 = vmatprep.subr.bf16.mxu0 0
        %2747 = vmatpush1.bf16.msra.mxu0 0
        %2748 = vmatprep.subr.bf16.mxu0 0
        %2749 = vmatpush1.bf16.msra.mxu0 0
        %2750 = vmatprep.subr.bf16.mxu0 0
        %2751 = vmatpush1.bf16.msra.mxu0 0
        %2752 = vmatprep.subr.bf16.mxu0 0
        %2753 = vmatpush1.bf16.msra.mxu0 0
        %2754 = vmatprep.subr.bf16.mxu0 0
        %2755 = vmatpush1.bf16.msra.mxu0 %v2738
        %2756 = vmatprep.subr.bf16.mxu0 0
        %2757 = vmatpush2.bf16.msra.mxu0 0
        %2758 = vmatprep.subr.bf16.mxu0 0
        %2759 = vmatpush2.bf16.msra.mxu0 0
        %2760 = vmatprep.subr.bf16.mxu0 0
        %2761 = vmatpush2.bf16.msra.mxu0 0
        %2762 = vmatprep.subr.bf16.mxu0 0
        %2763 = vmatpush2.bf16.msra.mxu0 0
        %2764 = vmatprep.subr.bf16.mxu0 0
        %2765 = vmatpush2.bf16.msra.mxu0 0
        %2766 = vmatprep.subr.bf16.mxu0 0
        %2767 = vmatpush2.bf16.msra.mxu0 0
        %2768 = vmatprep.subr.bf16.mxu0 0
        %2769 = vmatpush2.bf16.msra.mxu0 0
        %2770 = vmatprep.subr.bf16.mxu0 0
        %2771 = vmatpush2.bf16.msra.mxu0 0
        %2772 = vmatprep.mubr.bf16.mxu0 0
        %2773 = vmatmul.mubr.bf16.gmra.mxu0 %v2735
        %v2774 = vpop.f32.mrf.mxu0
        %v2775 = vadd.f32 0.0, %v2774
        %v2776 = vpop.f32.mrf.mxu0
        %v2777 = vpop.f32.mrf.mxu0
        %v2778 = vpop.f32.mrf.mxu0
        %2779 = vdwg.mxu0
        %2780 = vrot.lane.b32.xlu0 %v1225, 56
        %v2781 = vpop.permute.xlu0 %2780
        %v2783 = vsel %vm1233, %v2631, 0
        %v2786 = vsel %vm1740, %v2781, 0
        %2788 = vmatprep.subr.bf16.mxu0 0
        %2789 = vmatpush1.bf16.msra.mxu0 0
        %2790 = vmatprep.subr.bf16.mxu0 0
        %2791 = vmatpush1.bf16.msra.mxu0 0
        %2792 = vmatprep.subr.bf16.mxu0 0
        %2793 = vmatpush1.bf16.msra.mxu0 0
        %2794 = vmatprep.subr.bf16.mxu0 0
        %2795 = vmatpush1.bf16.msra.mxu0 0
        %2796 = vmatprep.subr.bf16.mxu0 0
        %2797 = vmatpush1.bf16.msra.mxu0 0
        %2798 = vmatprep.subr.bf16.mxu0 0
        %2799 = vmatpush1.bf16.msra.mxu0 0
        %2800 = vmatprep.subr.bf16.mxu0 0
        %2801 = vmatpush1.bf16.msra.mxu0 0
        %2802 = vmatprep.subr.bf16.mxu0 0
        %2803 = vmatpush1.bf16.msra.mxu0 %v2786
        %2804 = vmatprep.subr.bf16.mxu0 0
        %2805 = vmatpush2.bf16.msra.mxu0 0
        %2806 = vmatprep.subr.bf16.mxu0 0
        %2807 = vmatpush2.bf16.msra.mxu0 0
        %2808 = vmatprep.subr.bf16.mxu0 0
        %2809 = vmatpush2.bf16.msra.mxu0 0
        %2810 = vmatprep.subr.bf16.mxu0 0
        %2811 = vmatpush2.bf16.msra.mxu0 0
        %2812 = vmatprep.subr.bf16.mxu0 0
        %2813 = vmatpush2.bf16.msra.mxu0 0
        %2814 = vmatprep.subr.bf16.mxu0 0
        %2815 = vmatpush2.bf16.msra.mxu0 0
        %2816 = vmatprep.subr.bf16.mxu0 0
        %2817 = vmatpush2.bf16.msra.mxu0 0
        %2818 = vmatprep.subr.bf16.mxu0 0
        %2819 = vmatpush2.bf16.msra.mxu0 0
        %2820 = vmatprep.mubr.bf16.mxu0 0
        %2821 = vmatmul.mubr.bf16.gmra.mxu0 %v2783
        %v2822 = vpop.f32.mrf.mxu0
        %v2823 = vadd.f32 0.0, %v2822
        %v2824 = vpop.f32.mrf.mxu0
        %v2825 = vpop.f32.mrf.mxu0
        %v2826 = vpop.f32.mrf.mxu0
        %2827 = vdwg.mxu0
        %2828 = vrot.lane.b32.xlu0 %v1226, 56
        %v2829 = vpop.permute.xlu0 %2828
        %v2831 = vsel %vm1233, %v2632, 0
        %v2834 = vsel %vm1740, %v2829, 0
        %2836 = vmatprep.subr.bf16.mxu0 0
        %2837 = vmatpush1.bf16.msra.mxu0 0
        %2838 = vmatprep.subr.bf16.mxu0 0
        %2839 = vmatpush1.bf16.msra.mxu0 0
        %2840 = vmatprep.subr.bf16.mxu0 0
        %2841 = vmatpush1.bf16.msra.mxu0 0
        %2842 = vmatprep.subr.bf16.mxu0 0
        %2843 = vmatpush1.bf16.msra.mxu0 0
        %2844 = vmatprep.subr.bf16.mxu0 0
        %2845 = vmatpush1.bf16.msra.mxu0 0
        %2846 = vmatprep.subr.bf16.mxu0 0
        %2847 = vmatpush1.bf16.msra.mxu0 0
        %2848 = vmatprep.subr.bf16.mxu0 0
        %2849 = vmatpush1.bf16.msra.mxu0 0
        %2850 = vmatprep.subr.bf16.mxu0 0
        %2851 = vmatpush1.bf16.msra.mxu0 %v2834
        %2852 = vmatprep.subr.bf16.mxu0 0
        %2853 = vmatpush2.bf16.msra.mxu0 0
        %2854 = vmatprep.subr.bf16.mxu0 0
        %2855 = vmatpush2.bf16.msra.mxu0 0
        %2856 = vmatprep.subr.bf16.mxu0 0
        %2857 = vmatpush2.bf16.msra.mxu0 0
        %2858 = vmatprep.subr.bf16.mxu0 0
        %2859 = vmatpush2.bf16.msra.mxu0 0
        %2860 = vmatprep.subr.bf16.mxu0 0
        %2861 = vmatpush2.bf16.msra.mxu0 0
        %2862 = vmatprep.subr.bf16.mxu0 0
        %2863 = vmatpush2.bf16.msra.mxu0 0
        %2864 = vmatprep.subr.bf16.mxu0 0
        %2865 = vmatpush2.bf16.msra.mxu0 0
        %2866 = vmatprep.subr.bf16.mxu0 0
        %2867 = vmatpush2.bf16.msra.mxu0 0
        %2868 = vmatprep.mubr.bf16.mxu0 0
        %2869 = vmatmul.mubr.bf16.gmra.mxu0 %v2831
        %v2870 = vpop.f32.mrf.mxu0
        %v2871 = vadd.f32 0.0, %v2870
        %v2872 = vpop.f32.mrf.mxu0
        %v2873 = vpop.f32.mrf.mxu0
        %v2874 = vpop.f32.mrf.mxu0
        %2875 = vdwg.mxu0
        %2876 = vrot.lane.b32.xlu0 %v1227, 56
        %v2877 = vpop.permute.xlu0 %2876
        %v2879 = vsel %vm1233, %v2633, 0
        %v2882 = vsel %vm1740, %v2877, 0
        %2884 = vmatprep.subr.bf16.mxu0 0
        %2885 = vmatpush1.bf16.msra.mxu0 0
        %2886 = vmatprep.subr.bf16.mxu0 0
        %2887 = vmatpush1.bf16.msra.mxu0 0
        %2888 = vmatprep.subr.bf16.mxu0 0
        %2889 = vmatpush1.bf16.msra.mxu0 0
        %2890 = vmatprep.subr.bf16.mxu0 0
        %2891 = vmatpush1.bf16.msra.mxu0 0
        %2892 = vmatprep.subr.bf16.mxu0 0
        %2893 = vmatpush1.bf16.msra.mxu0 0
        %2894 = vmatprep.subr.bf16.mxu0 0
        %2895 = vmatpush1.bf16.msra.mxu0 0
        %2896 = vmatprep.subr.bf16.mxu0 0
        %2897 = vmatpush1.bf16.msra.mxu0 0
        %2898 = vmatprep.subr.bf16.mxu0 0
        %2899 = vmatpush1.bf16.msra.mxu0 %v2882
        %2900 = vmatprep.subr.bf16.mxu0 0
        %2901 = vmatpush2.bf16.msra.mxu0 0
        %2902 = vmatprep.subr.bf16.mxu0 0
        %2903 = vmatpush2.bf16.msra.mxu0 0
        %2904 = vmatprep.subr.bf16.mxu0 0
        %2905 = vmatpush2.bf16.msra.mxu0 0
        %2906 = vmatprep.subr.bf16.mxu0 0
        %2907 = vmatpush2.bf16.msra.mxu0 0
        %2908 = vmatprep.subr.bf16.mxu0 0
        %2909 = vmatpush2.bf16.msra.mxu0 0
        %2910 = vmatprep.subr.bf16.mxu0 0
        %2911 = vmatpush2.bf16.msra.mxu0 0
        %2912 = vmatprep.subr.bf16.mxu0 0
        %2913 = vmatpush2.bf16.msra.mxu0 0
        %2914 = vmatprep.subr.bf16.mxu0 0
        %2915 = vmatpush2.bf16.msra.mxu0 0
        %2916 = vmatprep.mubr.bf16.mxu0 0
        %2917 = vmatmul.mubr.bf16.gmra.mxu0 %v2879
        %v2918 = vpop.f32.mrf.mxu0
        %v2919 = vadd.f32 0.0, %v2918
        %v2920 = vpop.f32.mrf.mxu0
        %v2921 = vpop.f32.mrf.mxu0
        %v2922 = vpop.f32.mrf.mxu0
        %2923 = vdwg.mxu0
        %2924 = vrot.lane.b32.xlu0 %v1228, 56
        %v2925 = vpop.permute.xlu0 %2924
        %v2927 = vsel %vm1233, %v2634, 0
        %v2930 = vsel %vm1740, %v2925, 0
        %2932 = vmatprep.subr.bf16.mxu0 0
        %2933 = vmatpush1.bf16.msra.mxu0 0
        %2934 = vmatprep.subr.bf16.mxu0 0
        %2935 = vmatpush1.bf16.msra.mxu0 0
        %2936 = vmatprep.subr.bf16.mxu0 0
        %2937 = vmatpush1.bf16.msra.mxu0 0
        %2938 = vmatprep.subr.bf16.mxu0 0
        %2939 = vmatpush1.bf16.msra.mxu0 0
        %2940 = vmatprep.subr.bf16.mxu0 0
        %2941 = vmatpush1.bf16.msra.mxu0 0
        %2942 = vmatprep.subr.bf16.mxu0 0
        %2943 = vmatpush1.bf16.msra.mxu0 0
        %2944 = vmatprep.subr.bf16.mxu0 0
        %2945 = vmatpush1.bf16.msra.mxu0 0
        %2946 = vmatprep.subr.bf16.mxu0 0
        %2947 = vmatpush1.bf16.msra.mxu0 %v2930
        %2948 = vmatprep.subr.bf16.mxu0 0
        %2949 = vmatpush2.bf16.msra.mxu0 0
        %2950 = vmatprep.subr.bf16.mxu0 0
        %2951 = vmatpush2.bf16.msra.mxu0 0
        %2952 = vmatprep.subr.bf16.mxu0 0
        %2953 = vmatpush2.bf16.msra.mxu0 0
        %2954 = vmatprep.subr.bf16.mxu0 0
        %2955 = vmatpush2.bf16.msra.mxu0 0
        %2956 = vmatprep.subr.bf16.mxu0 0
        %2957 = vmatpush2.bf16.msra.mxu0 0
        %2958 = vmatprep.subr.bf16.mxu0 0
        %2959 = vmatpush2.bf16.msra.mxu0 0
        %2960 = vmatprep.subr.bf16.mxu0 0
        %2961 = vmatpush2.bf16.msra.mxu0 0
        %2962 = vmatprep.subr.bf16.mxu0 0
        %2963 = vmatpush2.bf16.msra.mxu0 0
        %2964 = vmatprep.mubr.bf16.mxu0 0
        %2965 = vmatmul.mubr.bf16.gmra.mxu0 %v2927
        %v2966 = vpop.f32.mrf.mxu0
        %v2967 = vadd.f32 0.0, %v2966
        %v2968 = vpop.f32.mrf.mxu0
        %v2969 = vpop.f32.mrf.mxu0
        %v2970 = vpop.f32.mrf.mxu0
        %2971 = vdwg.mxu0
        %2972 = vrot.lane.b32.xlu0 %v1229, 56
        %v2973 = vpop.permute.xlu0 %2972
        %v2975 = vsel %vm1233, %v2635, 0
        %v2978 = vsel %vm1740, %v2973, 0
        %2980 = vmatprep.subr.bf16.mxu0 0
        %2981 = vmatpush1.bf16.msra.mxu0 0
        %2982 = vmatprep.subr.bf16.mxu0 0
        %2983 = vmatpush1.bf16.msra.mxu0 0
        %2984 = vmatprep.subr.bf16.mxu0 0
        %2985 = vmatpush1.bf16.msra.mxu0 0
        %2986 = vmatprep.subr.bf16.mxu0 0
        %2987 = vmatpush1.bf16.msra.mxu0 0
        %2988 = vmatprep.subr.bf16.mxu0 0
        %2989 = vmatpush1.bf16.msra.mxu0 0
        %2990 = vmatprep.subr.bf16.mxu0 0
        %2991 = vmatpush1.bf16.msra.mxu0 0
        %2992 = vmatprep.subr.bf16.mxu0 0
        %2993 = vmatpush1.bf16.msra.mxu0 0
        %2994 = vmatprep.subr.bf16.mxu0 0
        %2995 = vmatpush1.bf16.msra.mxu0 %v2978
        %2996 = vmatprep.subr.bf16.mxu0 0
        %2997 = vmatpush2.bf16.msra.mxu0 0
        %2998 = vmatprep.subr.bf16.mxu0 0
        %2999 = vmatpush2.bf16.msra.mxu0 0
        %3000 = vmatprep.subr.bf16.mxu0 0
        %3001 = vmatpush2.bf16.msra.mxu0 0
        %3002 = vmatprep.subr.bf16.mxu0 0
        %3003 = vmatpush2.bf16.msra.mxu0 0
        %3004 = vmatprep.subr.bf16.mxu0 0
        %3005 = vmatpush2.bf16.msra.mxu0 0
        %3006 = vmatprep.subr.bf16.mxu0 0
        %3007 = vmatpush2.bf16.msra.mxu0 0
        %3008 = vmatprep.subr.bf16.mxu0 0
        %3009 = vmatpush2.bf16.msra.mxu0 0
        %3010 = vmatprep.subr.bf16.mxu0 0
        %3011 = vmatpush2.bf16.msra.mxu0 0
        %3012 = vmatprep.mubr.bf16.mxu0 0
        %3013 = vmatmul.mubr.bf16.gmra.mxu0 %v2975
        %v3014 = vpop.f32.mrf.mxu0
        %v3015 = vadd.f32 0.0, %v3014
        %v3016 = vpop.f32.mrf.mxu0
        %v3017 = vpop.f32.mrf.mxu0
        %v3018 = vpop.f32.mrf.mxu0
        %3019 = vdwg.mxu0
        %v3020 = vpack.c.bf16 %v2727, %v2679
        %v3021 = vpack.c.bf16 %v2823, %v2775
        %v3022 = vpack.c.bf16 %v2919, %v2871
        %v3023 = vpack.c.bf16 %v3015, %v2967
        %v3025 = vsel %vm1233, %v3020, 0
        %v3028 = vsel %vm1233, %v3021, 0
        %v3031 = vsel %vm1233, %v3022, 0
        %v3034 = vsel %vm1233, %v3023, 0
        %v3037 = vsel %vm1740, %v1219, 0
        %3039 = vmatprep.subr.bf16.mxu0 0
        %3040 = vmatpush1.bf16.msra.mxu0 0
        %3041 = vmatprep.subr.bf16.mxu0 0
        %3042 = vmatpush1.bf16.msra.mxu0 0
        %3043 = vmatprep.subr.bf16.mxu0 0
        %3044 = vmatpush1.bf16.msra.mxu0 0
        %3045 = vmatprep.subr.bf16.mxu0 0
        %3046 = vmatpush1.bf16.msra.mxu0 0
        %3047 = vmatprep.subr.bf16.mxu0 0
        %3048 = vmatpush1.bf16.msra.mxu0 0
        %3049 = vmatprep.subr.bf16.mxu0 0
        %3050 = vmatpush1.bf16.msra.mxu0 0
        %3051 = vmatprep.subr.bf16.mxu0 0
        %3052 = vmatpush1.bf16.msra.mxu0 0
        %3053 = vmatprep.subr.bf16.mxu0 0
        %3054 = vmatpush1.bf16.msra.mxu0 %v3037
        %3055 = vmatprep.subr.bf16.mxu0 0
        %3056 = vmatpush2.bf16.msra.mxu0 0
        %3057 = vmatprep.subr.bf16.mxu0 0
        %3058 = vmatpush2.bf16.msra.mxu0 0
        %3059 = vmatprep.subr.bf16.mxu0 0
        %3060 = vmatpush2.bf16.msra.mxu0 0
        %3061 = vmatprep.subr.bf16.mxu0 0
        %3062 = vmatpush2.bf16.msra.mxu0 0
        %3063 = vmatprep.subr.bf16.mxu0 0
        %3064 = vmatpush2.bf16.msra.mxu0 0
        %3065 = vmatprep.subr.bf16.mxu0 0
        %3066 = vmatpush2.bf16.msra.mxu0 0
        %3067 = vmatprep.subr.bf16.mxu0 0
        %3068 = vmatpush2.bf16.msra.mxu0 0
        %3069 = vmatprep.subr.bf16.mxu0 0
        %3070 = vmatpush2.bf16.msra.mxu0 0
        %3071 = vmatprep.mubr.bf16.mxu0 0
        %3072 = vmatmul.mubr.bf16.gmra.mxu0 %v3025
        %v3073 = vpop.f32.mrf.mxu0
        %v3074 = vadd.f32 0.0, %v3073
        %v3075 = vpop.f32.mrf.mxu0
        %v3076 = vpop.f32.mrf.mxu0
        %v3077 = vadd.f32 0.0, %v3076
        %v3078 = vpop.f32.mrf.mxu0
        %3079 = vmatprep.mubr.bf16.mxu0 0
        %3080 = vmatmul.mubr.bf16.gmra.mxu0 %v3028
        %v3081 = vpop.f32.mrf.mxu0
        %v3082 = vadd.f32 0.0, %v3081
        %v3083 = vpop.f32.mrf.mxu0
        %v3084 = vpop.f32.mrf.mxu0
        %v3085 = vadd.f32 0.0, %v3084
        %v3086 = vpop.f32.mrf.mxu0
        %3087 = vmatprep.mubr.bf16.mxu0 0
        %3088 = vmatmul.mubr.bf16.gmra.mxu0 %v3031
        %v3089 = vpop.f32.mrf.mxu0
        %v3090 = vadd.f32 0.0, %v3089
        %v3091 = vpop.f32.mrf.mxu0
        %v3092 = vpop.f32.mrf.mxu0
        %v3093 = vadd.f32 0.0, %v3092
        %v3094 = vpop.f32.mrf.mxu0
        %3095 = vmatprep.mubr.bf16.mxu0 0
        %3096 = vmatmul.mubr.bf16.gmra.mxu0 %v3034
        %v3097 = vpop.f32.mrf.mxu0
        %v3098 = vadd.f32 0.0, %v3097
        %v3099 = vpop.f32.mrf.mxu0
        %v3100 = vpop.f32.mrf.mxu0
        %v3101 = vadd.f32 0.0, %v3100
        %v3102 = vpop.f32.mrf.mxu0
        %3103 = vdwg.mxu0
        %v3105 = vsel %vm1233, %v2120, 0
        %v3108 = vsel %vm1233, %v2121, 0
        %v3111 = vsel %vm1233, %v2122, 0
        %v3114 = vsel %vm1233, %v2123, 0
        %v3117 = vsel %vm1740, %v1218, 0
        %3119 = vmatprep.subr.bf16.mxu0 0
        %3120 = vmatpush1.bf16.msra.mxu0 0
        %3121 = vmatprep.subr.bf16.mxu0 0
        %3122 = vmatpush1.bf16.msra.mxu0 0
        %3123 = vmatprep.subr.bf16.mxu0 0
        %3124 = vmatpush1.bf16.msra.mxu0 0
        %3125 = vmatprep.subr.bf16.mxu0 0
        %3126 = vmatpush1.bf16.msra.mxu0 0
        %3127 = vmatprep.subr.bf16.mxu0 0
        %3128 = vmatpush1.bf16.msra.mxu0 0
        %3129 = vmatprep.subr.bf16.mxu0 0
        %3130 = vmatpush1.bf16.msra.mxu0 0
        %3131 = vmatprep.subr.bf16.mxu0 0
        %3132 = vmatpush1.bf16.msra.mxu0 0
        %3133 = vmatprep.subr.bf16.mxu0 0
        %3134 = vmatpush1.bf16.msra.mxu0 %v3117
        %3135 = vmatprep.subr.bf16.mxu0 0
        %3136 = vmatpush2.bf16.msra.mxu0 0
        %3137 = vmatprep.subr.bf16.mxu0 0
        %3138 = vmatpush2.bf16.msra.mxu0 0
        %3139 = vmatprep.subr.bf16.mxu0 0
        %3140 = vmatpush2.bf16.msra.mxu0 0
        %3141 = vmatprep.subr.bf16.mxu0 0
        %3142 = vmatpush2.bf16.msra.mxu0 0
        %3143 = vmatprep.subr.bf16.mxu0 0
        %3144 = vmatpush2.bf16.msra.mxu0 0
        %3145 = vmatprep.subr.bf16.mxu0 0
        %3146 = vmatpush2.bf16.msra.mxu0 0
        %3147 = vmatprep.subr.bf16.mxu0 0
        %3148 = vmatpush2.bf16.msra.mxu0 0
        %3149 = vmatprep.subr.bf16.mxu0 0
        %3150 = vmatpush2.bf16.msra.mxu0 0
        %3151 = vmatprep.mubr.bf16.mxu0 0
        %3152 = vmatmul.mubr.bf16.gmra.mxu0 %v3105
        %v3153 = vpop.f32.mrf.mxu0
        %v3154 = vadd.f32 %v3074, %v3153
        %v3155 = vpop.f32.mrf.mxu0
        %v3156 = vpop.f32.mrf.mxu0
        %v3157 = vadd.f32 %v3077, %v3156
        %v3158 = vpop.f32.mrf.mxu0
        %3159 = vmatprep.mubr.bf16.mxu0 0
        %3160 = vmatmul.mubr.bf16.gmra.mxu0 %v3108
        %v3161 = vpop.f32.mrf.mxu0
        %v3162 = vadd.f32 %v3082, %v3161
        %v3163 = vpop.f32.mrf.mxu0
        %v3164 = vpop.f32.mrf.mxu0
        %v3165 = vadd.f32 %v3085, %v3164
        %v3166 = vpop.f32.mrf.mxu0
        %3167 = vmatprep.mubr.bf16.mxu0 0
        %3168 = vmatmul.mubr.bf16.gmra.mxu0 %v3111
        %v3169 = vpop.f32.mrf.mxu0
        %v3170 = vadd.f32 %v3090, %v3169
        %v3171 = vpop.f32.mrf.mxu0
        %v3172 = vpop.f32.mrf.mxu0
        %v3173 = vadd.f32 %v3093, %v3172
        %v3174 = vpop.f32.mrf.mxu0
        %3175 = vmatprep.mubr.bf16.mxu0 0
        %3176 = vmatmul.mubr.bf16.gmra.mxu0 %v3114
        %v3177 = vpop.f32.mrf.mxu0
        %v3178 = vadd.f32 %v3098, %v3177
        %v3179 = vpop.f32.mrf.mxu0
        %v3180 = vpop.f32.mrf.mxu0
        %v3181 = vadd.f32 %v3101, %v3180
        %v3182 = vpop.f32.mrf.mxu0
        %3183 = vdwg.mxu0
        %3184 = vrot.lane.b32.xlu0 %v1222, 112
        %v3185 = vpop.permute.xlu0 %3184
        %3186 = vrot.lane.b32.xlu0 %v1222, 80
        %v3187 = vpop.permute.xlu0 %3186
        %v3189 = vsel %vm1233, %v3185, 0
        %v3192 = vsel %vm1233, %v3187, 0
        %3194 = vmatprep.subr.bf16.mxu0 0
        %3195 = vmatpush1.bf16.xpose.msra.mxu0 0
        %3196 = vmatprep.subr.bf16.mxu0 0
        %3197 = vmatpush1.bf16.xpose.msra.mxu0 0
        %3198 = vmatprep.subr.bf16.mxu0 0
        %3199 = vmatpush1.bf16.xpose.msra.mxu0 0
        %3200 = vmatprep.subr.bf16.mxu0 0
        %3201 = vmatpush1.bf16.xpose.msra.mxu0 0
        %3202 = vmatprep.subr.bf16.mxu0 0
        %3203 = vmatpush1.bf16.xpose.msra.mxu0 0
        %3204 = vmatprep.subr.bf16.mxu0 0
        %3205 = vmatpush1.bf16.xpose.msra.mxu0 0
        %3206 = vmatprep.subr.bf16.mxu0 0
        %3207 = vmatpush1.bf16.xpose.msra.mxu0 0
        %3208 = vmatprep.subr.bf16.mxu0 0
        %3209 = vmatpush1.bf16.xpose.msra.mxu0 %v3192
        %3210 = vmatprep.subr.bf16.mxu0 0
        %3211 = vmatpush2.bf16.xpose.msra.mxu0 0
        %3212 = vmatprep.subr.bf16.mxu0 0
        %3213 = vmatpush2.bf16.xpose.msra.mxu0 0
        %3214 = vmatprep.subr.bf16.mxu0 0
        %3215 = vmatpush2.bf16.xpose.msra.mxu0 0
        %3216 = vmatprep.subr.bf16.mxu0 0
        %3217 = vmatpush2.bf16.xpose.msra.mxu0 0
        %3218 = vmatprep.subr.bf16.mxu0 0
        %3219 = vmatpush2.bf16.xpose.msra.mxu0 0
        %3220 = vmatprep.subr.bf16.mxu0 0
        %3221 = vmatpush2.bf16.xpose.msra.mxu0 0
        %3222 = vmatprep.subr.bf16.mxu0 0
        %3223 = vmatpush2.bf16.xpose.msra.mxu0 0
        %3224 = vmatprep.subr.bf16.mxu0 0
        %3225 = vmatpush2.bf16.xpose.msra.mxu0 0
        %3226 = vmatprep.mubr.bf16.mxu0 0
        %3227 = vmatmul.mubr.bf16.gmra.mxu0 %v3189
        %v3228 = vpop.f32.mrf.mxu0
        %v3229 = vadd.f32 0.0, %v3228
        %v3230 = vpop.f32.mrf.mxu0
        %v3231 = vpop.f32.mrf.mxu0
        %v3232 = vpop.f32.mrf.mxu0
        %3233 = vdwg.mxu0
        %3234 = vrot.lane.b32.xlu0 %v1223, 112
        %v3235 = vpop.permute.xlu0 %3234
        %3236 = vrot.lane.b32.xlu0 %v1223, 80
        %v3237 = vpop.permute.xlu0 %3236
        %v3239 = vsel %vm1233, %v3235, 0
        %v3242 = vsel %vm1233, %v3237, 0
        %3244 = vmatprep.subr.bf16.mxu0 0
        %3245 = vmatpush1.bf16.xpose.msra.mxu0 0
        %3246 = vmatprep.subr.bf16.mxu0 0
        %3247 = vmatpush1.bf16.xpose.msra.mxu0 0
        %3248 = vmatprep.subr.bf16.mxu0 0
        %3249 = vmatpush1.bf16.xpose.msra.mxu0 0
        %3250 = vmatprep.subr.bf16.mxu0 0
        %3251 = vmatpush1.bf16.xpose.msra.mxu0 0
        %3252 = vmatprep.subr.bf16.mxu0 0
        %3253 = vmatpush1.bf16.xpose.msra.mxu0 0
        %3254 = vmatprep.subr.bf16.mxu0 0
        %3255 = vmatpush1.bf16.xpose.msra.mxu0 0
        %3256 = vmatprep.subr.bf16.mxu0 0
        %3257 = vmatpush1.bf16.xpose.msra.mxu0 0
        %3258 = vmatprep.subr.bf16.mxu0 0
        %3259 = vmatpush1.bf16.xpose.msra.mxu0 %v3242
        %3260 = vmatprep.subr.bf16.mxu0 0
        %3261 = vmatpush2.bf16.xpose.msra.mxu0 0
        %3262 = vmatprep.subr.bf16.mxu0 0
        %3263 = vmatpush2.bf16.xpose.msra.mxu0 0
        %3264 = vmatprep.subr.bf16.mxu0 0
        %3265 = vmatpush2.bf16.xpose.msra.mxu0 0
        %3266 = vmatprep.subr.bf16.mxu0 0
        %3267 = vmatpush2.bf16.xpose.msra.mxu0 0
        %3268 = vmatprep.subr.bf16.mxu0 0
        %3269 = vmatpush2.bf16.xpose.msra.mxu0 0
        %3270 = vmatprep.subr.bf16.mxu0 0
        %3271 = vmatpush2.bf16.xpose.msra.mxu0 0
        %3272 = vmatprep.subr.bf16.mxu0 0
        %3273 = vmatpush2.bf16.xpose.msra.mxu0 0
        %3274 = vmatprep.subr.bf16.mxu0 0
        %3275 = vmatpush2.bf16.xpose.msra.mxu0 0
        %3276 = vmatprep.mubr.bf16.mxu0 0
        %3277 = vmatmul.mubr.bf16.gmra.mxu0 %v3239
        %v3278 = vpop.f32.mrf.mxu0
        %v3279 = vadd.f32 0.0, %v3278
        %v3280 = vpop.f32.mrf.mxu0
        %v3281 = vpop.f32.mrf.mxu0
        %v3282 = vpop.f32.mrf.mxu0
        %3283 = vdwg.mxu0
        %3284 = vrot.lane.b32.xlu0 %v1224, 112
        %v3285 = vpop.permute.xlu0 %3284
        %3286 = vrot.lane.b32.xlu0 %v1224, 80
        %v3287 = vpop.permute.xlu0 %3286
        %v3289 = vsel %vm1233, %v3285, 0
        %v3292 = vsel %vm1233, %v3287, 0
        %3294 = vmatprep.subr.bf16.mxu0 0
        %3295 = vmatpush1.bf16.xpose.msra.mxu0 0
        %3296 = vmatprep.subr.bf16.mxu0 0
        %3297 = vmatpush1.bf16.xpose.msra.mxu0 0
        %3298 = vmatprep.subr.bf16.mxu0 0
        %3299 = vmatpush1.bf16.xpose.msra.mxu0 0
        %3300 = vmatprep.subr.bf16.mxu0 0
        %3301 = vmatpush1.bf16.xpose.msra.mxu0 0
        %3302 = vmatprep.subr.bf16.mxu0 0
        %3303 = vmatpush1.bf16.xpose.msra.mxu0 0
        %3304 = vmatprep.subr.bf16.mxu0 0
        %3305 = vmatpush1.bf16.xpose.msra.mxu0 0
        %3306 = vmatprep.subr.bf16.mxu0 0
        %3307 = vmatpush1.bf16.xpose.msra.mxu0 0
        %3308 = vmatprep.subr.bf16.mxu0 0
        %3309 = vmatpush1.bf16.xpose.msra.mxu0 %v3292
        %3310 = vmatprep.subr.bf16.mxu0 0
        %3311 = vmatpush2.bf16.xpose.msra.mxu0 0
        %3312 = vmatprep.subr.bf16.mxu0 0
        %3313 = vmatpush2.bf16.xpose.msra.mxu0 0
        %3314 = vmatprep.subr.bf16.mxu0 0
        %3315 = vmatpush2.bf16.xpose.msra.mxu0 0
        %3316 = vmatprep.subr.bf16.mxu0 0
        %3317 = vmatpush2.bf16.xpose.msra.mxu0 0
        %3318 = vmatprep.subr.bf16.mxu0 0
        %3319 = vmatpush2.bf16.xpose.msra.mxu0 0
        %3320 = vmatprep.subr.bf16.mxu0 0
        %3321 = vmatpush2.bf16.xpose.msra.mxu0 0
        %3322 = vmatprep.subr.bf16.mxu0 0
        %3323 = vmatpush2.bf16.xpose.msra.mxu0 0
        %3324 = vmatprep.subr.bf16.mxu0 0
        %3325 = vmatpush2.bf16.xpose.msra.mxu0 0
        %3326 = vmatprep.mubr.bf16.mxu0 0
        %3327 = vmatmul.mubr.bf16.gmra.mxu0 %v3289
        %v3328 = vpop.f32.mrf.mxu0
        %v3329 = vadd.f32 0.0, %v3328
        %v3330 = vpop.f32.mrf.mxu0
        %v3331 = vpop.f32.mrf.mxu0
        %v3332 = vpop.f32.mrf.mxu0
        %3333 = vdwg.mxu0
        %3334 = vrot.lane.b32.xlu0 %v1225, 112
        %v3335 = vpop.permute.xlu0 %3334
        %3336 = vrot.lane.b32.xlu0 %v1225, 80
        %v3337 = vpop.permute.xlu0 %3336
        %v3339 = vsel %vm1233, %v3335, 0
        %v3342 = vsel %vm1233, %v3337, 0
        %3344 = vmatprep.subr.bf16.mxu0 0
        %3345 = vmatpush1.bf16.xpose.msra.mxu0 0
        %3346 = vmatprep.subr.bf16.mxu0 0
        %3347 = vmatpush1.bf16.xpose.msra.mxu0 0
        %3348 = vmatprep.subr.bf16.mxu0 0
        %3349 = vmatpush1.bf16.xpose.msra.mxu0 0
        %3350 = vmatprep.subr.bf16.mxu0 0
        %3351 = vmatpush1.bf16.xpose.msra.mxu0 0
        %3352 = vmatprep.subr.bf16.mxu0 0
        %3353 = vmatpush1.bf16.xpose.msra.mxu0 0
        %3354 = vmatprep.subr.bf16.mxu0 0
        %3355 = vmatpush1.bf16.xpose.msra.mxu0 0
        %3356 = vmatprep.subr.bf16.mxu0 0
        %3357 = vmatpush1.bf16.xpose.msra.mxu0 0
        %3358 = vmatprep.subr.bf16.mxu0 0
        %3359 = vmatpush1.bf16.xpose.msra.mxu0 %v3342
        %3360 = vmatprep.subr.bf16.mxu0 0
        %3361 = vmatpush2.bf16.xpose.msra.mxu0 0
        %3362 = vmatprep.subr.bf16.mxu0 0
        %3363 = vmatpush2.bf16.xpose.msra.mxu0 0
        %3364 = vmatprep.subr.bf16.mxu0 0
        %3365 = vmatpush2.bf16.xpose.msra.mxu0 0
        %3366 = vmatprep.subr.bf16.mxu0 0
        %3367 = vmatpush2.bf16.xpose.msra.mxu0 0
        %3368 = vmatprep.subr.bf16.mxu0 0
        %3369 = vmatpush2.bf16.xpose.msra.mxu0 0
        %3370 = vmatprep.subr.bf16.mxu0 0
        %3371 = vmatpush2.bf16.xpose.msra.mxu0 0
        %3372 = vmatprep.subr.bf16.mxu0 0
        %3373 = vmatpush2.bf16.xpose.msra.mxu0 0
        %3374 = vmatprep.subr.bf16.mxu0 0
        %3375 = vmatpush2.bf16.xpose.msra.mxu0 0
        %3376 = vmatprep.mubr.bf16.mxu0 0
        %3377 = vmatmul.mubr.bf16.gmra.mxu0 %v3339
        %v3378 = vpop.f32.mrf.mxu0
        %v3379 = vadd.f32 0.0, %v3378
        %v3380 = vpop.f32.mrf.mxu0
        %v3381 = vpop.f32.mrf.mxu0
        %v3382 = vpop.f32.mrf.mxu0
        %3383 = vdwg.mxu0
        %3384 = vrot.lane.b32.xlu0 %v1226, 112
        %v3385 = vpop.permute.xlu0 %3384
        %3386 = vrot.lane.b32.xlu0 %v1226, 80
        %v3387 = vpop.permute.xlu0 %3386
        %v3389 = vsel %vm1233, %v3385, 0
        %v3392 = vsel %vm1233, %v3387, 0
        %3394 = vmatprep.subr.bf16.mxu0 0
        %3395 = vmatpush1.bf16.xpose.msra.mxu0 0
        %3396 = vmatprep.subr.bf16.mxu0 0
        %3397 = vmatpush1.bf16.xpose.msra.mxu0 0
        %3398 = vmatprep.subr.bf16.mxu0 0
        %3399 = vmatpush1.bf16.xpose.msra.mxu0 0
        %3400 = vmatprep.subr.bf16.mxu0 0
        %3401 = vmatpush1.bf16.xpose.msra.mxu0 0
        %3402 = vmatprep.subr.bf16.mxu0 0
        %3403 = vmatpush1.bf16.xpose.msra.mxu0 0
        %3404 = vmatprep.subr.bf16.mxu0 0
        %3405 = vmatpush1.bf16.xpose.msra.mxu0 0
        %3406 = vmatprep.subr.bf16.mxu0 0
        %3407 = vmatpush1.bf16.xpose.msra.mxu0 0
        %3408 = vmatprep.subr.bf16.mxu0 0
        %3409 = vmatpush1.bf16.xpose.msra.mxu0 %v3392
        %3410 = vmatprep.subr.bf16.mxu0 0
        %3411 = vmatpush2.bf16.xpose.msra.mxu0 0
        %3412 = vmatprep.subr.bf16.mxu0 0
        %3413 = vmatpush2.bf16.xpose.msra.mxu0 0
        %3414 = vmatprep.subr.bf16.mxu0 0
        %3415 = vmatpush2.bf16.xpose.msra.mxu0 0
        %3416 = vmatprep.subr.bf16.mxu0 0
        %3417 = vmatpush2.bf16.xpose.msra.mxu0 0
        %3418 = vmatprep.subr.bf16.mxu0 0
        %3419 = vmatpush2.bf16.xpose.msra.mxu0 0
        %3420 = vmatprep.subr.bf16.mxu0 0
        %3421 = vmatpush2.bf16.xpose.msra.mxu0 0
        %3422 = vmatprep.subr.bf16.mxu0 0
        %3423 = vmatpush2.bf16.xpose.msra.mxu0 0
        %3424 = vmatprep.subr.bf16.mxu0 0
        %3425 = vmatpush2.bf16.xpose.msra.mxu0 0
        %3426 = vmatprep.mubr.bf16.mxu0 0
        %3427 = vmatmul.mubr.bf16.gmra.mxu0 %v3389
        %v3428 = vpop.f32.mrf.mxu0
        %v3429 = vadd.f32 0.0, %v3428
        %v3430 = vpop.f32.mrf.mxu0
        %v3431 = vpop.f32.mrf.mxu0
        %v3432 = vpop.f32.mrf.mxu0
        %3433 = vdwg.mxu0
        %3434 = vrot.lane.b32.xlu0 %v1227, 112
        %v3435 = vpop.permute.xlu0 %3434
        %3436 = vrot.lane.b32.xlu0 %v1227, 80
        %v3437 = vpop.permute.xlu0 %3436
        %v3439 = vsel %vm1233, %v3435, 0
        %v3442 = vsel %vm1233, %v3437, 0
        %3444 = vmatprep.subr.bf16.mxu0 0
        %3445 = vmatpush1.bf16.xpose.msra.mxu0 0
        %3446 = vmatprep.subr.bf16.mxu0 0
        %3447 = vmatpush1.bf16.xpose.msra.mxu0 0
        %3448 = vmatprep.subr.bf16.mxu0 0
        %3449 = vmatpush1.bf16.xpose.msra.mxu0 0
        %3450 = vmatprep.subr.bf16.mxu0 0
        %3451 = vmatpush1.bf16.xpose.msra.mxu0 0
        %3452 = vmatprep.subr.bf16.mxu0 0
        %3453 = vmatpush1.bf16.xpose.msra.mxu0 0
        %3454 = vmatprep.subr.bf16.mxu0 0
        %3455 = vmatpush1.bf16.xpose.msra.mxu0 0
        %3456 = vmatprep.subr.bf16.mxu0 0
        %3457 = vmatpush1.bf16.xpose.msra.mxu0 0
        %3458 = vmatprep.subr.bf16.mxu0 0
        %3459 = vmatpush1.bf16.xpose.msra.mxu0 %v3442
        %3460 = vmatprep.subr.bf16.mxu0 0
        %3461 = vmatpush2.bf16.xpose.msra.mxu0 0
        %3462 = vmatprep.subr.bf16.mxu0 0
        %3463 = vmatpush2.bf16.xpose.msra.mxu0 0
        %3464 = vmatprep.subr.bf16.mxu0 0
        %3465 = vmatpush2.bf16.xpose.msra.mxu0 0
        %3466 = vmatprep.subr.bf16.mxu0 0
        %3467 = vmatpush2.bf16.xpose.msra.mxu0 0
        %3468 = vmatprep.subr.bf16.mxu0 0
        %3469 = vmatpush2.bf16.xpose.msra.mxu0 0
        %3470 = vmatprep.subr.bf16.mxu0 0
        %3471 = vmatpush2.bf16.xpose.msra.mxu0 0
        %3472 = vmatprep.subr.bf16.mxu0 0
        %3473 = vmatpush2.bf16.xpose.msra.mxu0 0
        %3474 = vmatprep.subr.bf16.mxu0 0
        %3475 = vmatpush2.bf16.xpose.msra.mxu0 0
        %3476 = vmatprep.mubr.bf16.mxu0 0
        %3477 = vmatmul.mubr.bf16.gmra.mxu0 %v3439
        %v3478 = vpop.f32.mrf.mxu0
        %v3479 = vadd.f32 0.0, %v3478
        %v3480 = vpop.f32.mrf.mxu0
        %v3481 = vpop.f32.mrf.mxu0
        %v3482 = vpop.f32.mrf.mxu0
        %3483 = vdwg.mxu0
        %3484 = vrot.lane.b32.xlu0 %v1228, 112
        %v3485 = vpop.permute.xlu0 %3484
        %3486 = vrot.lane.b32.xlu0 %v1228, 80
        %v3487 = vpop.permute.xlu0 %3486
        %v3489 = vsel %vm1233, %v3485, 0
        %v3492 = vsel %vm1233, %v3487, 0
        %3494 = vmatprep.subr.bf16.mxu0 0
        %3495 = vmatpush1.bf16.xpose.msra.mxu0 0
        %3496 = vmatprep.subr.bf16.mxu0 0
        %3497 = vmatpush1.bf16.xpose.msra.mxu0 0
        %3498 = vmatprep.subr.bf16.mxu0 0
        %3499 = vmatpush1.bf16.xpose.msra.mxu0 0
        %3500 = vmatprep.subr.bf16.mxu0 0
        %3501 = vmatpush1.bf16.xpose.msra.mxu0 0
        %3502 = vmatprep.subr.bf16.mxu0 0
        %3503 = vmatpush1.bf16.xpose.msra.mxu0 0
        %3504 = vmatprep.subr.bf16.mxu0 0
        %3505 = vmatpush1.bf16.xpose.msra.mxu0 0
        %3506 = vmatprep.subr.bf16.mxu0 0
        %3507 = vmatpush1.bf16.xpose.msra.mxu0 0
        %3508 = vmatprep.subr.bf16.mxu0 0
        %3509 = vmatpush1.bf16.xpose.msra.mxu0 %v3492
        %3510 = vmatprep.subr.bf16.mxu0 0
        %3511 = vmatpush2.bf16.xpose.msra.mxu0 0
        %3512 = vmatprep.subr.bf16.mxu0 0
        %3513 = vmatpush2.bf16.xpose.msra.mxu0 0
        %3514 = vmatprep.subr.bf16.mxu0 0
        %3515 = vmatpush2.bf16.xpose.msra.mxu0 0
        %3516 = vmatprep.subr.bf16.mxu0 0
        %3517 = vmatpush2.bf16.xpose.msra.mxu0 0
        %3518 = vmatprep.subr.bf16.mxu0 0
        %3519 = vmatpush2.bf16.xpose.msra.mxu0 0
        %3520 = vmatprep.subr.bf16.mxu0 0
        %3521 = vmatpush2.bf16.xpose.msra.mxu0 0
        %3522 = vmatprep.subr.bf16.mxu0 0
        %3523 = vmatpush2.bf16.xpose.msra.mxu0 0
        %3524 = vmatprep.subr.bf16.mxu0 0
        %3525 = vmatpush2.bf16.xpose.msra.mxu0 0
        %3526 = vmatprep.mubr.bf16.mxu0 0
        %3527 = vmatmul.mubr.bf16.gmra.mxu0 %v3489
        %v3528 = vpop.f32.mrf.mxu0
        %v3529 = vadd.f32 0.0, %v3528
        %v3530 = vpop.f32.mrf.mxu0
        %v3531 = vpop.f32.mrf.mxu0
        %v3532 = vpop.f32.mrf.mxu0
        %3533 = vdwg.mxu0
        %3534 = vrot.lane.b32.xlu0 %v1229, 112
        %v3535 = vpop.permute.xlu0 %3534
        %3536 = vrot.lane.b32.xlu0 %v1229, 80
        %v3537 = vpop.permute.xlu0 %3536
        %v3539 = vsel %vm1233, %v3535, 0
        %v3542 = vsel %vm1233, %v3537, 0
        %3544 = vmatprep.subr.bf16.mxu0 0
        %3545 = vmatpush1.bf16.xpose.msra.mxu0 0
        %3546 = vmatprep.subr.bf16.mxu0 0
        %3547 = vmatpush1.bf16.xpose.msra.mxu0 0
        %3548 = vmatprep.subr.bf16.mxu0 0
        %3549 = vmatpush1.bf16.xpose.msra.mxu0 0
        %3550 = vmatprep.subr.bf16.mxu0 0
        %3551 = vmatpush1.bf16.xpose.msra.mxu0 0
        %3552 = vmatprep.subr.bf16.mxu0 0
        %3553 = vmatpush1.bf16.xpose.msra.mxu0 0
        %3554 = vmatprep.subr.bf16.mxu0 0
        %3555 = vmatpush1.bf16.xpose.msra.mxu0 0
        %3556 = vmatprep.subr.bf16.mxu0 0
        %3557 = vmatpush1.bf16.xpose.msra.mxu0 0
        %3558 = vmatprep.subr.bf16.mxu0 0
        %3559 = vmatpush1.bf16.xpose.msra.mxu0 %v3542
        %3560 = vmatprep.subr.bf16.mxu0 0
        %3561 = vmatpush2.bf16.xpose.msra.mxu0 0
        %3562 = vmatprep.subr.bf16.mxu0 0
        %3563 = vmatpush2.bf16.xpose.msra.mxu0 0
        %3564 = vmatprep.subr.bf16.mxu0 0
        %3565 = vmatpush2.bf16.xpose.msra.mxu0 0
        %3566 = vmatprep.subr.bf16.mxu0 0
        %3567 = vmatpush2.bf16.xpose.msra.mxu0 0
        %3568 = vmatprep.subr.bf16.mxu0 0
        %3569 = vmatpush2.bf16.xpose.msra.mxu0 0
        %3570 = vmatprep.subr.bf16.mxu0 0
        %3571 = vmatpush2.bf16.xpose.msra.mxu0 0
        %3572 = vmatprep.subr.bf16.mxu0 0
        %3573 = vmatpush2.bf16.xpose.msra.mxu0 0
        %3574 = vmatprep.subr.bf16.mxu0 0
        %3575 = vmatpush2.bf16.xpose.msra.mxu0 0
        %3576 = vmatprep.mubr.bf16.mxu0 0
        %3577 = vmatmul.mubr.bf16.gmra.mxu0 %v3539
        %v3578 = vpop.f32.mrf.mxu0
        %v3579 = vadd.f32 0.0, %v3578
        %v3580 = vpop.f32.mrf.mxu0
        %v3581 = vpop.f32.mrf.mxu0
        %v3582 = vpop.f32.mrf.mxu0
        %3583 = vdwg.mxu0
        %v3584 = vmul.f32 %v3229, 0.35355338
        %v3585 = vmul.f32 %v3279, 0.35355338
        %v3586 = vmul.f32 %v3329, 0.35355338
        %v3587 = vmul.f32 %v3379, 0.35355338
        %v3588 = vmul.f32 %v3429, 0.35355338
        %v3589 = vmul.f32 %v3479, 0.35355338
        %v3590 = vmul.f32 %v3529, 0.35355338
        %v3591 = vmul.f32 %v3579, 0.35355338
        %v3592 = vadd.f32 %v3584, %v979
        %v3593 = vadd.f32 %v3585, %v979
        %v3594 = vadd.f32 %v3586, %v979
        %v3595 = vadd.f32 %v3587, %v979
        %v3596 = vadd.f32 %v3588, %v979
        %v3597 = vadd.f32 %v3589, %v979
        %v3598 = vadd.f32 %v3590, %v979
        %v3599 = vadd.f32 %v3591, %v979
        %v3600 = vsel %vm1233, %v3592, -inf
        %3601 = vmax.xlane.f32.xlu0 %v3600
        %v3602 = vpop.xlane.xlu0 %3601
        %v3603 = vsel %vm1233, %v3593, -inf
        %3604 = vmax.xlane.f32.xlu0 %v3603
        %v3605 = vpop.xlane.xlu0 %3604
        %v3606 = vsel %vm1233, %v3594, -inf
        %3607 = vmax.xlane.f32.xlu0 %v3606
        %v3608 = vpop.xlane.xlu0 %3607
        %v3609 = vsel %vm1233, %v3595, -inf
        %3610 = vmax.xlane.f32.xlu0 %v3609
        %v3611 = vpop.xlane.xlu0 %3610
        %v3612 = vsel %vm1233, %v3596, -inf
        %3613 = vmax.xlane.f32.xlu0 %v3612
        %v3614 = vpop.xlane.xlu0 %3613
        %v3615 = vsel %vm1233, %v3597, -inf
        %3616 = vmax.xlane.f32.xlu0 %v3615
        %v3617 = vpop.xlane.xlu0 %3616
        %v3618 = vsel %vm1233, %v3598, -inf
        %3619 = vmax.xlane.f32.xlu0 %v3618
        %v3620 = vpop.xlane.xlu0 %3619
        %v3621 = vsel %vm1233, %v3599, -inf
        %3622 = vmax.xlane.f32.xlu0 %v3621
        %v3623 = vpop.xlane.xlu0 %3622
        %v3624 = vsub.f32 %v3592, %v3602
        %v3625 = vsub.f32 %v3593, %v3605
        %v3626 = vsub.f32 %v3594, %v3608
        %v3627 = vsub.f32 %v3595, %v3611
        %v3628 = vsub.f32 %v3596, %v3614
        %v3629 = vsub.f32 %v3597, %v3617
        %v3630 = vsub.f32 %v3598, %v3620
        %v3631 = vsub.f32 %v3599, %v3623
        %v3632 = vmul.f32 %v3624, 1.442695
        %v3633 = vpow.pop %v3632
        %v3634 = vmul.f32 %v3625, 1.442695
        %v3635 = vpow.pop %v3634
        %v3636 = vmul.f32 %v3626, 1.442695
        %v3637 = vpow.pop %v3636
        %v3638 = vmul.f32 %v3627, 1.442695
        %v3639 = vpow.pop %v3638
        %v3640 = vmul.f32 %v3628, 1.442695
        %v3641 = vpow.pop %v3640
        %v3642 = vmul.f32 %v3629, 1.442695
        %v3643 = vpow.pop %v3642
        %v3644 = vmul.f32 %v3630, 1.442695
        %v3645 = vpow.pop %v3644
        %v3646 = vmul.f32 %v3631, 1.442695
        %v3647 = vpow.pop %v3646
        %v3648 = vsel %vm1233, %v3633, 0.0
        %3649 = vadd.xlane.f32.xlu0 %v3648
        %v3650 = vpop.xlane.xlu0 %3649
        %v3651 = vsel %vm1233, %v3635, 0.0
        %3652 = vadd.xlane.f32.xlu0 %v3651
        %v3653 = vpop.xlane.xlu0 %3652
        %v3654 = vsel %vm1233, %v3637, 0.0
        %3655 = vadd.xlane.f32.xlu0 %v3654
        %v3656 = vpop.xlane.xlu0 %3655
        %v3657 = vsel %vm1233, %v3639, 0.0
        %3658 = vadd.xlane.f32.xlu0 %v3657
        %v3659 = vpop.xlane.xlu0 %3658
        %v3660 = vsel %vm1233, %v3641, 0.0
        %3661 = vadd.xlane.f32.xlu0 %v3660
        %v3662 = vpop.xlane.xlu0 %3661
        %v3663 = vsel %vm1233, %v3643, 0.0
        %3664 = vadd.xlane.f32.xlu0 %v3663
        %v3665 = vpop.xlane.xlu0 %3664
        %v3666 = vsel %vm1233, %v3645, 0.0
        %3667 = vadd.xlane.f32.xlu0 %v3666
        %v3668 = vpop.xlane.xlu0 %3667
        %v3669 = vsel %vm1233, %v3647, 0.0
        %3670 = vadd.xlane.f32.xlu0 %v3669
        %v3671 = vpop.xlane.xlu0 %3670
        %v3672 = vrcp.pop %v3650
        %v3673 = vrcp.pop %v3653
        %v3674 = vrcp.pop %v3656
        %v3675 = vrcp.pop %v3659
        %v3676 = vrcp.pop %v3662
        %v3677 = vrcp.pop %v3665
        %v3678 = vrcp.pop %v3668
        %v3679 = vrcp.pop %v3671
        %v3680 = vmul.f32 %v3633, %v3672
        %v3681 = vmul.f32 %v3635, %v3673
        %v3682 = vmul.f32 %v3637, %v3674
        %v3683 = vmul.f32 %v3639, %v3675
        %v3684 = vmul.f32 %v3641, %v3676
        %v3685 = vmul.f32 %v3643, %v3677
        %v3686 = vmul.f32 %v3645, %v3678
        %v3687 = vmul.f32 %v3647, %v3679
        %v3688 = vpack.c.bf16 %v3680, %v3680
        %v3689 = vpack.c.bf16 %v3681, %v3681
        %v3690 = vpack.c.bf16 %v3682, %v3682
        %v3691 = vpack.c.bf16 %v3683, %v3683
        %v3692 = vpack.c.bf16 %v3684, %v3684
        %v3693 = vpack.c.bf16 %v3685, %v3685
        %v3694 = vpack.c.bf16 %v3686, %v3686
        %v3695 = vpack.c.bf16 %v3687, %v3687
        %3696 = vrot.lane.b32.xlu0 %v1222, 48
        %v3697 = vpop.permute.xlu0 %3696
        %v3699 = vsel %vm1233, %v3688, 0
        %v3702 = vsel %vm1740, %v3697, 0
        %3704 = vmatprep.subr.bf16.mxu0 0
        %3705 = vmatpush1.bf16.msra.mxu0 0
        %3706 = vmatprep.subr.bf16.mxu0 0
        %3707 = vmatpush1.bf16.msra.mxu0 0
        %3708 = vmatprep.subr.bf16.mxu0 0
        %3709 = vmatpush1.bf16.msra.mxu0 0
        %3710 = vmatprep.subr.bf16.mxu0 0
        %3711 = vmatpush1.bf16.msra.mxu0 0
        %3712 = vmatprep.subr.bf16.mxu0 0
        %3713 = vmatpush1.bf16.msra.mxu0 0
        %3714 = vmatprep.subr.bf16.mxu0 0
        %3715 = vmatpush1.bf16.msra.mxu0 0
        %3716 = vmatprep.subr.bf16.mxu0 0
        %3717 = vmatpush1.bf16.msra.mxu0 0
        %3718 = vmatprep.subr.bf16.mxu0 0
        %3719 = vmatpush1.bf16.msra.mxu0 %v3702
        %3720 = vmatprep.subr.bf16.mxu0 0
        %3721 = vmatpush2.bf16.msra.mxu0 0
        %3722 = vmatprep.subr.bf16.mxu0 0
        %3723 = vmatpush2.bf16.msra.mxu0 0
        %3724 = vmatprep.subr.bf16.mxu0 0
        %3725 = vmatpush2.bf16.msra.mxu0 0
        %3726 = vmatprep.subr.bf16.mxu0 0
        %3727 = vmatpush2.bf16.msra.mxu0 0
        %3728 = vmatprep.subr.bf16.mxu0 0
        %3729 = vmatpush2.bf16.msra.mxu0 0
        %3730 = vmatprep.subr.bf16.mxu0 0
        %3731 = vmatpush2.bf16.msra.mxu0 0
        %3732 = vmatprep.subr.bf16.mxu0 0
        %3733 = vmatpush2.bf16.msra.mxu0 0
        %3734 = vmatprep.subr.bf16.mxu0 0
        %3735 = vmatpush2.bf16.msra.mxu0 0
        %3736 = vmatprep.mubr.bf16.mxu0 0
        %3737 = vmatmul.mubr.bf16.gmra.mxu0 %v3699
        %v3738 = vpop.f32.mrf.mxu0
        %v3739 = vadd.f32 0.0, %v3738
        %v3740 = vpop.f32.mrf.mxu0
        %v3741 = vpop.f32.mrf.mxu0
        %v3742 = vpop.f32.mrf.mxu0
        %3743 = vdwg.mxu0
        %3744 = vrot.lane.b32.xlu0 %v1223, 48
        %v3745 = vpop.permute.xlu0 %3744
        %v3747 = vsel %vm1233, %v3689, 0
        %v3750 = vsel %vm1740, %v3745, 0
        %3752 = vmatprep.subr.bf16.mxu0 0
        %3753 = vmatpush1.bf16.msra.mxu0 0
        %3754 = vmatprep.subr.bf16.mxu0 0
        %3755 = vmatpush1.bf16.msra.mxu0 0
        %3756 = vmatprep.subr.bf16.mxu0 0
        %3757 = vmatpush1.bf16.msra.mxu0 0
        %3758 = vmatprep.subr.bf16.mxu0 0
        %3759 = vmatpush1.bf16.msra.mxu0 0
        %3760 = vmatprep.subr.bf16.mxu0 0
        %3761 = vmatpush1.bf16.msra.mxu0 0
        %3762 = vmatprep.subr.bf16.mxu0 0
        %3763 = vmatpush1.bf16.msra.mxu0 0
        %3764 = vmatprep.subr.bf16.mxu0 0
        %3765 = vmatpush1.bf16.msra.mxu0 0
        %3766 = vmatprep.subr.bf16.mxu0 0
        %3767 = vmatpush1.bf16.msra.mxu0 %v3750
        %3768 = vmatprep.subr.bf16.mxu0 0
        %3769 = vmatpush2.bf16.msra.mxu0 0
        %3770 = vmatprep.subr.bf16.mxu0 0
        %3771 = vmatpush2.bf16.msra.mxu0 0
        %3772 = vmatprep.subr.bf16.mxu0 0
        %3773 = vmatpush2.bf16.msra.mxu0 0
        %3774 = vmatprep.subr.bf16.mxu0 0
        %3775 = vmatpush2.bf16.msra.mxu0 0
        %3776 = vmatprep.subr.bf16.mxu0 0
        %3777 = vmatpush2.bf16.msra.mxu0 0
        %3778 = vmatprep.subr.bf16.mxu0 0
        %3779 = vmatpush2.bf16.msra.mxu0 0
        %3780 = vmatprep.subr.bf16.mxu0 0
        %3781 = vmatpush2.bf16.msra.mxu0 0
        %3782 = vmatprep.subr.bf16.mxu0 0
        %3783 = vmatpush2.bf16.msra.mxu0 0
        %3784 = vmatprep.mubr.bf16.mxu0 0
        %3785 = vmatmul.mubr.bf16.gmra.mxu0 %v3747
        %v3786 = vpop.f32.mrf.mxu0
        %v3787 = vadd.f32 0.0, %v3786
        %v3788 = vpop.f32.mrf.mxu0
        %v3789 = vpop.f32.mrf.mxu0
        %v3790 = vpop.f32.mrf.mxu0
        %3791 = vdwg.mxu0
        %3792 = vrot.lane.b32.xlu0 %v1224, 48
        %v3793 = vpop.permute.xlu0 %3792
        %v3795 = vsel %vm1233, %v3690, 0
        %v3798 = vsel %vm1740, %v3793, 0
        %3800 = vmatprep.subr.bf16.mxu0 0
        %3801 = vmatpush1.bf16.msra.mxu0 0
        %3802 = vmatprep.subr.bf16.mxu0 0
        %3803 = vmatpush1.bf16.msra.mxu0 0
        %3804 = vmatprep.subr.bf16.mxu0 0
        %3805 = vmatpush1.bf16.msra.mxu0 0
        %3806 = vmatprep.subr.bf16.mxu0 0
        %3807 = vmatpush1.bf16.msra.mxu0 0
        %3808 = vmatprep.subr.bf16.mxu0 0
        %3809 = vmatpush1.bf16.msra.mxu0 0
        %3810 = vmatprep.subr.bf16.mxu0 0
        %3811 = vmatpush1.bf16.msra.mxu0 0
        %3812 = vmatprep.subr.bf16.mxu0 0
        %3813 = vmatpush1.bf16.msra.mxu0 0
        %3814 = vmatprep.subr.bf16.mxu0 0
        %3815 = vmatpush1.bf16.msra.mxu0 %v3798
        %3816 = vmatprep.subr.bf16.mxu0 0
        %3817 = vmatpush2.bf16.msra.mxu0 0
        %3818 = vmatprep.subr.bf16.mxu0 0
        %3819 = vmatpush2.bf16.msra.mxu0 0
        %3820 = vmatprep.subr.bf16.mxu0 0
        %3821 = vmatpush2.bf16.msra.mxu0 0
        %3822 = vmatprep.subr.bf16.mxu0 0
        %3823 = vmatpush2.bf16.msra.mxu0 0
        %3824 = vmatprep.subr.bf16.mxu0 0
        %3825 = vmatpush2.bf16.msra.mxu0 0
        %3826 = vmatprep.subr.bf16.mxu0 0
        %3827 = vmatpush2.bf16.msra.mxu0 0
        %3828 = vmatprep.subr.bf16.mxu0 0
        %3829 = vmatpush2.bf16.msra.mxu0 0
        %3830 = vmatprep.subr.bf16.mxu0 0
        %3831 = vmatpush2.bf16.msra.mxu0 0
        %3832 = vmatprep.mubr.bf16.mxu0 0
        %3833 = vmatmul.mubr.bf16.gmra.mxu0 %v3795
        %v3834 = vpop.f32.mrf.mxu0
        %v3835 = vadd.f32 0.0, %v3834
        %v3836 = vpop.f32.mrf.mxu0
        %v3837 = vpop.f32.mrf.mxu0
        %v3838 = vpop.f32.mrf.mxu0
        %3839 = vdwg.mxu0
        %3840 = vrot.lane.b32.xlu0 %v1225, 48
        %v3841 = vpop.permute.xlu0 %3840
        %v3843 = vsel %vm1233, %v3691, 0
        %v3846 = vsel %vm1740, %v3841, 0
        %3848 = vmatprep.subr.bf16.mxu0 0
        %3849 = vmatpush1.bf16.msra.mxu0 0
        %3850 = vmatprep.subr.bf16.mxu0 0
        %3851 = vmatpush1.bf16.msra.mxu0 0
        %3852 = vmatprep.subr.bf16.mxu0 0
        %3853 = vmatpush1.bf16.msra.mxu0 0
        %3854 = vmatprep.subr.bf16.mxu0 0
        %3855 = vmatpush1.bf16.msra.mxu0 0
        %3856 = vmatprep.subr.bf16.mxu0 0
        %3857 = vmatpush1.bf16.msra.mxu0 0
        %3858 = vmatprep.subr.bf16.mxu0 0
        %3859 = vmatpush1.bf16.msra.mxu0 0
        %3860 = vmatprep.subr.bf16.mxu0 0
        %3861 = vmatpush1.bf16.msra.mxu0 0
        %3862 = vmatprep.subr.bf16.mxu0 0
        %3863 = vmatpush1.bf16.msra.mxu0 %v3846
        %3864 = vmatprep.subr.bf16.mxu0 0
        %3865 = vmatpush2.bf16.msra.mxu0 0
        %3866 = vmatprep.subr.bf16.mxu0 0
        %3867 = vmatpush2.bf16.msra.mxu0 0
        %3868 = vmatprep.subr.bf16.mxu0 0
        %3869 = vmatpush2.bf16.msra.mxu0 0
        %3870 = vmatprep.subr.bf16.mxu0 0
        %3871 = vmatpush2.bf16.msra.mxu0 0
        %3872 = vmatprep.subr.bf16.mxu0 0
        %3873 = vmatpush2.bf16.msra.mxu0 0
        %3874 = vmatprep.subr.bf16.mxu0 0
        %3875 = vmatpush2.bf16.msra.mxu0 0
        %3876 = vmatprep.subr.bf16.mxu0 0
        %3877 = vmatpush2.bf16.msra.mxu0 0
        %3878 = vmatprep.subr.bf16.mxu0 0
        %3879 = vmatpush2.bf16.msra.mxu0 0
        %3880 = vmatprep.mubr.bf16.mxu0 0
        %3881 = vmatmul.mubr.bf16.gmra.mxu0 %v3843
        %v3882 = vpop.f32.mrf.mxu0
        %v3883 = vadd.f32 0.0, %v3882
        %v3884 = vpop.f32.mrf.mxu0
        %v3885 = vpop.f32.mrf.mxu0
        %v3886 = vpop.f32.mrf.mxu0
        %3887 = vdwg.mxu0
        %3888 = vrot.lane.b32.xlu0 %v1226, 48
        %v3889 = vpop.permute.xlu0 %3888
        %v3891 = vsel %vm1233, %v3692, 0
        %v3894 = vsel %vm1740, %v3889, 0
        %3896 = vmatprep.subr.bf16.mxu0 0
        %3897 = vmatpush1.bf16.msra.mxu0 0
        %3898 = vmatprep.subr.bf16.mxu0 0
        %3899 = vmatpush1.bf16.msra.mxu0 0
        %3900 = vmatprep.subr.bf16.mxu0 0
        %3901 = vmatpush1.bf16.msra.mxu0 0
        %3902 = vmatprep.subr.bf16.mxu0 0
        %3903 = vmatpush1.bf16.msra.mxu0 0
        %3904 = vmatprep.subr.bf16.mxu0 0
        %3905 = vmatpush1.bf16.msra.mxu0 0
        %3906 = vmatprep.subr.bf16.mxu0 0
        %3907 = vmatpush1.bf16.msra.mxu0 0
        %3908 = vmatprep.subr.bf16.mxu0 0
        %3909 = vmatpush1.bf16.msra.mxu0 0
        %3910 = vmatprep.subr.bf16.mxu0 0
        %3911 = vmatpush1.bf16.msra.mxu0 %v3894
        %3912 = vmatprep.subr.bf16.mxu0 0
        %3913 = vmatpush2.bf16.msra.mxu0 0
        %3914 = vmatprep.subr.bf16.mxu0 0
        %3915 = vmatpush2.bf16.msra.mxu0 0
        %3916 = vmatprep.subr.bf16.mxu0 0
        %3917 = vmatpush2.bf16.msra.mxu0 0
        %3918 = vmatprep.subr.bf16.mxu0 0
        %3919 = vmatpush2.bf16.msra.mxu0 0
        %3920 = vmatprep.subr.bf16.mxu0 0
        %3921 = vmatpush2.bf16.msra.mxu0 0
        %3922 = vmatprep.subr.bf16.mxu0 0
        %3923 = vmatpush2.bf16.msra.mxu0 0
        %3924 = vmatprep.subr.bf16.mxu0 0
        %3925 = vmatpush2.bf16.msra.mxu0 0
        %3926 = vmatprep.subr.bf16.mxu0 0
        %3927 = vmatpush2.bf16.msra.mxu0 0
        %3928 = vmatprep.mubr.bf16.mxu0 0
        %3929 = vmatmul.mubr.bf16.gmra.mxu0 %v3891
        %v3930 = vpop.f32.mrf.mxu0
        %v3931 = vadd.f32 0.0, %v3930
        %v3932 = vpop.f32.mrf.mxu0
        %v3933 = vpop.f32.mrf.mxu0
        %v3934 = vpop.f32.mrf.mxu0
        %3935 = vdwg.mxu0
        %3936 = vrot.lane.b32.xlu0 %v1227, 48
        %v3937 = vpop.permute.xlu0 %3936
        %v3939 = vsel %vm1233, %v3693, 0
        %v3942 = vsel %vm1740, %v3937, 0
        %3944 = vmatprep.subr.bf16.mxu0 0
        %3945 = vmatpush1.bf16.msra.mxu0 0
        %3946 = vmatprep.subr.bf16.mxu0 0
        %3947 = vmatpush1.bf16.msra.mxu0 0
        %3948 = vmatprep.subr.bf16.mxu0 0
        %3949 = vmatpush1.bf16.msra.mxu0 0
        %3950 = vmatprep.subr.bf16.mxu0 0
        %3951 = vmatpush1.bf16.msra.mxu0 0
        %3952 = vmatprep.subr.bf16.mxu0 0
        %3953 = vmatpush1.bf16.msra.mxu0 0
        %3954 = vmatprep.subr.bf16.mxu0 0
        %3955 = vmatpush1.bf16.msra.mxu0 0
        %3956 = vmatprep.subr.bf16.mxu0 0
        %3957 = vmatpush1.bf16.msra.mxu0 0
        %3958 = vmatprep.subr.bf16.mxu0 0
        %3959 = vmatpush1.bf16.msra.mxu0 %v3942
        %3960 = vmatprep.subr.bf16.mxu0 0
        %3961 = vmatpush2.bf16.msra.mxu0 0
        %3962 = vmatprep.subr.bf16.mxu0 0
        %3963 = vmatpush2.bf16.msra.mxu0 0
        %3964 = vmatprep.subr.bf16.mxu0 0
        %3965 = vmatpush2.bf16.msra.mxu0 0
        %3966 = vmatprep.subr.bf16.mxu0 0
        %3967 = vmatpush2.bf16.msra.mxu0 0
        %3968 = vmatprep.subr.bf16.mxu0 0
        %3969 = vmatpush2.bf16.msra.mxu0 0
        %3970 = vmatprep.subr.bf16.mxu0 0
        %3971 = vmatpush2.bf16.msra.mxu0 0
        %3972 = vmatprep.subr.bf16.mxu0 0
        %3973 = vmatpush2.bf16.msra.mxu0 0
        %3974 = vmatprep.subr.bf16.mxu0 0
        %3975 = vmatpush2.bf16.msra.mxu0 0
        %3976 = vmatprep.mubr.bf16.mxu0 0
        %3977 = vmatmul.mubr.bf16.gmra.mxu0 %v3939
        %v3978 = vpop.f32.mrf.mxu0
        %v3979 = vadd.f32 0.0, %v3978
        %v3980 = vpop.f32.mrf.mxu0
        %v3981 = vpop.f32.mrf.mxu0
        %v3982 = vpop.f32.mrf.mxu0
        %3983 = vdwg.mxu0
        %3984 = vrot.lane.b32.xlu0 %v1228, 48
        %v3985 = vpop.permute.xlu0 %3984
        %v3987 = vsel %vm1233, %v3694, 0
        %v3990 = vsel %vm1740, %v3985, 0
        %3992 = vmatprep.subr.bf16.mxu0 0
        %3993 = vmatpush1.bf16.msra.mxu0 0
        %3994 = vmatprep.subr.bf16.mxu0 0
        %3995 = vmatpush1.bf16.msra.mxu0 0
        %3996 = vmatprep.subr.bf16.mxu0 0
        %3997 = vmatpush1.bf16.msra.mxu0 0
        %3998 = vmatprep.subr.bf16.mxu0 0
        %3999 = vmatpush1.bf16.msra.mxu0 0
        %4000 = vmatprep.subr.bf16.mxu0 0
        %4001 = vmatpush1.bf16.msra.mxu0 0
        %4002 = vmatprep.subr.bf16.mxu0 0
        %4003 = vmatpush1.bf16.msra.mxu0 0
        %4004 = vmatprep.subr.bf16.mxu0 0
        %4005 = vmatpush1.bf16.msra.mxu0 0
        %4006 = vmatprep.subr.bf16.mxu0 0
        %4007 = vmatpush1.bf16.msra.mxu0 %v3990
        %4008 = vmatprep.subr.bf16.mxu0 0
        %4009 = vmatpush2.bf16.msra.mxu0 0
        %4010 = vmatprep.subr.bf16.mxu0 0
        %4011 = vmatpush2.bf16.msra.mxu0 0
        %4012 = vmatprep.subr.bf16.mxu0 0
        %4013 = vmatpush2.bf16.msra.mxu0 0
        %4014 = vmatprep.subr.bf16.mxu0 0
        %4015 = vmatpush2.bf16.msra.mxu0 0
        %4016 = vmatprep.subr.bf16.mxu0 0
        %4017 = vmatpush2.bf16.msra.mxu0 0
        %4018 = vmatprep.subr.bf16.mxu0 0
        %4019 = vmatpush2.bf16.msra.mxu0 0
        %4020 = vmatprep.subr.bf16.mxu0 0
        %4021 = vmatpush2.bf16.msra.mxu0 0
        %4022 = vmatprep.subr.bf16.mxu0 0
        %4023 = vmatpush2.bf16.msra.mxu0 0
        %4024 = vmatprep.mubr.bf16.mxu0 0
        %4025 = vmatmul.mubr.bf16.gmra.mxu0 %v3987
        %v4026 = vpop.f32.mrf.mxu0
        %v4027 = vadd.f32 0.0, %v4026
        %v4028 = vpop.f32.mrf.mxu0
        %v4029 = vpop.f32.mrf.mxu0
        %v4030 = vpop.f32.mrf.mxu0
        %4031 = vdwg.mxu0
        %4032 = vrot.lane.b32.xlu0 %v1229, 48
        %v4033 = vpop.permute.xlu0 %4032
        %v4035 = vsel %vm1233, %v3695, 0
        %v4038 = vsel %vm1740, %v4033, 0
        %4040 = vmatprep.subr.bf16.mxu0 0
        %4041 = vmatpush1.bf16.msra.mxu0 0
        %4042 = vmatprep.subr.bf16.mxu0 0
        %4043 = vmatpush1.bf16.msra.mxu0 0
        %4044 = vmatprep.subr.bf16.mxu0 0
        %4045 = vmatpush1.bf16.msra.mxu0 0
        %4046 = vmatprep.subr.bf16.mxu0 0
        %4047 = vmatpush1.bf16.msra.mxu0 0
        %4048 = vmatprep.subr.bf16.mxu0 0
        %4049 = vmatpush1.bf16.msra.mxu0 0
        %4050 = vmatprep.subr.bf16.mxu0 0
        %4051 = vmatpush1.bf16.msra.mxu0 0
        %4052 = vmatprep.subr.bf16.mxu0 0
        %4053 = vmatpush1.bf16.msra.mxu0 0
        %4054 = vmatprep.subr.bf16.mxu0 0
        %4055 = vmatpush1.bf16.msra.mxu0 %v4038
        %4056 = vmatprep.subr.bf16.mxu0 0
        %4057 = vmatpush2.bf16.msra.mxu0 0
        %4058 = vmatprep.subr.bf16.mxu0 0
        %4059 = vmatpush2.bf16.msra.mxu0 0
        %4060 = vmatprep.subr.bf16.mxu0 0
        %4061 = vmatpush2.bf16.msra.mxu0 0
        %4062 = vmatprep.subr.bf16.mxu0 0
        %4063 = vmatpush2.bf16.msra.mxu0 0
        %4064 = vmatprep.subr.bf16.mxu0 0
        %4065 = vmatpush2.bf16.msra.mxu0 0
        %4066 = vmatprep.subr.bf16.mxu0 0
        %4067 = vmatpush2.bf16.msra.mxu0 0
        %4068 = vmatprep.subr.bf16.mxu0 0
        %4069 = vmatpush2.bf16.msra.mxu0 0
        %4070 = vmatprep.subr.bf16.mxu0 0
        %4071 = vmatpush2.bf16.msra.mxu0 0
        %4072 = vmatprep.mubr.bf16.mxu0 0
        %4073 = vmatmul.mubr.bf16.gmra.mxu0 %v4035
        %v4074 = vpop.f32.mrf.mxu0
        %v4075 = vadd.f32 0.0, %v4074
        %v4076 = vpop.f32.mrf.mxu0
        %v4077 = vpop.f32.mrf.mxu0
        %v4078 = vpop.f32.mrf.mxu0
        %4079 = vdwg.mxu0
        %v4080 = vpack.c.bf16 %v3787, %v3739
        %v4081 = vpack.c.bf16 %v3883, %v3835
        %v4082 = vpack.c.bf16 %v3979, %v3931
        %v4083 = vpack.c.bf16 %v4075, %v4027
        %v4085 = vsel %vm1233, %v4080, 0
        %v4088 = vsel %vm1233, %v4081, 0
        %v4091 = vsel %vm1233, %v4082, 0
        %v4094 = vsel %vm1233, %v4083, 0
        %v4097 = vsel %vm1740, %v1220, 0
        %4099 = vmatprep.subr.bf16.mxu0 0
        %4100 = vmatpush1.bf16.msra.mxu0 0
        %4101 = vmatprep.subr.bf16.mxu0 0
        %4102 = vmatpush1.bf16.msra.mxu0 0
        %4103 = vmatprep.subr.bf16.mxu0 0
        %4104 = vmatpush1.bf16.msra.mxu0 0
        %4105 = vmatprep.subr.bf16.mxu0 0
        %4106 = vmatpush1.bf16.msra.mxu0 0
        %4107 = vmatprep.subr.bf16.mxu0 0
        %4108 = vmatpush1.bf16.msra.mxu0 0
        %4109 = vmatprep.subr.bf16.mxu0 0
        %4110 = vmatpush1.bf16.msra.mxu0 0
        %4111 = vmatprep.subr.bf16.mxu0 0
        %4112 = vmatpush1.bf16.msra.mxu0 0
        %4113 = vmatprep.subr.bf16.mxu0 0
        %4114 = vmatpush1.bf16.msra.mxu0 %v4097
        %4115 = vmatprep.subr.bf16.mxu0 0
        %4116 = vmatpush2.bf16.msra.mxu0 0
        %4117 = vmatprep.subr.bf16.mxu0 0
        %4118 = vmatpush2.bf16.msra.mxu0 0
        %4119 = vmatprep.subr.bf16.mxu0 0
        %4120 = vmatpush2.bf16.msra.mxu0 0
        %4121 = vmatprep.subr.bf16.mxu0 0
        %4122 = vmatpush2.bf16.msra.mxu0 0
        %4123 = vmatprep.subr.bf16.mxu0 0
        %4124 = vmatpush2.bf16.msra.mxu0 0
        %4125 = vmatprep.subr.bf16.mxu0 0
        %4126 = vmatpush2.bf16.msra.mxu0 0
        %4127 = vmatprep.subr.bf16.mxu0 0
        %4128 = vmatpush2.bf16.msra.mxu0 0
        %4129 = vmatprep.subr.bf16.mxu0 0
        %4130 = vmatpush2.bf16.msra.mxu0 0
        %4131 = vmatprep.mubr.bf16.mxu0 0
        %4132 = vmatmul.mubr.bf16.gmra.mxu0 %v4085
        %v4133 = vpop.f32.mrf.mxu0
        %v4134 = vadd.f32 0.0, %v4133
        %v4135 = vpop.f32.mrf.mxu0
        %v4136 = vpop.f32.mrf.mxu0
        %v4137 = vadd.f32 0.0, %v4136
        %v4138 = vpop.f32.mrf.mxu0
        %4139 = vmatprep.mubr.bf16.mxu0 0
        %4140 = vmatmul.mubr.bf16.gmra.mxu0 %v4088
        %v4141 = vpop.f32.mrf.mxu0
        %v4142 = vadd.f32 0.0, %v4141
        %v4143 = vpop.f32.mrf.mxu0
        %v4144 = vpop.f32.mrf.mxu0
        %v4145 = vadd.f32 0.0, %v4144
        %v4146 = vpop.f32.mrf.mxu0
        %4147 = vmatprep.mubr.bf16.mxu0 0
        %4148 = vmatmul.mubr.bf16.gmra.mxu0 %v4091
        %v4149 = vpop.f32.mrf.mxu0
        %v4150 = vadd.f32 0.0, %v4149
        %v4151 = vpop.f32.mrf.mxu0
        %v4152 = vpop.f32.mrf.mxu0
        %v4153 = vadd.f32 0.0, %v4152
        %v4154 = vpop.f32.mrf.mxu0
        %4155 = vmatprep.mubr.bf16.mxu0 0
        %4156 = vmatmul.mubr.bf16.gmra.mxu0 %v4094
        %v4157 = vpop.f32.mrf.mxu0
        %v4158 = vadd.f32 0.0, %v4157
        %v4159 = vpop.f32.mrf.mxu0
        %v4160 = vpop.f32.mrf.mxu0
        %v4161 = vadd.f32 0.0, %v4160
        %v4162 = vpop.f32.mrf.mxu0
        %4163 = vdwg.mxu0
        %v4164 = vadd.f32 %v3154, %v4134
        %v4165 = vadd.f32 %v3157, %v4137
        %v4166 = vadd.f32 %v3162, %v4142
        %v4167 = vadd.f32 %v3165, %v4145
        %v4168 = vadd.f32 %v3170, %v4150
        %v4169 = vadd.f32 %v3173, %v4153
        %v4170 = vadd.f32 %v3178, %v4158
        %v4171 = vadd.f32 %v3181, %v4161
        %4172 = vrot.lane.b32.xlu0 %v1222, 104
        %v4173 = vpop.permute.xlu0 %4172
        %4174 = vrot.lane.b32.xlu0 %v1222, 72
        %v4175 = vpop.permute.xlu0 %4174
        %v4177 = vsel %vm1233, %v4173, 0
        %v4180 = vsel %vm1233, %v4175, 0
        %4182 = vmatprep.subr.bf16.mxu0 0
        %4183 = vmatpush1.bf16.xpose.msra.mxu0 0
        %4184 = vmatprep.subr.bf16.mxu0 0
        %4185 = vmatpush1.bf16.xpose.msra.mxu0 0
        %4186 = vmatprep.subr.bf16.mxu0 0
        %4187 = vmatpush1.bf16.xpose.msra.mxu0 0
        %4188 = vmatprep.subr.bf16.mxu0 0
        %4189 = vmatpush1.bf16.xpose.msra.mxu0 0
        %4190 = vmatprep.subr.bf16.mxu0 0
        %4191 = vmatpush1.bf16.xpose.msra.mxu0 0
        %4192 = vmatprep.subr.bf16.mxu0 0
        %4193 = vmatpush1.bf16.xpose.msra.mxu0 0
        %4194 = vmatprep.subr.bf16.mxu0 0
        %4195 = vmatpush1.bf16.xpose.msra.mxu0 0
        %4196 = vmatprep.subr.bf16.mxu0 0
        %4197 = vmatpush1.bf16.xpose.msra.mxu0 %v4180
        %4198 = vmatprep.subr.bf16.mxu0 0
        %4199 = vmatpush2.bf16.xpose.msra.mxu0 0
        %4200 = vmatprep.subr.bf16.mxu0 0
        %4201 = vmatpush2.bf16.xpose.msra.mxu0 0
        %4202 = vmatprep.subr.bf16.mxu0 0
        %4203 = vmatpush2.bf16.xpose.msra.mxu0 0
        %4204 = vmatprep.subr.bf16.mxu0 0
        %4205 = vmatpush2.bf16.xpose.msra.mxu0 0
        %4206 = vmatprep.subr.bf16.mxu0 0
        %4207 = vmatpush2.bf16.xpose.msra.mxu0 0
        %4208 = vmatprep.subr.bf16.mxu0 0
        %4209 = vmatpush2.bf16.xpose.msra.mxu0 0
        %4210 = vmatprep.subr.bf16.mxu0 0
        %4211 = vmatpush2.bf16.xpose.msra.mxu0 0
        %4212 = vmatprep.subr.bf16.mxu0 0
        %4213 = vmatpush2.bf16.xpose.msra.mxu0 0
        %4214 = vmatprep.mubr.bf16.mxu0 0
        %4215 = vmatmul.mubr.bf16.gmra.mxu0 %v4177
        %v4216 = vpop.f32.mrf.mxu0
        %v4217 = vadd.f32 0.0, %v4216
        %v4218 = vpop.f32.mrf.mxu0
        %v4219 = vpop.f32.mrf.mxu0
        %v4220 = vpop.f32.mrf.mxu0
        %4221 = vdwg.mxu0
        %4222 = vrot.lane.b32.xlu0 %v1223, 104
        %v4223 = vpop.permute.xlu0 %4222
        %4224 = vrot.lane.b32.xlu0 %v1223, 72
        %v4225 = vpop.permute.xlu0 %4224
        %v4227 = vsel %vm1233, %v4223, 0
        %v4230 = vsel %vm1233, %v4225, 0
        %4232 = vmatprep.subr.bf16.mxu0 0
        %4233 = vmatpush1.bf16.xpose.msra.mxu0 0
        %4234 = vmatprep.subr.bf16.mxu0 0
        %4235 = vmatpush1.bf16.xpose.msra.mxu0 0
        %4236 = vmatprep.subr.bf16.mxu0 0
        %4237 = vmatpush1.bf16.xpose.msra.mxu0 0
        %4238 = vmatprep.subr.bf16.mxu0 0
        %4239 = vmatpush1.bf16.xpose.msra.mxu0 0
        %4240 = vmatprep.subr.bf16.mxu0 0
        %4241 = vmatpush1.bf16.xpose.msra.mxu0 0
        %4242 = vmatprep.subr.bf16.mxu0 0
        %4243 = vmatpush1.bf16.xpose.msra.mxu0 0
        %4244 = vmatprep.subr.bf16.mxu0 0
        %4245 = vmatpush1.bf16.xpose.msra.mxu0 0
        %4246 = vmatprep.subr.bf16.mxu0 0
        %4247 = vmatpush1.bf16.xpose.msra.mxu0 %v4230
        %4248 = vmatprep.subr.bf16.mxu0 0
        %4249 = vmatpush2.bf16.xpose.msra.mxu0 0
        %4250 = vmatprep.subr.bf16.mxu0 0
        %4251 = vmatpush2.bf16.xpose.msra.mxu0 0
        %4252 = vmatprep.subr.bf16.mxu0 0
        %4253 = vmatpush2.bf16.xpose.msra.mxu0 0
        %4254 = vmatprep.subr.bf16.mxu0 0
        %4255 = vmatpush2.bf16.xpose.msra.mxu0 0
        %4256 = vmatprep.subr.bf16.mxu0 0
        %4257 = vmatpush2.bf16.xpose.msra.mxu0 0
        %4258 = vmatprep.subr.bf16.mxu0 0
        %4259 = vmatpush2.bf16.xpose.msra.mxu0 0
        %4260 = vmatprep.subr.bf16.mxu0 0
        %4261 = vmatpush2.bf16.xpose.msra.mxu0 0
        %4262 = vmatprep.subr.bf16.mxu0 0
        %4263 = vmatpush2.bf16.xpose.msra.mxu0 0
        %4264 = vmatprep.mubr.bf16.mxu0 0
        %4265 = vmatmul.mubr.bf16.gmra.mxu0 %v4227
        %v4266 = vpop.f32.mrf.mxu0
        %v4267 = vadd.f32 0.0, %v4266
        %v4268 = vpop.f32.mrf.mxu0
        %v4269 = vpop.f32.mrf.mxu0
        %v4270 = vpop.f32.mrf.mxu0
        %4271 = vdwg.mxu0
        %4272 = vrot.lane.b32.xlu0 %v1224, 104
        %v4273 = vpop.permute.xlu0 %4272
        %4274 = vrot.lane.b32.xlu0 %v1224, 72
        %v4275 = vpop.permute.xlu0 %4274
        %v4277 = vsel %vm1233, %v4273, 0
        %v4280 = vsel %vm1233, %v4275, 0
        %4282 = vmatprep.subr.bf16.mxu0 0
        %4283 = vmatpush1.bf16.xpose.msra.mxu0 0
        %4284 = vmatprep.subr.bf16.mxu0 0
        %4285 = vmatpush1.bf16.xpose.msra.mxu0 0
        %4286 = vmatprep.subr.bf16.mxu0 0
        %4287 = vmatpush1.bf16.xpose.msra.mxu0 0
        %4288 = vmatprep.subr.bf16.mxu0 0
        %4289 = vmatpush1.bf16.xpose.msra.mxu0 0
        %4290 = vmatprep.subr.bf16.mxu0 0
        %4291 = vmatpush1.bf16.xpose.msra.mxu0 0
        %4292 = vmatprep.subr.bf16.mxu0 0
        %4293 = vmatpush1.bf16.xpose.msra.mxu0 0
        %4294 = vmatprep.subr.bf16.mxu0 0
        %4295 = vmatpush1.bf16.xpose.msra.mxu0 0
        %4296 = vmatprep.subr.bf16.mxu0 0
        %4297 = vmatpush1.bf16.xpose.msra.mxu0 %v4280
        %4298 = vmatprep.subr.bf16.mxu0 0
        %4299 = vmatpush2.bf16.xpose.msra.mxu0 0
        %4300 = vmatprep.subr.bf16.mxu0 0
        %4301 = vmatpush2.bf16.xpose.msra.mxu0 0
        %4302 = vmatprep.subr.bf16.mxu0 0
        %4303 = vmatpush2.bf16.xpose.msra.mxu0 0
        %4304 = vmatprep.subr.bf16.mxu0 0
        %4305 = vmatpush2.bf16.xpose.msra.mxu0 0
        %4306 = vmatprep.subr.bf16.mxu0 0
        %4307 = vmatpush2.bf16.xpose.msra.mxu0 0
        %4308 = vmatprep.subr.bf16.mxu0 0
        %4309 = vmatpush2.bf16.xpose.msra.mxu0 0
        %4310 = vmatprep.subr.bf16.mxu0 0
        %4311 = vmatpush2.bf16.xpose.msra.mxu0 0
        %4312 = vmatprep.subr.bf16.mxu0 0
        %4313 = vmatpush2.bf16.xpose.msra.mxu0 0
        %4314 = vmatprep.mubr.bf16.mxu0 0
        %4315 = vmatmul.mubr.bf16.gmra.mxu0 %v4277
        %v4316 = vpop.f32.mrf.mxu0
        %v4317 = vadd.f32 0.0, %v4316
        %v4318 = vpop.f32.mrf.mxu0
        %v4319 = vpop.f32.mrf.mxu0
        %v4320 = vpop.f32.mrf.mxu0
        %4321 = vdwg.mxu0
        %4322 = vrot.lane.b32.xlu0 %v1225, 104
        %v4323 = vpop.permute.xlu0 %4322
        %4324 = vrot.lane.b32.xlu0 %v1225, 72
        %v4325 = vpop.permute.xlu0 %4324
        %v4327 = vsel %vm1233, %v4323, 0
        %v4330 = vsel %vm1233, %v4325, 0
        %4332 = vmatprep.subr.bf16.mxu0 0
        %4333 = vmatpush1.bf16.xpose.msra.mxu0 0
        %4334 = vmatprep.subr.bf16.mxu0 0
        %4335 = vmatpush1.bf16.xpose.msra.mxu0 0
        %4336 = vmatprep.subr.bf16.mxu0 0
        %4337 = vmatpush1.bf16.xpose.msra.mxu0 0
        %4338 = vmatprep.subr.bf16.mxu0 0
        %4339 = vmatpush1.bf16.xpose.msra.mxu0 0
        %4340 = vmatprep.subr.bf16.mxu0 0
        %4341 = vmatpush1.bf16.xpose.msra.mxu0 0
        %4342 = vmatprep.subr.bf16.mxu0 0
        %4343 = vmatpush1.bf16.xpose.msra.mxu0 0
        %4344 = vmatprep.subr.bf16.mxu0 0
        %4345 = vmatpush1.bf16.xpose.msra.mxu0 0
        %4346 = vmatprep.subr.bf16.mxu0 0
        %4347 = vmatpush1.bf16.xpose.msra.mxu0 %v4330
        %4348 = vmatprep.subr.bf16.mxu0 0
        %4349 = vmatpush2.bf16.xpose.msra.mxu0 0
        %4350 = vmatprep.subr.bf16.mxu0 0
        %4351 = vmatpush2.bf16.xpose.msra.mxu0 0
        %4352 = vmatprep.subr.bf16.mxu0 0
        %4353 = vmatpush2.bf16.xpose.msra.mxu0 0
        %4354 = vmatprep.subr.bf16.mxu0 0
        %4355 = vmatpush2.bf16.xpose.msra.mxu0 0
        %4356 = vmatprep.subr.bf16.mxu0 0
        %4357 = vmatpush2.bf16.xpose.msra.mxu0 0
        %4358 = vmatprep.subr.bf16.mxu0 0
        %4359 = vmatpush2.bf16.xpose.msra.mxu0 0
        %4360 = vmatprep.subr.bf16.mxu0 0
        %4361 = vmatpush2.bf16.xpose.msra.mxu0 0
        %4362 = vmatprep.subr.bf16.mxu0 0
        %4363 = vmatpush2.bf16.xpose.msra.mxu0 0
        %4364 = vmatprep.mubr.bf16.mxu0 0
        %4365 = vmatmul.mubr.bf16.gmra.mxu0 %v4327
        %v4366 = vpop.f32.mrf.mxu0
        %v4367 = vadd.f32 0.0, %v4366
        %v4368 = vpop.f32.mrf.mxu0
        %v4369 = vpop.f32.mrf.mxu0
        %v4370 = vpop.f32.mrf.mxu0
        %4371 = vdwg.mxu0
        %4372 = vrot.lane.b32.xlu0 %v1226, 104
        %v4373 = vpop.permute.xlu0 %4372
        %4374 = vrot.lane.b32.xlu0 %v1226, 72
        %v4375 = vpop.permute.xlu0 %4374
        %v4377 = vsel %vm1233, %v4373, 0
        %v4380 = vsel %vm1233, %v4375, 0
        %4382 = vmatprep.subr.bf16.mxu0 0
        %4383 = vmatpush1.bf16.xpose.msra.mxu0 0
        %4384 = vmatprep.subr.bf16.mxu0 0
        %4385 = vmatpush1.bf16.xpose.msra.mxu0 0
        %4386 = vmatprep.subr.bf16.mxu0 0
        %4387 = vmatpush1.bf16.xpose.msra.mxu0 0
        %4388 = vmatprep.subr.bf16.mxu0 0
        %4389 = vmatpush1.bf16.xpose.msra.mxu0 0
        %4390 = vmatprep.subr.bf16.mxu0 0
        %4391 = vmatpush1.bf16.xpose.msra.mxu0 0
        %4392 = vmatprep.subr.bf16.mxu0 0
        %4393 = vmatpush1.bf16.xpose.msra.mxu0 0
        %4394 = vmatprep.subr.bf16.mxu0 0
        %4395 = vmatpush1.bf16.xpose.msra.mxu0 0
        %4396 = vmatprep.subr.bf16.mxu0 0
        %4397 = vmatpush1.bf16.xpose.msra.mxu0 %v4380
        %4398 = vmatprep.subr.bf16.mxu0 0
        %4399 = vmatpush2.bf16.xpose.msra.mxu0 0
        %4400 = vmatprep.subr.bf16.mxu0 0
        %4401 = vmatpush2.bf16.xpose.msra.mxu0 0
        %4402 = vmatprep.subr.bf16.mxu0 0
        %4403 = vmatpush2.bf16.xpose.msra.mxu0 0
        %4404 = vmatprep.subr.bf16.mxu0 0
        %4405 = vmatpush2.bf16.xpose.msra.mxu0 0
        %4406 = vmatprep.subr.bf16.mxu0 0
        %4407 = vmatpush2.bf16.xpose.msra.mxu0 0
        %4408 = vmatprep.subr.bf16.mxu0 0
        %4409 = vmatpush2.bf16.xpose.msra.mxu0 0
        %4410 = vmatprep.subr.bf16.mxu0 0
        %4411 = vmatpush2.bf16.xpose.msra.mxu0 0
        %4412 = vmatprep.subr.bf16.mxu0 0
        %4413 = vmatpush2.bf16.xpose.msra.mxu0 0
        %4414 = vmatprep.mubr.bf16.mxu0 0
        %4415 = vmatmul.mubr.bf16.gmra.mxu0 %v4377
        %v4416 = vpop.f32.mrf.mxu0
        %v4417 = vadd.f32 0.0, %v4416
        %v4418 = vpop.f32.mrf.mxu0
        %v4419 = vpop.f32.mrf.mxu0
        %v4420 = vpop.f32.mrf.mxu0
        %4421 = vdwg.mxu0
        %4422 = vrot.lane.b32.xlu0 %v1227, 104
        %v4423 = vpop.permute.xlu0 %4422
        %4424 = vrot.lane.b32.xlu0 %v1227, 72
        %v4425 = vpop.permute.xlu0 %4424
        %v4427 = vsel %vm1233, %v4423, 0
        %v4430 = vsel %vm1233, %v4425, 0
        %4432 = vmatprep.subr.bf16.mxu0 0
        %4433 = vmatpush1.bf16.xpose.msra.mxu0 0
        %4434 = vmatprep.subr.bf16.mxu0 0
        %4435 = vmatpush1.bf16.xpose.msra.mxu0 0
        %4436 = vmatprep.subr.bf16.mxu0 0
        %4437 = vmatpush1.bf16.xpose.msra.mxu0 0
        %4438 = vmatprep.subr.bf16.mxu0 0
        %4439 = vmatpush1.bf16.xpose.msra.mxu0 0
        %4440 = vmatprep.subr.bf16.mxu0 0
        %4441 = vmatpush1.bf16.xpose.msra.mxu0 0
        %4442 = vmatprep.subr.bf16.mxu0 0
        %4443 = vmatpush1.bf16.xpose.msra.mxu0 0
        %4444 = vmatprep.subr.bf16.mxu0 0
        %4445 = vmatpush1.bf16.xpose.msra.mxu0 0
        %4446 = vmatprep.subr.bf16.mxu0 0
        %4447 = vmatpush1.bf16.xpose.msra.mxu0 %v4430
        %4448 = vmatprep.subr.bf16.mxu0 0
        %4449 = vmatpush2.bf16.xpose.msra.mxu0 0
        %4450 = vmatprep.subr.bf16.mxu0 0
        %4451 = vmatpush2.bf16.xpose.msra.mxu0 0
        %4452 = vmatprep.subr.bf16.mxu0 0
        %4453 = vmatpush2.bf16.xpose.msra.mxu0 0
        %4454 = vmatprep.subr.bf16.mxu0 0
        %4455 = vmatpush2.bf16.xpose.msra.mxu0 0
        %4456 = vmatprep.subr.bf16.mxu0 0
        %4457 = vmatpush2.bf16.xpose.msra.mxu0 0
        %4458 = vmatprep.subr.bf16.mxu0 0
        %4459 = vmatpush2.bf16.xpose.msra.mxu0 0
        %4460 = vmatprep.subr.bf16.mxu0 0
        %4461 = vmatpush2.bf16.xpose.msra.mxu0 0
        %4462 = vmatprep.subr.bf16.mxu0 0
        %4463 = vmatpush2.bf16.xpose.msra.mxu0 0
        %4464 = vmatprep.mubr.bf16.mxu0 0
        %4465 = vmatmul.mubr.bf16.gmra.mxu0 %v4427
        %v4466 = vpop.f32.mrf.mxu0
        %v4467 = vadd.f32 0.0, %v4466
        %v4468 = vpop.f32.mrf.mxu0
        %v4469 = vpop.f32.mrf.mxu0
        %v4470 = vpop.f32.mrf.mxu0
        %4471 = vdwg.mxu0
        %4472 = vrot.lane.b32.xlu0 %v1228, 104
        %v4473 = vpop.permute.xlu0 %4472
        %4474 = vrot.lane.b32.xlu0 %v1228, 72
        %v4475 = vpop.permute.xlu0 %4474
        %v4477 = vsel %vm1233, %v4473, 0
        %v4480 = vsel %vm1233, %v4475, 0
        %4482 = vmatprep.subr.bf16.mxu0 0
        %4483 = vmatpush1.bf16.xpose.msra.mxu0 0
        %4484 = vmatprep.subr.bf16.mxu0 0
        %4485 = vmatpush1.bf16.xpose.msra.mxu0 0
        %4486 = vmatprep.subr.bf16.mxu0 0
        %4487 = vmatpush1.bf16.xpose.msra.mxu0 0
        %4488 = vmatprep.subr.bf16.mxu0 0
        %4489 = vmatpush1.bf16.xpose.msra.mxu0 0
        %4490 = vmatprep.subr.bf16.mxu0 0
        %4491 = vmatpush1.bf16.xpose.msra.mxu0 0
        %4492 = vmatprep.subr.bf16.mxu0 0
        %4493 = vmatpush1.bf16.xpose.msra.mxu0 0
        %4494 = vmatprep.subr.bf16.mxu0 0
        %4495 = vmatpush1.bf16.xpose.msra.mxu0 0
        %4496 = vmatprep.subr.bf16.mxu0 0
        %4497 = vmatpush1.bf16.xpose.msra.mxu0 %v4480
        %4498 = vmatprep.subr.bf16.mxu0 0
        %4499 = vmatpush2.bf16.xpose.msra.mxu0 0
        %4500 = vmatprep.subr.bf16.mxu0 0
        %4501 = vmatpush2.bf16.xpose.msra.mxu0 0
        %4502 = vmatprep.subr.bf16.mxu0 0
        %4503 = vmatpush2.bf16.xpose.msra.mxu0 0
        %4504 = vmatprep.subr.bf16.mxu0 0
        %4505 = vmatpush2.bf16.xpose.msra.mxu0 0
        %4506 = vmatprep.subr.bf16.mxu0 0
        %4507 = vmatpush2.bf16.xpose.msra.mxu0 0
        %4508 = vmatprep.subr.bf16.mxu0 0
        %4509 = vmatpush2.bf16.xpose.msra.mxu0 0
        %4510 = vmatprep.subr.bf16.mxu0 0
        %4511 = vmatpush2.bf16.xpose.msra.mxu0 0
        %4512 = vmatprep.subr.bf16.mxu0 0
        %4513 = vmatpush2.bf16.xpose.msra.mxu0 0
        %4514 = vmatprep.mubr.bf16.mxu0 0
        %4515 = vmatmul.mubr.bf16.gmra.mxu0 %v4477
        %v4516 = vpop.f32.mrf.mxu0
        %v4517 = vadd.f32 0.0, %v4516
        %v4518 = vpop.f32.mrf.mxu0
        %v4519 = vpop.f32.mrf.mxu0
        %v4520 = vpop.f32.mrf.mxu0
        %4521 = vdwg.mxu0
        %4522 = vrot.lane.b32.xlu0 %v1229, 104
        %v4523 = vpop.permute.xlu0 %4522
        %4524 = vrot.lane.b32.xlu0 %v1229, 72
        %v4525 = vpop.permute.xlu0 %4524
        %v4527 = vsel %vm1233, %v4523, 0
        %v4530 = vsel %vm1233, %v4525, 0
        %4532 = vmatprep.subr.bf16.mxu0 0
        %4533 = vmatpush1.bf16.xpose.msra.mxu0 0
        %4534 = vmatprep.subr.bf16.mxu0 0
        %4535 = vmatpush1.bf16.xpose.msra.mxu0 0
        %4536 = vmatprep.subr.bf16.mxu0 0
        %4537 = vmatpush1.bf16.xpose.msra.mxu0 0
        %4538 = vmatprep.subr.bf16.mxu0 0
        %4539 = vmatpush1.bf16.xpose.msra.mxu0 0
        %4540 = vmatprep.subr.bf16.mxu0 0
        %4541 = vmatpush1.bf16.xpose.msra.mxu0 0
        %4542 = vmatprep.subr.bf16.mxu0 0
        %4543 = vmatpush1.bf16.xpose.msra.mxu0 0
        %4544 = vmatprep.subr.bf16.mxu0 0
        %4545 = vmatpush1.bf16.xpose.msra.mxu0 0
        %4546 = vmatprep.subr.bf16.mxu0 0
        %4547 = vmatpush1.bf16.xpose.msra.mxu0 %v4530
        %4548 = vmatprep.subr.bf16.mxu0 0
        %4549 = vmatpush2.bf16.xpose.msra.mxu0 0
        %4550 = vmatprep.subr.bf16.mxu0 0
        %4551 = vmatpush2.bf16.xpose.msra.mxu0 0
        %4552 = vmatprep.subr.bf16.mxu0 0
        %4553 = vmatpush2.bf16.xpose.msra.mxu0 0
        %4554 = vmatprep.subr.bf16.mxu0 0
        %4555 = vmatpush2.bf16.xpose.msra.mxu0 0
        %4556 = vmatprep.subr.bf16.mxu0 0
        %4557 = vmatpush2.bf16.xpose.msra.mxu0 0
        %4558 = vmatprep.subr.bf16.mxu0 0
        %4559 = vmatpush2.bf16.xpose.msra.mxu0 0
        %4560 = vmatprep.subr.bf16.mxu0 0
        %4561 = vmatpush2.bf16.xpose.msra.mxu0 0
        %4562 = vmatprep.subr.bf16.mxu0 0
        %4563 = vmatpush2.bf16.xpose.msra.mxu0 0
        %4564 = vmatprep.mubr.bf16.mxu0 0
        %4565 = vmatmul.mubr.bf16.gmra.mxu0 %v4527
        %v4566 = vpop.f32.mrf.mxu0
        %v4567 = vadd.f32 0.0, %v4566
        %v4568 = vpop.f32.mrf.mxu0
        %v4569 = vpop.f32.mrf.mxu0
        %v4570 = vpop.f32.mrf.mxu0
        %4571 = vdwg.mxu0
        %v4572 = vmul.f32 %v4217, 0.35355338
        %v4573 = vmul.f32 %v4267, 0.35355338
        %v4574 = vmul.f32 %v4317, 0.35355338
        %v4575 = vmul.f32 %v4367, 0.35355338
        %v4576 = vmul.f32 %v4417, 0.35355338
        %v4577 = vmul.f32 %v4467, 0.35355338
        %v4578 = vmul.f32 %v4517, 0.35355338
        %v4579 = vmul.f32 %v4567, 0.35355338
        %v4580 = vadd.f32 %v4572, %v979
        %v4581 = vadd.f32 %v4573, %v979
        %v4582 = vadd.f32 %v4574, %v979
        %v4583 = vadd.f32 %v4575, %v979
        %v4584 = vadd.f32 %v4576, %v979
        %v4585 = vadd.f32 %v4577, %v979
        %v4586 = vadd.f32 %v4578, %v979
        %v4587 = vadd.f32 %v4579, %v979
        %v4588 = vsel %vm1233, %v4580, -inf
        %4589 = vmax.xlane.f32.xlu0 %v4588
        %v4590 = vpop.xlane.xlu0 %4589
        %v4591 = vsel %vm1233, %v4581, -inf
        %4592 = vmax.xlane.f32.xlu0 %v4591
        %v4593 = vpop.xlane.xlu0 %4592
        %v4594 = vsel %vm1233, %v4582, -inf
        %4595 = vmax.xlane.f32.xlu0 %v4594
        %v4596 = vpop.xlane.xlu0 %4595
        %v4597 = vsel %vm1233, %v4583, -inf
        %4598 = vmax.xlane.f32.xlu0 %v4597
        %v4599 = vpop.xlane.xlu0 %4598
        %v4600 = vsel %vm1233, %v4584, -inf
        %4601 = vmax.xlane.f32.xlu0 %v4600
        %v4602 = vpop.xlane.xlu0 %4601
        %v4603 = vsel %vm1233, %v4585, -inf
        %4604 = vmax.xlane.f32.xlu0 %v4603
        %v4605 = vpop.xlane.xlu0 %4604
        %v4606 = vsel %vm1233, %v4586, -inf
        %4607 = vmax.xlane.f32.xlu0 %v4606
        %v4608 = vpop.xlane.xlu0 %4607
        %v4609 = vsel %vm1233, %v4587, -inf
        %4610 = vmax.xlane.f32.xlu0 %v4609
        %v4611 = vpop.xlane.xlu0 %4610
        %v4612 = vsub.f32 %v4580, %v4590
        %v4613 = vsub.f32 %v4581, %v4593
        %v4614 = vsub.f32 %v4582, %v4596
        %v4615 = vsub.f32 %v4583, %v4599
        %v4616 = vsub.f32 %v4584, %v4602
        %v4617 = vsub.f32 %v4585, %v4605
        %v4618 = vsub.f32 %v4586, %v4608
        %v4619 = vsub.f32 %v4587, %v4611
        %v4620 = vmul.f32 %v4612, 1.442695
        %v4621 = vpow.pop %v4620
        %v4622 = vmul.f32 %v4613, 1.442695
        %v4623 = vpow.pop %v4622
        %v4624 = vmul.f32 %v4614, 1.442695
        %v4625 = vpow.pop %v4624
        %v4626 = vmul.f32 %v4615, 1.442695
        %v4627 = vpow.pop %v4626
        %v4628 = vmul.f32 %v4616, 1.442695
        %v4629 = vpow.pop %v4628
        %v4630 = vmul.f32 %v4617, 1.442695
        %v4631 = vpow.pop %v4630
        %v4632 = vmul.f32 %v4618, 1.442695
        %v4633 = vpow.pop %v4632
        %v4634 = vmul.f32 %v4619, 1.442695
        %v4635 = vpow.pop %v4634
        %v4636 = vsel %vm1233, %v4621, 0.0
        %4637 = vadd.xlane.f32.xlu0 %v4636
        %v4638 = vpop.xlane.xlu0 %4637
        %v4639 = vsel %vm1233, %v4623, 0.0
        %4640 = vadd.xlane.f32.xlu0 %v4639
        %v4641 = vpop.xlane.xlu0 %4640
        %v4642 = vsel %vm1233, %v4625, 0.0
        %4643 = vadd.xlane.f32.xlu0 %v4642
        %v4644 = vpop.xlane.xlu0 %4643
        %v4645 = vsel %vm1233, %v4627, 0.0
        %4646 = vadd.xlane.f32.xlu0 %v4645
        %v4647 = vpop.xlane.xlu0 %4646
        %v4648 = vsel %vm1233, %v4629, 0.0
        %4649 = vadd.xlane.f32.xlu0 %v4648
        %v4650 = vpop.xlane.xlu0 %4649
        %v4651 = vsel %vm1233, %v4631, 0.0
        %4652 = vadd.xlane.f32.xlu0 %v4651
        %v4653 = vpop.xlane.xlu0 %4652
        %v4654 = vsel %vm1233, %v4633, 0.0
        %4655 = vadd.xlane.f32.xlu0 %v4654
        %v4656 = vpop.xlane.xlu0 %4655
        %v4657 = vsel %vm1233, %v4635, 0.0
        %4658 = vadd.xlane.f32.xlu0 %v4657
        %v4659 = vpop.xlane.xlu0 %4658
        %v4660 = vrcp.pop %v4638
        %v4661 = vrcp.pop %v4641
        %v4662 = vrcp.pop %v4644
        %v4663 = vrcp.pop %v4647
        %v4664 = vrcp.pop %v4650
        %v4665 = vrcp.pop %v4653
        %v4666 = vrcp.pop %v4656
        %v4667 = vrcp.pop %v4659
        %v4668 = vmul.f32 %v4621, %v4660
        %v4669 = vmul.f32 %v4623, %v4661
        %v4670 = vmul.f32 %v4625, %v4662
        %v4671 = vmul.f32 %v4627, %v4663
        %v4672 = vmul.f32 %v4629, %v4664
        %v4673 = vmul.f32 %v4631, %v4665
        %v4674 = vmul.f32 %v4633, %v4666
        %v4675 = vmul.f32 %v4635, %v4667
        %v4676 = vpack.c.bf16 %v4668, %v4668
        %v4677 = vpack.c.bf16 %v4669, %v4669
        %v4678 = vpack.c.bf16 %v4670, %v4670
        %v4679 = vpack.c.bf16 %v4671, %v4671
        %v4680 = vpack.c.bf16 %v4672, %v4672
        %v4681 = vpack.c.bf16 %v4673, %v4673
        %v4682 = vpack.c.bf16 %v4674, %v4674
        %v4683 = vpack.c.bf16 %v4675, %v4675
        %4684 = vrot.lane.b32.xlu0 %v1222, 40
        %v4685 = vpop.permute.xlu0 %4684
        %v4687 = vsel %vm1233, %v4676, 0
        %v4690 = vsel %vm1740, %v4685, 0
        %4692 = vmatprep.subr.bf16.mxu0 0
        %4693 = vmatpush1.bf16.msra.mxu0 0
        %4694 = vmatprep.subr.bf16.mxu0 0
        %4695 = vmatpush1.bf16.msra.mxu0 0
        %4696 = vmatprep.subr.bf16.mxu0 0
        %4697 = vmatpush1.bf16.msra.mxu0 0
        %4698 = vmatprep.subr.bf16.mxu0 0
        %4699 = vmatpush1.bf16.msra.mxu0 0
        %4700 = vmatprep.subr.bf16.mxu0 0
        %4701 = vmatpush1.bf16.msra.mxu0 0
        %4702 = vmatprep.subr.bf16.mxu0 0
        %4703 = vmatpush1.bf16.msra.mxu0 0
        %4704 = vmatprep.subr.bf16.mxu0 0
        %4705 = vmatpush1.bf16.msra.mxu0 0
        %4706 = vmatprep.subr.bf16.mxu0 0
        %4707 = vmatpush1.bf16.msra.mxu0 %v4690
        %4708 = vmatprep.subr.bf16.mxu0 0
        %4709 = vmatpush2.bf16.msra.mxu0 0
        %4710 = vmatprep.subr.bf16.mxu0 0
        %4711 = vmatpush2.bf16.msra.mxu0 0
        %4712 = vmatprep.subr.bf16.mxu0 0
        %4713 = vmatpush2.bf16.msra.mxu0 0
        %4714 = vmatprep.subr.bf16.mxu0 0
        %4715 = vmatpush2.bf16.msra.mxu0 0
        %4716 = vmatprep.subr.bf16.mxu0 0
        %4717 = vmatpush2.bf16.msra.mxu0 0
        %4718 = vmatprep.subr.bf16.mxu0 0
        %4719 = vmatpush2.bf16.msra.mxu0 0
        %4720 = vmatprep.subr.bf16.mxu0 0
        %4721 = vmatpush2.bf16.msra.mxu0 0
        %4722 = vmatprep.subr.bf16.mxu0 0
        %4723 = vmatpush2.bf16.msra.mxu0 0
        %4724 = vmatprep.mubr.bf16.mxu0 0
        %4725 = vmatmul.mubr.bf16.gmra.mxu0 %v4687
        %v4726 = vpop.f32.mrf.mxu0
        %v4727 = vadd.f32 0.0, %v4726
        %v4728 = vpop.f32.mrf.mxu0
        %v4729 = vpop.f32.mrf.mxu0
        %v4730 = vpop.f32.mrf.mxu0
        %4731 = vdwg.mxu0
        %4732 = vrot.lane.b32.xlu0 %v1223, 40
        %v4733 = vpop.permute.xlu0 %4732
        %v4735 = vsel %vm1233, %v4677, 0
        %v4738 = vsel %vm1740, %v4733, 0
        %4740 = vmatprep.subr.bf16.mxu0 0
        %4741 = vmatpush1.bf16.msra.mxu0 0
        %4742 = vmatprep.subr.bf16.mxu0 0
        %4743 = vmatpush1.bf16.msra.mxu0 0
        %4744 = vmatprep.subr.bf16.mxu0 0
        %4745 = vmatpush1.bf16.msra.mxu0 0
        %4746 = vmatprep.subr.bf16.mxu0 0
        %4747 = vmatpush1.bf16.msra.mxu0 0
        %4748 = vmatprep.subr.bf16.mxu0 0
        %4749 = vmatpush1.bf16.msra.mxu0 0
        %4750 = vmatprep.subr.bf16.mxu0 0
        %4751 = vmatpush1.bf16.msra.mxu0 0
        %4752 = vmatprep.subr.bf16.mxu0 0
        %4753 = vmatpush1.bf16.msra.mxu0 0
        %4754 = vmatprep.subr.bf16.mxu0 0
        %4755 = vmatpush1.bf16.msra.mxu0 %v4738
        %4756 = vmatprep.subr.bf16.mxu0 0
        %4757 = vmatpush2.bf16.msra.mxu0 0
        %4758 = vmatprep.subr.bf16.mxu0 0
        %4759 = vmatpush2.bf16.msra.mxu0 0
        %4760 = vmatprep.subr.bf16.mxu0 0
        %4761 = vmatpush2.bf16.msra.mxu0 0
        %4762 = vmatprep.subr.bf16.mxu0 0
        %4763 = vmatpush2.bf16.msra.mxu0 0
        %4764 = vmatprep.subr.bf16.mxu0 0
        %4765 = vmatpush2.bf16.msra.mxu0 0
        %4766 = vmatprep.subr.bf16.mxu0 0
        %4767 = vmatpush2.bf16.msra.mxu0 0
        %4768 = vmatprep.subr.bf16.mxu0 0
        %4769 = vmatpush2.bf16.msra.mxu0 0
        %4770 = vmatprep.subr.bf16.mxu0 0
        %4771 = vmatpush2.bf16.msra.mxu0 0
        %4772 = vmatprep.mubr.bf16.mxu0 0
        %4773 = vmatmul.mubr.bf16.gmra.mxu0 %v4735
        %v4774 = vpop.f32.mrf.mxu0
        %v4775 = vadd.f32 0.0, %v4774
        %v4776 = vpop.f32.mrf.mxu0
        %v4777 = vpop.f32.mrf.mxu0
        %v4778 = vpop.f32.mrf.mxu0
        %4779 = vdwg.mxu0
        %4780 = vrot.lane.b32.xlu0 %v1224, 40
        %v4781 = vpop.permute.xlu0 %4780
        %v4783 = vsel %vm1233, %v4678, 0
        %v4786 = vsel %vm1740, %v4781, 0
        %4788 = vmatprep.subr.bf16.mxu0 0
        %4789 = vmatpush1.bf16.msra.mxu0 0
        %4790 = vmatprep.subr.bf16.mxu0 0
        %4791 = vmatpush1.bf16.msra.mxu0 0
        %4792 = vmatprep.subr.bf16.mxu0 0
        %4793 = vmatpush1.bf16.msra.mxu0 0
        %4794 = vmatprep.subr.bf16.mxu0 0
        %4795 = vmatpush1.bf16.msra.mxu0 0
        %4796 = vmatprep.subr.bf16.mxu0 0
        %4797 = vmatpush1.bf16.msra.mxu0 0
        %4798 = vmatprep.subr.bf16.mxu0 0
        %4799 = vmatpush1.bf16.msra.mxu0 0
        %4800 = vmatprep.subr.bf16.mxu0 0
        %4801 = vmatpush1.bf16.msra.mxu0 0
        %4802 = vmatprep.subr.bf16.mxu0 0
        %4803 = vmatpush1.bf16.msra.mxu0 %v4786
        %4804 = vmatprep.subr.bf16.mxu0 0
        %4805 = vmatpush2.bf16.msra.mxu0 0
        %4806 = vmatprep.subr.bf16.mxu0 0
        %4807 = vmatpush2.bf16.msra.mxu0 0
        %4808 = vmatprep.subr.bf16.mxu0 0
        %4809 = vmatpush2.bf16.msra.mxu0 0
        %4810 = vmatprep.subr.bf16.mxu0 0
        %4811 = vmatpush2.bf16.msra.mxu0 0
        %4812 = vmatprep.subr.bf16.mxu0 0
        %4813 = vmatpush2.bf16.msra.mxu0 0
        %4814 = vmatprep.subr.bf16.mxu0 0
        %4815 = vmatpush2.bf16.msra.mxu0 0
        %4816 = vmatprep.subr.bf16.mxu0 0
        %4817 = vmatpush2.bf16.msra.mxu0 0
        %4818 = vmatprep.subr.bf16.mxu0 0
        %4819 = vmatpush2.bf16.msra.mxu0 0
        %4820 = vmatprep.mubr.bf16.mxu0 0
        %4821 = vmatmul.mubr.bf16.gmra.mxu0 %v4783
        %v4822 = vpop.f32.mrf.mxu0
        %v4823 = vadd.f32 0.0, %v4822
        %v4824 = vpop.f32.mrf.mxu0
        %v4825 = vpop.f32.mrf.mxu0
        %v4826 = vpop.f32.mrf.mxu0
        %4827 = vdwg.mxu0
        %4828 = vrot.lane.b32.xlu0 %v1225, 40
        %v4829 = vpop.permute.xlu0 %4828
        %v4831 = vsel %vm1233, %v4679, 0
        %v4834 = vsel %vm1740, %v4829, 0
        %4836 = vmatprep.subr.bf16.mxu0 0
        %4837 = vmatpush1.bf16.msra.mxu0 0
        %4838 = vmatprep.subr.bf16.mxu0 0
        %4839 = vmatpush1.bf16.msra.mxu0 0
        %4840 = vmatprep.subr.bf16.mxu0 0
        %4841 = vmatpush1.bf16.msra.mxu0 0
        %4842 = vmatprep.subr.bf16.mxu0 0
        %4843 = vmatpush1.bf16.msra.mxu0 0
        %4844 = vmatprep.subr.bf16.mxu0 0
        %4845 = vmatpush1.bf16.msra.mxu0 0
        %4846 = vmatprep.subr.bf16.mxu0 0
        %4847 = vmatpush1.bf16.msra.mxu0 0
        %4848 = vmatprep.subr.bf16.mxu0 0
        %4849 = vmatpush1.bf16.msra.mxu0 0
        %4850 = vmatprep.subr.bf16.mxu0 0
        %4851 = vmatpush1.bf16.msra.mxu0 %v4834
        %4852 = vmatprep.subr.bf16.mxu0 0
        %4853 = vmatpush2.bf16.msra.mxu0 0
        %4854 = vmatprep.subr.bf16.mxu0 0
        %4855 = vmatpush2.bf16.msra.mxu0 0
        %4856 = vmatprep.subr.bf16.mxu0 0
        %4857 = vmatpush2.bf16.msra.mxu0 0
        %4858 = vmatprep.subr.bf16.mxu0 0
        %4859 = vmatpush2.bf16.msra.mxu0 0
        %4860 = vmatprep.subr.bf16.mxu0 0
        %4861 = vmatpush2.bf16.msra.mxu0 0
        %4862 = vmatprep.subr.bf16.mxu0 0
        %4863 = vmatpush2.bf16.msra.mxu0 0
        %4864 = vmatprep.subr.bf16.mxu0 0
        %4865 = vmatpush2.bf16.msra.mxu0 0
        %4866 = vmatprep.subr.bf16.mxu0 0
        %4867 = vmatpush2.bf16.msra.mxu0 0
        %4868 = vmatprep.mubr.bf16.mxu0 0
        %4869 = vmatmul.mubr.bf16.gmra.mxu0 %v4831
        %v4870 = vpop.f32.mrf.mxu0
        %v4871 = vadd.f32 0.0, %v4870
        %v4872 = vpop.f32.mrf.mxu0
        %v4873 = vpop.f32.mrf.mxu0
        %v4874 = vpop.f32.mrf.mxu0
        %4875 = vdwg.mxu0
        %4876 = vrot.lane.b32.xlu0 %v1226, 40
        %v4877 = vpop.permute.xlu0 %4876
        %v4879 = vsel %vm1233, %v4680, 0
        %v4882 = vsel %vm1740, %v4877, 0
        %4884 = vmatprep.subr.bf16.mxu0 0
        %4885 = vmatpush1.bf16.msra.mxu0 0
        %4886 = vmatprep.subr.bf16.mxu0 0
        %4887 = vmatpush1.bf16.msra.mxu0 0
        %4888 = vmatprep.subr.bf16.mxu0 0
        %4889 = vmatpush1.bf16.msra.mxu0 0
        %4890 = vmatprep.subr.bf16.mxu0 0
        %4891 = vmatpush1.bf16.msra.mxu0 0
        %4892 = vmatprep.subr.bf16.mxu0 0
        %4893 = vmatpush1.bf16.msra.mxu0 0
        %4894 = vmatprep.subr.bf16.mxu0 0
        %4895 = vmatpush1.bf16.msra.mxu0 0
        %4896 = vmatprep.subr.bf16.mxu0 0
        %4897 = vmatpush1.bf16.msra.mxu0 0
        %4898 = vmatprep.subr.bf16.mxu0 0
        %4899 = vmatpush1.bf16.msra.mxu0 %v4882
        %4900 = vmatprep.subr.bf16.mxu0 0
        %4901 = vmatpush2.bf16.msra.mxu0 0
        %4902 = vmatprep.subr.bf16.mxu0 0
        %4903 = vmatpush2.bf16.msra.mxu0 0
        %4904 = vmatprep.subr.bf16.mxu0 0
        %4905 = vmatpush2.bf16.msra.mxu0 0
        %4906 = vmatprep.subr.bf16.mxu0 0
        %4907 = vmatpush2.bf16.msra.mxu0 0
        %4908 = vmatprep.subr.bf16.mxu0 0
        %4909 = vmatpush2.bf16.msra.mxu0 0
        %4910 = vmatprep.subr.bf16.mxu0 0
        %4911 = vmatpush2.bf16.msra.mxu0 0
        %4912 = vmatprep.subr.bf16.mxu0 0
        %4913 = vmatpush2.bf16.msra.mxu0 0
        %4914 = vmatprep.subr.bf16.mxu0 0
        %4915 = vmatpush2.bf16.msra.mxu0 0
        %4916 = vmatprep.mubr.bf16.mxu0 0
        %4917 = vmatmul.mubr.bf16.gmra.mxu0 %v4879
        %v4918 = vpop.f32.mrf.mxu0
        %v4919 = vadd.f32 0.0, %v4918
        %v4920 = vpop.f32.mrf.mxu0
        %v4921 = vpop.f32.mrf.mxu0
        %v4922 = vpop.f32.mrf.mxu0
        %4923 = vdwg.mxu0
        %4924 = vrot.lane.b32.xlu0 %v1227, 40
        %v4925 = vpop.permute.xlu0 %4924
        %v4927 = vsel %vm1233, %v4681, 0
        %v4930 = vsel %vm1740, %v4925, 0
        %4932 = vmatprep.subr.bf16.mxu0 0
        %4933 = vmatpush1.bf16.msra.mxu0 0
        %4934 = vmatprep.subr.bf16.mxu0 0
        %4935 = vmatpush1.bf16.msra.mxu0 0
        %4936 = vmatprep.subr.bf16.mxu0 0
        %4937 = vmatpush1.bf16.msra.mxu0 0
        %4938 = vmatprep.subr.bf16.mxu0 0
        %4939 = vmatpush1.bf16.msra.mxu0 0
        %4940 = vmatprep.subr.bf16.mxu0 0
        %4941 = vmatpush1.bf16.msra.mxu0 0
        %4942 = vmatprep.subr.bf16.mxu0 0
        %4943 = vmatpush1.bf16.msra.mxu0 0
        %4944 = vmatprep.subr.bf16.mxu0 0
        %4945 = vmatpush1.bf16.msra.mxu0 0
        %4946 = vmatprep.subr.bf16.mxu0 0
        %4947 = vmatpush1.bf16.msra.mxu0 %v4930
        %4948 = vmatprep.subr.bf16.mxu0 0
        %4949 = vmatpush2.bf16.msra.mxu0 0
        %4950 = vmatprep.subr.bf16.mxu0 0
        %4951 = vmatpush2.bf16.msra.mxu0 0
        %4952 = vmatprep.subr.bf16.mxu0 0
        %4953 = vmatpush2.bf16.msra.mxu0 0
        %4954 = vmatprep.subr.bf16.mxu0 0
        %4955 = vmatpush2.bf16.msra.mxu0 0
        %4956 = vmatprep.subr.bf16.mxu0 0
        %4957 = vmatpush2.bf16.msra.mxu0 0
        %4958 = vmatprep.subr.bf16.mxu0 0
        %4959 = vmatpush2.bf16.msra.mxu0 0
        %4960 = vmatprep.subr.bf16.mxu0 0
        %4961 = vmatpush2.bf16.msra.mxu0 0
        %4962 = vmatprep.subr.bf16.mxu0 0
        %4963 = vmatpush2.bf16.msra.mxu0 0
        %4964 = vmatprep.mubr.bf16.mxu0 0
        %4965 = vmatmul.mubr.bf16.gmra.mxu0 %v4927
        %v4966 = vpop.f32.mrf.mxu0
        %v4967 = vadd.f32 0.0, %v4966
        %v4968 = vpop.f32.mrf.mxu0
        %v4969 = vpop.f32.mrf.mxu0
        %v4970 = vpop.f32.mrf.mxu0
        %4971 = vdwg.mxu0
        %4972 = vrot.lane.b32.xlu0 %v1228, 40
        %v4973 = vpop.permute.xlu0 %4972
        %v4975 = vsel %vm1233, %v4682, 0
        %v4978 = vsel %vm1740, %v4973, 0
        %4980 = vmatprep.subr.bf16.mxu0 0
        %4981 = vmatpush1.bf16.msra.mxu0 0
        %4982 = vmatprep.subr.bf16.mxu0 0
        %4983 = vmatpush1.bf16.msra.mxu0 0
        %4984 = vmatprep.subr.bf16.mxu0 0
        %4985 = vmatpush1.bf16.msra.mxu0 0
        %4986 = vmatprep.subr.bf16.mxu0 0
        %4987 = vmatpush1.bf16.msra.mxu0 0
        %4988 = vmatprep.subr.bf16.mxu0 0
        %4989 = vmatpush1.bf16.msra.mxu0 0
        %4990 = vmatprep.subr.bf16.mxu0 0
        %4991 = vmatpush1.bf16.msra.mxu0 0
        %4992 = vmatprep.subr.bf16.mxu0 0
        %4993 = vmatpush1.bf16.msra.mxu0 0
        %4994 = vmatprep.subr.bf16.mxu0 0
        %4995 = vmatpush1.bf16.msra.mxu0 %v4978
        %4996 = vmatprep.subr.bf16.mxu0 0
        %4997 = vmatpush2.bf16.msra.mxu0 0
        %4998 = vmatprep.subr.bf16.mxu0 0
        %4999 = vmatpush2.bf16.msra.mxu0 0
        %5000 = vmatprep.subr.bf16.mxu0 0
        %5001 = vmatpush2.bf16.msra.mxu0 0
        %5002 = vmatprep.subr.bf16.mxu0 0
        %5003 = vmatpush2.bf16.msra.mxu0 0
        %5004 = vmatprep.subr.bf16.mxu0 0
        %5005 = vmatpush2.bf16.msra.mxu0 0
        %5006 = vmatprep.subr.bf16.mxu0 0
        %5007 = vmatpush2.bf16.msra.mxu0 0
        %5008 = vmatprep.subr.bf16.mxu0 0
        %5009 = vmatpush2.bf16.msra.mxu0 0
        %5010 = vmatprep.subr.bf16.mxu0 0
        %5011 = vmatpush2.bf16.msra.mxu0 0
        %5012 = vmatprep.mubr.bf16.mxu0 0
        %5013 = vmatmul.mubr.bf16.gmra.mxu0 %v4975
        %v5014 = vpop.f32.mrf.mxu0
        %v5015 = vadd.f32 0.0, %v5014
        %v5016 = vpop.f32.mrf.mxu0
        %v5017 = vpop.f32.mrf.mxu0
        %v5018 = vpop.f32.mrf.mxu0
        %5019 = vdwg.mxu0
        %5020 = vrot.lane.b32.xlu0 %v1229, 40
        %v5021 = vpop.permute.xlu0 %5020
        %v5023 = vsel %vm1233, %v4683, 0
        %v5026 = vsel %vm1740, %v5021, 0
        %5028 = vmatprep.subr.bf16.mxu0 0
        %5029 = vmatpush1.bf16.msra.mxu0 0
        %5030 = vmatprep.subr.bf16.mxu0 0
        %5031 = vmatpush1.bf16.msra.mxu0 0
        %5032 = vmatprep.subr.bf16.mxu0 0
        %5033 = vmatpush1.bf16.msra.mxu0 0
        %5034 = vmatprep.subr.bf16.mxu0 0
        %5035 = vmatpush1.bf16.msra.mxu0 0
        %5036 = vmatprep.subr.bf16.mxu0 0
        %5037 = vmatpush1.bf16.msra.mxu0 0
        %5038 = vmatprep.subr.bf16.mxu0 0
        %5039 = vmatpush1.bf16.msra.mxu0 0
        %5040 = vmatprep.subr.bf16.mxu0 0
        %5041 = vmatpush1.bf16.msra.mxu0 0
        %5042 = vmatprep.subr.bf16.mxu0 0
        %5043 = vmatpush1.bf16.msra.mxu0 %v5026
        %5044 = vmatprep.subr.bf16.mxu0 0
        %5045 = vmatpush2.bf16.msra.mxu0 0
        %5046 = vmatprep.subr.bf16.mxu0 0
        %5047 = vmatpush2.bf16.msra.mxu0 0
        %5048 = vmatprep.subr.bf16.mxu0 0
        %5049 = vmatpush2.bf16.msra.mxu0 0
        %5050 = vmatprep.subr.bf16.mxu0 0
        %5051 = vmatpush2.bf16.msra.mxu0 0
        %5052 = vmatprep.subr.bf16.mxu0 0
        %5053 = vmatpush2.bf16.msra.mxu0 0
        %5054 = vmatprep.subr.bf16.mxu0 0
        %5055 = vmatpush2.bf16.msra.mxu0 0
        %5056 = vmatprep.subr.bf16.mxu0 0
        %5057 = vmatpush2.bf16.msra.mxu0 0
        %5058 = vmatprep.subr.bf16.mxu0 0
        %5059 = vmatpush2.bf16.msra.mxu0 0
        %5060 = vmatprep.mubr.bf16.mxu0 0
        %5061 = vmatmul.mubr.bf16.gmra.mxu0 %v5023
        %v5062 = vpop.f32.mrf.mxu0
        %v5063 = vadd.f32 0.0, %v5062
        %v5064 = vpop.f32.mrf.mxu0
        %v5065 = vpop.f32.mrf.mxu0
        %v5066 = vpop.f32.mrf.mxu0
        %5067 = vdwg.mxu0
        %v5068 = vpack.c.bf16 %v4775, %v4727
        %v5069 = vpack.c.bf16 %v4871, %v4823
        %v5070 = vpack.c.bf16 %v4967, %v4919
        %v5071 = vpack.c.bf16 %v5063, %v5015
        %v5073 = vsel %vm1233, %v5068, 0
        %v5076 = vsel %vm1233, %v5069, 0
        %v5079 = vsel %vm1233, %v5070, 0
        %v5082 = vsel %vm1233, %v5071, 0
        %v5085 = vsel %vm1740, %v1221, 0
        %5087 = vmatprep.subr.bf16.mxu0 0
        %5088 = vmatpush1.bf16.msra.mxu0 0
        %5089 = vmatprep.subr.bf16.mxu0 0
        %5090 = vmatpush1.bf16.msra.mxu0 0
        %5091 = vmatprep.subr.bf16.mxu0 0
        %5092 = vmatpush1.bf16.msra.mxu0 0
        %5093 = vmatprep.subr.bf16.mxu0 0
        %5094 = vmatpush1.bf16.msra.mxu0 0
        %5095 = vmatprep.subr.bf16.mxu0 0
        %5096 = vmatpush1.bf16.msra.mxu0 0
        %5097 = vmatprep.subr.bf16.mxu0 0
        %5098 = vmatpush1.bf16.msra.mxu0 0
        %5099 = vmatprep.subr.bf16.mxu0 0
        %5100 = vmatpush1.bf16.msra.mxu0 0
        %5101 = vmatprep.subr.bf16.mxu0 0
        %5102 = vmatpush1.bf16.msra.mxu0 %v5085
        %5103 = vmatprep.subr.bf16.mxu0 0
        %5104 = vmatpush2.bf16.msra.mxu0 0
        %5105 = vmatprep.subr.bf16.mxu0 0
        %5106 = vmatpush2.bf16.msra.mxu0 0
        %5107 = vmatprep.subr.bf16.mxu0 0
        %5108 = vmatpush2.bf16.msra.mxu0 0
        %5109 = vmatprep.subr.bf16.mxu0 0
        %5110 = vmatpush2.bf16.msra.mxu0 0
        %5111 = vmatprep.subr.bf16.mxu0 0
        %5112 = vmatpush2.bf16.msra.mxu0 0
        %5113 = vmatprep.subr.bf16.mxu0 0
        %5114 = vmatpush2.bf16.msra.mxu0 0
        %5115 = vmatprep.subr.bf16.mxu0 0
        %5116 = vmatpush2.bf16.msra.mxu0 0
        %5117 = vmatprep.subr.bf16.mxu0 0
        %5118 = vmatpush2.bf16.msra.mxu0 0
        %5119 = vmatprep.mubr.bf16.mxu0 0
        %5120 = vmatmul.mubr.bf16.gmra.mxu0 %v5073
        %v5121 = vpop.f32.mrf.mxu0
        %v5122 = vadd.f32 0.0, %v5121
        %v5123 = vpop.f32.mrf.mxu0
        %v5124 = vpop.f32.mrf.mxu0
        %v5125 = vadd.f32 0.0, %v5124
        %v5126 = vpop.f32.mrf.mxu0
        %5127 = vmatprep.mubr.bf16.mxu0 0
        %5128 = vmatmul.mubr.bf16.gmra.mxu0 %v5076
        %v5129 = vpop.f32.mrf.mxu0
        %v5130 = vadd.f32 0.0, %v5129
        %v5131 = vpop.f32.mrf.mxu0
        %v5132 = vpop.f32.mrf.mxu0
        %v5133 = vadd.f32 0.0, %v5132
        %v5134 = vpop.f32.mrf.mxu0
        %5135 = vmatprep.mubr.bf16.mxu0 0
        %5136 = vmatmul.mubr.bf16.gmra.mxu0 %v5079
        %v5137 = vpop.f32.mrf.mxu0
        %v5138 = vadd.f32 0.0, %v5137
        %v5139 = vpop.f32.mrf.mxu0
        %v5140 = vpop.f32.mrf.mxu0
        %v5141 = vadd.f32 0.0, %v5140
        %v5142 = vpop.f32.mrf.mxu0
        %5143 = vmatprep.mubr.bf16.mxu0 0
        %5144 = vmatmul.mubr.bf16.gmra.mxu0 %v5082
        %v5145 = vpop.f32.mrf.mxu0
        %v5146 = vadd.f32 0.0, %v5145
        %v5147 = vpop.f32.mrf.mxu0
        %v5148 = vpop.f32.mrf.mxu0
        %v5149 = vadd.f32 0.0, %v5148
        %v5150 = vpop.f32.mrf.mxu0
        %5151 = vdwg.mxu0
        %v5152 = vadd.f32 %v4164, %v5122
        %v5153 = vadd.f32 %v4165, %v5125
        %v5154 = vadd.f32 %v4166, %v5130
        %v5155 = vadd.f32 %v4167, %v5133
        %v5156 = vadd.f32 %v4168, %v5138
        %v5157 = vadd.f32 %v4169, %v5141
        %v5158 = vadd.f32 %v4170, %v5146
        %v5159 = vadd.f32 %v4171, %v5149
        %v5160 = vadd.f32 %v968, %v5152
        %v5161 = vadd.f32 %v969, %v5153
        %v5162 = vadd.f32 %v970, %v5154
        %v5163 = vadd.f32 %v971, %v5155
        %v5164 = vadd.f32 %v972, %v5156
        %v5165 = vadd.f32 %v973, %v5157
        %v5166 = vadd.f32 %v974, %v5158
        %v5167 = vadd.f32 %v975, %v5159
        %v5168 = vld [vmem:[%s10] sm:$0x1]
        %v5170 = vlaneseq
        %v5171 = vshrl.u32 %v5170, 7
        %v5172 = vsub.s32 0, %v5171
        %v5173 = vrot.slane %v5168, %v5172
        %v5175 = vadd.f32 %v5160, %v5173
        %v5176 = vadd.f32 %v5161, %v5173
        %v5177 = vadd.f32 %v5162, %v5173
        %v5178 = vadd.f32 %v5163, %v5173
        %v5179 = vadd.f32 %v5164, %v5173
        %v5180 = vadd.f32 %v5165, %v5173
        %v5181 = vadd.f32 %v5166, %v5173
        %v5182 = vadd.f32 %v5167, %v5173
        %v5183 = vld [vmem:[%s11] sm:$0x1]
        %v5184 = vld [vmem:[%s12] sm:$0x1]
        %v5185 = vsel %vm842, %v5175, 0.0
        %5186 = vadd.xlane.f32.xlu0 %v5185
        %v5187 = vpop.xlane.xlu0 %5186
        %v5188 = vsel %vm842, %v5176, 0.0
        %5189 = vadd.xlane.f32.xlu0 %v5188
        %v5190 = vpop.xlane.xlu0 %5189
        %v5191 = vsel %vm842, %v5177, 0.0
        %5192 = vadd.xlane.f32.xlu0 %v5191
        %v5193 = vpop.xlane.xlu0 %5192
        %v5194 = vsel %vm842, %v5178, 0.0
        %5195 = vadd.xlane.f32.xlu0 %v5194
        %v5196 = vpop.xlane.xlu0 %5195
        %v5197 = vsel %vm842, %v5179, 0.0
        %5198 = vadd.xlane.f32.xlu0 %v5197
        %v5199 = vpop.xlane.xlu0 %5198
        %v5200 = vsel %vm842, %v5180, 0.0
        %5201 = vadd.xlane.f32.xlu0 %v5200
        %v5202 = vpop.xlane.xlu0 %5201
        %v5203 = vsel %vm842, %v5181, 0.0
        %5204 = vadd.xlane.f32.xlu0 %v5203
        %v5205 = vpop.xlane.xlu0 %5204
        %v5206 = vsel %vm842, %v5182, 0.0
        %5207 = vadd.xlane.f32.xlu0 %v5206
        %v5208 = vpop.xlane.xlu0 %5207
        %v5209 = vmul.f32 %v5187, %v867
        %v5210 = vmul.f32 %v5190, %v867
        %v5211 = vmul.f32 %v5193, %v867
        %v5212 = vmul.f32 %v5196, %v867
        %v5213 = vmul.f32 %v5199, %v867
        %v5214 = vmul.f32 %v5202, %v867
        %v5215 = vmul.f32 %v5205, %v867
        %v5216 = vmul.f32 %v5208, %v867
        %v5217 = vsub.f32 %v5175, %v5209
        %v5218 = vsub.f32 %v5176, %v5210
        %v5219 = vsub.f32 %v5177, %v5211
        %v5220 = vsub.f32 %v5178, %v5212
        %v5221 = vsub.f32 %v5179, %v5213
        %v5222 = vsub.f32 %v5180, %v5214
        %v5223 = vsub.f32 %v5181, %v5215
        %v5224 = vsub.f32 %v5182, %v5216
        %v5225 = vmul.f32 %v5217, %v5217
        %v5226 = vmul.f32 %v5218, %v5218
        %v5227 = vmul.f32 %v5219, %v5219
        %v5228 = vmul.f32 %v5220, %v5220
        %v5229 = vmul.f32 %v5221, %v5221
        %v5230 = vmul.f32 %v5222, %v5222
        %v5231 = vmul.f32 %v5223, %v5223
        %v5232 = vmul.f32 %v5224, %v5224
        %v5233 = vsel %vm842, %v5225, 0.0
        %5234 = vadd.xlane.f32.xlu0 %v5233
        %v5235 = vpop.xlane.xlu0 %5234
        %v5236 = vsel %vm842, %v5226, 0.0
        %5237 = vadd.xlane.f32.xlu0 %v5236
        %v5238 = vpop.xlane.xlu0 %5237
        %v5239 = vsel %vm842, %v5227, 0.0
        %5240 = vadd.xlane.f32.xlu0 %v5239
        %v5241 = vpop.xlane.xlu0 %5240
        %v5242 = vsel %vm842, %v5228, 0.0
        %5243 = vadd.xlane.f32.xlu0 %v5242
        %v5244 = vpop.xlane.xlu0 %5243
        %v5245 = vsel %vm842, %v5229, 0.0
        %5246 = vadd.xlane.f32.xlu0 %v5245
        %v5247 = vpop.xlane.xlu0 %5246
        %v5248 = vsel %vm842, %v5230, 0.0
        %5249 = vadd.xlane.f32.xlu0 %v5248
        %v5250 = vpop.xlane.xlu0 %5249
        %v5251 = vsel %vm842, %v5231, 0.0
        %5252 = vadd.xlane.f32.xlu0 %v5251
        %v5253 = vpop.xlane.xlu0 %5252
        %v5254 = vsel %vm842, %v5232, 0.0
        %5255 = vadd.xlane.f32.xlu0 %v5254
        %v5256 = vpop.xlane.xlu0 %5255
        %v5257 = vmul.f32 %v5235, %v867
        %v5258 = vmul.f32 %v5238, %v867
        %v5259 = vmul.f32 %v5241, %v867
        %v5260 = vmul.f32 %v5244, %v867
        %v5261 = vmul.f32 %v5247, %v867
        %v5262 = vmul.f32 %v5250, %v867
        %v5263 = vmul.f32 %v5253, %v867
        %v5264 = vmul.f32 %v5256, %v867
        %v5265 = vadd.f32 %v5257, 1e-05
        %v5266 = vadd.f32 %v5258, 1e-05
        %v5267 = vadd.f32 %v5259, 1e-05
        %v5268 = vadd.f32 %v5260, 1e-05
        %v5269 = vadd.f32 %v5261, 1e-05
        %v5270 = vadd.f32 %v5262, 1e-05
        %v5271 = vadd.f32 %v5263, 1e-05
        %v5272 = vadd.f32 %v5264, 1e-05
        %v5273 = vrsqrt.pop %v5265
        %v5274 = vrsqrt.pop %v5266
        %v5275 = vrsqrt.pop %v5267
        %v5276 = vrsqrt.pop %v5268
        %v5277 = vrsqrt.pop %v5269
        %v5278 = vrsqrt.pop %v5270
        %v5279 = vrsqrt.pop %v5271
        %v5280 = vrsqrt.pop %v5272
        %v5281 = vmul.f32 %v5217, %v5273
        %v5282 = vmul.f32 %v5218, %v5274
        %v5283 = vmul.f32 %v5219, %v5275
        %v5284 = vmul.f32 %v5220, %v5276
        %v5285 = vmul.f32 %v5221, %v5277
        %v5286 = vmul.f32 %v5222, %v5278
        %v5287 = vmul.f32 %v5223, %v5279
        %v5288 = vmul.f32 %v5224, %v5280
        %v5290 = vlaneseq
        %v5291 = vshrl.u32 %v5290, 7
        %v5292 = vsub.s32 0, %v5291
        %v5293 = vrot.slane %v5183, %v5292
        %v5295 = vmul.f32 %v5281, %v5293
        %v5296 = vmul.f32 %v5282, %v5293
        %v5297 = vmul.f32 %v5283, %v5293
        %v5298 = vmul.f32 %v5284, %v5293
        %v5299 = vmul.f32 %v5285, %v5293
        %v5300 = vmul.f32 %v5286, %v5293
        %v5301 = vmul.f32 %v5287, %v5293
        %v5302 = vmul.f32 %v5288, %v5293
        %v5304 = vlaneseq
        %v5305 = vshrl.u32 %v5304, 7
        %v5306 = vsub.s32 0, %v5305
        %v5307 = vrot.slane %v5184, %v5306
        %v5309 = vadd.f32 %v5295, %v5307
        %v5310 = vadd.f32 %v5296, %v5307
        %v5311 = vadd.f32 %v5297, %v5307
        %v5312 = vadd.f32 %v5298, %v5307
        %v5313 = vadd.f32 %v5299, %v5307
        %v5314 = vadd.f32 %v5300, %v5307
        %v5315 = vadd.f32 %v5301, %v5307
        %v5316 = vadd.f32 %v5302, %v5307
        %v5317 = vpack.c.bf16 %v5310, %v5309
        %v5318 = vpack.c.bf16 %v5312, %v5311
        %v5319 = vpack.c.bf16 %v5314, %v5313
        %v5320 = vpack.c.bf16 %v5316, %v5315
        %v5321 = vld [vmem:[%s13] sm:$0xf]
        %v5322 = vld [vmem:[%s13 + $0x4] sm:$0xf]
        %v5323 = vld [vmem:[%s13 + $0x8] sm:$0xf]
        %v5324 = vld [vmem:[%s13 + $0xc] sm:$0xf]
        %v5325 = vld [vmem:[%s14] sm:$0x1]
        %v5327 = vlaneseq
        %v5328 = vshrl.u32 %v5327, 7
        %v5329 = vsub.s32 0, %v5328
        %v5330 = vrot.slane %v5325, %v5329
        %v5336 = vunpack.c.l.b16 %v5321
        %v5337 = vunpack.c.l.b16 %v5322
        %v5338 = vunpack.c.l.b16 %v5323
        %v5339 = vunpack.c.l.b16 %v5324
        %v5340 = vpack.c.b16 %v5337, %v5336
        %v5341 = vpack.c.b16 %v5339, %v5338
        %v5345 = vsel %vm842, %v5317, 0
        %v5348 = vsel %vm842, %v5318, 0
        %v5351 = vsel %vm842, %v5319, 0
        %v5354 = vsel %vm842, %v5320, 0
        %5356 = vmatprep.subr.bf16.mxu0 0
        %5357 = vmatpush1.bf16.msra.mxu0 0
        %5358 = vmatprep.subr.bf16.mxu0 0
        %5359 = vmatpush1.bf16.msra.mxu0 0
        %5360 = vmatprep.subr.bf16.mxu0 0
        %5361 = vmatpush1.bf16.msra.mxu0 0
        %5362 = vmatprep.subr.bf16.mxu0 0
        %5363 = vmatpush1.bf16.msra.mxu0 0
        %5364 = vmatprep.subr.bf16.mxu0 0
        %5365 = vmatpush1.bf16.msra.mxu0 0
        %5366 = vmatprep.subr.bf16.mxu0 0
        %5367 = vmatpush1.bf16.msra.mxu0 0
        %5368 = vmatprep.subr.bf16.mxu0 0
        %5369 = vmatpush1.bf16.msra.mxu0 %v5341
        %5370 = vmatprep.subr.bf16.mxu0 0
        %5371 = vmatpush1.bf16.msra.mxu0 %v5340
        %5372 = vmatprep.subr.bf16.mxu0 0
        %5373 = vmatpush2.bf16.msra.mxu0 0
        %5374 = vmatprep.subr.bf16.mxu0 0
        %5375 = vmatpush2.bf16.msra.mxu0 0
        %5376 = vmatprep.subr.bf16.mxu0 0
        %5377 = vmatpush2.bf16.msra.mxu0 0
        %5378 = vmatprep.subr.bf16.mxu0 0
        %5379 = vmatpush2.bf16.msra.mxu0 0
        %5380 = vmatprep.subr.bf16.mxu0 0
        %5381 = vmatpush2.bf16.msra.mxu0 0
        %5382 = vmatprep.subr.bf16.mxu0 0
        %5383 = vmatpush2.bf16.msra.mxu0 0
        %5384 = vmatprep.subr.bf16.mxu0 0
        %5385 = vmatpush2.bf16.msra.mxu0 0
        %5386 = vmatprep.subr.bf16.mxu0 0
        %5387 = vmatpush2.bf16.msra.mxu0 0
        %5388 = vmatprep.mubr.bf16.mxu0 0
        %5389 = vmatmul.mubr.bf16.gmra.mxu0 %v5345
        %v5390 = vpop.f32.mrf.mxu0
        %v5391 = vadd.f32 %v5330, %v5390
        %v5392 = vpop.f32.mrf.mxu0
        %v5393 = vpop.f32.mrf.mxu0
        %v5394 = vadd.f32 %v5330, %v5393
        %v5395 = vpop.f32.mrf.mxu0
        %5396 = vmatprep.mubr.bf16.mxu0 0
        %5397 = vmatmul.mubr.bf16.gmra.mxu0 %v5348
        %v5398 = vpop.f32.mrf.mxu0
        %v5399 = vadd.f32 %v5330, %v5398
        %v5400 = vpop.f32.mrf.mxu0
        %v5401 = vpop.f32.mrf.mxu0
        %v5402 = vadd.f32 %v5330, %v5401
        %v5403 = vpop.f32.mrf.mxu0
        %5404 = vmatprep.mubr.bf16.mxu0 0
        %5405 = vmatmul.mubr.bf16.gmra.mxu0 %v5351
        %v5406 = vpop.f32.mrf.mxu0
        %v5407 = vadd.f32 %v5330, %v5406
        %v5408 = vpop.f32.mrf.mxu0
        %v5409 = vpop.f32.mrf.mxu0
        %v5410 = vadd.f32 %v5330, %v5409
        %v5411 = vpop.f32.mrf.mxu0
        %5412 = vmatprep.mubr.bf16.mxu0 0
        %5413 = vmatmul.mubr.bf16.gmra.mxu0 %v5354
        %v5414 = vpop.f32.mrf.mxu0
        %v5415 = vadd.f32 %v5330, %v5414
        %v5416 = vpop.f32.mrf.mxu0
        %v5417 = vpop.f32.mrf.mxu0
        %v5418 = vadd.f32 %v5330, %v5417
        %v5419 = vpop.f32.mrf.mxu0
        %5420 = vdwg.mxu0
        %v5421 = vmul.f32 %v5391, -1.702
        %v5422 = vmul.f32 %v5394, -1.702
        %v5423 = vmul.f32 %v5399, -1.702
        %v5424 = vmul.f32 %v5402, -1.702
        %v5425 = vmul.f32 %v5407, -1.702
        %v5426 = vmul.f32 %v5410, -1.702
        %v5427 = vmul.f32 %v5415, -1.702
        %v5428 = vmul.f32 %v5418, -1.702
        %v5429 = vmul.f32 %v5421, 1.442695
        %v5430 = vpow.pop %v5429
        %v5431 = vmul.f32 %v5422, 1.442695
        %v5432 = vpow.pop %v5431
        %v5433 = vmul.f32 %v5423, 1.442695
        %v5434 = vpow.pop %v5433
        %v5435 = vmul.f32 %v5424, 1.442695
        %v5436 = vpow.pop %v5435
        %v5437 = vmul.f32 %v5425, 1.442695
        %v5438 = vpow.pop %v5437
        %v5439 = vmul.f32 %v5426, 1.442695
        %v5440 = vpow.pop %v5439
        %v5441 = vmul.f32 %v5427, 1.442695
        %v5442 = vpow.pop %v5441
        %v5443 = vmul.f32 %v5428, 1.442695
        %v5444 = vpow.pop %v5443
        %v5445 = vadd.f32 %v5430, 1.0
        %v5446 = vadd.f32 %v5432, 1.0
        %v5447 = vadd.f32 %v5434, 1.0
        %v5448 = vadd.f32 %v5436, 1.0
        %v5449 = vadd.f32 %v5438, 1.0
        %v5450 = vadd.f32 %v5440, 1.0
        %v5451 = vadd.f32 %v5442, 1.0
        %v5452 = vadd.f32 %v5444, 1.0
        %v5453 = vrcp.pop %v5445
        %v5454 = vrcp.pop %v5446
        %v5455 = vrcp.pop %v5447
        %v5456 = vrcp.pop %v5448
        %v5457 = vrcp.pop %v5449
        %v5458 = vrcp.pop %v5450
        %v5459 = vrcp.pop %v5451
        %v5460 = vrcp.pop %v5452
        %v5461 = vmul.f32 %v5391, %v5453
        %v5462 = vmul.f32 %v5394, %v5454
        %v5463 = vmul.f32 %v5399, %v5455
        %v5464 = vmul.f32 %v5402, %v5456
        %v5465 = vmul.f32 %v5407, %v5457
        %v5466 = vmul.f32 %v5410, %v5458
        %v5467 = vmul.f32 %v5415, %v5459
        %v5468 = vmul.f32 %v5418, %v5460
        %v5469 = vpack.c.bf16 %v5462, %v5461
        %v5470 = vpack.c.bf16 %v5464, %v5463
        %v5471 = vpack.c.bf16 %v5466, %v5465
        %v5472 = vpack.c.bf16 %v5468, %v5467
        %v5473 = vld [vmem:[%s15] sm:$0xf]
        %v5474 = vld [vmem:[%s15 + $0x4] sm:$0xf]
        %v5475 = vld [vmem:[%s15 + $0x8] sm:$0xf]
        %v5476 = vld [vmem:[%s15 + $0xc] sm:$0xf]
        %v5477 = vld [vmem:[%s15 + $0x10] sm:$0xf]
        %v5478 = vld [vmem:[%s15 + $0x14] sm:$0xf]
        %v5479 = vld [vmem:[%s15 + $0x18] sm:$0xf]
        %v5480 = vld [vmem:[%s15 + $0x1c] sm:$0xf]
        %v5481 = vld [vmem:[%s15 + $0x20] sm:$0xf]
        %v5482 = vld [vmem:[%s15 + $0x24] sm:$0xf]
        %v5483 = vld [vmem:[%s15 + $0x28] sm:$0xf]
        %v5484 = vld [vmem:[%s15 + $0x2c] sm:$0xf]
        %v5485 = vld [vmem:[%s15 + $0x30] sm:$0xf]
        %v5486 = vld [vmem:[%s15 + $0x34] sm:$0xf]
        %v5487 = vld [vmem:[%s15 + $0x38] sm:$0xf]
        %v5488 = vld [vmem:[%s15 + $0x3c] sm:$0xf]
        %v5505 = vunpack.c.l.b16 %v5473
        %v5506 = vunpack.c.l.b16 %v5474
        %v5507 = vunpack.c.l.b16 %v5475
        %v5508 = vunpack.c.l.b16 %v5476
        %v5509 = vunpack.c.l.b16 %v5477
        %v5510 = vunpack.c.l.b16 %v5478
        %v5511 = vunpack.c.l.b16 %v5479
        %v5512 = vunpack.c.l.b16 %v5480
        %v5513 = vunpack.c.l.b16 %v5481
        %v5514 = vunpack.c.l.b16 %v5482
        %v5515 = vunpack.c.l.b16 %v5483
        %v5516 = vunpack.c.l.b16 %v5484
        %v5517 = vunpack.c.l.b16 %v5485
        %v5518 = vunpack.c.l.b16 %v5486
        %v5519 = vunpack.c.l.b16 %v5487
        %v5520 = vunpack.c.l.b16 %v5488
        %v5521 = vpack.c.b16 %v5506, %v5505
        %v5522 = vpack.c.b16 %v5508, %v5507
        %v5523 = vpack.c.b16 %v5510, %v5509
        %v5524 = vpack.c.b16 %v5512, %v5511
        %v5525 = vpack.c.b16 %v5514, %v5513
        %v5526 = vpack.c.b16 %v5516, %v5515
        %v5527 = vpack.c.b16 %v5518, %v5517
        %v5528 = vpack.c.b16 %v5520, %v5519
        %5537 = vmatprep.subr.bf16.mxu0 0
        %5538 = vmatpush1.bf16.msra.mxu0 %v5528
        %5539 = vmatprep.subr.bf16.mxu0 0
        %5540 = vmatpush1.bf16.msra.mxu0 %v5527
        %5541 = vmatprep.subr.bf16.mxu0 0
        %5542 = vmatpush1.bf16.msra.mxu0 %v5526
        %5543 = vmatprep.subr.bf16.mxu0 0
        %5544 = vmatpush1.bf16.msra.mxu0 %v5525
        %5545 = vmatprep.subr.bf16.mxu0 0
        %5546 = vmatpush1.bf16.msra.mxu0 %v5524
        %5547 = vmatprep.subr.bf16.mxu0 0
        %5548 = vmatpush1.bf16.msra.mxu0 %v5523
        %5549 = vmatprep.subr.bf16.mxu0 0
        %5550 = vmatpush1.bf16.msra.mxu0 %v5522
        %5551 = vmatprep.subr.bf16.mxu0 0
        %5552 = vmatpush1.bf16.msra.mxu0 %v5521
        %5553 = vmatprep.subr.bf16.mxu0 0
        %5554 = vmatpush2.bf16.msra.mxu0 0
        %5555 = vmatprep.subr.bf16.mxu0 0
        %5556 = vmatpush2.bf16.msra.mxu0 0
        %5557 = vmatprep.subr.bf16.mxu0 0
        %5558 = vmatpush2.bf16.msra.mxu0 0
        %5559 = vmatprep.subr.bf16.mxu0 0
        %5560 = vmatpush2.bf16.msra.mxu0 0
        %5561 = vmatprep.subr.bf16.mxu0 0
        %5562 = vmatpush2.bf16.msra.mxu0 0
        %5563 = vmatprep.subr.bf16.mxu0 0
        %5564 = vmatpush2.bf16.msra.mxu0 0
        %5565 = vmatprep.subr.bf16.mxu0 0
        %5566 = vmatpush2.bf16.msra.mxu0 0
        %5567 = vmatprep.subr.bf16.mxu0 0
        %5568 = vmatpush2.bf16.msra.mxu0 0
        %5569 = vmatprep.mubr.bf16.mxu0 0
        %5570 = vmatmul.mubr.bf16.gmra.mxu0 %v5469
        %v5571 = vpop.f32.mrf.mxu0
        %v5572 = vadd.f32 0.0, %v5571
        %v5573 = vpop.f32.mrf.mxu0
        %v5574 = vpop.f32.mrf.mxu0
        %v5575 = vadd.f32 0.0, %v5574
        %v5576 = vpop.f32.mrf.mxu0
        %5577 = vmatprep.mubr.bf16.mxu0 0
        %5578 = vmatmul.mubr.bf16.gmra.mxu0 %v5470
        %v5579 = vpop.f32.mrf.mxu0
        %v5580 = vadd.f32 0.0, %v5579
        %v5581 = vpop.f32.mrf.mxu0
        %v5582 = vpop.f32.mrf.mxu0
        %v5583 = vadd.f32 0.0, %v5582
        %v5584 = vpop.f32.mrf.mxu0
        %5585 = vmatprep.mubr.bf16.mxu0 0
        %5586 = vmatmul.mubr.bf16.gmra.mxu0 %v5471
        %v5587 = vpop.f32.mrf.mxu0
        %v5588 = vadd.f32 0.0, %v5587
        %v5589 = vpop.f32.mrf.mxu0
        %v5590 = vpop.f32.mrf.mxu0
        %v5591 = vadd.f32 0.0, %v5590
        %v5592 = vpop.f32.mrf.mxu0
        %5593 = vmatprep.mubr.bf16.mxu0 0
        %5594 = vmatmul.mubr.bf16.gmra.mxu0 %v5472
        %v5595 = vpop.f32.mrf.mxu0
        %v5596 = vadd.f32 0.0, %v5595
        %v5597 = vpop.f32.mrf.mxu0
        %v5598 = vpop.f32.mrf.mxu0
        %v5599 = vadd.f32 0.0, %v5598
        %v5600 = vpop.f32.mrf.mxu0
        %5601 = vdwg.mxu0
        %v5602 = vadd.f32 %v5175, %v5572
        %v5603 = vadd.f32 %v5176, %v5575
        %v5604 = vadd.f32 %v5177, %v5580
        %v5605 = vadd.f32 %v5178, %v5583
        %v5606 = vadd.f32 %v5179, %v5588
        %v5607 = vadd.f32 %v5180, %v5591
        %v5608 = vadd.f32 %v5181, %v5596
        %v5609 = vadd.f32 %v5182, %v5599
        %v5610 = vld [vmem:[%s16] sm:$0x1]
        %v5612 = vlaneseq
        %v5613 = vshrl.u32 %v5612, 7
        %v5614 = vsub.s32 0, %v5613
        %v5615 = vrot.slane %v5610, %v5614
        %v5617 = vadd.f32 %v5602, %v5615
        %v5618 = vadd.f32 %v5603, %v5615
        %v5619 = vadd.f32 %v5604, %v5615
        %v5620 = vadd.f32 %v5605, %v5615
        %v5621 = vadd.f32 %v5606, %v5615
        %v5622 = vadd.f32 %v5607, %v5615
        %v5623 = vadd.f32 %v5608, %v5615
        %v5624 = vadd.f32 %v5609, %v5615
        %s5625 = scalar_lea.vmem %s5, 1
        %v5626 = vld [vmem:[%s5625] sm:$0x1]
        %s5627 = scalar_lea.vmem %s6, 1
        %v5628 = vld [vmem:[%s5627] sm:$0x1]
        %v5629 = vsel %vm842, %v5617, 0.0
        %5630 = vadd.xlane.f32.xlu0 %v5629
        %v5631 = vpop.xlane.xlu0 %5630
        %v5632 = vsel %vm842, %v5618, 0.0
        %5633 = vadd.xlane.f32.xlu0 %v5632
        %v5634 = vpop.xlane.xlu0 %5633
        %v5635 = vsel %vm842, %v5619, 0.0
        %5636 = vadd.xlane.f32.xlu0 %v5635
        %v5637 = vpop.xlane.xlu0 %5636
        %v5638 = vsel %vm842, %v5620, 0.0
        %5639 = vadd.xlane.f32.xlu0 %v5638
        %v5640 = vpop.xlane.xlu0 %5639
        %v5641 = vsel %vm842, %v5621, 0.0
        %5642 = vadd.xlane.f32.xlu0 %v5641
        %v5643 = vpop.xlane.xlu0 %5642
        %v5644 = vsel %vm842, %v5622, 0.0
        %5645 = vadd.xlane.f32.xlu0 %v5644
        %v5646 = vpop.xlane.xlu0 %5645
        %v5647 = vsel %vm842, %v5623, 0.0
        %5648 = vadd.xlane.f32.xlu0 %v5647
        %v5649 = vpop.xlane.xlu0 %5648
        %v5650 = vsel %vm842, %v5624, 0.0
        %5651 = vadd.xlane.f32.xlu0 %v5650
        %v5652 = vpop.xlane.xlu0 %5651
        %v5653 = vmul.f32 %v5631, %v867
        %v5654 = vmul.f32 %v5634, %v867
        %v5655 = vmul.f32 %v5637, %v867
        %v5656 = vmul.f32 %v5640, %v867
        %v5657 = vmul.f32 %v5643, %v867
        %v5658 = vmul.f32 %v5646, %v867
        %v5659 = vmul.f32 %v5649, %v867
        %v5660 = vmul.f32 %v5652, %v867
        %v5661 = vsub.f32 %v5617, %v5653
        %v5662 = vsub.f32 %v5618, %v5654
        %v5663 = vsub.f32 %v5619, %v5655
        %v5664 = vsub.f32 %v5620, %v5656
        %v5665 = vsub.f32 %v5621, %v5657
        %v5666 = vsub.f32 %v5622, %v5658
        %v5667 = vsub.f32 %v5623, %v5659
        %v5668 = vsub.f32 %v5624, %v5660
        %v5669 = vmul.f32 %v5661, %v5661
        %v5670 = vmul.f32 %v5662, %v5662
        %v5671 = vmul.f32 %v5663, %v5663
        %v5672 = vmul.f32 %v5664, %v5664
        %v5673 = vmul.f32 %v5665, %v5665
        %v5674 = vmul.f32 %v5666, %v5666
        %v5675 = vmul.f32 %v5667, %v5667
        %v5676 = vmul.f32 %v5668, %v5668
        %v5677 = vsel %vm842, %v5669, 0.0
        %5678 = vadd.xlane.f32.xlu0 %v5677
        %v5679 = vpop.xlane.xlu0 %5678
        %v5680 = vsel %vm842, %v5670, 0.0
        %5681 = vadd.xlane.f32.xlu0 %v5680
        %v5682 = vpop.xlane.xlu0 %5681
        %v5683 = vsel %vm842, %v5671, 0.0
        %5684 = vadd.xlane.f32.xlu0 %v5683
        %v5685 = vpop.xlane.xlu0 %5684
        %v5686 = vsel %vm842, %v5672, 0.0
        %5687 = vadd.xlane.f32.xlu0 %v5686
        %v5688 = vpop.xlane.xlu0 %5687
        %v5689 = vsel %vm842, %v5673, 0.0
        %5690 = vadd.xlane.f32.xlu0 %v5689
        %v5691 = vpop.xlane.xlu0 %5690
        %v5692 = vsel %vm842, %v5674, 0.0
        %5693 = vadd.xlane.f32.xlu0 %v5692
        %v5694 = vpop.xlane.xlu0 %5693
        %v5695 = vsel %vm842, %v5675, 0.0
        %5696 = vadd.xlane.f32.xlu0 %v5695
        %v5697 = vpop.xlane.xlu0 %5696
        %v5698 = vsel %vm842, %v5676, 0.0
        %5699 = vadd.xlane.f32.xlu0 %v5698
        %v5700 = vpop.xlane.xlu0 %5699
        %v5701 = vmul.f32 %v5679, %v867
        %v5702 = vmul.f32 %v5682, %v867
        %v5703 = vmul.f32 %v5685, %v867
        %v5704 = vmul.f32 %v5688, %v867
        %v5705 = vmul.f32 %v5691, %v867
        %v5706 = vmul.f32 %v5694, %v867
        %v5707 = vmul.f32 %v5697, %v867
        %v5708 = vmul.f32 %v5700, %v867
        %v5709 = vadd.f32 %v5701, 1e-05
        %v5710 = vadd.f32 %v5702, 1e-05
        %v5711 = vadd.f32 %v5703, 1e-05
        %v5712 = vadd.f32 %v5704, 1e-05
        %v5713 = vadd.f32 %v5705, 1e-05
        %v5714 = vadd.f32 %v5706, 1e-05
        %v5715 = vadd.f32 %v5707, 1e-05
        %v5716 = vadd.f32 %v5708, 1e-05
        %v5717 = vrsqrt.pop %v5709
        %v5718 = vrsqrt.pop %v5710
        %v5719 = vrsqrt.pop %v5711
        %v5720 = vrsqrt.pop %v5712
        %v5721 = vrsqrt.pop %v5713
        %v5722 = vrsqrt.pop %v5714
        %v5723 = vrsqrt.pop %v5715
        %v5724 = vrsqrt.pop %v5716
        %v5725 = vmul.f32 %v5661, %v5717
        %v5726 = vmul.f32 %v5662, %v5718
        %v5727 = vmul.f32 %v5663, %v5719
        %v5728 = vmul.f32 %v5664, %v5720
        %v5729 = vmul.f32 %v5665, %v5721
        %v5730 = vmul.f32 %v5666, %v5722
        %v5731 = vmul.f32 %v5667, %v5723
        %v5732 = vmul.f32 %v5668, %v5724
        %v5734 = vlaneseq
        %v5735 = vshrl.u32 %v5734, 7
        %v5736 = vsub.s32 0, %v5735
        %v5737 = vrot.slane %v5626, %v5736
        %v5739 = vmul.f32 %v5725, %v5737
        %v5740 = vmul.f32 %v5726, %v5737
        %v5741 = vmul.f32 %v5727, %v5737
        %v5742 = vmul.f32 %v5728, %v5737
        %v5743 = vmul.f32 %v5729, %v5737
        %v5744 = vmul.f32 %v5730, %v5737
        %v5745 = vmul.f32 %v5731, %v5737
        %v5746 = vmul.f32 %v5732, %v5737
        %v5748 = vlaneseq
        %v5749 = vshrl.u32 %v5748, 7
        %v5750 = vsub.s32 0, %v5749
        %v5751 = vrot.slane %v5628, %v5750
        %v5753 = vadd.f32 %v5739, %v5751
        %v5754 = vadd.f32 %v5740, %v5751
        %v5755 = vadd.f32 %v5741, %v5751
        %v5756 = vadd.f32 %v5742, %v5751
        %v5757 = vadd.f32 %v5743, %v5751
        %v5758 = vadd.f32 %v5744, %v5751
        %v5759 = vadd.f32 %v5745, %v5751
        %v5760 = vadd.f32 %v5746, %v5751
        %v5761 = vpack.c.bf16 %v5754, %v5753
        %v5762 = vpack.c.bf16 %v5756, %v5755
        %v5763 = vpack.c.bf16 %v5758, %v5757
        %v5764 = vpack.c.bf16 %v5760, %v5759
        %s5765 = scalar_lea.vmem %s7, 16
        %v5766 = vld [vmem:[%s5765] sm:$0xf]
        %v5767 = vld [vmem:[%s5765 + $0x4] sm:$0xf]
        %v5768 = vld [vmem:[%s5765 + $0x8] sm:$0xf]
        %v5769 = vld [vmem:[%s5765 + $0xc] sm:$0xf]
        %s5770 = scalar_lea.vmem %s8, 1
        %v5771 = vld [vmem:[%s5770] sm:$0x1]
        %v5773 = vlaneseq
        %v5774 = vshrl.u32 %v5773, 7
        %v5775 = vsub.s32 0, %v5774
        %v5776 = vrot.slane %v5771, %v5775
        %v5782 = vunpack.c.l.b16 %v5766
        %v5783 = vunpack.c.l.b16 %v5767
        %v5784 = vunpack.c.l.b16 %v5768
        %v5785 = vunpack.c.l.b16 %v5769
        %v5786 = vpack.c.b16 %v5783, %v5782
        %v5787 = vpack.c.b16 %v5785, %v5784
        %v5791 = vsel %vm842, %v5761, 0
        %v5794 = vsel %vm842, %v5762, 0
        %v5797 = vsel %vm842, %v5763, 0
        %v5800 = vsel %vm842, %v5764, 0
        %5802 = vmatprep.subr.bf16.mxu0 0
        %5803 = vmatpush1.bf16.msra.mxu0 0
        %5804 = vmatprep.subr.bf16.mxu0 0
        %5805 = vmatpush1.bf16.msra.mxu0 0
        %5806 = vmatprep.subr.bf16.mxu0 0
        %5807 = vmatpush1.bf16.msra.mxu0 0
        %5808 = vmatprep.subr.bf16.mxu0 0
        %5809 = vmatpush1.bf16.msra.mxu0 0
        %5810 = vmatprep.subr.bf16.mxu0 0
        %5811 = vmatpush1.bf16.msra.mxu0 0
        %5812 = vmatprep.subr.bf16.mxu0 0
        %5813 = vmatpush1.bf16.msra.mxu0 0
        %5814 = vmatprep.subr.bf16.mxu0 0
        %5815 = vmatpush1.bf16.msra.mxu0 %v5787
        %5816 = vmatprep.subr.bf16.mxu0 0
        %5817 = vmatpush1.bf16.msra.mxu0 %v5786
        %5818 = vmatprep.subr.bf16.mxu0 0
        %5819 = vmatpush2.bf16.msra.mxu0 0
        %5820 = vmatprep.subr.bf16.mxu0 0
        %5821 = vmatpush2.bf16.msra.mxu0 0
        %5822 = vmatprep.subr.bf16.mxu0 0
        %5823 = vmatpush2.bf16.msra.mxu0 0
        %5824 = vmatprep.subr.bf16.mxu0 0
        %5825 = vmatpush2.bf16.msra.mxu0 0
        %5826 = vmatprep.subr.bf16.mxu0 0
        %5827 = vmatpush2.bf16.msra.mxu0 0
        %5828 = vmatprep.subr.bf16.mxu0 0
        %5829 = vmatpush2.bf16.msra.mxu0 0
        %5830 = vmatprep.subr.bf16.mxu0 0
        %5831 = vmatpush2.bf16.msra.mxu0 0
        %5832 = vmatprep.subr.bf16.mxu0 0
        %5833 = vmatpush2.bf16.msra.mxu0 0
        %5834 = vmatprep.mubr.bf16.mxu0 0
        %5835 = vmatmul.mubr.bf16.gmra.mxu0 %v5791
        %v5836 = vpop.f32.mrf.mxu0
        %v5837 = vadd.f32 %v5776, %v5836
        %v5838 = vpop.f32.mrf.mxu0
        %v5839 = vpop.f32.mrf.mxu0
        %v5840 = vadd.f32 %v5776, %v5839
        %v5841 = vpop.f32.mrf.mxu0
        %5842 = vmatprep.mubr.bf16.mxu0 0
        %5843 = vmatmul.mubr.bf16.gmra.mxu0 %v5794
        %v5844 = vpop.f32.mrf.mxu0
        %v5845 = vadd.f32 %v5776, %v5844
        %v5846 = vpop.f32.mrf.mxu0
        %v5847 = vpop.f32.mrf.mxu0
        %v5848 = vadd.f32 %v5776, %v5847
        %v5849 = vpop.f32.mrf.mxu0
        %5850 = vmatprep.mubr.bf16.mxu0 0
        %5851 = vmatmul.mubr.bf16.gmra.mxu0 %v5797
        %v5852 = vpop.f32.mrf.mxu0
        %v5853 = vadd.f32 %v5776, %v5852
        %v5854 = vpop.f32.mrf.mxu0
        %v5855 = vpop.f32.mrf.mxu0
        %v5856 = vadd.f32 %v5776, %v5855
        %v5857 = vpop.f32.mrf.mxu0
        %5858 = vmatprep.mubr.bf16.mxu0 0
        %5859 = vmatmul.mubr.bf16.gmra.mxu0 %v5800
        %v5860 = vpop.f32.mrf.mxu0
        %v5861 = vadd.f32 %v5776, %v5860
        %v5862 = vpop.f32.mrf.mxu0
        %v5863 = vpop.f32.mrf.mxu0
        %v5864 = vadd.f32 %v5776, %v5863
        %v5865 = vpop.f32.mrf.mxu0
        %5866 = vdwg.mxu0
        %s5867 = scalar_lea.vmem %s9, 16
        %v5868 = vld [vmem:[%s5867] sm:$0xf]
        %v5869 = vld [vmem:[%s5867 + $0x4] sm:$0xf]
        %v5870 = vld [vmem:[%s5867 + $0x8] sm:$0xf]
        %v5871 = vld [vmem:[%s5867 + $0xc] sm:$0xf]
        %v5872 = vpack.c.bf16 %v5837, %v5837
        %v5873 = vpack.c.bf16 %v5840, %v5840
        %v5874 = vpack.c.bf16 %v5845, %v5845
        %v5875 = vpack.c.bf16 %v5848, %v5848
        %v5876 = vpack.c.bf16 %v5853, %v5853
        %v5877 = vpack.c.bf16 %v5856, %v5856
        %v5878 = vpack.c.bf16 %v5861, %v5861
        %v5879 = vpack.c.bf16 %v5864, %v5864
        %5881 = vrot.lane.b32.xlu0 %v5872, 96
        %v5882 = vpop.permute.xlu0 %5881
        %v5884 = vsel %vm1233, %v5872, 0
        %v5887 = vsel %vm1233, %v5882, 0
        %5889 = vmatprep.subr.bf16.mxu0 0
        %5890 = vmatpush1.bf16.xpose.msra.mxu0 0
        %5891 = vmatprep.subr.bf16.mxu0 0
        %5892 = vmatpush1.bf16.xpose.msra.mxu0 0
        %5893 = vmatprep.subr.bf16.mxu0 0
        %5894 = vmatpush1.bf16.xpose.msra.mxu0 0
        %5895 = vmatprep.subr.bf16.mxu0 0
        %5896 = vmatpush1.bf16.xpose.msra.mxu0 0
        %5897 = vmatprep.subr.bf16.mxu0 0
        %5898 = vmatpush1.bf16.xpose.msra.mxu0 0
        %5899 = vmatprep.subr.bf16.mxu0 0
        %5900 = vmatpush1.bf16.xpose.msra.mxu0 0
        %5901 = vmatprep.subr.bf16.mxu0 0
        %5902 = vmatpush1.bf16.xpose.msra.mxu0 0
        %5903 = vmatprep.subr.bf16.mxu0 0
        %5904 = vmatpush1.bf16.xpose.msra.mxu0 %v5887
        %5905 = vmatprep.subr.bf16.mxu0 0
        %5906 = vmatpush2.bf16.xpose.msra.mxu0 0
        %5907 = vmatprep.subr.bf16.mxu0 0
        %5908 = vmatpush2.bf16.xpose.msra.mxu0 0
        %5909 = vmatprep.subr.bf16.mxu0 0
        %5910 = vmatpush2.bf16.xpose.msra.mxu0 0
        %5911 = vmatprep.subr.bf16.mxu0 0
        %5912 = vmatpush2.bf16.xpose.msra.mxu0 0
        %5913 = vmatprep.subr.bf16.mxu0 0
        %5914 = vmatpush2.bf16.xpose.msra.mxu0 0
        %5915 = vmatprep.subr.bf16.mxu0 0
        %5916 = vmatpush2.bf16.xpose.msra.mxu0 0
        %5917 = vmatprep.subr.bf16.mxu0 0
        %5918 = vmatpush2.bf16.xpose.msra.mxu0 0
        %5919 = vmatprep.subr.bf16.mxu0 0
        %5920 = vmatpush2.bf16.xpose.msra.mxu0 0
        %5921 = vmatprep.mubr.bf16.mxu0 0
        %5922 = vmatmul.mubr.bf16.gmra.mxu0 %v5884
        %v5923 = vpop.f32.mrf.mxu0
        %v5924 = vadd.f32 0.0, %v5923
        %v5925 = vpop.f32.mrf.mxu0
        %v5926 = vpop.f32.mrf.mxu0
        %v5927 = vpop.f32.mrf.mxu0
        %5928 = vdwg.mxu0
        %5930 = vrot.lane.b32.xlu0 %v5873, 96
        %v5931 = vpop.permute.xlu0 %5930
        %v5933 = vsel %vm1233, %v5873, 0
        %v5936 = vsel %vm1233, %v5931, 0
        %5938 = vmatprep.subr.bf16.mxu0 0
        %5939 = vmatpush1.bf16.xpose.msra.mxu0 0
        %5940 = vmatprep.subr.bf16.mxu0 0
        %5941 = vmatpush1.bf16.xpose.msra.mxu0 0
        %5942 = vmatprep.subr.bf16.mxu0 0
        %5943 = vmatpush1.bf16.xpose.msra.mxu0 0
        %5944 = vmatprep.subr.bf16.mxu0 0
        %5945 = vmatpush1.bf16.xpose.msra.mxu0 0
        %5946 = vmatprep.subr.bf16.mxu0 0
        %5947 = vmatpush1.bf16.xpose.msra.mxu0 0
        %5948 = vmatprep.subr.bf16.mxu0 0
        %5949 = vmatpush1.bf16.xpose.msra.mxu0 0
        %5950 = vmatprep.subr.bf16.mxu0 0
        %5951 = vmatpush1.bf16.xpose.msra.mxu0 0
        %5952 = vmatprep.subr.bf16.mxu0 0
        %5953 = vmatpush1.bf16.xpose.msra.mxu0 %v5936
        %5954 = vmatprep.subr.bf16.mxu0 0
        %5955 = vmatpush2.bf16.xpose.msra.mxu0 0
        %5956 = vmatprep.subr.bf16.mxu0 0
        %5957 = vmatpush2.bf16.xpose.msra.mxu0 0
        %5958 = vmatprep.subr.bf16.mxu0 0
        %5959 = vmatpush2.bf16.xpose.msra.mxu0 0
        %5960 = vmatprep.subr.bf16.mxu0 0
        %5961 = vmatpush2.bf16.xpose.msra.mxu0 0
        %5962 = vmatprep.subr.bf16.mxu0 0
        %5963 = vmatpush2.bf16.xpose.msra.mxu0 0
        %5964 = vmatprep.subr.bf16.mxu0 0
        %5965 = vmatpush2.bf16.xpose.msra.mxu0 0
        %5966 = vmatprep.subr.bf16.mxu0 0
        %5967 = vmatpush2.bf16.xpose.msra.mxu0 0
        %5968 = vmatprep.subr.bf16.mxu0 0
        %5969 = vmatpush2.bf16.xpose.msra.mxu0 0
        %5970 = vmatprep.mubr.bf16.mxu0 0
        %5971 = vmatmul.mubr.bf16.gmra.mxu0 %v5933
        %v5972 = vpop.f32.mrf.mxu0
        %v5973 = vadd.f32 0.0, %v5972
        %v5974 = vpop.f32.mrf.mxu0
        %v5975 = vpop.f32.mrf.mxu0
        %v5976 = vpop.f32.mrf.mxu0
        %5977 = vdwg.mxu0
        %5979 = vrot.lane.b32.xlu0 %v5874, 96
        %v5980 = vpop.permute.xlu0 %5979
        %v5982 = vsel %vm1233, %v5874, 0
        %v5985 = vsel %vm1233, %v5980, 0
        %5987 = vmatprep.subr.bf16.mxu0 0
        %5988 = vmatpush1.bf16.xpose.msra.mxu0 0
        %5989 = vmatprep.subr.bf16.mxu0 0
        %5990 = vmatpush1.bf16.xpose.msra.mxu0 0
        %5991 = vmatprep.subr.bf16.mxu0 0
        %5992 = vmatpush1.bf16.xpose.msra.mxu0 0
        %5993 = vmatprep.subr.bf16.mxu0 0
        %5994 = vmatpush1.bf16.xpose.msra.mxu0 0
        %5995 = vmatprep.subr.bf16.mxu0 0
        %5996 = vmatpush1.bf16.xpose.msra.mxu0 0
        %5997 = vmatprep.subr.bf16.mxu0 0
        %5998 = vmatpush1.bf16.xpose.msra.mxu0 0
        %5999 = vmatprep.subr.bf16.mxu0 0
        %6000 = vmatpush1.bf16.xpose.msra.mxu0 0
        %6001 = vmatprep.subr.bf16.mxu0 0
        %6002 = vmatpush1.bf16.xpose.msra.mxu0 %v5985
        %6003 = vmatprep.subr.bf16.mxu0 0
        %6004 = vmatpush2.bf16.xpose.msra.mxu0 0
        %6005 = vmatprep.subr.bf16.mxu0 0
        %6006 = vmatpush2.bf16.xpose.msra.mxu0 0
        %6007 = vmatprep.subr.bf16.mxu0 0
        %6008 = vmatpush2.bf16.xpose.msra.mxu0 0
        %6009 = vmatprep.subr.bf16.mxu0 0
        %6010 = vmatpush2.bf16.xpose.msra.mxu0 0
        %6011 = vmatprep.subr.bf16.mxu0 0
        %6012 = vmatpush2.bf16.xpose.msra.mxu0 0
        %6013 = vmatprep.subr.bf16.mxu0 0
        %6014 = vmatpush2.bf16.xpose.msra.mxu0 0
        %6015 = vmatprep.subr.bf16.mxu0 0
        %6016 = vmatpush2.bf16.xpose.msra.mxu0 0
        %6017 = vmatprep.subr.bf16.mxu0 0
        %6018 = vmatpush2.bf16.xpose.msra.mxu0 0
        %6019 = vmatprep.mubr.bf16.mxu0 0
        %6020 = vmatmul.mubr.bf16.gmra.mxu0 %v5982
        %v6021 = vpop.f32.mrf.mxu0
        %v6022 = vadd.f32 0.0, %v6021
        %v6023 = vpop.f32.mrf.mxu0
        %v6024 = vpop.f32.mrf.mxu0
        %v6025 = vpop.f32.mrf.mxu0
        %6026 = vdwg.mxu0
        %6028 = vrot.lane.b32.xlu0 %v5875, 96
        %v6029 = vpop.permute.xlu0 %6028
        %v6031 = vsel %vm1233, %v5875, 0
        %v6034 = vsel %vm1233, %v6029, 0
        %6036 = vmatprep.subr.bf16.mxu0 0
        %6037 = vmatpush1.bf16.xpose.msra.mxu0 0
        %6038 = vmatprep.subr.bf16.mxu0 0
        %6039 = vmatpush1.bf16.xpose.msra.mxu0 0
        %6040 = vmatprep.subr.bf16.mxu0 0
        %6041 = vmatpush1.bf16.xpose.msra.mxu0 0
        %6042 = vmatprep.subr.bf16.mxu0 0
        %6043 = vmatpush1.bf16.xpose.msra.mxu0 0
        %6044 = vmatprep.subr.bf16.mxu0 0
        %6045 = vmatpush1.bf16.xpose.msra.mxu0 0
        %6046 = vmatprep.subr.bf16.mxu0 0
        %6047 = vmatpush1.bf16.xpose.msra.mxu0 0
        %6048 = vmatprep.subr.bf16.mxu0 0
        %6049 = vmatpush1.bf16.xpose.msra.mxu0 0
        %6050 = vmatprep.subr.bf16.mxu0 0
        %6051 = vmatpush1.bf16.xpose.msra.mxu0 %v6034
        %6052 = vmatprep.subr.bf16.mxu0 0
        %6053 = vmatpush2.bf16.xpose.msra.mxu0 0
        %6054 = vmatprep.subr.bf16.mxu0 0
        %6055 = vmatpush2.bf16.xpose.msra.mxu0 0
        %6056 = vmatprep.subr.bf16.mxu0 0
        %6057 = vmatpush2.bf16.xpose.msra.mxu0 0
        %6058 = vmatprep.subr.bf16.mxu0 0
        %6059 = vmatpush2.bf16.xpose.msra.mxu0 0
        %6060 = vmatprep.subr.bf16.mxu0 0
        %6061 = vmatpush2.bf16.xpose.msra.mxu0 0
        %6062 = vmatprep.subr.bf16.mxu0 0
        %6063 = vmatpush2.bf16.xpose.msra.mxu0 0
        %6064 = vmatprep.subr.bf16.mxu0 0
        %6065 = vmatpush2.bf16.xpose.msra.mxu0 0
        %6066 = vmatprep.subr.bf16.mxu0 0
        %6067 = vmatpush2.bf16.xpose.msra.mxu0 0
        %6068 = vmatprep.mubr.bf16.mxu0 0
        %6069 = vmatmul.mubr.bf16.gmra.mxu0 %v6031
        %v6070 = vpop.f32.mrf.mxu0
        %v6071 = vadd.f32 0.0, %v6070
        %v6072 = vpop.f32.mrf.mxu0
        %v6073 = vpop.f32.mrf.mxu0
        %v6074 = vpop.f32.mrf.mxu0
        %6075 = vdwg.mxu0
        %6077 = vrot.lane.b32.xlu0 %v5876, 96
        %v6078 = vpop.permute.xlu0 %6077
        %v6080 = vsel %vm1233, %v5876, 0
        %v6083 = vsel %vm1233, %v6078, 0
        %6085 = vmatprep.subr.bf16.mxu0 0
        %6086 = vmatpush1.bf16.xpose.msra.mxu0 0
        %6087 = vmatprep.subr.bf16.mxu0 0
        %6088 = vmatpush1.bf16.xpose.msra.mxu0 0
        %6089 = vmatprep.subr.bf16.mxu0 0
        %6090 = vmatpush1.bf16.xpose.msra.mxu0 0
        %6091 = vmatprep.subr.bf16.mxu0 0
        %6092 = vmatpush1.bf16.xpose.msra.mxu0 0
        %6093 = vmatprep.subr.bf16.mxu0 0
        %6094 = vmatpush1.bf16.xpose.msra.mxu0 0
        %6095 = vmatprep.subr.bf16.mxu0 0
        %6096 = vmatpush1.bf16.xpose.msra.mxu0 0
        %6097 = vmatprep.subr.bf16.mxu0 0
        %6098 = vmatpush1.bf16.xpose.msra.mxu0 0
        %6099 = vmatprep.subr.bf16.mxu0 0
        %6100 = vmatpush1.bf16.xpose.msra.mxu0 %v6083
        %6101 = vmatprep.subr.bf16.mxu0 0
        %6102 = vmatpush2.bf16.xpose.msra.mxu0 0
        %6103 = vmatprep.subr.bf16.mxu0 0
        %6104 = vmatpush2.bf16.xpose.msra.mxu0 0
        %6105 = vmatprep.subr.bf16.mxu0 0
        %6106 = vmatpush2.bf16.xpose.msra.mxu0 0
        %6107 = vmatprep.subr.bf16.mxu0 0
        %6108 = vmatpush2.bf16.xpose.msra.mxu0 0
        %6109 = vmatprep.subr.bf16.mxu0 0
        %6110 = vmatpush2.bf16.xpose.msra.mxu0 0
        %6111 = vmatprep.subr.bf16.mxu0 0
        %6112 = vmatpush2.bf16.xpose.msra.mxu0 0
        %6113 = vmatprep.subr.bf16.mxu0 0
        %6114 = vmatpush2.bf16.xpose.msra.mxu0 0
        %6115 = vmatprep.subr.bf16.mxu0 0
        %6116 = vmatpush2.bf16.xpose.msra.mxu0 0
        %6117 = vmatprep.mubr.bf16.mxu0 0
        %6118 = vmatmul.mubr.bf16.gmra.mxu0 %v6080
        %v6119 = vpop.f32.mrf.mxu0
        %v6120 = vadd.f32 0.0, %v6119
        %v6121 = vpop.f32.mrf.mxu0
        %v6122 = vpop.f32.mrf.mxu0
        %v6123 = vpop.f32.mrf.mxu0
        %6124 = vdwg.mxu0
        %6126 = vrot.lane.b32.xlu0 %v5877, 96
        %v6127 = vpop.permute.xlu0 %6126
        %v6129 = vsel %vm1233, %v5877, 0
        %v6132 = vsel %vm1233, %v6127, 0
        %6134 = vmatprep.subr.bf16.mxu0 0
        %6135 = vmatpush1.bf16.xpose.msra.mxu0 0
        %6136 = vmatprep.subr.bf16.mxu0 0
        %6137 = vmatpush1.bf16.xpose.msra.mxu0 0
        %6138 = vmatprep.subr.bf16.mxu0 0
        %6139 = vmatpush1.bf16.xpose.msra.mxu0 0
        %6140 = vmatprep.subr.bf16.mxu0 0
        %6141 = vmatpush1.bf16.xpose.msra.mxu0 0
        %6142 = vmatprep.subr.bf16.mxu0 0
        %6143 = vmatpush1.bf16.xpose.msra.mxu0 0
        %6144 = vmatprep.subr.bf16.mxu0 0
        %6145 = vmatpush1.bf16.xpose.msra.mxu0 0
        %6146 = vmatprep.subr.bf16.mxu0 0
        %6147 = vmatpush1.bf16.xpose.msra.mxu0 0
        %6148 = vmatprep.subr.bf16.mxu0 0
        %6149 = vmatpush1.bf16.xpose.msra.mxu0 %v6132
        %6150 = vmatprep.subr.bf16.mxu0 0
        %6151 = vmatpush2.bf16.xpose.msra.mxu0 0
        %6152 = vmatprep.subr.bf16.mxu0 0
        %6153 = vmatpush2.bf16.xpose.msra.mxu0 0
        %6154 = vmatprep.subr.bf16.mxu0 0
        %6155 = vmatpush2.bf16.xpose.msra.mxu0 0
        %6156 = vmatprep.subr.bf16.mxu0 0
        %6157 = vmatpush2.bf16.xpose.msra.mxu0 0
        %6158 = vmatprep.subr.bf16.mxu0 0
        %6159 = vmatpush2.bf16.xpose.msra.mxu0 0
        %6160 = vmatprep.subr.bf16.mxu0 0
        %6161 = vmatpush2.bf16.xpose.msra.mxu0 0
        %6162 = vmatprep.subr.bf16.mxu0 0
        %6163 = vmatpush2.bf16.xpose.msra.mxu0 0
        %6164 = vmatprep.subr.bf16.mxu0 0
        %6165 = vmatpush2.bf16.xpose.msra.mxu0 0
        %6166 = vmatprep.mubr.bf16.mxu0 0
        %6167 = vmatmul.mubr.bf16.gmra.mxu0 %v6129
        %v6168 = vpop.f32.mrf.mxu0
        %v6169 = vadd.f32 0.0, %v6168
        %v6170 = vpop.f32.mrf.mxu0
        %v6171 = vpop.f32.mrf.mxu0
        %v6172 = vpop.f32.mrf.mxu0
        %6173 = vdwg.mxu0
        %6175 = vrot.lane.b32.xlu0 %v5878, 96
        %v6176 = vpop.permute.xlu0 %6175
        %v6178 = vsel %vm1233, %v5878, 0
        %v6181 = vsel %vm1233, %v6176, 0
        %6183 = vmatprep.subr.bf16.mxu0 0
        %6184 = vmatpush1.bf16.xpose.msra.mxu0 0
        %6185 = vmatprep.subr.bf16.mxu0 0
        %6186 = vmatpush1.bf16.xpose.msra.mxu0 0
        %6187 = vmatprep.subr.bf16.mxu0 0
        %6188 = vmatpush1.bf16.xpose.msra.mxu0 0
        %6189 = vmatprep.subr.bf16.mxu0 0
        %6190 = vmatpush1.bf16.xpose.msra.mxu0 0
        %6191 = vmatprep.subr.bf16.mxu0 0
        %6192 = vmatpush1.bf16.xpose.msra.mxu0 0
        %6193 = vmatprep.subr.bf16.mxu0 0
        %6194 = vmatpush1.bf16.xpose.msra.mxu0 0
        %6195 = vmatprep.subr.bf16.mxu0 0
        %6196 = vmatpush1.bf16.xpose.msra.mxu0 0
        %6197 = vmatprep.subr.bf16.mxu0 0
        %6198 = vmatpush1.bf16.xpose.msra.mxu0 %v6181
        %6199 = vmatprep.subr.bf16.mxu0 0
        %6200 = vmatpush2.bf16.xpose.msra.mxu0 0
        %6201 = vmatprep.subr.bf16.mxu0 0
        %6202 = vmatpush2.bf16.xpose.msra.mxu0 0
        %6203 = vmatprep.subr.bf16.mxu0 0
        %6204 = vmatpush2.bf16.xpose.msra.mxu0 0
        %6205 = vmatprep.subr.bf16.mxu0 0
        %6206 = vmatpush2.bf16.xpose.msra.mxu0 0
        %6207 = vmatprep.subr.bf16.mxu0 0
        %6208 = vmatpush2.bf16.xpose.msra.mxu0 0
        %6209 = vmatprep.subr.bf16.mxu0 0
        %6210 = vmatpush2.bf16.xpose.msra.mxu0 0
        %6211 = vmatprep.subr.bf16.mxu0 0
        %6212 = vmatpush2.bf16.xpose.msra.mxu0 0
        %6213 = vmatprep.subr.bf16.mxu0 0
        %6214 = vmatpush2.bf16.xpose.msra.mxu0 0
        %6215 = vmatprep.mubr.bf16.mxu0 0
        %6216 = vmatmul.mubr.bf16.gmra.mxu0 %v6178
        %v6217 = vpop.f32.mrf.mxu0
        %v6218 = vadd.f32 0.0, %v6217
        %v6219 = vpop.f32.mrf.mxu0
        %v6220 = vpop.f32.mrf.mxu0
        %v6221 = vpop.f32.mrf.mxu0
        %6222 = vdwg.mxu0
        %6224 = vrot.lane.b32.xlu0 %v5879, 96
        %v6225 = vpop.permute.xlu0 %6224
        %v6227 = vsel %vm1233, %v5879, 0
        %v6230 = vsel %vm1233, %v6225, 0
        %6232 = vmatprep.subr.bf16.mxu0 0
        %6233 = vmatpush1.bf16.xpose.msra.mxu0 0
        %6234 = vmatprep.subr.bf16.mxu0 0
        %6235 = vmatpush1.bf16.xpose.msra.mxu0 0
        %6236 = vmatprep.subr.bf16.mxu0 0
        %6237 = vmatpush1.bf16.xpose.msra.mxu0 0
        %6238 = vmatprep.subr.bf16.mxu0 0
        %6239 = vmatpush1.bf16.xpose.msra.mxu0 0
        %6240 = vmatprep.subr.bf16.mxu0 0
        %6241 = vmatpush1.bf16.xpose.msra.mxu0 0
        %6242 = vmatprep.subr.bf16.mxu0 0
        %6243 = vmatpush1.bf16.xpose.msra.mxu0 0
        %6244 = vmatprep.subr.bf16.mxu0 0
        %6245 = vmatpush1.bf16.xpose.msra.mxu0 0
        %6246 = vmatprep.subr.bf16.mxu0 0
        %6247 = vmatpush1.bf16.xpose.msra.mxu0 %v6230
        %6248 = vmatprep.subr.bf16.mxu0 0
        %6249 = vmatpush2.bf16.xpose.msra.mxu0 0
        %6250 = vmatprep.subr.bf16.mxu0 0
        %6251 = vmatpush2.bf16.xpose.msra.mxu0 0
        %6252 = vmatprep.subr.bf16.mxu0 0
        %6253 = vmatpush2.bf16.xpose.msra.mxu0 0
        %6254 = vmatprep.subr.bf16.mxu0 0
        %6255 = vmatpush2.bf16.xpose.msra.mxu0 0
        %6256 = vmatprep.subr.bf16.mxu0 0
        %6257 = vmatpush2.bf16.xpose.msra.mxu0 0
        %6258 = vmatprep.subr.bf16.mxu0 0
        %6259 = vmatpush2.bf16.xpose.msra.mxu0 0
        %6260 = vmatprep.subr.bf16.mxu0 0
        %6261 = vmatpush2.bf16.xpose.msra.mxu0 0
        %6262 = vmatprep.subr.bf16.mxu0 0
        %6263 = vmatpush2.bf16.xpose.msra.mxu0 0
        %6264 = vmatprep.mubr.bf16.mxu0 0
        %6265 = vmatmul.mubr.bf16.gmra.mxu0 %v6227
        %v6266 = vpop.f32.mrf.mxu0
        %v6267 = vadd.f32 0.0, %v6266
        %v6268 = vpop.f32.mrf.mxu0
        %v6269 = vpop.f32.mrf.mxu0
        %v6270 = vpop.f32.mrf.mxu0
        %6271 = vdwg.mxu0
        %v6272 = vmul.f32 %v5924, 0.35355338
        %v6273 = vmul.f32 %v5973, 0.35355338
        %v6274 = vmul.f32 %v6022, 0.35355338
        %v6275 = vmul.f32 %v6071, 0.35355338
        %v6276 = vmul.f32 %v6120, 0.35355338
        %v6277 = vmul.f32 %v6169, 0.35355338
        %v6278 = vmul.f32 %v6218, 0.35355338
        %v6279 = vmul.f32 %v6267, 0.35355338
        %v6280 = vadd.f32 %v6272, %v979
        %v6281 = vadd.f32 %v6273, %v979
        %v6282 = vadd.f32 %v6274, %v979
        %v6283 = vadd.f32 %v6275, %v979
        %v6284 = vadd.f32 %v6276, %v979
        %v6285 = vadd.f32 %v6277, %v979
        %v6286 = vadd.f32 %v6278, %v979
        %v6287 = vadd.f32 %v6279, %v979
        %v6288 = vsel %vm1233, %v6280, -inf
        %6289 = vmax.xlane.f32.xlu0 %v6288
        %v6290 = vpop.xlane.xlu0 %6289
        %v6291 = vsel %vm1233, %v6281, -inf
        %6292 = vmax.xlane.f32.xlu0 %v6291
        %v6293 = vpop.xlane.xlu0 %6292
        %v6294 = vsel %vm1233, %v6282, -inf
        %6295 = vmax.xlane.f32.xlu0 %v6294
        %v6296 = vpop.xlane.xlu0 %6295
        %v6297 = vsel %vm1233, %v6283, -inf
        %6298 = vmax.xlane.f32.xlu0 %v6297
        %v6299 = vpop.xlane.xlu0 %6298
        %v6300 = vsel %vm1233, %v6284, -inf
        %6301 = vmax.xlane.f32.xlu0 %v6300
        %v6302 = vpop.xlane.xlu0 %6301
        %v6303 = vsel %vm1233, %v6285, -inf
        %6304 = vmax.xlane.f32.xlu0 %v6303
        %v6305 = vpop.xlane.xlu0 %6304
        %v6306 = vsel %vm1233, %v6286, -inf
        %6307 = vmax.xlane.f32.xlu0 %v6306
        %v6308 = vpop.xlane.xlu0 %6307
        %v6309 = vsel %vm1233, %v6287, -inf
        %6310 = vmax.xlane.f32.xlu0 %v6309
        %v6311 = vpop.xlane.xlu0 %6310
        %v6312 = vsub.f32 %v6280, %v6290
        %v6313 = vsub.f32 %v6281, %v6293
        %v6314 = vsub.f32 %v6282, %v6296
        %v6315 = vsub.f32 %v6283, %v6299
        %v6316 = vsub.f32 %v6284, %v6302
        %v6317 = vsub.f32 %v6285, %v6305
        %v6318 = vsub.f32 %v6286, %v6308
        %v6319 = vsub.f32 %v6287, %v6311
        %v6320 = vmul.f32 %v6312, 1.442695
        %v6321 = vpow.pop %v6320
        %v6322 = vmul.f32 %v6313, 1.442695
        %v6323 = vpow.pop %v6322
        %v6324 = vmul.f32 %v6314, 1.442695
        %v6325 = vpow.pop %v6324
        %v6326 = vmul.f32 %v6315, 1.442695
        %v6327 = vpow.pop %v6326
        %v6328 = vmul.f32 %v6316, 1.442695
        %v6329 = vpow.pop %v6328
        %v6330 = vmul.f32 %v6317, 1.442695
        %v6331 = vpow.pop %v6330
        %v6332 = vmul.f32 %v6318, 1.442695
        %v6333 = vpow.pop %v6332
        %v6334 = vmul.f32 %v6319, 1.442695
        %v6335 = vpow.pop %v6334
        %v6336 = vsel %vm1233, %v6321, 0.0
        %6337 = vadd.xlane.f32.xlu0 %v6336
        %v6338 = vpop.xlane.xlu0 %6337
        %v6339 = vsel %vm1233, %v6323, 0.0
        %6340 = vadd.xlane.f32.xlu0 %v6339
        %v6341 = vpop.xlane.xlu0 %6340
        %v6342 = vsel %vm1233, %v6325, 0.0
        %6343 = vadd.xlane.f32.xlu0 %v6342
        %v6344 = vpop.xlane.xlu0 %6343
        %v6345 = vsel %vm1233, %v6327, 0.0
        %6346 = vadd.xlane.f32.xlu0 %v6345
        %v6347 = vpop.xlane.xlu0 %6346
        %v6348 = vsel %vm1233, %v6329, 0.0
        %6349 = vadd.xlane.f32.xlu0 %v6348
        %v6350 = vpop.xlane.xlu0 %6349
        %v6351 = vsel %vm1233, %v6331, 0.0
        %6352 = vadd.xlane.f32.xlu0 %v6351
        %v6353 = vpop.xlane.xlu0 %6352
        %v6354 = vsel %vm1233, %v6333, 0.0
        %6355 = vadd.xlane.f32.xlu0 %v6354
        %v6356 = vpop.xlane.xlu0 %6355
        %v6357 = vsel %vm1233, %v6335, 0.0
        %6358 = vadd.xlane.f32.xlu0 %v6357
        %v6359 = vpop.xlane.xlu0 %6358
        %v6360 = vrcp.pop %v6338
        %v6361 = vrcp.pop %v6341
        %v6362 = vrcp.pop %v6344
        %v6363 = vrcp.pop %v6347
        %v6364 = vrcp.pop %v6350
        %v6365 = vrcp.pop %v6353
        %v6366 = vrcp.pop %v6356
        %v6367 = vrcp.pop %v6359
        %v6368 = vmul.f32 %v6321, %v6360
        %v6369 = vmul.f32 %v6323, %v6361
        %v6370 = vmul.f32 %v6325, %v6362
        %v6371 = vmul.f32 %v6327, %v6363
        %v6372 = vmul.f32 %v6329, %v6364
        %v6373 = vmul.f32 %v6331, %v6365
        %v6374 = vmul.f32 %v6333, %v6366
        %v6375 = vmul.f32 %v6335, %v6367
        %v6376 = vpack.c.bf16 %v6368, %v6368
        %v6377 = vpack.c.bf16 %v6369, %v6369
        %v6378 = vpack.c.bf16 %v6370, %v6370
        %v6379 = vpack.c.bf16 %v6371, %v6371
        %v6380 = vpack.c.bf16 %v6372, %v6372
        %v6381 = vpack.c.bf16 %v6373, %v6373
        %v6382 = vpack.c.bf16 %v6374, %v6374
        %v6383 = vpack.c.bf16 %v6375, %v6375
        %6384 = vrot.lane.b32.xlu0 %v5872, 64
        %v6385 = vpop.permute.xlu0 %6384
        %v6387 = vsel %vm1233, %v6376, 0
        %v6390 = vsel %vm1740, %v6385, 0
        %6392 = vmatprep.subr.bf16.mxu0 0
        %6393 = vmatpush1.bf16.msra.mxu0 0
        %6394 = vmatprep.subr.bf16.mxu0 0
        %6395 = vmatpush1.bf16.msra.mxu0 0
        %6396 = vmatprep.subr.bf16.mxu0 0
        %6397 = vmatpush1.bf16.msra.mxu0 0
        %6398 = vmatprep.subr.bf16.mxu0 0
        %6399 = vmatpush1.bf16.msra.mxu0 0
        %6400 = vmatprep.subr.bf16.mxu0 0
        %6401 = vmatpush1.bf16.msra.mxu0 0
        %6402 = vmatprep.subr.bf16.mxu0 0
        %6403 = vmatpush1.bf16.msra.mxu0 0
        %6404 = vmatprep.subr.bf16.mxu0 0
        %6405 = vmatpush1.bf16.msra.mxu0 0
        %6406 = vmatprep.subr.bf16.mxu0 0
        %6407 = vmatpush1.bf16.msra.mxu0 %v6390
        %6408 = vmatprep.subr.bf16.mxu0 0
        %6409 = vmatpush2.bf16.msra.mxu0 0
        %6410 = vmatprep.subr.bf16.mxu0 0
        %6411 = vmatpush2.bf16.msra.mxu0 0
        %6412 = vmatprep.subr.bf16.mxu0 0
        %6413 = vmatpush2.bf16.msra.mxu0 0
        %6414 = vmatprep.subr.bf16.mxu0 0
        %6415 = vmatpush2.bf16.msra.mxu0 0
        %6416 = vmatprep.subr.bf16.mxu0 0
        %6417 = vmatpush2.bf16.msra.mxu0 0
        %6418 = vmatprep.subr.bf16.mxu0 0
        %6419 = vmatpush2.bf16.msra.mxu0 0
        %6420 = vmatprep.subr.bf16.mxu0 0
        %6421 = vmatpush2.bf16.msra.mxu0 0
        %6422 = vmatprep.subr.bf16.mxu0 0
        %6423 = vmatpush2.bf16.msra.mxu0 0
        %6424 = vmatprep.mubr.bf16.mxu0 0
        %6425 = vmatmul.mubr.bf16.gmra.mxu0 %v6387
        %v6426 = vpop.f32.mrf.mxu0
        %v6427 = vadd.f32 0.0, %v6426
        %v6428 = vpop.f32.mrf.mxu0
        %v6429 = vpop.f32.mrf.mxu0
        %v6430 = vpop.f32.mrf.mxu0
        %6431 = vdwg.mxu0
        %6432 = vrot.lane.b32.xlu0 %v5873, 64
        %v6433 = vpop.permute.xlu0 %6432
        %v6435 = vsel %vm1233, %v6377, 0
        %v6438 = vsel %vm1740, %v6433, 0
        %6440 = vmatprep.subr.bf16.mxu0 0
        %6441 = vmatpush1.bf16.msra.mxu0 0
        %6442 = vmatprep.subr.bf16.mxu0 0
        %6443 = vmatpush1.bf16.msra.mxu0 0
        %6444 = vmatprep.subr.bf16.mxu0 0
        %6445 = vmatpush1.bf16.msra.mxu0 0
        %6446 = vmatprep.subr.bf16.mxu0 0
        %6447 = vmatpush1.bf16.msra.mxu0 0
        %6448 = vmatprep.subr.bf16.mxu0 0
        %6449 = vmatpush1.bf16.msra.mxu0 0
        %6450 = vmatprep.subr.bf16.mxu0 0
        %6451 = vmatpush1.bf16.msra.mxu0 0
        %6452 = vmatprep.subr.bf16.mxu0 0
        %6453 = vmatpush1.bf16.msra.mxu0 0
        %6454 = vmatprep.subr.bf16.mxu0 0
        %6455 = vmatpush1.bf16.msra.mxu0 %v6438
        %6456 = vmatprep.subr.bf16.mxu0 0
        %6457 = vmatpush2.bf16.msra.mxu0 0
        %6458 = vmatprep.subr.bf16.mxu0 0
        %6459 = vmatpush2.bf16.msra.mxu0 0
        %6460 = vmatprep.subr.bf16.mxu0 0
        %6461 = vmatpush2.bf16.msra.mxu0 0
        %6462 = vmatprep.subr.bf16.mxu0 0
        %6463 = vmatpush2.bf16.msra.mxu0 0
        %6464 = vmatprep.subr.bf16.mxu0 0
        %6465 = vmatpush2.bf16.msra.mxu0 0
        %6466 = vmatprep.subr.bf16.mxu0 0
        %6467 = vmatpush2.bf16.msra.mxu0 0
        %6468 = vmatprep.subr.bf16.mxu0 0
        %6469 = vmatpush2.bf16.msra.mxu0 0
        %6470 = vmatprep.subr.bf16.mxu0 0
        %6471 = vmatpush2.bf16.msra.mxu0 0
        %6472 = vmatprep.mubr.bf16.mxu0 0
        %6473 = vmatmul.mubr.bf16.gmra.mxu0 %v6435
        %v6474 = vpop.f32.mrf.mxu0
        %v6475 = vadd.f32 0.0, %v6474
        %v6476 = vpop.f32.mrf.mxu0
        %v6477 = vpop.f32.mrf.mxu0
        %v6478 = vpop.f32.mrf.mxu0
        %6479 = vdwg.mxu0
        %6480 = vrot.lane.b32.xlu0 %v5874, 64
        %v6481 = vpop.permute.xlu0 %6480
        %v6483 = vsel %vm1233, %v6378, 0
        %v6486 = vsel %vm1740, %v6481, 0
        %6488 = vmatprep.subr.bf16.mxu0 0
        %6489 = vmatpush1.bf16.msra.mxu0 0
        %6490 = vmatprep.subr.bf16.mxu0 0
        %6491 = vmatpush1.bf16.msra.mxu0 0
        %6492 = vmatprep.subr.bf16.mxu0 0
        %6493 = vmatpush1.bf16.msra.mxu0 0
        %6494 = vmatprep.subr.bf16.mxu0 0
        %6495 = vmatpush1.bf16.msra.mxu0 0
        %6496 = vmatprep.subr.bf16.mxu0 0
        %6497 = vmatpush1.bf16.msra.mxu0 0
        %6498 = vmatprep.subr.bf16.mxu0 0
        %6499 = vmatpush1.bf16.msra.mxu0 0
        %6500 = vmatprep.subr.bf16.mxu0 0
        %6501 = vmatpush1.bf16.msra.mxu0 0
        %6502 = vmatprep.subr.bf16.mxu0 0
        %6503 = vmatpush1.bf16.msra.mxu0 %v6486
        %6504 = vmatprep.subr.bf16.mxu0 0
        %6505 = vmatpush2.bf16.msra.mxu0 0
        %6506 = vmatprep.subr.bf16.mxu0 0
        %6507 = vmatpush2.bf16.msra.mxu0 0
        %6508 = vmatprep.subr.bf16.mxu0 0
        %6509 = vmatpush2.bf16.msra.mxu0 0
        %6510 = vmatprep.subr.bf16.mxu0 0
        %6511 = vmatpush2.bf16.msra.mxu0 0
        %6512 = vmatprep.subr.bf16.mxu0 0
        %6513 = vmatpush2.bf16.msra.mxu0 0
        %6514 = vmatprep.subr.bf16.mxu0 0
        %6515 = vmatpush2.bf16.msra.mxu0 0
        %6516 = vmatprep.subr.bf16.mxu0 0
        %6517 = vmatpush2.bf16.msra.mxu0 0
        %6518 = vmatprep.subr.bf16.mxu0 0
        %6519 = vmatpush2.bf16.msra.mxu0 0
        %6520 = vmatprep.mubr.bf16.mxu0 0
        %6521 = vmatmul.mubr.bf16.gmra.mxu0 %v6483
        %v6522 = vpop.f32.mrf.mxu0
        %v6523 = vadd.f32 0.0, %v6522
        %v6524 = vpop.f32.mrf.mxu0
        %v6525 = vpop.f32.mrf.mxu0
        %v6526 = vpop.f32.mrf.mxu0
        %6527 = vdwg.mxu0
        %6528 = vrot.lane.b32.xlu0 %v5875, 64
        %v6529 = vpop.permute.xlu0 %6528
        %v6531 = vsel %vm1233, %v6379, 0
        %v6534 = vsel %vm1740, %v6529, 0
        %6536 = vmatprep.subr.bf16.mxu0 0
        %6537 = vmatpush1.bf16.msra.mxu0 0
        %6538 = vmatprep.subr.bf16.mxu0 0
        %6539 = vmatpush1.bf16.msra.mxu0 0
        %6540 = vmatprep.subr.bf16.mxu0 0
        %6541 = vmatpush1.bf16.msra.mxu0 0
        %6542 = vmatprep.subr.bf16.mxu0 0
        %6543 = vmatpush1.bf16.msra.mxu0 0
        %6544 = vmatprep.subr.bf16.mxu0 0
        %6545 = vmatpush1.bf16.msra.mxu0 0
        %6546 = vmatprep.subr.bf16.mxu0 0
        %6547 = vmatpush1.bf16.msra.mxu0 0
        %6548 = vmatprep.subr.bf16.mxu0 0
        %6549 = vmatpush1.bf16.msra.mxu0 0
        %6550 = vmatprep.subr.bf16.mxu0 0
        %6551 = vmatpush1.bf16.msra.mxu0 %v6534
        %6552 = vmatprep.subr.bf16.mxu0 0
        %6553 = vmatpush2.bf16.msra.mxu0 0
        %6554 = vmatprep.subr.bf16.mxu0 0
        %6555 = vmatpush2.bf16.msra.mxu0 0
        %6556 = vmatprep.subr.bf16.mxu0 0
        %6557 = vmatpush2.bf16.msra.mxu0 0
        %6558 = vmatprep.subr.bf16.mxu0 0
        %6559 = vmatpush2.bf16.msra.mxu0 0
        %6560 = vmatprep.subr.bf16.mxu0 0
        %6561 = vmatpush2.bf16.msra.mxu0 0
        %6562 = vmatprep.subr.bf16.mxu0 0
        %6563 = vmatpush2.bf16.msra.mxu0 0
        %6564 = vmatprep.subr.bf16.mxu0 0
        %6565 = vmatpush2.bf16.msra.mxu0 0
        %6566 = vmatprep.subr.bf16.mxu0 0
        %6567 = vmatpush2.bf16.msra.mxu0 0
        %6568 = vmatprep.mubr.bf16.mxu0 0
        %6569 = vmatmul.mubr.bf16.gmra.mxu0 %v6531
        %v6570 = vpop.f32.mrf.mxu0
        %v6571 = vadd.f32 0.0, %v6570
        %v6572 = vpop.f32.mrf.mxu0
        %v6573 = vpop.f32.mrf.mxu0
        %v6574 = vpop.f32.mrf.mxu0
        %6575 = vdwg.mxu0
        %6576 = vrot.lane.b32.xlu0 %v5876, 64
        %v6577 = vpop.permute.xlu0 %6576
        %v6579 = vsel %vm1233, %v6380, 0
        %v6582 = vsel %vm1740, %v6577, 0
        %6584 = vmatprep.subr.bf16.mxu0 0
        %6585 = vmatpush1.bf16.msra.mxu0 0
        %6586 = vmatprep.subr.bf16.mxu0 0
        %6587 = vmatpush1.bf16.msra.mxu0 0
        %6588 = vmatprep.subr.bf16.mxu0 0
        %6589 = vmatpush1.bf16.msra.mxu0 0
        %6590 = vmatprep.subr.bf16.mxu0 0
        %6591 = vmatpush1.bf16.msra.mxu0 0
        %6592 = vmatprep.subr.bf16.mxu0 0
        %6593 = vmatpush1.bf16.msra.mxu0 0
        %6594 = vmatprep.subr.bf16.mxu0 0
        %6595 = vmatpush1.bf16.msra.mxu0 0
        %6596 = vmatprep.subr.bf16.mxu0 0
        %6597 = vmatpush1.bf16.msra.mxu0 0
        %6598 = vmatprep.subr.bf16.mxu0 0
        %6599 = vmatpush1.bf16.msra.mxu0 %v6582
        %6600 = vmatprep.subr.bf16.mxu0 0
        %6601 = vmatpush2.bf16.msra.mxu0 0
        %6602 = vmatprep.subr.bf16.mxu0 0
        %6603 = vmatpush2.bf16.msra.mxu0 0
        %6604 = vmatprep.subr.bf16.mxu0 0
        %6605 = vmatpush2.bf16.msra.mxu0 0
        %6606 = vmatprep.subr.bf16.mxu0 0
        %6607 = vmatpush2.bf16.msra.mxu0 0
        %6608 = vmatprep.subr.bf16.mxu0 0
        %6609 = vmatpush2.bf16.msra.mxu0 0
        %6610 = vmatprep.subr.bf16.mxu0 0
        %6611 = vmatpush2.bf16.msra.mxu0 0
        %6612 = vmatprep.subr.bf16.mxu0 0
        %6613 = vmatpush2.bf16.msra.mxu0 0
        %6614 = vmatprep.subr.bf16.mxu0 0
        %6615 = vmatpush2.bf16.msra.mxu0 0
        %6616 = vmatprep.mubr.bf16.mxu0 0
        %6617 = vmatmul.mubr.bf16.gmra.mxu0 %v6579
        %v6618 = vpop.f32.mrf.mxu0
        %v6619 = vadd.f32 0.0, %v6618
        %v6620 = vpop.f32.mrf.mxu0
        %v6621 = vpop.f32.mrf.mxu0
        %v6622 = vpop.f32.mrf.mxu0
        %6623 = vdwg.mxu0
        %6624 = vrot.lane.b32.xlu0 %v5877, 64
        %v6625 = vpop.permute.xlu0 %6624
        %v6627 = vsel %vm1233, %v6381, 0
        %v6630 = vsel %vm1740, %v6625, 0
        %6632 = vmatprep.subr.bf16.mxu0 0
        %6633 = vmatpush1.bf16.msra.mxu0 0
        %6634 = vmatprep.subr.bf16.mxu0 0
        %6635 = vmatpush1.bf16.msra.mxu0 0
        %6636 = vmatprep.subr.bf16.mxu0 0
        %6637 = vmatpush1.bf16.msra.mxu0 0
        %6638 = vmatprep.subr.bf16.mxu0 0
        %6639 = vmatpush1.bf16.msra.mxu0 0
        %6640 = vmatprep.subr.bf16.mxu0 0
        %6641 = vmatpush1.bf16.msra.mxu0 0
        %6642 = vmatprep.subr.bf16.mxu0 0
        %6643 = vmatpush1.bf16.msra.mxu0 0
        %6644 = vmatprep.subr.bf16.mxu0 0
        %6645 = vmatpush1.bf16.msra.mxu0 0
        %6646 = vmatprep.subr.bf16.mxu0 0
        %6647 = vmatpush1.bf16.msra.mxu0 %v6630
        %6648 = vmatprep.subr.bf16.mxu0 0
        %6649 = vmatpush2.bf16.msra.mxu0 0
        %6650 = vmatprep.subr.bf16.mxu0 0
        %6651 = vmatpush2.bf16.msra.mxu0 0
        %6652 = vmatprep.subr.bf16.mxu0 0
        %6653 = vmatpush2.bf16.msra.mxu0 0
        %6654 = vmatprep.subr.bf16.mxu0 0
        %6655 = vmatpush2.bf16.msra.mxu0 0
        %6656 = vmatprep.subr.bf16.mxu0 0
        %6657 = vmatpush2.bf16.msra.mxu0 0
        %6658 = vmatprep.subr.bf16.mxu0 0
        %6659 = vmatpush2.bf16.msra.mxu0 0
        %6660 = vmatprep.subr.bf16.mxu0 0
        %6661 = vmatpush2.bf16.msra.mxu0 0
        %6662 = vmatprep.subr.bf16.mxu0 0
        %6663 = vmatpush2.bf16.msra.mxu0 0
        %6664 = vmatprep.mubr.bf16.mxu0 0
        %6665 = vmatmul.mubr.bf16.gmra.mxu0 %v6627
        %v6666 = vpop.f32.mrf.mxu0
        %v6667 = vadd.f32 0.0, %v6666
        %v6668 = vpop.f32.mrf.mxu0
        %v6669 = vpop.f32.mrf.mxu0
        %v6670 = vpop.f32.mrf.mxu0
        %6671 = vdwg.mxu0
        %6672 = vrot.lane.b32.xlu0 %v5878, 64
        %v6673 = vpop.permute.xlu0 %6672
        %v6675 = vsel %vm1233, %v6382, 0
        %v6678 = vsel %vm1740, %v6673, 0
        %6680 = vmatprep.subr.bf16.mxu0 0
        %6681 = vmatpush1.bf16.msra.mxu0 0
        %6682 = vmatprep.subr.bf16.mxu0 0
        %6683 = vmatpush1.bf16.msra.mxu0 0
        %6684 = vmatprep.subr.bf16.mxu0 0
        %6685 = vmatpush1.bf16.msra.mxu0 0
        %6686 = vmatprep.subr.bf16.mxu0 0
        %6687 = vmatpush1.bf16.msra.mxu0 0
        %6688 = vmatprep.subr.bf16.mxu0 0
        %6689 = vmatpush1.bf16.msra.mxu0 0
        %6690 = vmatprep.subr.bf16.mxu0 0
        %6691 = vmatpush1.bf16.msra.mxu0 0
        %6692 = vmatprep.subr.bf16.mxu0 0
        %6693 = vmatpush1.bf16.msra.mxu0 0
        %6694 = vmatprep.subr.bf16.mxu0 0
        %6695 = vmatpush1.bf16.msra.mxu0 %v6678
        %6696 = vmatprep.subr.bf16.mxu0 0
        %6697 = vmatpush2.bf16.msra.mxu0 0
        %6698 = vmatprep.subr.bf16.mxu0 0
        %6699 = vmatpush2.bf16.msra.mxu0 0
        %6700 = vmatprep.subr.bf16.mxu0 0
        %6701 = vmatpush2.bf16.msra.mxu0 0
        %6702 = vmatprep.subr.bf16.mxu0 0
        %6703 = vmatpush2.bf16.msra.mxu0 0
        %6704 = vmatprep.subr.bf16.mxu0 0
        %6705 = vmatpush2.bf16.msra.mxu0 0
        %6706 = vmatprep.subr.bf16.mxu0 0
        %6707 = vmatpush2.bf16.msra.mxu0 0
        %6708 = vmatprep.subr.bf16.mxu0 0
        %6709 = vmatpush2.bf16.msra.mxu0 0
        %6710 = vmatprep.subr.bf16.mxu0 0
        %6711 = vmatpush2.bf16.msra.mxu0 0
        %6712 = vmatprep.mubr.bf16.mxu0 0
        %6713 = vmatmul.mubr.bf16.gmra.mxu0 %v6675
        %v6714 = vpop.f32.mrf.mxu0
        %v6715 = vadd.f32 0.0, %v6714
        %v6716 = vpop.f32.mrf.mxu0
        %v6717 = vpop.f32.mrf.mxu0
        %v6718 = vpop.f32.mrf.mxu0
        %6719 = vdwg.mxu0
        %6720 = vrot.lane.b32.xlu0 %v5879, 64
        %v6721 = vpop.permute.xlu0 %6720
        %v6723 = vsel %vm1233, %v6383, 0
        %v6726 = vsel %vm1740, %v6721, 0
        %6728 = vmatprep.subr.bf16.mxu0 0
        %6729 = vmatpush1.bf16.msra.mxu0 0
        %6730 = vmatprep.subr.bf16.mxu0 0
        %6731 = vmatpush1.bf16.msra.mxu0 0
        %6732 = vmatprep.subr.bf16.mxu0 0
        %6733 = vmatpush1.bf16.msra.mxu0 0
        %6734 = vmatprep.subr.bf16.mxu0 0
        %6735 = vmatpush1.bf16.msra.mxu0 0
        %6736 = vmatprep.subr.bf16.mxu0 0
        %6737 = vmatpush1.bf16.msra.mxu0 0
        %6738 = vmatprep.subr.bf16.mxu0 0
        %6739 = vmatpush1.bf16.msra.mxu0 0
        %6740 = vmatprep.subr.bf16.mxu0 0
        %6741 = vmatpush1.bf16.msra.mxu0 0
        %6742 = vmatprep.subr.bf16.mxu0 0
        %6743 = vmatpush1.bf16.msra.mxu0 %v6726
        %6744 = vmatprep.subr.bf16.mxu0 0
        %6745 = vmatpush2.bf16.msra.mxu0 0
        %6746 = vmatprep.subr.bf16.mxu0 0
        %6747 = vmatpush2.bf16.msra.mxu0 0
        %6748 = vmatprep.subr.bf16.mxu0 0
        %6749 = vmatpush2.bf16.msra.mxu0 0
        %6750 = vmatprep.subr.bf16.mxu0 0
        %6751 = vmatpush2.bf16.msra.mxu0 0
        %6752 = vmatprep.subr.bf16.mxu0 0
        %6753 = vmatpush2.bf16.msra.mxu0 0
        %6754 = vmatprep.subr.bf16.mxu0 0
        %6755 = vmatpush2.bf16.msra.mxu0 0
        %6756 = vmatprep.subr.bf16.mxu0 0
        %6757 = vmatpush2.bf16.msra.mxu0 0
        %6758 = vmatprep.subr.bf16.mxu0 0
        %6759 = vmatpush2.bf16.msra.mxu0 0
        %6760 = vmatprep.mubr.bf16.mxu0 0
        %6761 = vmatmul.mubr.bf16.gmra.mxu0 %v6723
        %v6762 = vpop.f32.mrf.mxu0
        %v6763 = vadd.f32 0.0, %v6762
        %v6764 = vpop.f32.mrf.mxu0
        %v6765 = vpop.f32.mrf.mxu0
        %v6766 = vpop.f32.mrf.mxu0
        %6767 = vdwg.mxu0
        %v6768 = vpack.c.bf16 %v6475, %v6427
        %v6769 = vpack.c.bf16 %v6571, %v6523
        %v6770 = vpack.c.bf16 %v6667, %v6619
        %v6771 = vpack.c.bf16 %v6763, %v6715
        %6772 = vrot.lane.b32.xlu0 %v5872, 120
        %v6773 = vpop.permute.xlu0 %6772
        %6774 = vrot.lane.b32.xlu0 %v5872, 88
        %v6775 = vpop.permute.xlu0 %6774
        %v6777 = vsel %vm1233, %v6773, 0
        %v6780 = vsel %vm1233, %v6775, 0
        %6782 = vmatprep.subr.bf16.mxu0 0
        %6783 = vmatpush1.bf16.xpose.msra.mxu0 0
        %6784 = vmatprep.subr.bf16.mxu0 0
        %6785 = vmatpush1.bf16.xpose.msra.mxu0 0
        %6786 = vmatprep.subr.bf16.mxu0 0
        %6787 = vmatpush1.bf16.xpose.msra.mxu0 0
        %6788 = vmatprep.subr.bf16.mxu0 0
        %6789 = vmatpush1.bf16.xpose.msra.mxu0 0
        %6790 = vmatprep.subr.bf16.mxu0 0
        %6791 = vmatpush1.bf16.xpose.msra.mxu0 0
        %6792 = vmatprep.subr.bf16.mxu0 0
        %6793 = vmatpush1.bf16.xpose.msra.mxu0 0
        %6794 = vmatprep.subr.bf16.mxu0 0
        %6795 = vmatpush1.bf16.xpose.msra.mxu0 0
        %6796 = vmatprep.subr.bf16.mxu0 0
        %6797 = vmatpush1.bf16.xpose.msra.mxu0 %v6780
        %6798 = vmatprep.subr.bf16.mxu0 0
        %6799 = vmatpush2.bf16.xpose.msra.mxu0 0
        %6800 = vmatprep.subr.bf16.mxu0 0
        %6801 = vmatpush2.bf16.xpose.msra.mxu0 0
        %6802 = vmatprep.subr.bf16.mxu0 0
        %6803 = vmatpush2.bf16.xpose.msra.mxu0 0
        %6804 = vmatprep.subr.bf16.mxu0 0
        %6805 = vmatpush2.bf16.xpose.msra.mxu0 0
        %6806 = vmatprep.subr.bf16.mxu0 0
        %6807 = vmatpush2.bf16.xpose.msra.mxu0 0
        %6808 = vmatprep.subr.bf16.mxu0 0
        %6809 = vmatpush2.bf16.xpose.msra.mxu0 0
        %6810 = vmatprep.subr.bf16.mxu0 0
        %6811 = vmatpush2.bf16.xpose.msra.mxu0 0
        %6812 = vmatprep.subr.bf16.mxu0 0
        %6813 = vmatpush2.bf16.xpose.msra.mxu0 0
        %6814 = vmatprep.mubr.bf16.mxu0 0
        %6815 = vmatmul.mubr.bf16.gmra.mxu0 %v6777
        %v6816 = vpop.f32.mrf.mxu0
        %v6817 = vadd.f32 0.0, %v6816
        %v6818 = vpop.f32.mrf.mxu0
        %v6819 = vpop.f32.mrf.mxu0
        %v6820 = vpop.f32.mrf.mxu0
        %6821 = vdwg.mxu0
        %6822 = vrot.lane.b32.xlu0 %v5873, 120
        %v6823 = vpop.permute.xlu0 %6822
        %6824 = vrot.lane.b32.xlu0 %v5873, 88
        %v6825 = vpop.permute.xlu0 %6824
        %v6827 = vsel %vm1233, %v6823, 0
        %v6830 = vsel %vm1233, %v6825, 0
        %6832 = vmatprep.subr.bf16.mxu0 0
        %6833 = vmatpush1.bf16.xpose.msra.mxu0 0
        %6834 = vmatprep.subr.bf16.mxu0 0
        %6835 = vmatpush1.bf16.xpose.msra.mxu0 0
        %6836 = vmatprep.subr.bf16.mxu0 0
        %6837 = vmatpush1.bf16.xpose.msra.mxu0 0
        %6838 = vmatprep.subr.bf16.mxu0 0
        %6839 = vmatpush1.bf16.xpose.msra.mxu0 0
        %6840 = vmatprep.subr.bf16.mxu0 0
        %6841 = vmatpush1.bf16.xpose.msra.mxu0 0
        %6842 = vmatprep.subr.bf16.mxu0 0
        %6843 = vmatpush1.bf16.xpose.msra.mxu0 0
        %6844 = vmatprep.subr.bf16.mxu0 0
        %6845 = vmatpush1.bf16.xpose.msra.mxu0 0
        %6846 = vmatprep.subr.bf16.mxu0 0
        %6847 = vmatpush1.bf16.xpose.msra.mxu0 %v6830
        %6848 = vmatprep.subr.bf16.mxu0 0
        %6849 = vmatpush2.bf16.xpose.msra.mxu0 0
        %6850 = vmatprep.subr.bf16.mxu0 0
        %6851 = vmatpush2.bf16.xpose.msra.mxu0 0
        %6852 = vmatprep.subr.bf16.mxu0 0
        %6853 = vmatpush2.bf16.xpose.msra.mxu0 0
        %6854 = vmatprep.subr.bf16.mxu0 0
        %6855 = vmatpush2.bf16.xpose.msra.mxu0 0
        %6856 = vmatprep.subr.bf16.mxu0 0
        %6857 = vmatpush2.bf16.xpose.msra.mxu0 0
        %6858 = vmatprep.subr.bf16.mxu0 0
        %6859 = vmatpush2.bf16.xpose.msra.mxu0 0
        %6860 = vmatprep.subr.bf16.mxu0 0
        %6861 = vmatpush2.bf16.xpose.msra.mxu0 0
        %6862 = vmatprep.subr.bf16.mxu0 0
        %6863 = vmatpush2.bf16.xpose.msra.mxu0 0
        %6864 = vmatprep.mubr.bf16.mxu0 0
        %6865 = vmatmul.mubr.bf16.gmra.mxu0 %v6827
        %v6866 = vpop.f32.mrf.mxu0
        %v6867 = vadd.f32 0.0, %v6866
        %v6868 = vpop.f32.mrf.mxu0
        %v6869 = vpop.f32.mrf.mxu0
        %v6870 = vpop.f32.mrf.mxu0
        %6871 = vdwg.mxu0
        %6872 = vrot.lane.b32.xlu0 %v5874, 120
        %v6873 = vpop.permute.xlu0 %6872
        %6874 = vrot.lane.b32.xlu0 %v5874, 88
        %v6875 = vpop.permute.xlu0 %6874
        %v6877 = vsel %vm1233, %v6873, 0
        %v6880 = vsel %vm1233, %v6875, 0
        %6882 = vmatprep.subr.bf16.mxu0 0
        %6883 = vmatpush1.bf16.xpose.msra.mxu0 0
        %6884 = vmatprep.subr.bf16.mxu0 0
        %6885 = vmatpush1.bf16.xpose.msra.mxu0 0
        %6886 = vmatprep.subr.bf16.mxu0 0
        %6887 = vmatpush1.bf16.xpose.msra.mxu0 0
        %6888 = vmatprep.subr.bf16.mxu0 0
        %6889 = vmatpush1.bf16.xpose.msra.mxu0 0
        %6890 = vmatprep.subr.bf16.mxu0 0
        %6891 = vmatpush1.bf16.xpose.msra.mxu0 0
        %6892 = vmatprep.subr.bf16.mxu0 0
        %6893 = vmatpush1.bf16.xpose.msra.mxu0 0
        %6894 = vmatprep.subr.bf16.mxu0 0
        %6895 = vmatpush1.bf16.xpose.msra.mxu0 0
        %6896 = vmatprep.subr.bf16.mxu0 0
        %6897 = vmatpush1.bf16.xpose.msra.mxu0 %v6880
        %6898 = vmatprep.subr.bf16.mxu0 0
        %6899 = vmatpush2.bf16.xpose.msra.mxu0 0
        %6900 = vmatprep.subr.bf16.mxu0 0
        %6901 = vmatpush2.bf16.xpose.msra.mxu0 0
        %6902 = vmatprep.subr.bf16.mxu0 0
        %6903 = vmatpush2.bf16.xpose.msra.mxu0 0
        %6904 = vmatprep.subr.bf16.mxu0 0
        %6905 = vmatpush2.bf16.xpose.msra.mxu0 0
        %6906 = vmatprep.subr.bf16.mxu0 0
        %6907 = vmatpush2.bf16.xpose.msra.mxu0 0
        %6908 = vmatprep.subr.bf16.mxu0 0
        %6909 = vmatpush2.bf16.xpose.msra.mxu0 0
        %6910 = vmatprep.subr.bf16.mxu0 0
        %6911 = vmatpush2.bf16.xpose.msra.mxu0 0
        %6912 = vmatprep.subr.bf16.mxu0 0
        %6913 = vmatpush2.bf16.xpose.msra.mxu0 0
        %6914 = vmatprep.mubr.bf16.mxu0 0
        %6915 = vmatmul.mubr.bf16.gmra.mxu0 %v6877
        %v6916 = vpop.f32.mrf.mxu0
        %v6917 = vadd.f32 0.0, %v6916
        %v6918 = vpop.f32.mrf.mxu0
        %v6919 = vpop.f32.mrf.mxu0
        %v6920 = vpop.f32.mrf.mxu0
        %6921 = vdwg.mxu0
        %6922 = vrot.lane.b32.xlu0 %v5875, 120
        %v6923 = vpop.permute.xlu0 %6922
        %6924 = vrot.lane.b32.xlu0 %v5875, 88
        %v6925 = vpop.permute.xlu0 %6924
        %v6927 = vsel %vm1233, %v6923, 0
        %v6930 = vsel %vm1233, %v6925, 0
        %6932 = vmatprep.subr.bf16.mxu0 0
        %6933 = vmatpush1.bf16.xpose.msra.mxu0 0
        %6934 = vmatprep.subr.bf16.mxu0 0
        %6935 = vmatpush1.bf16.xpose.msra.mxu0 0
        %6936 = vmatprep.subr.bf16.mxu0 0
        %6937 = vmatpush1.bf16.xpose.msra.mxu0 0
        %6938 = vmatprep.subr.bf16.mxu0 0
        %6939 = vmatpush1.bf16.xpose.msra.mxu0 0
        %6940 = vmatprep.subr.bf16.mxu0 0
        %6941 = vmatpush1.bf16.xpose.msra.mxu0 0
        %6942 = vmatprep.subr.bf16.mxu0 0
        %6943 = vmatpush1.bf16.xpose.msra.mxu0 0
        %6944 = vmatprep.subr.bf16.mxu0 0
        %6945 = vmatpush1.bf16.xpose.msra.mxu0 0
        %6946 = vmatprep.subr.bf16.mxu0 0
        %6947 = vmatpush1.bf16.xpose.msra.mxu0 %v6930
        %6948 = vmatprep.subr.bf16.mxu0 0
        %6949 = vmatpush2.bf16.xpose.msra.mxu0 0
        %6950 = vmatprep.subr.bf16.mxu0 0
        %6951 = vmatpush2.bf16.xpose.msra.mxu0 0
        %6952 = vmatprep.subr.bf16.mxu0 0
        %6953 = vmatpush2.bf16.xpose.msra.mxu0 0
        %6954 = vmatprep.subr.bf16.mxu0 0
        %6955 = vmatpush2.bf16.xpose.msra.mxu0 0
        %6956 = vmatprep.subr.bf16.mxu0 0
        %6957 = vmatpush2.bf16.xpose.msra.mxu0 0
        %6958 = vmatprep.subr.bf16.mxu0 0
        %6959 = vmatpush2.bf16.xpose.msra.mxu0 0
        %6960 = vmatprep.subr.bf16.mxu0 0
        %6961 = vmatpush2.bf16.xpose.msra.mxu0 0
        %6962 = vmatprep.subr.bf16.mxu0 0
        %6963 = vmatpush2.bf16.xpose.msra.mxu0 0
        %6964 = vmatprep.mubr.bf16.mxu0 0
        %6965 = vmatmul.mubr.bf16.gmra.mxu0 %v6927
        %v6966 = vpop.f32.mrf.mxu0
        %v6967 = vadd.f32 0.0, %v6966
        %v6968 = vpop.f32.mrf.mxu0
        %v6969 = vpop.f32.mrf.mxu0
        %v6970 = vpop.f32.mrf.mxu0
        %6971 = vdwg.mxu0
        %6972 = vrot.lane.b32.xlu0 %v5876, 120
        %v6973 = vpop.permute.xlu0 %6972
        %6974 = vrot.lane.b32.xlu0 %v5876, 88
        %v6975 = vpop.permute.xlu0 %6974
        %v6977 = vsel %vm1233, %v6973, 0
        %v6980 = vsel %vm1233, %v6975, 0
        %6982 = vmatprep.subr.bf16.mxu0 0
        %6983 = vmatpush1.bf16.xpose.msra.mxu0 0
        %6984 = vmatprep.subr.bf16.mxu0 0
        %6985 = vmatpush1.bf16.xpose.msra.mxu0 0
        %6986 = vmatprep.subr.bf16.mxu0 0
        %6987 = vmatpush1.bf16.xpose.msra.mxu0 0
        %6988 = vmatprep.subr.bf16.mxu0 0
        %6989 = vmatpush1.bf16.xpose.msra.mxu0 0
        %6990 = vmatprep.subr.bf16.mxu0 0
        %6991 = vmatpush1.bf16.xpose.msra.mxu0 0
        %6992 = vmatprep.subr.bf16.mxu0 0
        %6993 = vmatpush1.bf16.xpose.msra.mxu0 0
        %6994 = vmatprep.subr.bf16.mxu0 0
        %6995 = vmatpush1.bf16.xpose.msra.mxu0 0
        %6996 = vmatprep.subr.bf16.mxu0 0
        %6997 = vmatpush1.bf16.xpose.msra.mxu0 %v6980
        %6998 = vmatprep.subr.bf16.mxu0 0
        %6999 = vmatpush2.bf16.xpose.msra.mxu0 0
        %7000 = vmatprep.subr.bf16.mxu0 0
        %7001 = vmatpush2.bf16.xpose.msra.mxu0 0
        %7002 = vmatprep.subr.bf16.mxu0 0
        %7003 = vmatpush2.bf16.xpose.msra.mxu0 0
        %7004 = vmatprep.subr.bf16.mxu0 0
        %7005 = vmatpush2.bf16.xpose.msra.mxu0 0
        %7006 = vmatprep.subr.bf16.mxu0 0
        %7007 = vmatpush2.bf16.xpose.msra.mxu0 0
        %7008 = vmatprep.subr.bf16.mxu0 0
        %7009 = vmatpush2.bf16.xpose.msra.mxu0 0
        %7010 = vmatprep.subr.bf16.mxu0 0
        %7011 = vmatpush2.bf16.xpose.msra.mxu0 0
        %7012 = vmatprep.subr.bf16.mxu0 0
        %7013 = vmatpush2.bf16.xpose.msra.mxu0 0
        %7014 = vmatprep.mubr.bf16.mxu0 0
        %7015 = vmatmul.mubr.bf16.gmra.mxu0 %v6977
        %v7016 = vpop.f32.mrf.mxu0
        %v7017 = vadd.f32 0.0, %v7016
        %v7018 = vpop.f32.mrf.mxu0
        %v7019 = vpop.f32.mrf.mxu0
        %v7020 = vpop.f32.mrf.mxu0
        %7021 = vdwg.mxu0
        %7022 = vrot.lane.b32.xlu0 %v5877, 120
        %v7023 = vpop.permute.xlu0 %7022
        %7024 = vrot.lane.b32.xlu0 %v5877, 88
        %v7025 = vpop.permute.xlu0 %7024
        %v7027 = vsel %vm1233, %v7023, 0
        %v7030 = vsel %vm1233, %v7025, 0
        %7032 = vmatprep.subr.bf16.mxu0 0
        %7033 = vmatpush1.bf16.xpose.msra.mxu0 0
        %7034 = vmatprep.subr.bf16.mxu0 0
        %7035 = vmatpush1.bf16.xpose.msra.mxu0 0
        %7036 = vmatprep.subr.bf16.mxu0 0
        %7037 = vmatpush1.bf16.xpose.msra.mxu0 0
        %7038 = vmatprep.subr.bf16.mxu0 0
        %7039 = vmatpush1.bf16.xpose.msra.mxu0 0
        %7040 = vmatprep.subr.bf16.mxu0 0
        %7041 = vmatpush1.bf16.xpose.msra.mxu0 0
        %7042 = vmatprep.subr.bf16.mxu0 0
        %7043 = vmatpush1.bf16.xpose.msra.mxu0 0
        %7044 = vmatprep.subr.bf16.mxu0 0
        %7045 = vmatpush1.bf16.xpose.msra.mxu0 0
        %7046 = vmatprep.subr.bf16.mxu0 0
        %7047 = vmatpush1.bf16.xpose.msra.mxu0 %v7030
        %7048 = vmatprep.subr.bf16.mxu0 0
        %7049 = vmatpush2.bf16.xpose.msra.mxu0 0
        %7050 = vmatprep.subr.bf16.mxu0 0
        %7051 = vmatpush2.bf16.xpose.msra.mxu0 0
        %7052 = vmatprep.subr.bf16.mxu0 0
        %7053 = vmatpush2.bf16.xpose.msra.mxu0 0
        %7054 = vmatprep.subr.bf16.mxu0 0
        %7055 = vmatpush2.bf16.xpose.msra.mxu0 0
        %7056 = vmatprep.subr.bf16.mxu0 0
        %7057 = vmatpush2.bf16.xpose.msra.mxu0 0
        %7058 = vmatprep.subr.bf16.mxu0 0
        %7059 = vmatpush2.bf16.xpose.msra.mxu0 0
        %7060 = vmatprep.subr.bf16.mxu0 0
        %7061 = vmatpush2.bf16.xpose.msra.mxu0 0
        %7062 = vmatprep.subr.bf16.mxu0 0
        %7063 = vmatpush2.bf16.xpose.msra.mxu0 0
        %7064 = vmatprep.mubr.bf16.mxu0 0
        %7065 = vmatmul.mubr.bf16.gmra.mxu0 %v7027
        %v7066 = vpop.f32.mrf.mxu0
        %v7067 = vadd.f32 0.0, %v7066
        %v7068 = vpop.f32.mrf.mxu0
        %v7069 = vpop.f32.mrf.mxu0
        %v7070 = vpop.f32.mrf.mxu0
        %7071 = vdwg.mxu0
        %7072 = vrot.lane.b32.xlu0 %v5878, 120
        %v7073 = vpop.permute.xlu0 %7072
        %7074 = vrot.lane.b32.xlu0 %v5878, 88
        %v7075 = vpop.permute.xlu0 %7074
        %v7077 = vsel %vm1233, %v7073, 0
        %v7080 = vsel %vm1233, %v7075, 0
        %7082 = vmatprep.subr.bf16.mxu0 0
        %7083 = vmatpush1.bf16.xpose.msra.mxu0 0
        %7084 = vmatprep.subr.bf16.mxu0 0
        %7085 = vmatpush1.bf16.xpose.msra.mxu0 0
        %7086 = vmatprep.subr.bf16.mxu0 0
        %7087 = vmatpush1.bf16.xpose.msra.mxu0 0
        %7088 = vmatprep.subr.bf16.mxu0 0
        %7089 = vmatpush1.bf16.xpose.msra.mxu0 0
        %7090 = vmatprep.subr.bf16.mxu0 0
        %7091 = vmatpush1.bf16.xpose.msra.mxu0 0
        %7092 = vmatprep.subr.bf16.mxu0 0
        %7093 = vmatpush1.bf16.xpose.msra.mxu0 0
        %7094 = vmatprep.subr.bf16.mxu0 0
        %7095 = vmatpush1.bf16.xpose.msra.mxu0 0
        %7096 = vmatprep.subr.bf16.mxu0 0
        %7097 = vmatpush1.bf16.xpose.msra.mxu0 %v7080
        %7098 = vmatprep.subr.bf16.mxu0 0
        %7099 = vmatpush2.bf16.xpose.msra.mxu0 0
        %7100 = vmatprep.subr.bf16.mxu0 0
        %7101 = vmatpush2.bf16.xpose.msra.mxu0 0
        %7102 = vmatprep.subr.bf16.mxu0 0
        %7103 = vmatpush2.bf16.xpose.msra.mxu0 0
        %7104 = vmatprep.subr.bf16.mxu0 0
        %7105 = vmatpush2.bf16.xpose.msra.mxu0 0
        %7106 = vmatprep.subr.bf16.mxu0 0
        %7107 = vmatpush2.bf16.xpose.msra.mxu0 0
        %7108 = vmatprep.subr.bf16.mxu0 0
        %7109 = vmatpush2.bf16.xpose.msra.mxu0 0
        %7110 = vmatprep.subr.bf16.mxu0 0
        %7111 = vmatpush2.bf16.xpose.msra.mxu0 0
        %7112 = vmatprep.subr.bf16.mxu0 0
        %7113 = vmatpush2.bf16.xpose.msra.mxu0 0
        %7114 = vmatprep.mubr.bf16.mxu0 0
        %7115 = vmatmul.mubr.bf16.gmra.mxu0 %v7077
        %v7116 = vpop.f32.mrf.mxu0
        %v7117 = vadd.f32 0.0, %v7116
        %v7118 = vpop.f32.mrf.mxu0
        %v7119 = vpop.f32.mrf.mxu0
        %v7120 = vpop.f32.mrf.mxu0
        %7121 = vdwg.mxu0
        %7122 = vrot.lane.b32.xlu0 %v5879, 120
        %v7123 = vpop.permute.xlu0 %7122
        %7124 = vrot.lane.b32.xlu0 %v5879, 88
        %v7125 = vpop.permute.xlu0 %7124
        %v7127 = vsel %vm1233, %v7123, 0
        %v7130 = vsel %vm1233, %v7125, 0
        %7132 = vmatprep.subr.bf16.mxu0 0
        %7133 = vmatpush1.bf16.xpose.msra.mxu0 0
        %7134 = vmatprep.subr.bf16.mxu0 0
        %7135 = vmatpush1.bf16.xpose.msra.mxu0 0
        %7136 = vmatprep.subr.bf16.mxu0 0
        %7137 = vmatpush1.bf16.xpose.msra.mxu0 0
        %7138 = vmatprep.subr.bf16.mxu0 0
        %7139 = vmatpush1.bf16.xpose.msra.mxu0 0
        %7140 = vmatprep.subr.bf16.mxu0 0
        %7141 = vmatpush1.bf16.xpose.msra.mxu0 0
        %7142 = vmatprep.subr.bf16.mxu0 0
        %7143 = vmatpush1.bf16.xpose.msra.mxu0 0
        %7144 = vmatprep.subr.bf16.mxu0 0
        %7145 = vmatpush1.bf16.xpose.msra.mxu0 0
        %7146 = vmatprep.subr.bf16.mxu0 0
        %7147 = vmatpush1.bf16.xpose.msra.mxu0 %v7130
        %7148 = vmatprep.subr.bf16.mxu0 0
        %7149 = vmatpush2.bf16.xpose.msra.mxu0 0
        %7150 = vmatprep.subr.bf16.mxu0 0
        %7151 = vmatpush2.bf16.xpose.msra.mxu0 0
        %7152 = vmatprep.subr.bf16.mxu0 0
        %7153 = vmatpush2.bf16.xpose.msra.mxu0 0
        %7154 = vmatprep.subr.bf16.mxu0 0
        %7155 = vmatpush2.bf16.xpose.msra.mxu0 0
        %7156 = vmatprep.subr.bf16.mxu0 0
        %7157 = vmatpush2.bf16.xpose.msra.mxu0 0
        %7158 = vmatprep.subr.bf16.mxu0 0
        %7159 = vmatpush2.bf16.xpose.msra.mxu0 0
        %7160 = vmatprep.subr.bf16.mxu0 0
        %7161 = vmatpush2.bf16.xpose.msra.mxu0 0
        %7162 = vmatprep.subr.bf16.mxu0 0
        %7163 = vmatpush2.bf16.xpose.msra.mxu0 0
        %7164 = vmatprep.mubr.bf16.mxu0 0
        %7165 = vmatmul.mubr.bf16.gmra.mxu0 %v7127
        %v7166 = vpop.f32.mrf.mxu0
        %v7167 = vadd.f32 0.0, %v7166
        %v7168 = vpop.f32.mrf.mxu0
        %v7169 = vpop.f32.mrf.mxu0
        %v7170 = vpop.f32.mrf.mxu0
        %7171 = vdwg.mxu0
        %v7172 = vmul.f32 %v6817, 0.35355338
        %v7173 = vmul.f32 %v6867, 0.35355338
        %v7174 = vmul.f32 %v6917, 0.35355338
        %v7175 = vmul.f32 %v6967, 0.35355338
        %v7176 = vmul.f32 %v7017, 0.35355338
        %v7177 = vmul.f32 %v7067, 0.35355338
        %v7178 = vmul.f32 %v7117, 0.35355338
        %v7179 = vmul.f32 %v7167, 0.35355338
        %v7180 = vadd.f32 %v7172, %v979
        %v7181 = vadd.f32 %v7173, %v979
        %v7182 = vadd.f32 %v7174, %v979
        %v7183 = vadd.f32 %v7175, %v979
        %v7184 = vadd.f32 %v7176, %v979
        %v7185 = vadd.f32 %v7177, %v979
        %v7186 = vadd.f32 %v7178, %v979
        %v7187 = vadd.f32 %v7179, %v979
        %v7188 = vsel %vm1233, %v7180, -inf
        %7189 = vmax.xlane.f32.xlu0 %v7188
        %v7190 = vpop.xlane.xlu0 %7189
        %v7191 = vsel %vm1233, %v7181, -inf
        %7192 = vmax.xlane.f32.xlu0 %v7191
        %v7193 = vpop.xlane.xlu0 %7192
        %v7194 = vsel %vm1233, %v7182, -inf
        %7195 = vmax.xlane.f32.xlu0 %v7194
        %v7196 = vpop.xlane.xlu0 %7195
        %v7197 = vsel %vm1233, %v7183, -inf
        %7198 = vmax.xlane.f32.xlu0 %v7197
        %v7199 = vpop.xlane.xlu0 %7198
        %v7200 = vsel %vm1233, %v7184, -inf
        %7201 = vmax.xlane.f32.xlu0 %v7200
        %v7202 = vpop.xlane.xlu0 %7201
        %v7203 = vsel %vm1233, %v7185, -inf
        %7204 = vmax.xlane.f32.xlu0 %v7203
        %v7205 = vpop.xlane.xlu0 %7204
        %v7206 = vsel %vm1233, %v7186, -inf
        %7207 = vmax.xlane.f32.xlu0 %v7206
        %v7208 = vpop.xlane.xlu0 %7207
        %v7209 = vsel %vm1233, %v7187, -inf
        %7210 = vmax.xlane.f32.xlu0 %v7209
        %v7211 = vpop.xlane.xlu0 %7210
        %v7212 = vsub.f32 %v7180, %v7190
        %v7213 = vsub.f32 %v7181, %v7193
        %v7214 = vsub.f32 %v7182, %v7196
        %v7215 = vsub.f32 %v7183, %v7199
        %v7216 = vsub.f32 %v7184, %v7202
        %v7217 = vsub.f32 %v7185, %v7205
        %v7218 = vsub.f32 %v7186, %v7208
        %v7219 = vsub.f32 %v7187, %v7211
        %v7220 = vmul.f32 %v7212, 1.442695
        %v7221 = vpow.pop %v7220
        %v7222 = vmul.f32 %v7213, 1.442695
        %v7223 = vpow.pop %v7222
        %v7224 = vmul.f32 %v7214, 1.442695
        %v7225 = vpow.pop %v7224
        %v7226 = vmul.f32 %v7215, 1.442695
        %v7227 = vpow.pop %v7226
        %v7228 = vmul.f32 %v7216, 1.442695
        %v7229 = vpow.pop %v7228
        %v7230 = vmul.f32 %v7217, 1.442695
        %v7231 = vpow.pop %v7230
        %v7232 = vmul.f32 %v7218, 1.442695
        %v7233 = vpow.pop %v7232
        %v7234 = vmul.f32 %v7219, 1.442695
        %v7235 = vpow.pop %v7234
        %v7236 = vsel %vm1233, %v7221, 0.0
        %7237 = vadd.xlane.f32.xlu0 %v7236
        %v7238 = vpop.xlane.xlu0 %7237
        %v7239 = vsel %vm1233, %v7223, 0.0
        %7240 = vadd.xlane.f32.xlu0 %v7239
        %v7241 = vpop.xlane.xlu0 %7240
        %v7242 = vsel %vm1233, %v7225, 0.0
        %7243 = vadd.xlane.f32.xlu0 %v7242
        %v7244 = vpop.xlane.xlu0 %7243
        %v7245 = vsel %vm1233, %v7227, 0.0
        %7246 = vadd.xlane.f32.xlu0 %v7245
        %v7247 = vpop.xlane.xlu0 %7246
        %v7248 = vsel %vm1233, %v7229, 0.0
        %7249 = vadd.xlane.f32.xlu0 %v7248
        %v7250 = vpop.xlane.xlu0 %7249
        %v7251 = vsel %vm1233, %v7231, 0.0
        %7252 = vadd.xlane.f32.xlu0 %v7251
        %v7253 = vpop.xlane.xlu0 %7252
        %v7254 = vsel %vm1233, %v7233, 0.0
        %7255 = vadd.xlane.f32.xlu0 %v7254
        %v7256 = vpop.xlane.xlu0 %7255
        %v7257 = vsel %vm1233, %v7235, 0.0
        %7258 = vadd.xlane.f32.xlu0 %v7257
        %v7259 = vpop.xlane.xlu0 %7258
        %v7260 = vrcp.pop %v7238
        %v7261 = vrcp.pop %v7241
        %v7262 = vrcp.pop %v7244
        %v7263 = vrcp.pop %v7247
        %v7264 = vrcp.pop %v7250
        %v7265 = vrcp.pop %v7253
        %v7266 = vrcp.pop %v7256
        %v7267 = vrcp.pop %v7259
        %v7268 = vmul.f32 %v7221, %v7260
        %v7269 = vmul.f32 %v7223, %v7261
        %v7270 = vmul.f32 %v7225, %v7262
        %v7271 = vmul.f32 %v7227, %v7263
        %v7272 = vmul.f32 %v7229, %v7264
        %v7273 = vmul.f32 %v7231, %v7265
        %v7274 = vmul.f32 %v7233, %v7266
        %v7275 = vmul.f32 %v7235, %v7267
        %v7276 = vpack.c.bf16 %v7268, %v7268
        %v7277 = vpack.c.bf16 %v7269, %v7269
        %v7278 = vpack.c.bf16 %v7270, %v7270
        %v7279 = vpack.c.bf16 %v7271, %v7271
        %v7280 = vpack.c.bf16 %v7272, %v7272
        %v7281 = vpack.c.bf16 %v7273, %v7273
        %v7282 = vpack.c.bf16 %v7274, %v7274
        %v7283 = vpack.c.bf16 %v7275, %v7275
        %7284 = vrot.lane.b32.xlu0 %v5872, 56
        %v7285 = vpop.permute.xlu0 %7284
        %v7287 = vsel %vm1233, %v7276, 0
        %v7290 = vsel %vm1740, %v7285, 0
        %7292 = vmatprep.subr.bf16.mxu0 0
        %7293 = vmatpush1.bf16.msra.mxu0 0
        %7294 = vmatprep.subr.bf16.mxu0 0
        %7295 = vmatpush1.bf16.msra.mxu0 0
        %7296 = vmatprep.subr.bf16.mxu0 0
        %7297 = vmatpush1.bf16.msra.mxu0 0
        %7298 = vmatprep.subr.bf16.mxu0 0
        %7299 = vmatpush1.bf16.msra.mxu0 0
        %7300 = vmatprep.subr.bf16.mxu0 0
        %7301 = vmatpush1.bf16.msra.mxu0 0
        %7302 = vmatprep.subr.bf16.mxu0 0
        %7303 = vmatpush1.bf16.msra.mxu0 0
        %7304 = vmatprep.subr.bf16.mxu0 0
        %7305 = vmatpush1.bf16.msra.mxu0 0
        %7306 = vmatprep.subr.bf16.mxu0 0
        %7307 = vmatpush1.bf16.msra.mxu0 %v7290
        %7308 = vmatprep.subr.bf16.mxu0 0
        %7309 = vmatpush2.bf16.msra.mxu0 0
        %7310 = vmatprep.subr.bf16.mxu0 0
        %7311 = vmatpush2.bf16.msra.mxu0 0
        %7312 = vmatprep.subr.bf16.mxu0 0
        %7313 = vmatpush2.bf16.msra.mxu0 0
        %7314 = vmatprep.subr.bf16.mxu0 0
        %7315 = vmatpush2.bf16.msra.mxu0 0
        %7316 = vmatprep.subr.bf16.mxu0 0
        %7317 = vmatpush2.bf16.msra.mxu0 0
        %7318 = vmatprep.subr.bf16.mxu0 0
        %7319 = vmatpush2.bf16.msra.mxu0 0
        %7320 = vmatprep.subr.bf16.mxu0 0
        %7321 = vmatpush2.bf16.msra.mxu0 0
        %7322 = vmatprep.subr.bf16.mxu0 0
        %7323 = vmatpush2.bf16.msra.mxu0 0
        %7324 = vmatprep.mubr.bf16.mxu0 0
        %7325 = vmatmul.mubr.bf16.gmra.mxu0 %v7287
        %v7326 = vpop.f32.mrf.mxu0
        %v7327 = vadd.f32 0.0, %v7326
        %v7328 = vpop.f32.mrf.mxu0
        %v7329 = vpop.f32.mrf.mxu0
        %v7330 = vpop.f32.mrf.mxu0
        %7331 = vdwg.mxu0
        %7332 = vrot.lane.b32.xlu0 %v5873, 56
        %v7333 = vpop.permute.xlu0 %7332
        %v7335 = vsel %vm1233, %v7277, 0
        %v7338 = vsel %vm1740, %v7333, 0
        %7340 = vmatprep.subr.bf16.mxu0 0
        %7341 = vmatpush1.bf16.msra.mxu0 0
        %7342 = vmatprep.subr.bf16.mxu0 0
        %7343 = vmatpush1.bf16.msra.mxu0 0
        %7344 = vmatprep.subr.bf16.mxu0 0
        %7345 = vmatpush1.bf16.msra.mxu0 0
        %7346 = vmatprep.subr.bf16.mxu0 0
        %7347 = vmatpush1.bf16.msra.mxu0 0
        %7348 = vmatprep.subr.bf16.mxu0 0
        %7349 = vmatpush1.bf16.msra.mxu0 0
        %7350 = vmatprep.subr.bf16.mxu0 0
        %7351 = vmatpush1.bf16.msra.mxu0 0
        %7352 = vmatprep.subr.bf16.mxu0 0
        %7353 = vmatpush1.bf16.msra.mxu0 0
        %7354 = vmatprep.subr.bf16.mxu0 0
        %7355 = vmatpush1.bf16.msra.mxu0 %v7338
        %7356 = vmatprep.subr.bf16.mxu0 0
        %7357 = vmatpush2.bf16.msra.mxu0 0
        %7358 = vmatprep.subr.bf16.mxu0 0
        %7359 = vmatpush2.bf16.msra.mxu0 0
        %7360 = vmatprep.subr.bf16.mxu0 0
        %7361 = vmatpush2.bf16.msra.mxu0 0
        %7362 = vmatprep.subr.bf16.mxu0 0
        %7363 = vmatpush2.bf16.msra.mxu0 0
        %7364 = vmatprep.subr.bf16.mxu0 0
        %7365 = vmatpush2.bf16.msra.mxu0 0
        %7366 = vmatprep.subr.bf16.mxu0 0
        %7367 = vmatpush2.bf16.msra.mxu0 0
        %7368 = vmatprep.subr.bf16.mxu0 0
        %7369 = vmatpush2.bf16.msra.mxu0 0
        %7370 = vmatprep.subr.bf16.mxu0 0
        %7371 = vmatpush2.bf16.msra.mxu0 0
        %7372 = vmatprep.mubr.bf16.mxu0 0
        %7373 = vmatmul.mubr.bf16.gmra.mxu0 %v7335
        %v7374 = vpop.f32.mrf.mxu0
        %v7375 = vadd.f32 0.0, %v7374
        %v7376 = vpop.f32.mrf.mxu0
        %v7377 = vpop.f32.mrf.mxu0
        %v7378 = vpop.f32.mrf.mxu0
        %7379 = vdwg.mxu0
        %7380 = vrot.lane.b32.xlu0 %v5874, 56
        %v7381 = vpop.permute.xlu0 %7380
        %v7383 = vsel %vm1233, %v7278, 0
        %v7386 = vsel %vm1740, %v7381, 0
        %7388 = vmatprep.subr.bf16.mxu0 0
        %7389 = vmatpush1.bf16.msra.mxu0 0
        %7390 = vmatprep.subr.bf16.mxu0 0
        %7391 = vmatpush1.bf16.msra.mxu0 0
        %7392 = vmatprep.subr.bf16.mxu0 0
        %7393 = vmatpush1.bf16.msra.mxu0 0
        %7394 = vmatprep.subr.bf16.mxu0 0
        %7395 = vmatpush1.bf16.msra.mxu0 0
        %7396 = vmatprep.subr.bf16.mxu0 0
        %7397 = vmatpush1.bf16.msra.mxu0 0
        %7398 = vmatprep.subr.bf16.mxu0 0
        %7399 = vmatpush1.bf16.msra.mxu0 0
        %7400 = vmatprep.subr.bf16.mxu0 0
        %7401 = vmatpush1.bf16.msra.mxu0 0
        %7402 = vmatprep.subr.bf16.mxu0 0
        %7403 = vmatpush1.bf16.msra.mxu0 %v7386
        %7404 = vmatprep.subr.bf16.mxu0 0
        %7405 = vmatpush2.bf16.msra.mxu0 0
        %7406 = vmatprep.subr.bf16.mxu0 0
        %7407 = vmatpush2.bf16.msra.mxu0 0
        %7408 = vmatprep.subr.bf16.mxu0 0
        %7409 = vmatpush2.bf16.msra.mxu0 0
        %7410 = vmatprep.subr.bf16.mxu0 0
        %7411 = vmatpush2.bf16.msra.mxu0 0
        %7412 = vmatprep.subr.bf16.mxu0 0
        %7413 = vmatpush2.bf16.msra.mxu0 0
        %7414 = vmatprep.subr.bf16.mxu0 0
        %7415 = vmatpush2.bf16.msra.mxu0 0
        %7416 = vmatprep.subr.bf16.mxu0 0
        %7417 = vmatpush2.bf16.msra.mxu0 0
        %7418 = vmatprep.subr.bf16.mxu0 0
        %7419 = vmatpush2.bf16.msra.mxu0 0
        %7420 = vmatprep.mubr.bf16.mxu0 0
        %7421 = vmatmul.mubr.bf16.gmra.mxu0 %v7383
        %v7422 = vpop.f32.mrf.mxu0
        %v7423 = vadd.f32 0.0, %v7422
        %v7424 = vpop.f32.mrf.mxu0
        %v7425 = vpop.f32.mrf.mxu0
        %v7426 = vpop.f32.mrf.mxu0
        %7427 = vdwg.mxu0
        %7428 = vrot.lane.b32.xlu0 %v5875, 56
        %v7429 = vpop.permute.xlu0 %7428
        %v7431 = vsel %vm1233, %v7279, 0
        %v7434 = vsel %vm1740, %v7429, 0
        %7436 = vmatprep.subr.bf16.mxu0 0
        %7437 = vmatpush1.bf16.msra.mxu0 0
        %7438 = vmatprep.subr.bf16.mxu0 0
        %7439 = vmatpush1.bf16.msra.mxu0 0
        %7440 = vmatprep.subr.bf16.mxu0 0
        %7441 = vmatpush1.bf16.msra.mxu0 0
        %7442 = vmatprep.subr.bf16.mxu0 0
        %7443 = vmatpush1.bf16.msra.mxu0 0
        %7444 = vmatprep.subr.bf16.mxu0 0
        %7445 = vmatpush1.bf16.msra.mxu0 0
        %7446 = vmatprep.subr.bf16.mxu0 0
        %7447 = vmatpush1.bf16.msra.mxu0 0
        %7448 = vmatprep.subr.bf16.mxu0 0
        %7449 = vmatpush1.bf16.msra.mxu0 0
        %7450 = vmatprep.subr.bf16.mxu0 0
        %7451 = vmatpush1.bf16.msra.mxu0 %v7434
        %7452 = vmatprep.subr.bf16.mxu0 0
        %7453 = vmatpush2.bf16.msra.mxu0 0
        %7454 = vmatprep.subr.bf16.mxu0 0
        %7455 = vmatpush2.bf16.msra.mxu0 0
        %7456 = vmatprep.subr.bf16.mxu0 0
        %7457 = vmatpush2.bf16.msra.mxu0 0
        %7458 = vmatprep.subr.bf16.mxu0 0
        %7459 = vmatpush2.bf16.msra.mxu0 0
        %7460 = vmatprep.subr.bf16.mxu0 0
        %7461 = vmatpush2.bf16.msra.mxu0 0
        %7462 = vmatprep.subr.bf16.mxu0 0
        %7463 = vmatpush2.bf16.msra.mxu0 0
        %7464 = vmatprep.subr.bf16.mxu0 0
        %7465 = vmatpush2.bf16.msra.mxu0 0
        %7466 = vmatprep.subr.bf16.mxu0 0
        %7467 = vmatpush2.bf16.msra.mxu0 0
        %7468 = vmatprep.mubr.bf16.mxu0 0
        %7469 = vmatmul.mubr.bf16.gmra.mxu0 %v7431
        %v7470 = vpop.f32.mrf.mxu0
        %v7471 = vadd.f32 0.0, %v7470
        %v7472 = vpop.f32.mrf.mxu0
        %v7473 = vpop.f32.mrf.mxu0
        %v7474 = vpop.f32.mrf.mxu0
        %7475 = vdwg.mxu0
        %7476 = vrot.lane.b32.xlu0 %v5876, 56
        %v7477 = vpop.permute.xlu0 %7476
        %v7479 = vsel %vm1233, %v7280, 0
        %v7482 = vsel %vm1740, %v7477, 0
        %7484 = vmatprep.subr.bf16.mxu0 0
        %7485 = vmatpush1.bf16.msra.mxu0 0
        %7486 = vmatprep.subr.bf16.mxu0 0
        %7487 = vmatpush1.bf16.msra.mxu0 0
        %7488 = vmatprep.subr.bf16.mxu0 0
        %7489 = vmatpush1.bf16.msra.mxu0 0
        %7490 = vmatprep.subr.bf16.mxu0 0
        %7491 = vmatpush1.bf16.msra.mxu0 0
        %7492 = vmatprep.subr.bf16.mxu0 0
        %7493 = vmatpush1.bf16.msra.mxu0 0
        %7494 = vmatprep.subr.bf16.mxu0 0
        %7495 = vmatpush1.bf16.msra.mxu0 0
        %7496 = vmatprep.subr.bf16.mxu0 0
        %7497 = vmatpush1.bf16.msra.mxu0 0
        %7498 = vmatprep.subr.bf16.mxu0 0
        %7499 = vmatpush1.bf16.msra.mxu0 %v7482
        %7500 = vmatprep.subr.bf16.mxu0 0
        %7501 = vmatpush2.bf16.msra.mxu0 0
        %7502 = vmatprep.subr.bf16.mxu0 0
        %7503 = vmatpush2.bf16.msra.mxu0 0
        %7504 = vmatprep.subr.bf16.mxu0 0
        %7505 = vmatpush2.bf16.msra.mxu0 0
        %7506 = vmatprep.subr.bf16.mxu0 0
        %7507 = vmatpush2.bf16.msra.mxu0 0
        %7508 = vmatprep.subr.bf16.mxu0 0
        %7509 = vmatpush2.bf16.msra.mxu0 0
        %7510 = vmatprep.subr.bf16.mxu0 0
        %7511 = vmatpush2.bf16.msra.mxu0 0
        %7512 = vmatprep.subr.bf16.mxu0 0
        %7513 = vmatpush2.bf16.msra.mxu0 0
        %7514 = vmatprep.subr.bf16.mxu0 0
        %7515 = vmatpush2.bf16.msra.mxu0 0
        %7516 = vmatprep.mubr.bf16.mxu0 0
        %7517 = vmatmul.mubr.bf16.gmra.mxu0 %v7479
        %v7518 = vpop.f32.mrf.mxu0
        %v7519 = vadd.f32 0.0, %v7518
        %v7520 = vpop.f32.mrf.mxu0
        %v7521 = vpop.f32.mrf.mxu0
        %v7522 = vpop.f32.mrf.mxu0
        %7523 = vdwg.mxu0
        %7524 = vrot.lane.b32.xlu0 %v5877, 56
        %v7525 = vpop.permute.xlu0 %7524
        %v7527 = vsel %vm1233, %v7281, 0
        %v7530 = vsel %vm1740, %v7525, 0
        %7532 = vmatprep.subr.bf16.mxu0 0
        %7533 = vmatpush1.bf16.msra.mxu0 0
        %7534 = vmatprep.subr.bf16.mxu0 0
        %7535 = vmatpush1.bf16.msra.mxu0 0
        %7536 = vmatprep.subr.bf16.mxu0 0
        %7537 = vmatpush1.bf16.msra.mxu0 0
        %7538 = vmatprep.subr.bf16.mxu0 0
        %7539 = vmatpush1.bf16.msra.mxu0 0
        %7540 = vmatprep.subr.bf16.mxu0 0
        %7541 = vmatpush1.bf16.msra.mxu0 0
        %7542 = vmatprep.subr.bf16.mxu0 0
        %7543 = vmatpush1.bf16.msra.mxu0 0
        %7544 = vmatprep.subr.bf16.mxu0 0
        %7545 = vmatpush1.bf16.msra.mxu0 0
        %7546 = vmatprep.subr.bf16.mxu0 0
        %7547 = vmatpush1.bf16.msra.mxu0 %v7530
        %7548 = vmatprep.subr.bf16.mxu0 0
        %7549 = vmatpush2.bf16.msra.mxu0 0
        %7550 = vmatprep.subr.bf16.mxu0 0
        %7551 = vmatpush2.bf16.msra.mxu0 0
        %7552 = vmatprep.subr.bf16.mxu0 0
        %7553 = vmatpush2.bf16.msra.mxu0 0
        %7554 = vmatprep.subr.bf16.mxu0 0
        %7555 = vmatpush2.bf16.msra.mxu0 0
        %7556 = vmatprep.subr.bf16.mxu0 0
        %7557 = vmatpush2.bf16.msra.mxu0 0
        %7558 = vmatprep.subr.bf16.mxu0 0
        %7559 = vmatpush2.bf16.msra.mxu0 0
        %7560 = vmatprep.subr.bf16.mxu0 0
        %7561 = vmatpush2.bf16.msra.mxu0 0
        %7562 = vmatprep.subr.bf16.mxu0 0
        %7563 = vmatpush2.bf16.msra.mxu0 0
        %7564 = vmatprep.mubr.bf16.mxu0 0
        %7565 = vmatmul.mubr.bf16.gmra.mxu0 %v7527
        %v7566 = vpop.f32.mrf.mxu0
        %v7567 = vadd.f32 0.0, %v7566
        %v7568 = vpop.f32.mrf.mxu0
        %v7569 = vpop.f32.mrf.mxu0
        %v7570 = vpop.f32.mrf.mxu0
        %7571 = vdwg.mxu0
        %7572 = vrot.lane.b32.xlu0 %v5878, 56
        %v7573 = vpop.permute.xlu0 %7572
        %v7575 = vsel %vm1233, %v7282, 0
        %v7578 = vsel %vm1740, %v7573, 0
        %7580 = vmatprep.subr.bf16.mxu0 0
        %7581 = vmatpush1.bf16.msra.mxu0 0
        %7582 = vmatprep.subr.bf16.mxu0 0
        %7583 = vmatpush1.bf16.msra.mxu0 0
        %7584 = vmatprep.subr.bf16.mxu0 0
        %7585 = vmatpush1.bf16.msra.mxu0 0
        %7586 = vmatprep.subr.bf16.mxu0 0
        %7587 = vmatpush1.bf16.msra.mxu0 0
        %7588 = vmatprep.subr.bf16.mxu0 0
        %7589 = vmatpush1.bf16.msra.mxu0 0
        %7590 = vmatprep.subr.bf16.mxu0 0
        %7591 = vmatpush1.bf16.msra.mxu0 0
        %7592 = vmatprep.subr.bf16.mxu0 0
        %7593 = vmatpush1.bf16.msra.mxu0 0
        %7594 = vmatprep.subr.bf16.mxu0 0
        %7595 = vmatpush1.bf16.msra.mxu0 %v7578
        %7596 = vmatprep.subr.bf16.mxu0 0
        %7597 = vmatpush2.bf16.msra.mxu0 0
        %7598 = vmatprep.subr.bf16.mxu0 0
        %7599 = vmatpush2.bf16.msra.mxu0 0
        %7600 = vmatprep.subr.bf16.mxu0 0
        %7601 = vmatpush2.bf16.msra.mxu0 0
        %7602 = vmatprep.subr.bf16.mxu0 0
        %7603 = vmatpush2.bf16.msra.mxu0 0
        %7604 = vmatprep.subr.bf16.mxu0 0
        %7605 = vmatpush2.bf16.msra.mxu0 0
        %7606 = vmatprep.subr.bf16.mxu0 0
        %7607 = vmatpush2.bf16.msra.mxu0 0
        %7608 = vmatprep.subr.bf16.mxu0 0
        %7609 = vmatpush2.bf16.msra.mxu0 0
        %7610 = vmatprep.subr.bf16.mxu0 0
        %7611 = vmatpush2.bf16.msra.mxu0 0
        %7612 = vmatprep.mubr.bf16.mxu0 0
        %7613 = vmatmul.mubr.bf16.gmra.mxu0 %v7575
        %v7614 = vpop.f32.mrf.mxu0
        %v7615 = vadd.f32 0.0, %v7614
        %v7616 = vpop.f32.mrf.mxu0
        %v7617 = vpop.f32.mrf.mxu0
        %v7618 = vpop.f32.mrf.mxu0
        %7619 = vdwg.mxu0
        %7620 = vrot.lane.b32.xlu0 %v5879, 56
        %v7621 = vpop.permute.xlu0 %7620
        %v7623 = vsel %vm1233, %v7283, 0
        %v7626 = vsel %vm1740, %v7621, 0
        %7628 = vmatprep.subr.bf16.mxu0 0
        %7629 = vmatpush1.bf16.msra.mxu0 0
        %7630 = vmatprep.subr.bf16.mxu0 0
        %7631 = vmatpush1.bf16.msra.mxu0 0
        %7632 = vmatprep.subr.bf16.mxu0 0
        %7633 = vmatpush1.bf16.msra.mxu0 0
        %7634 = vmatprep.subr.bf16.mxu0 0
        %7635 = vmatpush1.bf16.msra.mxu0 0
        %7636 = vmatprep.subr.bf16.mxu0 0
        %7637 = vmatpush1.bf16.msra.mxu0 0
        %7638 = vmatprep.subr.bf16.mxu0 0
        %7639 = vmatpush1.bf16.msra.mxu0 0
        %7640 = vmatprep.subr.bf16.mxu0 0
        %7641 = vmatpush1.bf16.msra.mxu0 0
        %7642 = vmatprep.subr.bf16.mxu0 0
        %7643 = vmatpush1.bf16.msra.mxu0 %v7626
        %7644 = vmatprep.subr.bf16.mxu0 0
        %7645 = vmatpush2.bf16.msra.mxu0 0
        %7646 = vmatprep.subr.bf16.mxu0 0
        %7647 = vmatpush2.bf16.msra.mxu0 0
        %7648 = vmatprep.subr.bf16.mxu0 0
        %7649 = vmatpush2.bf16.msra.mxu0 0
        %7650 = vmatprep.subr.bf16.mxu0 0
        %7651 = vmatpush2.bf16.msra.mxu0 0
        %7652 = vmatprep.subr.bf16.mxu0 0
        %7653 = vmatpush2.bf16.msra.mxu0 0
        %7654 = vmatprep.subr.bf16.mxu0 0
        %7655 = vmatpush2.bf16.msra.mxu0 0
        %7656 = vmatprep.subr.bf16.mxu0 0
        %7657 = vmatpush2.bf16.msra.mxu0 0
        %7658 = vmatprep.subr.bf16.mxu0 0
        %7659 = vmatpush2.bf16.msra.mxu0 0
        %7660 = vmatprep.mubr.bf16.mxu0 0
        %7661 = vmatmul.mubr.bf16.gmra.mxu0 %v7623
        %v7662 = vpop.f32.mrf.mxu0
        %v7663 = vadd.f32 0.0, %v7662
        %v7664 = vpop.f32.mrf.mxu0
        %v7665 = vpop.f32.mrf.mxu0
        %v7666 = vpop.f32.mrf.mxu0
        %7667 = vdwg.mxu0
        %v7668 = vpack.c.bf16 %v7375, %v7327
        %v7669 = vpack.c.bf16 %v7471, %v7423
        %v7670 = vpack.c.bf16 %v7567, %v7519
        %v7671 = vpack.c.bf16 %v7663, %v7615
        %v7673 = vsel %vm1233, %v7668, 0
        %v7676 = vsel %vm1233, %v7669, 0
        %v7679 = vsel %vm1233, %v7670, 0
        %v7682 = vsel %vm1233, %v7671, 0
        %v7685 = vsel %vm1740, %v5869, 0
        %7687 = vmatprep.subr.bf16.mxu0 0
        %7688 = vmatpush1.bf16.msra.mxu0 0
        %7689 = vmatprep.subr.bf16.mxu0 0
        %7690 = vmatpush1.bf16.msra.mxu0 0
        %7691 = vmatprep.subr.bf16.mxu0 0
        %7692 = vmatpush1.bf16.msra.mxu0 0
        %7693 = vmatprep.subr.bf16.mxu0 0
        %7694 = vmatpush1.bf16.msra.mxu0 0
        %7695 = vmatprep.subr.bf16.mxu0 0
        %7696 = vmatpush1.bf16.msra.mxu0 0
        %7697 = vmatprep.subr.bf16.mxu0 0
        %7698 = vmatpush1.bf16.msra.mxu0 0
        %7699 = vmatprep.subr.bf16.mxu0 0
        %7700 = vmatpush1.bf16.msra.mxu0 0
        %7701 = vmatprep.subr.bf16.mxu0 0
        %7702 = vmatpush1.bf16.msra.mxu0 %v7685
        %7703 = vmatprep.subr.bf16.mxu0 0
        %7704 = vmatpush2.bf16.msra.mxu0 0
        %7705 = vmatprep.subr.bf16.mxu0 0
        %7706 = vmatpush2.bf16.msra.mxu0 0
        %7707 = vmatprep.subr.bf16.mxu0 0
        %7708 = vmatpush2.bf16.msra.mxu0 0
        %7709 = vmatprep.subr.bf16.mxu0 0
        %7710 = vmatpush2.bf16.msra.mxu0 0
        %7711 = vmatprep.subr.bf16.mxu0 0
        %7712 = vmatpush2.bf16.msra.mxu0 0
        %7713 = vmatprep.subr.bf16.mxu0 0
        %7714 = vmatpush2.bf16.msra.mxu0 0
        %7715 = vmatprep.subr.bf16.mxu0 0
        %7716 = vmatpush2.bf16.msra.mxu0 0
        %7717 = vmatprep.subr.bf16.mxu0 0
        %7718 = vmatpush2.bf16.msra.mxu0 0
        %7719 = vmatprep.mubr.bf16.mxu0 0
        %7720 = vmatmul.mubr.bf16.gmra.mxu0 %v7673
        %v7721 = vpop.f32.mrf.mxu0
        %v7722 = vadd.f32 0.0, %v7721
        %v7723 = vpop.f32.mrf.mxu0
        %v7724 = vpop.f32.mrf.mxu0
        %v7725 = vadd.f32 0.0, %v7724
        %v7726 = vpop.f32.mrf.mxu0
        %7727 = vmatprep.mubr.bf16.mxu0 0
        %7728 = vmatmul.mubr.bf16.gmra.mxu0 %v7676
        %v7729 = vpop.f32.mrf.mxu0
        %v7730 = vadd.f32 0.0, %v7729
        %v7731 = vpop.f32.mrf.mxu0
        %v7732 = vpop.f32.mrf.mxu0
        %v7733 = vadd.f32 0.0, %v7732
        %v7734 = vpop.f32.mrf.mxu0
        %7735 = vmatprep.mubr.bf16.mxu0 0
        %7736 = vmatmul.mubr.bf16.gmra.mxu0 %v7679
        %v7737 = vpop.f32.mrf.mxu0
        %v7738 = vadd.f32 0.0, %v7737
        %v7739 = vpop.f32.mrf.mxu0
        %v7740 = vpop.f32.mrf.mxu0
        %v7741 = vadd.f32 0.0, %v7740
        %v7742 = vpop.f32.mrf.mxu0
        %7743 = vmatprep.mubr.bf16.mxu0 0
        %7744 = vmatmul.mubr.bf16.gmra.mxu0 %v7682
        %v7745 = vpop.f32.mrf.mxu0
        %v7746 = vadd.f32 0.0, %v7745
        %v7747 = vpop.f32.mrf.mxu0
        %v7748 = vpop.f32.mrf.mxu0
        %v7749 = vadd.f32 0.0, %v7748
        %v7750 = vpop.f32.mrf.mxu0
        %7751 = vdwg.mxu0
        %v7753 = vsel %vm1233, %v6768, 0
        %v7756 = vsel %vm1233, %v6769, 0
        %v7759 = vsel %vm1233, %v6770, 0
        %v7762 = vsel %vm1233, %v6771, 0
        %v7765 = vsel %vm1740, %v5868, 0
        %7767 = vmatprep.subr.bf16.mxu0 0
        %7768 = vmatpush1.bf16.msra.mxu0 0
        %7769 = vmatprep.subr.bf16.mxu0 0
        %7770 = vmatpush1.bf16.msra.mxu0 0
        %7771 = vmatprep.subr.bf16.mxu0 0
        %7772 = vmatpush1.bf16.msra.mxu0 0
        %7773 = vmatprep.subr.bf16.mxu0 0
        %7774 = vmatpush1.bf16.msra.mxu0 0
        %7775 = vmatprep.subr.bf16.mxu0 0
        %7776 = vmatpush1.bf16.msra.mxu0 0
        %7777 = vmatprep.subr.bf16.mxu0 0
        %7778 = vmatpush1.bf16.msra.mxu0 0
        %7779 = vmatprep.subr.bf16.mxu0 0
        %7780 = vmatpush1.bf16.msra.mxu0 0
        %7781 = vmatprep.subr.bf16.mxu0 0
        %7782 = vmatpush1.bf16.msra.mxu0 %v7765
        %7783 = vmatprep.subr.bf16.mxu0 0
        %7784 = vmatpush2.bf16.msra.mxu0 0
        %7785 = vmatprep.subr.bf16.mxu0 0
        %7786 = vmatpush2.bf16.msra.mxu0 0
        %7787 = vmatprep.subr.bf16.mxu0 0
        %7788 = vmatpush2.bf16.msra.mxu0 0
        %7789 = vmatprep.subr.bf16.mxu0 0
        %7790 = vmatpush2.bf16.msra.mxu0 0
        %7791 = vmatprep.subr.bf16.mxu0 0
        %7792 = vmatpush2.bf16.msra.mxu0 0
        %7793 = vmatprep.subr.bf16.mxu0 0
        %7794 = vmatpush2.bf16.msra.mxu0 0
        %7795 = vmatprep.subr.bf16.mxu0 0
        %7796 = vmatpush2.bf16.msra.mxu0 0
        %7797 = vmatprep.subr.bf16.mxu0 0
        %7798 = vmatpush2.bf16.msra.mxu0 0
        %7799 = vmatprep.mubr.bf16.mxu0 0
        %7800 = vmatmul.mubr.bf16.gmra.mxu0 %v7753
        %v7801 = vpop.f32.mrf.mxu0
        %v7802 = vadd.f32 %v7722, %v7801
        %v7803 = vpop.f32.mrf.mxu0
        %v7804 = vpop.f32.mrf.mxu0
        %v7805 = vadd.f32 %v7725, %v7804
        %v7806 = vpop.f32.mrf.mxu0
        %7807 = vmatprep.mubr.bf16.mxu0 0
        %7808 = vmatmul.mubr.bf16.gmra.mxu0 %v7756
        %v7809 = vpop.f32.mrf.mxu0
        %v7810 = vadd.f32 %v7730, %v7809
        %v7811 = vpop.f32.mrf.mxu0
        %v7812 = vpop.f32.mrf.mxu0
        %v7813 = vadd.f32 %v7733, %v7812
        %v7814 = vpop.f32.mrf.mxu0
        %7815 = vmatprep.mubr.bf16.mxu0 0
        %7816 = vmatmul.mubr.bf16.gmra.mxu0 %v7759
        %v7817 = vpop.f32.mrf.mxu0
        %v7818 = vadd.f32 %v7738, %v7817
        %v7819 = vpop.f32.mrf.mxu0
        %v7820 = vpop.f32.mrf.mxu0
        %v7821 = vadd.f32 %v7741, %v7820
        %v7822 = vpop.f32.mrf.mxu0
        %7823 = vmatprep.mubr.bf16.mxu0 0
        %7824 = vmatmul.mubr.bf16.gmra.mxu0 %v7762
        %v7825 = vpop.f32.mrf.mxu0
        %v7826 = vadd.f32 %v7746, %v7825
        %v7827 = vpop.f32.mrf.mxu0
        %v7828 = vpop.f32.mrf.mxu0
        %v7829 = vadd.f32 %v7749, %v7828
        %v7830 = vpop.f32.mrf.mxu0
        %7831 = vdwg.mxu0
        %7832 = vrot.lane.b32.xlu0 %v5872, 112
        %v7833 = vpop.permute.xlu0 %7832
        %7834 = vrot.lane.b32.xlu0 %v5872, 80
        %v7835 = vpop.permute.xlu0 %7834
        %v7837 = vsel %vm1233, %v7833, 0
        %v7840 = vsel %vm1233, %v7835, 0
        %7842 = vmatprep.subr.bf16.mxu0 0
        %7843 = vmatpush1.bf16.xpose.msra.mxu0 0
        %7844 = vmatprep.subr.bf16.mxu0 0
        %7845 = vmatpush1.bf16.xpose.msra.mxu0 0
        %7846 = vmatprep.subr.bf16.mxu0 0
        %7847 = vmatpush1.bf16.xpose.msra.mxu0 0
        %7848 = vmatprep.subr.bf16.mxu0 0
        %7849 = vmatpush1.bf16.xpose.msra.mxu0 0
        %7850 = vmatprep.subr.bf16.mxu0 0
        %7851 = vmatpush1.bf16.xpose.msra.mxu0 0
        %7852 = vmatprep.subr.bf16.mxu0 0
        %7853 = vmatpush1.bf16.xpose.msra.mxu0 0
        %7854 = vmatprep.subr.bf16.mxu0 0
        %7855 = vmatpush1.bf16.xpose.msra.mxu0 0
        %7856 = vmatprep.subr.bf16.mxu0 0
        %7857 = vmatpush1.bf16.xpose.msra.mxu0 %v7840
        %7858 = vmatprep.subr.bf16.mxu0 0
        %7859 = vmatpush2.bf16.xpose.msra.mxu0 0
        %7860 = vmatprep.subr.bf16.mxu0 0
        %7861 = vmatpush2.bf16.xpose.msra.mxu0 0
        %7862 = vmatprep.subr.bf16.mxu0 0
        %7863 = vmatpush2.bf16.xpose.msra.mxu0 0
        %7864 = vmatprep.subr.bf16.mxu0 0
        %7865 = vmatpush2.bf16.xpose.msra.mxu0 0
        %7866 = vmatprep.subr.bf16.mxu0 0
        %7867 = vmatpush2.bf16.xpose.msra.mxu0 0
        %7868 = vmatprep.subr.bf16.mxu0 0
        %7869 = vmatpush2.bf16.xpose.msra.mxu0 0
        %7870 = vmatprep.subr.bf16.mxu0 0
        %7871 = vmatpush2.bf16.xpose.msra.mxu0 0
        %7872 = vmatprep.subr.bf16.mxu0 0
        %7873 = vmatpush2.bf16.xpose.msra.mxu0 0
        %7874 = vmatprep.mubr.bf16.mxu0 0
        %7875 = vmatmul.mubr.bf16.gmra.mxu0 %v7837
        %v7876 = vpop.f32.mrf.mxu0
        %v7877 = vadd.f32 0.0, %v7876
        %v7878 = vpop.f32.mrf.mxu0
        %v7879 = vpop.f32.mrf.mxu0
        %v7880 = vpop.f32.mrf.mxu0
        %7881 = vdwg.mxu0
        %7882 = vrot.lane.b32.xlu0 %v5873, 112
        %v7883 = vpop.permute.xlu0 %7882
        %7884 = vrot.lane.b32.xlu0 %v5873, 80
        %v7885 = vpop.permute.xlu0 %7884
        %v7887 = vsel %vm1233, %v7883, 0
        %v7890 = vsel %vm1233, %v7885, 0
        %7892 = vmatprep.subr.bf16.mxu0 0
        %7893 = vmatpush1.bf16.xpose.msra.mxu0 0
        %7894 = vmatprep.subr.bf16.mxu0 0
        %7895 = vmatpush1.bf16.xpose.msra.mxu0 0
        %7896 = vmatprep.subr.bf16.mxu0 0
        %7897 = vmatpush1.bf16.xpose.msra.mxu0 0
        %7898 = vmatprep.subr.bf16.mxu0 0
        %7899 = vmatpush1.bf16.xpose.msra.mxu0 0
        %7900 = vmatprep.subr.bf16.mxu0 0
        %7901 = vmatpush1.bf16.xpose.msra.mxu0 0
        %7902 = vmatprep.subr.bf16.mxu0 0
        %7903 = vmatpush1.bf16.xpose.msra.mxu0 0
        %7904 = vmatprep.subr.bf16.mxu0 0
        %7905 = vmatpush1.bf16.xpose.msra.mxu0 0
        %7906 = vmatprep.subr.bf16.mxu0 0
        %7907 = vmatpush1.bf16.xpose.msra.mxu0 %v7890
        %7908 = vmatprep.subr.bf16.mxu0 0
        %7909 = vmatpush2.bf16.xpose.msra.mxu0 0
        %7910 = vmatprep.subr.bf16.mxu0 0
        %7911 = vmatpush2.bf16.xpose.msra.mxu0 0
        %7912 = vmatprep.subr.bf16.mxu0 0
        %7913 = vmatpush2.bf16.xpose.msra.mxu0 0
        %7914 = vmatprep.subr.bf16.mxu0 0
        %7915 = vmatpush2.bf16.xpose.msra.mxu0 0
        %7916 = vmatprep.subr.bf16.mxu0 0
        %7917 = vmatpush2.bf16.xpose.msra.mxu0 0
        %7918 = vmatprep.subr.bf16.mxu0 0
        %7919 = vmatpush2.bf16.xpose.msra.mxu0 0
        %7920 = vmatprep.subr.bf16.mxu0 0
        %7921 = vmatpush2.bf16.xpose.msra.mxu0 0
        %7922 = vmatprep.subr.bf16.mxu0 0
        %7923 = vmatpush2.bf16.xpose.msra.mxu0 0
        %7924 = vmatprep.mubr.bf16.mxu0 0
        %7925 = vmatmul.mubr.bf16.gmra.mxu0 %v7887
        %v7926 = vpop.f32.mrf.mxu0
        %v7927 = vadd.f32 0.0, %v7926
        %v7928 = vpop.f32.mrf.mxu0
        %v7929 = vpop.f32.mrf.mxu0
        %v7930 = vpop.f32.mrf.mxu0
        %7931 = vdwg.mxu0
        %7932 = vrot.lane.b32.xlu0 %v5874, 112
        %v7933 = vpop.permute.xlu0 %7932
        %7934 = vrot.lane.b32.xlu0 %v5874, 80
        %v7935 = vpop.permute.xlu0 %7934
        %v7937 = vsel %vm1233, %v7933, 0
        %v7940 = vsel %vm1233, %v7935, 0
        %7942 = vmatprep.subr.bf16.mxu0 0
        %7943 = vmatpush1.bf16.xpose.msra.mxu0 0
        %7944 = vmatprep.subr.bf16.mxu0 0
        %7945 = vmatpush1.bf16.xpose.msra.mxu0 0
        %7946 = vmatprep.subr.bf16.mxu0 0
        %7947 = vmatpush1.bf16.xpose.msra.mxu0 0
        %7948 = vmatprep.subr.bf16.mxu0 0
        %7949 = vmatpush1.bf16.xpose.msra.mxu0 0
        %7950 = vmatprep.subr.bf16.mxu0 0
        %7951 = vmatpush1.bf16.xpose.msra.mxu0 0
        %7952 = vmatprep.subr.bf16.mxu0 0
        %7953 = vmatpush1.bf16.xpose.msra.mxu0 0
        %7954 = vmatprep.subr.bf16.mxu0 0
        %7955 = vmatpush1.bf16.xpose.msra.mxu0 0
        %7956 = vmatprep.subr.bf16.mxu0 0
        %7957 = vmatpush1.bf16.xpose.msra.mxu0 %v7940
        %7958 = vmatprep.subr.bf16.mxu0 0
        %7959 = vmatpush2.bf16.xpose.msra.mxu0 0
        %7960 = vmatprep.subr.bf16.mxu0 0
        %7961 = vmatpush2.bf16.xpose.msra.mxu0 0
        %7962 = vmatprep.subr.bf16.mxu0 0
        %7963 = vmatpush2.bf16.xpose.msra.mxu0 0
        %7964 = vmatprep.subr.bf16.mxu0 0
        %7965 = vmatpush2.bf16.xpose.msra.mxu0 0
        %7966 = vmatprep.subr.bf16.mxu0 0
        %7967 = vmatpush2.bf16.xpose.msra.mxu0 0
        %7968 = vmatprep.subr.bf16.mxu0 0
        %7969 = vmatpush2.bf16.xpose.msra.mxu0 0
        %7970 = vmatprep.subr.bf16.mxu0 0
        %7971 = vmatpush2.bf16.xpose.msra.mxu0 0
        %7972 = vmatprep.subr.bf16.mxu0 0
        %7973 = vmatpush2.bf16.xpose.msra.mxu0 0
        %7974 = vmatprep.mubr.bf16.mxu0 0
        %7975 = vmatmul.mubr.bf16.gmra.mxu0 %v7937
        %v7976 = vpop.f32.mrf.mxu0
        %v7977 = vadd.f32 0.0, %v7976
        %v7978 = vpop.f32.mrf.mxu0
        %v7979 = vpop.f32.mrf.mxu0
        %v7980 = vpop.f32.mrf.mxu0
        %7981 = vdwg.mxu0
        %7982 = vrot.lane.b32.xlu0 %v5875, 112
        %v7983 = vpop.permute.xlu0 %7982
        %7984 = vrot.lane.b32.xlu0 %v5875, 80
        %v7985 = vpop.permute.xlu0 %7984
        %v7987 = vsel %vm1233, %v7983, 0
        %v7990 = vsel %vm1233, %v7985, 0
        %7992 = vmatprep.subr.bf16.mxu0 0
        %7993 = vmatpush1.bf16.xpose.msra.mxu0 0
        %7994 = vmatprep.subr.bf16.mxu0 0
        %7995 = vmatpush1.bf16.xpose.msra.mxu0 0
        %7996 = vmatprep.subr.bf16.mxu0 0
        %7997 = vmatpush1.bf16.xpose.msra.mxu0 0
        %7998 = vmatprep.subr.bf16.mxu0 0
        %7999 = vmatpush1.bf16.xpose.msra.mxu0 0
        %8000 = vmatprep.subr.bf16.mxu0 0
        %8001 = vmatpush1.bf16.xpose.msra.mxu0 0
        %8002 = vmatprep.subr.bf16.mxu0 0
        %8003 = vmatpush1.bf16.xpose.msra.mxu0 0
        %8004 = vmatprep.subr.bf16.mxu0 0
        %8005 = vmatpush1.bf16.xpose.msra.mxu0 0
        %8006 = vmatprep.subr.bf16.mxu0 0
        %8007 = vmatpush1.bf16.xpose.msra.mxu0 %v7990
        %8008 = vmatprep.subr.bf16.mxu0 0
        %8009 = vmatpush2.bf16.xpose.msra.mxu0 0
        %8010 = vmatprep.subr.bf16.mxu0 0
        %8011 = vmatpush2.bf16.xpose.msra.mxu0 0
        %8012 = vmatprep.subr.bf16.mxu0 0
        %8013 = vmatpush2.bf16.xpose.msra.mxu0 0
        %8014 = vmatprep.subr.bf16.mxu0 0
        %8015 = vmatpush2.bf16.xpose.msra.mxu0 0
        %8016 = vmatprep.subr.bf16.mxu0 0
        %8017 = vmatpush2.bf16.xpose.msra.mxu0 0
        %8018 = vmatprep.subr.bf16.mxu0 0
        %8019 = vmatpush2.bf16.xpose.msra.mxu0 0
        %8020 = vmatprep.subr.bf16.mxu0 0
        %8021 = vmatpush2.bf16.xpose.msra.mxu0 0
        %8022 = vmatprep.subr.bf16.mxu0 0
        %8023 = vmatpush2.bf16.xpose.msra.mxu0 0
        %8024 = vmatprep.mubr.bf16.mxu0 0
        %8025 = vmatmul.mubr.bf16.gmra.mxu0 %v7987
        %v8026 = vpop.f32.mrf.mxu0
        %v8027 = vadd.f32 0.0, %v8026
        %v8028 = vpop.f32.mrf.mxu0
        %v8029 = vpop.f32.mrf.mxu0
        %v8030 = vpop.f32.mrf.mxu0
        %8031 = vdwg.mxu0
        %8032 = vrot.lane.b32.xlu0 %v5876, 112
        %v8033 = vpop.permute.xlu0 %8032
        %8034 = vrot.lane.b32.xlu0 %v5876, 80
        %v8035 = vpop.permute.xlu0 %8034
        %v8037 = vsel %vm1233, %v8033, 0
        %v8040 = vsel %vm1233, %v8035, 0
        %8042 = vmatprep.subr.bf16.mxu0 0
        %8043 = vmatpush1.bf16.xpose.msra.mxu0 0
        %8044 = vmatprep.subr.bf16.mxu0 0
        %8045 = vmatpush1.bf16.xpose.msra.mxu0 0
        %8046 = vmatprep.subr.bf16.mxu0 0
        %8047 = vmatpush1.bf16.xpose.msra.mxu0 0
        %8048 = vmatprep.subr.bf16.mxu0 0
        %8049 = vmatpush1.bf16.xpose.msra.mxu0 0
        %8050 = vmatprep.subr.bf16.mxu0 0
        %8051 = vmatpush1.bf16.xpose.msra.mxu0 0
        %8052 = vmatprep.subr.bf16.mxu0 0
        %8053 = vmatpush1.bf16.xpose.msra.mxu0 0
        %8054 = vmatprep.subr.bf16.mxu0 0
        %8055 = vmatpush1.bf16.xpose.msra.mxu0 0
        %8056 = vmatprep.subr.bf16.mxu0 0
        %8057 = vmatpush1.bf16.xpose.msra.mxu0 %v8040
        %8058 = vmatprep.subr.bf16.mxu0 0
        %8059 = vmatpush2.bf16.xpose.msra.mxu0 0
        %8060 = vmatprep.subr.bf16.mxu0 0
        %8061 = vmatpush2.bf16.xpose.msra.mxu0 0
        %8062 = vmatprep.subr.bf16.mxu0 0
        %8063 = vmatpush2.bf16.xpose.msra.mxu0 0
        %8064 = vmatprep.subr.bf16.mxu0 0
        %8065 = vmatpush2.bf16.xpose.msra.mxu0 0
        %8066 = vmatprep.subr.bf16.mxu0 0
        %8067 = vmatpush2.bf16.xpose.msra.mxu0 0
        %8068 = vmatprep.subr.bf16.mxu0 0
        %8069 = vmatpush2.bf16.xpose.msra.mxu0 0
        %8070 = vmatprep.subr.bf16.mxu0 0
        %8071 = vmatpush2.bf16.xpose.msra.mxu0 0
        %8072 = vmatprep.subr.bf16.mxu0 0
        %8073 = vmatpush2.bf16.xpose.msra.mxu0 0
        %8074 = vmatprep.mubr.bf16.mxu0 0
        %8075 = vmatmul.mubr.bf16.gmra.mxu0 %v8037
        %v8076 = vpop.f32.mrf.mxu0
        %v8077 = vadd.f32 0.0, %v8076
        %v8078 = vpop.f32.mrf.mxu0
        %v8079 = vpop.f32.mrf.mxu0
        %v8080 = vpop.f32.mrf.mxu0
        %8081 = vdwg.mxu0
        %8082 = vrot.lane.b32.xlu0 %v5877, 112
        %v8083 = vpop.permute.xlu0 %8082
        %8084 = vrot.lane.b32.xlu0 %v5877, 80
        %v8085 = vpop.permute.xlu0 %8084
        %v8087 = vsel %vm1233, %v8083, 0
        %v8090 = vsel %vm1233, %v8085, 0
        %8092 = vmatprep.subr.bf16.mxu0 0
        %8093 = vmatpush1.bf16.xpose.msra.mxu0 0
        %8094 = vmatprep.subr.bf16.mxu0 0
        %8095 = vmatpush1.bf16.xpose.msra.mxu0 0
        %8096 = vmatprep.subr.bf16.mxu0 0
        %8097 = vmatpush1.bf16.xpose.msra.mxu0 0
        %8098 = vmatprep.subr.bf16.mxu0 0
        %8099 = vmatpush1.bf16.xpose.msra.mxu0 0
        %8100 = vmatprep.subr.bf16.mxu0 0
        %8101 = vmatpush1.bf16.xpose.msra.mxu0 0
        %8102 = vmatprep.subr.bf16.mxu0 0
        %8103 = vmatpush1.bf16.xpose.msra.mxu0 0
        %8104 = vmatprep.subr.bf16.mxu0 0
        %8105 = vmatpush1.bf16.xpose.msra.mxu0 0
        %8106 = vmatprep.subr.bf16.mxu0 0
        %8107 = vmatpush1.bf16.xpose.msra.mxu0 %v8090
        %8108 = vmatprep.subr.bf16.mxu0 0
        %8109 = vmatpush2.bf16.xpose.msra.mxu0 0
        %8110 = vmatprep.subr.bf16.mxu0 0
        %8111 = vmatpush2.bf16.xpose.msra.mxu0 0
        %8112 = vmatprep.subr.bf16.mxu0 0
        %8113 = vmatpush2.bf16.xpose.msra.mxu0 0
        %8114 = vmatprep.subr.bf16.mxu0 0
        %8115 = vmatpush2.bf16.xpose.msra.mxu0 0
        %8116 = vmatprep.subr.bf16.mxu0 0
        %8117 = vmatpush2.bf16.xpose.msra.mxu0 0
        %8118 = vmatprep.subr.bf16.mxu0 0
        %8119 = vmatpush2.bf16.xpose.msra.mxu0 0
        %8120 = vmatprep.subr.bf16.mxu0 0
        %8121 = vmatpush2.bf16.xpose.msra.mxu0 0
        %8122 = vmatprep.subr.bf16.mxu0 0
        %8123 = vmatpush2.bf16.xpose.msra.mxu0 0
        %8124 = vmatprep.mubr.bf16.mxu0 0
        %8125 = vmatmul.mubr.bf16.gmra.mxu0 %v8087
        %v8126 = vpop.f32.mrf.mxu0
        %v8127 = vadd.f32 0.0, %v8126
        %v8128 = vpop.f32.mrf.mxu0
        %v8129 = vpop.f32.mrf.mxu0
        %v8130 = vpop.f32.mrf.mxu0
        %8131 = vdwg.mxu0
        %8132 = vrot.lane.b32.xlu0 %v5878, 112
        %v8133 = vpop.permute.xlu0 %8132
        %8134 = vrot.lane.b32.xlu0 %v5878, 80
        %v8135 = vpop.permute.xlu0 %8134
        %v8137 = vsel %vm1233, %v8133, 0
        %v8140 = vsel %vm1233, %v8135, 0
        %8142 = vmatprep.subr.bf16.mxu0 0
        %8143 = vmatpush1.bf16.xpose.msra.mxu0 0
        %8144 = vmatprep.subr.bf16.mxu0 0
        %8145 = vmatpush1.bf16.xpose.msra.mxu0 0
        %8146 = vmatprep.subr.bf16.mxu0 0
        %8147 = vmatpush1.bf16.xpose.msra.mxu0 0
        %8148 = vmatprep.subr.bf16.mxu0 0
        %8149 = vmatpush1.bf16.xpose.msra.mxu0 0
        %8150 = vmatprep.subr.bf16.mxu0 0
        %8151 = vmatpush1.bf16.xpose.msra.mxu0 0
        %8152 = vmatprep.subr.bf16.mxu0 0
        %8153 = vmatpush1.bf16.xpose.msra.mxu0 0
        %8154 = vmatprep.subr.bf16.mxu0 0
        %8155 = vmatpush1.bf16.xpose.msra.mxu0 0
        %8156 = vmatprep.subr.bf16.mxu0 0
        %8157 = vmatpush1.bf16.xpose.msra.mxu0 %v8140
        %8158 = vmatprep.subr.bf16.mxu0 0
        %8159 = vmatpush2.bf16.xpose.msra.mxu0 0
        %8160 = vmatprep.subr.bf16.mxu0 0
        %8161 = vmatpush2.bf16.xpose.msra.mxu0 0
        %8162 = vmatprep.subr.bf16.mxu0 0
        %8163 = vmatpush2.bf16.xpose.msra.mxu0 0
        %8164 = vmatprep.subr.bf16.mxu0 0
        %8165 = vmatpush2.bf16.xpose.msra.mxu0 0
        %8166 = vmatprep.subr.bf16.mxu0 0
        %8167 = vmatpush2.bf16.xpose.msra.mxu0 0
        %8168 = vmatprep.subr.bf16.mxu0 0
        %8169 = vmatpush2.bf16.xpose.msra.mxu0 0
        %8170 = vmatprep.subr.bf16.mxu0 0
        %8171 = vmatpush2.bf16.xpose.msra.mxu0 0
        %8172 = vmatprep.subr.bf16.mxu0 0
        %8173 = vmatpush2.bf16.xpose.msra.mxu0 0
        %8174 = vmatprep.mubr.bf16.mxu0 0
        %8175 = vmatmul.mubr.bf16.gmra.mxu0 %v8137
        %v8176 = vpop.f32.mrf.mxu0
        %v8177 = vadd.f32 0.0, %v8176
        %v8178 = vpop.f32.mrf.mxu0
        %v8179 = vpop.f32.mrf.mxu0
        %v8180 = vpop.f32.mrf.mxu0
        %8181 = vdwg.mxu0
        %8182 = vrot.lane.b32.xlu0 %v5879, 112
        %v8183 = vpop.permute.xlu0 %8182
        %8184 = vrot.lane.b32.xlu0 %v5879, 80
        %v8185 = vpop.permute.xlu0 %8184
        %v8187 = vsel %vm1233, %v8183, 0
        %v8190 = vsel %vm1233, %v8185, 0
        %8192 = vmatprep.subr.bf16.mxu0 0
        %8193 = vmatpush1.bf16.xpose.msra.mxu0 0
        %8194 = vmatprep.subr.bf16.mxu0 0
        %8195 = vmatpush1.bf16.xpose.msra.mxu0 0
        %8196 = vmatprep.subr.bf16.mxu0 0
        %8197 = vmatpush1.bf16.xpose.msra.mxu0 0
        %8198 = vmatprep.subr.bf16.mxu0 0
        %8199 = vmatpush1.bf16.xpose.msra.mxu0 0
        %8200 = vmatprep.subr.bf16.mxu0 0
        %8201 = vmatpush1.bf16.xpose.msra.mxu0 0
        %8202 = vmatprep.subr.bf16.mxu0 0
        %8203 = vmatpush1.bf16.xpose.msra.mxu0 0
        %8204 = vmatprep.subr.bf16.mxu0 0
        %8205 = vmatpush1.bf16.xpose.msra.mxu0 0
        %8206 = vmatprep.subr.bf16.mxu0 0
        %8207 = vmatpush1.bf16.xpose.msra.mxu0 %v8190
        %8208 = vmatprep.subr.bf16.mxu0 0
        %8209 = vmatpush2.bf16.xpose.msra.mxu0 0
        %8210 = vmatprep.subr.bf16.mxu0 0
        %8211 = vmatpush2.bf16.xpose.msra.mxu0 0
        %8212 = vmatprep.subr.bf16.mxu0 0
        %8213 = vmatpush2.bf16.xpose.msra.mxu0 0
        %8214 = vmatprep.subr.bf16.mxu0 0
        %8215 = vmatpush2.bf16.xpose.msra.mxu0 0
        %8216 = vmatprep.subr.bf16.mxu0 0
        %8217 = vmatpush2.bf16.xpose.msra.mxu0 0
        %8218 = vmatprep.subr.bf16.mxu0 0
        %8219 = vmatpush2.bf16.xpose.msra.mxu0 0
        %8220 = vmatprep.subr.bf16.mxu0 0
        %8221 = vmatpush2.bf16.xpose.msra.mxu0 0
        %8222 = vmatprep.subr.bf16.mxu0 0
        %8223 = vmatpush2.bf16.xpose.msra.mxu0 0
        %8224 = vmatprep.mubr.bf16.mxu0 0
        %8225 = vmatmul.mubr.bf16.gmra.mxu0 %v8187
        %v8226 = vpop.f32.mrf.mxu0
        %v8227 = vadd.f32 0.0, %v8226
        %v8228 = vpop.f32.mrf.mxu0
        %v8229 = vpop.f32.mrf.mxu0
        %v8230 = vpop.f32.mrf.mxu0
        %8231 = vdwg.mxu0
        %v8232 = vmul.f32 %v7877, 0.35355338
        %v8233 = vmul.f32 %v7927, 0.35355338
        %v8234 = vmul.f32 %v7977, 0.35355338
        %v8235 = vmul.f32 %v8027, 0.35355338
        %v8236 = vmul.f32 %v8077, 0.35355338
        %v8237 = vmul.f32 %v8127, 0.35355338
        %v8238 = vmul.f32 %v8177, 0.35355338
        %v8239 = vmul.f32 %v8227, 0.35355338
        %v8240 = vadd.f32 %v8232, %v979
        %v8241 = vadd.f32 %v8233, %v979
        %v8242 = vadd.f32 %v8234, %v979
        %v8243 = vadd.f32 %v8235, %v979
        %v8244 = vadd.f32 %v8236, %v979
        %v8245 = vadd.f32 %v8237, %v979
        %v8246 = vadd.f32 %v8238, %v979
        %v8247 = vadd.f32 %v8239, %v979
        %v8248 = vsel %vm1233, %v8240, -inf
        %8249 = vmax.xlane.f32.xlu0 %v8248
        %v8250 = vpop.xlane.xlu0 %8249
        %v8251 = vsel %vm1233, %v8241, -inf
        %8252 = vmax.xlane.f32.xlu0 %v8251
        %v8253 = vpop.xlane.xlu0 %8252
        %v8254 = vsel %vm1233, %v8242, -inf
        %8255 = vmax.xlane.f32.xlu0 %v8254
        %v8256 = vpop.xlane.xlu0 %8255
        %v8257 = vsel %vm1233, %v8243, -inf
        %8258 = vmax.xlane.f32.xlu0 %v8257
        %v8259 = vpop.xlane.xlu0 %8258
        %v8260 = vsel %vm1233, %v8244, -inf
        %8261 = vmax.xlane.f32.xlu0 %v8260
        %v8262 = vpop.xlane.xlu0 %8261
        %v8263 = vsel %vm1233, %v8245, -inf
        %8264 = vmax.xlane.f32.xlu0 %v8263
        %v8265 = vpop.xlane.xlu0 %8264
        %v8266 = vsel %vm1233, %v8246, -inf
        %8267 = vmax.xlane.f32.xlu0 %v8266
        %v8268 = vpop.xlane.xlu0 %8267
        %v8269 = vsel %vm1233, %v8247, -inf
        %8270 = vmax.xlane.f32.xlu0 %v8269
        %v8271 = vpop.xlane.xlu0 %8270
        %v8272 = vsub.f32 %v8240, %v8250
        %v8273 = vsub.f32 %v8241, %v8253
        %v8274 = vsub.f32 %v8242, %v8256
        %v8275 = vsub.f32 %v8243, %v8259
        %v8276 = vsub.f32 %v8244, %v8262
        %v8277 = vsub.f32 %v8245, %v8265
        %v8278 = vsub.f32 %v8246, %v8268
        %v8279 = vsub.f32 %v8247, %v8271
        %v8280 = vmul.f32 %v8272, 1.442695
        %v8281 = vpow.pop %v8280
        %v8282 = vmul.f32 %v8273, 1.442695
        %v8283 = vpow.pop %v8282
        %v8284 = vmul.f32 %v8274, 1.442695
        %v8285 = vpow.pop %v8284
        %v8286 = vmul.f32 %v8275, 1.442695
        %v8287 = vpow.pop %v8286
        %v8288 = vmul.f32 %v8276, 1.442695
        %v8289 = vpow.pop %v8288
        %v8290 = vmul.f32 %v8277, 1.442695
        %v8291 = vpow.pop %v8290
        %v8292 = vmul.f32 %v8278, 1.442695
        %v8293 = vpow.pop %v8292
        %v8294 = vmul.f32 %v8279, 1.442695
        %v8295 = vpow.pop %v8294
        %v8296 = vsel %vm1233, %v8281, 0.0
        %8297 = vadd.xlane.f32.xlu0 %v8296
        %v8298 = vpop.xlane.xlu0 %8297
        %v8299 = vsel %vm1233, %v8283, 0.0
        %8300 = vadd.xlane.f32.xlu0 %v8299
        %v8301 = vpop.xlane.xlu0 %8300
        %v8302 = vsel %vm1233, %v8285, 0.0
        %8303 = vadd.xlane.f32.xlu0 %v8302
        %v8304 = vpop.xlane.xlu0 %8303
        %v8305 = vsel %vm1233, %v8287, 0.0
        %8306 = vadd.xlane.f32.xlu0 %v8305
        %v8307 = vpop.xlane.xlu0 %8306
        %v8308 = vsel %vm1233, %v8289, 0.0
        %8309 = vadd.xlane.f32.xlu0 %v8308
        %v8310 = vpop.xlane.xlu0 %8309
        %v8311 = vsel %vm1233, %v8291, 0.0
        %8312 = vadd.xlane.f32.xlu0 %v8311
        %v8313 = vpop.xlane.xlu0 %8312
        %v8314 = vsel %vm1233, %v8293, 0.0
        %8315 = vadd.xlane.f32.xlu0 %v8314
        %v8316 = vpop.xlane.xlu0 %8315
        %v8317 = vsel %vm1233, %v8295, 0.0
        %8318 = vadd.xlane.f32.xlu0 %v8317
        %v8319 = vpop.xlane.xlu0 %8318
        %v8320 = vrcp.pop %v8298
        %v8321 = vrcp.pop %v8301
        %v8322 = vrcp.pop %v8304
        %v8323 = vrcp.pop %v8307
        %v8324 = vrcp.pop %v8310
        %v8325 = vrcp.pop %v8313
        %v8326 = vrcp.pop %v8316
        %v8327 = vrcp.pop %v8319
        %v8328 = vmul.f32 %v8281, %v8320
        %v8329 = vmul.f32 %v8283, %v8321
        %v8330 = vmul.f32 %v8285, %v8322
        %v8331 = vmul.f32 %v8287, %v8323
        %v8332 = vmul.f32 %v8289, %v8324
        %v8333 = vmul.f32 %v8291, %v8325
        %v8334 = vmul.f32 %v8293, %v8326
        %v8335 = vmul.f32 %v8295, %v8327
        %v8336 = vpack.c.bf16 %v8328, %v8328
        %v8337 = vpack.c.bf16 %v8329, %v8329
        %v8338 = vpack.c.bf16 %v8330, %v8330
        %v8339 = vpack.c.bf16 %v8331, %v8331
        %v8340 = vpack.c.bf16 %v8332, %v8332
        %v8341 = vpack.c.bf16 %v8333, %v8333
        %v8342 = vpack.c.bf16 %v8334, %v8334
        %v8343 = vpack.c.bf16 %v8335, %v8335
        %8344 = vrot.lane.b32.xlu0 %v5872, 48
        %v8345 = vpop.permute.xlu0 %8344
        %v8347 = vsel %vm1233, %v8336, 0
        %v8350 = vsel %vm1740, %v8345, 0
        %8352 = vmatprep.subr.bf16.mxu0 0
        %8353 = vmatpush1.bf16.msra.mxu0 0
        %8354 = vmatprep.subr.bf16.mxu0 0
        %8355 = vmatpush1.bf16.msra.mxu0 0
        %8356 = vmatprep.subr.bf16.mxu0 0
        %8357 = vmatpush1.bf16.msra.mxu0 0
        %8358 = vmatprep.subr.bf16.mxu0 0
        %8359 = vmatpush1.bf16.msra.mxu0 0
        %8360 = vmatprep.subr.bf16.mxu0 0
        %8361 = vmatpush1.bf16.msra.mxu0 0
        %8362 = vmatprep.subr.bf16.mxu0 0
        %8363 = vmatpush1.bf16.msra.mxu0 0
        %8364 = vmatprep.subr.bf16.mxu0 0
        %8365 = vmatpush1.bf16.msra.mxu0 0
        %8366 = vmatprep.subr.bf16.mxu0 0
        %8367 = vmatpush1.bf16.msra.mxu0 %v8350
        %8368 = vmatprep.subr.bf16.mxu0 0
        %8369 = vmatpush2.bf16.msra.mxu0 0
        %8370 = vmatprep.subr.bf16.mxu0 0
        %8371 = vmatpush2.bf16.msra.mxu0 0
        %8372 = vmatprep.subr.bf16.mxu0 0
        %8373 = vmatpush2.bf16.msra.mxu0 0
        %8374 = vmatprep.subr.bf16.mxu0 0
        %8375 = vmatpush2.bf16.msra.mxu0 0
        %8376 = vmatprep.subr.bf16.mxu0 0
        %8377 = vmatpush2.bf16.msra.mxu0 0
        %8378 = vmatprep.subr.bf16.mxu0 0
        %8379 = vmatpush2.bf16.msra.mxu0 0
        %8380 = vmatprep.subr.bf16.mxu0 0
        %8381 = vmatpush2.bf16.msra.mxu0 0
        %8382 = vmatprep.subr.bf16.mxu0 0
        %8383 = vmatpush2.bf16.msra.mxu0 0
        %8384 = vmatprep.mubr.bf16.mxu0 0
        %8385 = vmatmul.mubr.bf16.gmra.mxu0 %v8347
        %v8386 = vpop.f32.mrf.mxu0
        %v8387 = vadd.f32 0.0, %v8386
        %v8388 = vpop.f32.mrf.mxu0
        %v8389 = vpop.f32.mrf.mxu0
        %v8390 = vpop.f32.mrf.mxu0
        %8391 = vdwg.mxu0
        %8392 = vrot.lane.b32.xlu0 %v5873, 48
        %v8393 = vpop.permute.xlu0 %8392
        %v8395 = vsel %vm1233, %v8337, 0
        %v8398 = vsel %vm1740, %v8393, 0
        %8400 = vmatprep.subr.bf16.mxu0 0
        %8401 = vmatpush1.bf16.msra.mxu0 0
        %8402 = vmatprep.subr.bf16.mxu0 0
        %8403 = vmatpush1.bf16.msra.mxu0 0
        %8404 = vmatprep.subr.bf16.mxu0 0
        %8405 = vmatpush1.bf16.msra.mxu0 0
        %8406 = vmatprep.subr.bf16.mxu0 0
        %8407 = vmatpush1.bf16.msra.mxu0 0
        %8408 = vmatprep.subr.bf16.mxu0 0
        %8409 = vmatpush1.bf16.msra.mxu0 0
        %8410 = vmatprep.subr.bf16.mxu0 0
        %8411 = vmatpush1.bf16.msra.mxu0 0
        %8412 = vmatprep.subr.bf16.mxu0 0
        %8413 = vmatpush1.bf16.msra.mxu0 0
        %8414 = vmatprep.subr.bf16.mxu0 0
        %8415 = vmatpush1.bf16.msra.mxu0 %v8398
        %8416 = vmatprep.subr.bf16.mxu0 0
        %8417 = vmatpush2.bf16.msra.mxu0 0
        %8418 = vmatprep.subr.bf16.mxu0 0
        %8419 = vmatpush2.bf16.msra.mxu0 0
        %8420 = vmatprep.subr.bf16.mxu0 0
        %8421 = vmatpush2.bf16.msra.mxu0 0
        %8422 = vmatprep.subr.bf16.mxu0 0
        %8423 = vmatpush2.bf16.msra.mxu0 0
        %8424 = vmatprep.subr.bf16.mxu0 0
        %8425 = vmatpush2.bf16.msra.mxu0 0
        %8426 = vmatprep.subr.bf16.mxu0 0
        %8427 = vmatpush2.bf16.msra.mxu0 0
        %8428 = vmatprep.subr.bf16.mxu0 0
        %8429 = vmatpush2.bf16.msra.mxu0 0
        %8430 = vmatprep.subr.bf16.mxu0 0
        %8431 = vmatpush2.bf16.msra.mxu0 0
        %8432 = vmatprep.mubr.bf16.mxu0 0
        %8433 = vmatmul.mubr.bf16.gmra.mxu0 %v8395
        %v8434 = vpop.f32.mrf.mxu0
        %v8435 = vadd.f32 0.0, %v8434
        %v8436 = vpop.f32.mrf.mxu0
        %v8437 = vpop.f32.mrf.mxu0
        %v8438 = vpop.f32.mrf.mxu0
        %8439 = vdwg.mxu0
        %8440 = vrot.lane.b32.xlu0 %v5874, 48
        %v8441 = vpop.permute.xlu0 %8440
        %v8443 = vsel %vm1233, %v8338, 0
        %v8446 = vsel %vm1740, %v8441, 0
        %8448 = vmatprep.subr.bf16.mxu0 0
        %8449 = vmatpush1.bf16.msra.mxu0 0
        %8450 = vmatprep.subr.bf16.mxu0 0
        %8451 = vmatpush1.bf16.msra.mxu0 0
        %8452 = vmatprep.subr.bf16.mxu0 0
        %8453 = vmatpush1.bf16.msra.mxu0 0
        %8454 = vmatprep.subr.bf16.mxu0 0
        %8455 = vmatpush1.bf16.msra.mxu0 0
        %8456 = vmatprep.subr.bf16.mxu0 0
        %8457 = vmatpush1.bf16.msra.mxu0 0
        %8458 = vmatprep.subr.bf16.mxu0 0
        %8459 = vmatpush1.bf16.msra.mxu0 0
        %8460 = vmatprep.subr.bf16.mxu0 0
        %8461 = vmatpush1.bf16.msra.mxu0 0
        %8462 = vmatprep.subr.bf16.mxu0 0
        %8463 = vmatpush1.bf16.msra.mxu0 %v8446
        %8464 = vmatprep.subr.bf16.mxu0 0
        %8465 = vmatpush2.bf16.msra.mxu0 0
        %8466 = vmatprep.subr.bf16.mxu0 0
        %8467 = vmatpush2.bf16.msra.mxu0 0
        %8468 = vmatprep.subr.bf16.mxu0 0
        %8469 = vmatpush2.bf16.msra.mxu0 0
        %8470 = vmatprep.subr.bf16.mxu0 0
        %8471 = vmatpush2.bf16.msra.mxu0 0
        %8472 = vmatprep.subr.bf16.mxu0 0
        %8473 = vmatpush2.bf16.msra.mxu0 0
        %8474 = vmatprep.subr.bf16.mxu0 0
        %8475 = vmatpush2.bf16.msra.mxu0 0
        %8476 = vmatprep.subr.bf16.mxu0 0
        %8477 = vmatpush2.bf16.msra.mxu0 0
        %8478 = vmatprep.subr.bf16.mxu0 0
        %8479 = vmatpush2.bf16.msra.mxu0 0
        %8480 = vmatprep.mubr.bf16.mxu0 0
        %8481 = vmatmul.mubr.bf16.gmra.mxu0 %v8443
        %v8482 = vpop.f32.mrf.mxu0
        %v8483 = vadd.f32 0.0, %v8482
        %v8484 = vpop.f32.mrf.mxu0
        %v8485 = vpop.f32.mrf.mxu0
        %v8486 = vpop.f32.mrf.mxu0
        %8487 = vdwg.mxu0
        %8488 = vrot.lane.b32.xlu0 %v5875, 48
        %v8489 = vpop.permute.xlu0 %8488
        %v8491 = vsel %vm1233, %v8339, 0
        %v8494 = vsel %vm1740, %v8489, 0
        %8496 = vmatprep.subr.bf16.mxu0 0
        %8497 = vmatpush1.bf16.msra.mxu0 0
        %8498 = vmatprep.subr.bf16.mxu0 0
        %8499 = vmatpush1.bf16.msra.mxu0 0
        %8500 = vmatprep.subr.bf16.mxu0 0
        %8501 = vmatpush1.bf16.msra.mxu0 0
        %8502 = vmatprep.subr.bf16.mxu0 0
        %8503 = vmatpush1.bf16.msra.mxu0 0
        %8504 = vmatprep.subr.bf16.mxu0 0
        %8505 = vmatpush1.bf16.msra.mxu0 0
        %8506 = vmatprep.subr.bf16.mxu0 0
        %8507 = vmatpush1.bf16.msra.mxu0 0
        %8508 = vmatprep.subr.bf16.mxu0 0
        %8509 = vmatpush1.bf16.msra.mxu0 0
        %8510 = vmatprep.subr.bf16.mxu0 0
        %8511 = vmatpush1.bf16.msra.mxu0 %v8494
        %8512 = vmatprep.subr.bf16.mxu0 0
        %8513 = vmatpush2.bf16.msra.mxu0 0
        %8514 = vmatprep.subr.bf16.mxu0 0
        %8515 = vmatpush2.bf16.msra.mxu0 0
        %8516 = vmatprep.subr.bf16.mxu0 0
        %8517 = vmatpush2.bf16.msra.mxu0 0
        %8518 = vmatprep.subr.bf16.mxu0 0
        %8519 = vmatpush2.bf16.msra.mxu0 0
        %8520 = vmatprep.subr.bf16.mxu0 0
        %8521 = vmatpush2.bf16.msra.mxu0 0
        %8522 = vmatprep.subr.bf16.mxu0 0
        %8523 = vmatpush2.bf16.msra.mxu0 0
        %8524 = vmatprep.subr.bf16.mxu0 0
        %8525 = vmatpush2.bf16.msra.mxu0 0
        %8526 = vmatprep.subr.bf16.mxu0 0
        %8527 = vmatpush2.bf16.msra.mxu0 0
        %8528 = vmatprep.mubr.bf16.mxu0 0
        %8529 = vmatmul.mubr.bf16.gmra.mxu0 %v8491
        %v8530 = vpop.f32.mrf.mxu0
        %v8531 = vadd.f32 0.0, %v8530
        %v8532 = vpop.f32.mrf.mxu0
        %v8533 = vpop.f32.mrf.mxu0
        %v8534 = vpop.f32.mrf.mxu0
        %8535 = vdwg.mxu0
        %8536 = vrot.lane.b32.xlu0 %v5876, 48
        %v8537 = vpop.permute.xlu0 %8536
        %v8539 = vsel %vm1233, %v8340, 0
        %v8542 = vsel %vm1740, %v8537, 0
        %8544 = vmatprep.subr.bf16.mxu0 0
        %8545 = vmatpush1.bf16.msra.mxu0 0
        %8546 = vmatprep.subr.bf16.mxu0 0
        %8547 = vmatpush1.bf16.msra.mxu0 0
        %8548 = vmatprep.subr.bf16.mxu0 0
        %8549 = vmatpush1.bf16.msra.mxu0 0
        %8550 = vmatprep.subr.bf16.mxu0 0
        %8551 = vmatpush1.bf16.msra.mxu0 0
        %8552 = vmatprep.subr.bf16.mxu0 0
        %8553 = vmatpush1.bf16.msra.mxu0 0
        %8554 = vmatprep.subr.bf16.mxu0 0
        %8555 = vmatpush1.bf16.msra.mxu0 0
        %8556 = vmatprep.subr.bf16.mxu0 0
        %8557 = vmatpush1.bf16.msra.mxu0 0
        %8558 = vmatprep.subr.bf16.mxu0 0
        %8559 = vmatpush1.bf16.msra.mxu0 %v8542
        %8560 = vmatprep.subr.bf16.mxu0 0
        %8561 = vmatpush2.bf16.msra.mxu0 0
        %8562 = vmatprep.subr.bf16.mxu0 0
        %8563 = vmatpush2.bf16.msra.mxu0 0
        %8564 = vmatprep.subr.bf16.mxu0 0
        %8565 = vmatpush2.bf16.msra.mxu0 0
        %8566 = vmatprep.subr.bf16.mxu0 0
        %8567 = vmatpush2.bf16.msra.mxu0 0
        %8568 = vmatprep.subr.bf16.mxu0 0
        %8569 = vmatpush2.bf16.msra.mxu0 0
        %8570 = vmatprep.subr.bf16.mxu0 0
        %8571 = vmatpush2.bf16.msra.mxu0 0
        %8572 = vmatprep.subr.bf16.mxu0 0
        %8573 = vmatpush2.bf16.msra.mxu0 0
        %8574 = vmatprep.subr.bf16.mxu0 0
        %8575 = vmatpush2.bf16.msra.mxu0 0
        %8576 = vmatprep.mubr.bf16.mxu0 0
        %8577 = vmatmul.mubr.bf16.gmra.mxu0 %v8539
        %v8578 = vpop.f32.mrf.mxu0
        %v8579 = vadd.f32 0.0, %v8578
        %v8580 = vpop.f32.mrf.mxu0
        %v8581 = vpop.f32.mrf.mxu0
        %v8582 = vpop.f32.mrf.mxu0
        %8583 = vdwg.mxu0
        %8584 = vrot.lane.b32.xlu0 %v5877, 48
        %v8585 = vpop.permute.xlu0 %8584
        %v8587 = vsel %vm1233, %v8341, 0
        %v8590 = vsel %vm1740, %v8585, 0
        %8592 = vmatprep.subr.bf16.mxu0 0
        %8593 = vmatpush1.bf16.msra.mxu0 0
        %8594 = vmatprep.subr.bf16.mxu0 0
        %8595 = vmatpush1.bf16.msra.mxu0 0
        %8596 = vmatprep.subr.bf16.mxu0 0
        %8597 = vmatpush1.bf16.msra.mxu0 0
        %8598 = vmatprep.subr.bf16.mxu0 0
        %8599 = vmatpush1.bf16.msra.mxu0 0
        %8600 = vmatprep.subr.bf16.mxu0 0
        %8601 = vmatpush1.bf16.msra.mxu0 0
        %8602 = vmatprep.subr.bf16.mxu0 0
        %8603 = vmatpush1.bf16.msra.mxu0 0
        %8604 = vmatprep.subr.bf16.mxu0 0
        %8605 = vmatpush1.bf16.msra.mxu0 0
        %8606 = vmatprep.subr.bf16.mxu0 0
        %8607 = vmatpush1.bf16.msra.mxu0 %v8590
        %8608 = vmatprep.subr.bf16.mxu0 0
        %8609 = vmatpush2.bf16.msra.mxu0 0
        %8610 = vmatprep.subr.bf16.mxu0 0
        %8611 = vmatpush2.bf16.msra.mxu0 0
        %8612 = vmatprep.subr.bf16.mxu0 0
        %8613 = vmatpush2.bf16.msra.mxu0 0
        %8614 = vmatprep.subr.bf16.mxu0 0
        %8615 = vmatpush2.bf16.msra.mxu0 0
        %8616 = vmatprep.subr.bf16.mxu0 0
        %8617 = vmatpush2.bf16.msra.mxu0 0
        %8618 = vmatprep.subr.bf16.mxu0 0
        %8619 = vmatpush2.bf16.msra.mxu0 0
        %8620 = vmatprep.subr.bf16.mxu0 0
        %8621 = vmatpush2.bf16.msra.mxu0 0
        %8622 = vmatprep.subr.bf16.mxu0 0
        %8623 = vmatpush2.bf16.msra.mxu0 0
        %8624 = vmatprep.mubr.bf16.mxu0 0
        %8625 = vmatmul.mubr.bf16.gmra.mxu0 %v8587
        %v8626 = vpop.f32.mrf.mxu0
        %v8627 = vadd.f32 0.0, %v8626
        %v8628 = vpop.f32.mrf.mxu0
        %v8629 = vpop.f32.mrf.mxu0
        %v8630 = vpop.f32.mrf.mxu0
        %8631 = vdwg.mxu0
        %8632 = vrot.lane.b32.xlu0 %v5878, 48
        %v8633 = vpop.permute.xlu0 %8632
        %v8635 = vsel %vm1233, %v8342, 0
        %v8638 = vsel %vm1740, %v8633, 0
        %8640 = vmatprep.subr.bf16.mxu0 0
        %8641 = vmatpush1.bf16.msra.mxu0 0
        %8642 = vmatprep.subr.bf16.mxu0 0
        %8643 = vmatpush1.bf16.msra.mxu0 0
        %8644 = vmatprep.subr.bf16.mxu0 0
        %8645 = vmatpush1.bf16.msra.mxu0 0
        %8646 = vmatprep.subr.bf16.mxu0 0
        %8647 = vmatpush1.bf16.msra.mxu0 0
        %8648 = vmatprep.subr.bf16.mxu0 0
        %8649 = vmatpush1.bf16.msra.mxu0 0
        %8650 = vmatprep.subr.bf16.mxu0 0
        %8651 = vmatpush1.bf16.msra.mxu0 0
        %8652 = vmatprep.subr.bf16.mxu0 0
        %8653 = vmatpush1.bf16.msra.mxu0 0
        %8654 = vmatprep.subr.bf16.mxu0 0
        %8655 = vmatpush1.bf16.msra.mxu0 %v8638
        %8656 = vmatprep.subr.bf16.mxu0 0
        %8657 = vmatpush2.bf16.msra.mxu0 0
        %8658 = vmatprep.subr.bf16.mxu0 0
        %8659 = vmatpush2.bf16.msra.mxu0 0
        %8660 = vmatprep.subr.bf16.mxu0 0
        %8661 = vmatpush2.bf16.msra.mxu0 0
        %8662 = vmatprep.subr.bf16.mxu0 0
        %8663 = vmatpush2.bf16.msra.mxu0 0
        %8664 = vmatprep.subr.bf16.mxu0 0
        %8665 = vmatpush2.bf16.msra.mxu0 0
        %8666 = vmatprep.subr.bf16.mxu0 0
        %8667 = vmatpush2.bf16.msra.mxu0 0
        %8668 = vmatprep.subr.bf16.mxu0 0
        %8669 = vmatpush2.bf16.msra.mxu0 0
        %8670 = vmatprep.subr.bf16.mxu0 0
        %8671 = vmatpush2.bf16.msra.mxu0 0
        %8672 = vmatprep.mubr.bf16.mxu0 0
        %8673 = vmatmul.mubr.bf16.gmra.mxu0 %v8635
        %v8674 = vpop.f32.mrf.mxu0
        %v8675 = vadd.f32 0.0, %v8674
        %v8676 = vpop.f32.mrf.mxu0
        %v8677 = vpop.f32.mrf.mxu0
        %v8678 = vpop.f32.mrf.mxu0
        %8679 = vdwg.mxu0
        %8680 = vrot.lane.b32.xlu0 %v5879, 48
        %v8681 = vpop.permute.xlu0 %8680
        %v8683 = vsel %vm1233, %v8343, 0
        %v8686 = vsel %vm1740, %v8681, 0
        %8688 = vmatprep.subr.bf16.mxu0 0
        %8689 = vmatpush1.bf16.msra.mxu0 0
        %8690 = vmatprep.subr.bf16.mxu0 0
        %8691 = vmatpush1.bf16.msra.mxu0 0
        %8692 = vmatprep.subr.bf16.mxu0 0
        %8693 = vmatpush1.bf16.msra.mxu0 0
        %8694 = vmatprep.subr.bf16.mxu0 0
        %8695 = vmatpush1.bf16.msra.mxu0 0
        %8696 = vmatprep.subr.bf16.mxu0 0
        %8697 = vmatpush1.bf16.msra.mxu0 0
        %8698 = vmatprep.subr.bf16.mxu0 0
        %8699 = vmatpush1.bf16.msra.mxu0 0
        %8700 = vmatprep.subr.bf16.mxu0 0
        %8701 = vmatpush1.bf16.msra.mxu0 0
        %8702 = vmatprep.subr.bf16.mxu0 0
        %8703 = vmatpush1.bf16.msra.mxu0 %v8686
        %8704 = vmatprep.subr.bf16.mxu0 0
        %8705 = vmatpush2.bf16.msra.mxu0 0
        %8706 = vmatprep.subr.bf16.mxu0 0
        %8707 = vmatpush2.bf16.msra.mxu0 0
        %8708 = vmatprep.subr.bf16.mxu0 0
        %8709 = vmatpush2.bf16.msra.mxu0 0
        %8710 = vmatprep.subr.bf16.mxu0 0
        %8711 = vmatpush2.bf16.msra.mxu0 0
        %8712 = vmatprep.subr.bf16.mxu0 0
        %8713 = vmatpush2.bf16.msra.mxu0 0
        %8714 = vmatprep.subr.bf16.mxu0 0
        %8715 = vmatpush2.bf16.msra.mxu0 0
        %8716 = vmatprep.subr.bf16.mxu0 0
        %8717 = vmatpush2.bf16.msra.mxu0 0
        %8718 = vmatprep.subr.bf16.mxu0 0
        %8719 = vmatpush2.bf16.msra.mxu0 0
        %8720 = vmatprep.mubr.bf16.mxu0 0
        %8721 = vmatmul.mubr.bf16.gmra.mxu0 %v8683
        %v8722 = vpop.f32.mrf.mxu0
        %v8723 = vadd.f32 0.0, %v8722
        %v8724 = vpop.f32.mrf.mxu0
        %v8725 = vpop.f32.mrf.mxu0
        %v8726 = vpop.f32.mrf.mxu0
        %8727 = vdwg.mxu0
        %v8728 = vpack.c.bf16 %v8435, %v8387
        %v8729 = vpack.c.bf16 %v8531, %v8483
        %v8730 = vpack.c.bf16 %v8627, %v8579
        %v8731 = vpack.c.bf16 %v8723, %v8675
        %v8733 = vsel %vm1233, %v8728, 0
        %v8736 = vsel %vm1233, %v8729, 0
        %v8739 = vsel %vm1233, %v8730, 0
        %v8742 = vsel %vm1233, %v8731, 0
        %v8745 = vsel %vm1740, %v5870, 0
        %8747 = vmatprep.subr.bf16.mxu0 0
        %8748 = vmatpush1.bf16.msra.mxu0 0
        %8749 = vmatprep.subr.bf16.mxu0 0
        %8750 = vmatpush1.bf16.msra.mxu0 0
        %8751 = vmatprep.subr.bf16.mxu0 0
        %8752 = vmatpush1.bf16.msra.mxu0 0
        %8753 = vmatprep.subr.bf16.mxu0 0
        %8754 = vmatpush1.bf16.msra.mxu0 0
        %8755 = vmatprep.subr.bf16.mxu0 0
        %8756 = vmatpush1.bf16.msra.mxu0 0
        %8757 = vmatprep.subr.bf16.mxu0 0
        %8758 = vmatpush1.bf16.msra.mxu0 0
        %8759 = vmatprep.subr.bf16.mxu0 0
        %8760 = vmatpush1.bf16.msra.mxu0 0
        %8761 = vmatprep.subr.bf16.mxu0 0
        %8762 = vmatpush1.bf16.msra.mxu0 %v8745
        %8763 = vmatprep.subr.bf16.mxu0 0
        %8764 = vmatpush2.bf16.msra.mxu0 0
        %8765 = vmatprep.subr.bf16.mxu0 0
        %8766 = vmatpush2.bf16.msra.mxu0 0
        %8767 = vmatprep.subr.bf16.mxu0 0
        %8768 = vmatpush2.bf16.msra.mxu0 0
        %8769 = vmatprep.subr.bf16.mxu0 0
        %8770 = vmatpush2.bf16.msra.mxu0 0
        %8771 = vmatprep.subr.bf16.mxu0 0
        %8772 = vmatpush2.bf16.msra.mxu0 0
        %8773 = vmatprep.subr.bf16.mxu0 0
        %8774 = vmatpush2.bf16.msra.mxu0 0
        %8775 = vmatprep.subr.bf16.mxu0 0
        %8776 = vmatpush2.bf16.msra.mxu0 0
        %8777 = vmatprep.subr.bf16.mxu0 0
        %8778 = vmatpush2.bf16.msra.mxu0 0
        %8779 = vmatprep.mubr.bf16.mxu0 0
        %8780 = vmatmul.mubr.bf16.gmra.mxu0 %v8733
        %v8781 = vpop.f32.mrf.mxu0
        %v8782 = vadd.f32 0.0, %v8781
        %v8783 = vpop.f32.mrf.mxu0
        %v8784 = vpop.f32.mrf.mxu0
        %v8785 = vadd.f32 0.0, %v8784
        %v8786 = vpop.f32.mrf.mxu0
        %8787 = vmatprep.mubr.bf16.mxu0 0
        %8788 = vmatmul.mubr.bf16.gmra.mxu0 %v8736
        %v8789 = vpop.f32.mrf.mxu0
        %v8790 = vadd.f32 0.0, %v8789
        %v8791 = vpop.f32.mrf.mxu0
        %v8792 = vpop.f32.mrf.mxu0
        %v8793 = vadd.f32 0.0, %v8792
        %v8794 = vpop.f32.mrf.mxu0
        %8795 = vmatprep.mubr.bf16.mxu0 0
        %8796 = vmatmul.mubr.bf16.gmra.mxu0 %v8739
        %v8797 = vpop.f32.mrf.mxu0
        %v8798 = vadd.f32 0.0, %v8797
        %v8799 = vpop.f32.mrf.mxu0
        %v8800 = vpop.f32.mrf.mxu0
        %v8801 = vadd.f32 0.0, %v8800
        %v8802 = vpop.f32.mrf.mxu0
        %8803 = vmatprep.mubr.bf16.mxu0 0
        %8804 = vmatmul.mubr.bf16.gmra.mxu0 %v8742
        %v8805 = vpop.f32.mrf.mxu0
        %v8806 = vadd.f32 0.0, %v8805
        %v8807 = vpop.f32.mrf.mxu0
        %v8808 = vpop.f32.mrf.mxu0
        %v8809 = vadd.f32 0.0, %v8808
        %v8810 = vpop.f32.mrf.mxu0
        %8811 = vdwg.mxu0
        %v8812 = vadd.f32 %v7802, %v8782
        %v8813 = vadd.f32 %v7805, %v8785
        %v8814 = vadd.f32 %v7810, %v8790
        %v8815 = vadd.f32 %v7813, %v8793
        %v8816 = vadd.f32 %v7818, %v8798
        %v8817 = vadd.f32 %v7821, %v8801
        %v8818 = vadd.f32 %v7826, %v8806
        %v8819 = vadd.f32 %v7829, %v8809
        %8820 = vrot.lane.b32.xlu0 %v5872, 104
        %v8821 = vpop.permute.xlu0 %8820
        %8822 = vrot.lane.b32.xlu0 %v5872, 72
        %v8823 = vpop.permute.xlu0 %8822
        %v8825 = vsel %vm1233, %v8821, 0
        %v8828 = vsel %vm1233, %v8823, 0
        %8830 = vmatprep.subr.bf16.mxu0 0
        %8831 = vmatpush1.bf16.xpose.msra.mxu0 0
        %8832 = vmatprep.subr.bf16.mxu0 0
        %8833 = vmatpush1.bf16.xpose.msra.mxu0 0
        %8834 = vmatprep.subr.bf16.mxu0 0
        %8835 = vmatpush1.bf16.xpose.msra.mxu0 0
        %8836 = vmatprep.subr.bf16.mxu0 0
        %8837 = vmatpush1.bf16.xpose.msra.mxu0 0
        %8838 = vmatprep.subr.bf16.mxu0 0
        %8839 = vmatpush1.bf16.xpose.msra.mxu0 0
        %8840 = vmatprep.subr.bf16.mxu0 0
        %8841 = vmatpush1.bf16.xpose.msra.mxu0 0
        %8842 = vmatprep.subr.bf16.mxu0 0
        %8843 = vmatpush1.bf16.xpose.msra.mxu0 0
        %8844 = vmatprep.subr.bf16.mxu0 0
        %8845 = vmatpush1.bf16.xpose.msra.mxu0 %v8828
        %8846 = vmatprep.subr.bf16.mxu0 0
        %8847 = vmatpush2.bf16.xpose.msra.mxu0 0
        %8848 = vmatprep.subr.bf16.mxu0 0
        %8849 = vmatpush2.bf16.xpose.msra.mxu0 0
        %8850 = vmatprep.subr.bf16.mxu0 0
        %8851 = vmatpush2.bf16.xpose.msra.mxu0 0
        %8852 = vmatprep.subr.bf16.mxu0 0
        %8853 = vmatpush2.bf16.xpose.msra.mxu0 0
        %8854 = vmatprep.subr.bf16.mxu0 0
        %8855 = vmatpush2.bf16.xpose.msra.mxu0 0
        %8856 = vmatprep.subr.bf16.mxu0 0
        %8857 = vmatpush2.bf16.xpose.msra.mxu0 0
        %8858 = vmatprep.subr.bf16.mxu0 0
        %8859 = vmatpush2.bf16.xpose.msra.mxu0 0
        %8860 = vmatprep.subr.bf16.mxu0 0
        %8861 = vmatpush2.bf16.xpose.msra.mxu0 0
        %8862 = vmatprep.mubr.bf16.mxu0 0
        %8863 = vmatmul.mubr.bf16.gmra.mxu0 %v8825
        %v8864 = vpop.f32.mrf.mxu0
        %v8865 = vadd.f32 0.0, %v8864
        %v8866 = vpop.f32.mrf.mxu0
        %v8867 = vpop.f32.mrf.mxu0
        %v8868 = vpop.f32.mrf.mxu0
        %8869 = vdwg.mxu0
        %8870 = vrot.lane.b32.xlu0 %v5873, 104
        %v8871 = vpop.permute.xlu0 %8870
        %8872 = vrot.lane.b32.xlu0 %v5873, 72
        %v8873 = vpop.permute.xlu0 %8872
        %v8875 = vsel %vm1233, %v8871, 0
        %v8878 = vsel %vm1233, %v8873, 0
        %8880 = vmatprep.subr.bf16.mxu0 0
        %8881 = vmatpush1.bf16.xpose.msra.mxu0 0
        %8882 = vmatprep.subr.bf16.mxu0 0
        %8883 = vmatpush1.bf16.xpose.msra.mxu0 0
        %8884 = vmatprep.subr.bf16.mxu0 0
        %8885 = vmatpush1.bf16.xpose.msra.mxu0 0
        %8886 = vmatprep.subr.bf16.mxu0 0
        %8887 = vmatpush1.bf16.xpose.msra.mxu0 0
        %8888 = vmatprep.subr.bf16.mxu0 0
        %8889 = vmatpush1.bf16.xpose.msra.mxu0 0
        %8890 = vmatprep.subr.bf16.mxu0 0
        %8891 = vmatpush1.bf16.xpose.msra.mxu0 0
        %8892 = vmatprep.subr.bf16.mxu0 0
        %8893 = vmatpush1.bf16.xpose.msra.mxu0 0
        %8894 = vmatprep.subr.bf16.mxu0 0
        %8895 = vmatpush1.bf16.xpose.msra.mxu0 %v8878
        %8896 = vmatprep.subr.bf16.mxu0 0
        %8897 = vmatpush2.bf16.xpose.msra.mxu0 0
        %8898 = vmatprep.subr.bf16.mxu0 0
        %8899 = vmatpush2.bf16.xpose.msra.mxu0 0
        %8900 = vmatprep.subr.bf16.mxu0 0
        %8901 = vmatpush2.bf16.xpose.msra.mxu0 0
        %8902 = vmatprep.subr.bf16.mxu0 0
        %8903 = vmatpush2.bf16.xpose.msra.mxu0 0
        %8904 = vmatprep.subr.bf16.mxu0 0
        %8905 = vmatpush2.bf16.xpose.msra.mxu0 0
        %8906 = vmatprep.subr.bf16.mxu0 0
        %8907 = vmatpush2.bf16.xpose.msra.mxu0 0
        %8908 = vmatprep.subr.bf16.mxu0 0
        %8909 = vmatpush2.bf16.xpose.msra.mxu0 0
        %8910 = vmatprep.subr.bf16.mxu0 0
        %8911 = vmatpush2.bf16.xpose.msra.mxu0 0
        %8912 = vmatprep.mubr.bf16.mxu0 0
        %8913 = vmatmul.mubr.bf16.gmra.mxu0 %v8875
        %v8914 = vpop.f32.mrf.mxu0
        %v8915 = vadd.f32 0.0, %v8914
        %v8916 = vpop.f32.mrf.mxu0
        %v8917 = vpop.f32.mrf.mxu0
        %v8918 = vpop.f32.mrf.mxu0
        %8919 = vdwg.mxu0
        %8920 = vrot.lane.b32.xlu0 %v5874, 104
        %v8921 = vpop.permute.xlu0 %8920
        %8922 = vrot.lane.b32.xlu0 %v5874, 72
        %v8923 = vpop.permute.xlu0 %8922
        %v8925 = vsel %vm1233, %v8921, 0
        %v8928 = vsel %vm1233, %v8923, 0
        %8930 = vmatprep.subr.bf16.mxu0 0
        %8931 = vmatpush1.bf16.xpose.msra.mxu0 0
        %8932 = vmatprep.subr.bf16.mxu0 0
        %8933 = vmatpush1.bf16.xpose.msra.mxu0 0
        %8934 = vmatprep.subr.bf16.mxu0 0
        %8935 = vmatpush1.bf16.xpose.msra.mxu0 0
        %8936 = vmatprep.subr.bf16.mxu0 0
        %8937 = vmatpush1.bf16.xpose.msra.mxu0 0
        %8938 = vmatprep.subr.bf16.mxu0 0
        %8939 = vmatpush1.bf16.xpose.msra.mxu0 0
        %8940 = vmatprep.subr.bf16.mxu0 0
        %8941 = vmatpush1.bf16.xpose.msra.mxu0 0
        %8942 = vmatprep.subr.bf16.mxu0 0
        %8943 = vmatpush1.bf16.xpose.msra.mxu0 0
        %8944 = vmatprep.subr.bf16.mxu0 0
        %8945 = vmatpush1.bf16.xpose.msra.mxu0 %v8928
        %8946 = vmatprep.subr.bf16.mxu0 0
        %8947 = vmatpush2.bf16.xpose.msra.mxu0 0
        %8948 = vmatprep.subr.bf16.mxu0 0
        %8949 = vmatpush2.bf16.xpose.msra.mxu0 0
        %8950 = vmatprep.subr.bf16.mxu0 0
        %8951 = vmatpush2.bf16.xpose.msra.mxu0 0
        %8952 = vmatprep.subr.bf16.mxu0 0
        %8953 = vmatpush2.bf16.xpose.msra.mxu0 0
        %8954 = vmatprep.subr.bf16.mxu0 0
        %8955 = vmatpush2.bf16.xpose.msra.mxu0 0
        %8956 = vmatprep.subr.bf16.mxu0 0
        %8957 = vmatpush2.bf16.xpose.msra.mxu0 0
        %8958 = vmatprep.subr.bf16.mxu0 0
        %8959 = vmatpush2.bf16.xpose.msra.mxu0 0
        %8960 = vmatprep.subr.bf16.mxu0 0
        %8961 = vmatpush2.bf16.xpose.msra.mxu0 0
        %8962 = vmatprep.mubr.bf16.mxu0 0
        %8963 = vmatmul.mubr.bf16.gmra.mxu0 %v8925
        %v8964 = vpop.f32.mrf.mxu0
        %v8965 = vadd.f32 0.0, %v8964
        %v8966 = vpop.f32.mrf.mxu0
        %v8967 = vpop.f32.mrf.mxu0
        %v8968 = vpop.f32.mrf.mxu0
        %8969 = vdwg.mxu0
        %8970 = vrot.lane.b32.xlu0 %v5875, 104
        %v8971 = vpop.permute.xlu0 %8970
        %8972 = vrot.lane.b32.xlu0 %v5875, 72
        %v8973 = vpop.permute.xlu0 %8972
        %v8975 = vsel %vm1233, %v8971, 0
        %v8978 = vsel %vm1233, %v8973, 0
        %8980 = vmatprep.subr.bf16.mxu0 0
        %8981 = vmatpush1.bf16.xpose.msra.mxu0 0
        %8982 = vmatprep.subr.bf16.mxu0 0
        %8983 = vmatpush1.bf16.xpose.msra.mxu0 0
        %8984 = vmatprep.subr.bf16.mxu0 0
        %8985 = vmatpush1.bf16.xpose.msra.mxu0 0
        %8986 = vmatprep.subr.bf16.mxu0 0
        %8987 = vmatpush1.bf16.xpose.msra.mxu0 0
        %8988 = vmatprep.subr.bf16.mxu0 0
        %8989 = vmatpush1.bf16.xpose.msra.mxu0 0
        %8990 = vmatprep.subr.bf16.mxu0 0
        %8991 = vmatpush1.bf16.xpose.msra.mxu0 0
        %8992 = vmatprep.subr.bf16.mxu0 0
        %8993 = vmatpush1.bf16.xpose.msra.mxu0 0
        %8994 = vmatprep.subr.bf16.mxu0 0
        %8995 = vmatpush1.bf16.xpose.msra.mxu0 %v8978
        %8996 = vmatprep.subr.bf16.mxu0 0
        %8997 = vmatpush2.bf16.xpose.msra.mxu0 0
        %8998 = vmatprep.subr.bf16.mxu0 0
        %8999 = vmatpush2.bf16.xpose.msra.mxu0 0
        %9000 = vmatprep.subr.bf16.mxu0 0
        %9001 = vmatpush2.bf16.xpose.msra.mxu0 0
        %9002 = vmatprep.subr.bf16.mxu0 0
        %9003 = vmatpush2.bf16.xpose.msra.mxu0 0
        %9004 = vmatprep.subr.bf16.mxu0 0
        %9005 = vmatpush2.bf16.xpose.msra.mxu0 0
        %9006 = vmatprep.subr.bf16.mxu0 0
        %9007 = vmatpush2.bf16.xpose.msra.mxu0 0
        %9008 = vmatprep.subr.bf16.mxu0 0
        %9009 = vmatpush2.bf16.xpose.msra.mxu0 0
        %9010 = vmatprep.subr.bf16.mxu0 0
        %9011 = vmatpush2.bf16.xpose.msra.mxu0 0
        %9012 = vmatprep.mubr.bf16.mxu0 0
        %9013 = vmatmul.mubr.bf16.gmra.mxu0 %v8975
        %v9014 = vpop.f32.mrf.mxu0
        %v9015 = vadd.f32 0.0, %v9014
        %v9016 = vpop.f32.mrf.mxu0
        %v9017 = vpop.f32.mrf.mxu0
        %v9018 = vpop.f32.mrf.mxu0
        %9019 = vdwg.mxu0
        %9020 = vrot.lane.b32.xlu0 %v5876, 104
        %v9021 = vpop.permute.xlu0 %9020
        %9022 = vrot.lane.b32.xlu0 %v5876, 72
        %v9023 = vpop.permute.xlu0 %9022
        %v9025 = vsel %vm1233, %v9021, 0
        %v9028 = vsel %vm1233, %v9023, 0
        %9030 = vmatprep.subr.bf16.mxu0 0
        %9031 = vmatpush1.bf16.xpose.msra.mxu0 0
        %9032 = vmatprep.subr.bf16.mxu0 0
        %9033 = vmatpush1.bf16.xpose.msra.mxu0 0
        %9034 = vmatprep.subr.bf16.mxu0 0
        %9035 = vmatpush1.bf16.xpose.msra.mxu0 0
        %9036 = vmatprep.subr.bf16.mxu0 0
        %9037 = vmatpush1.bf16.xpose.msra.mxu0 0
        %9038 = vmatprep.subr.bf16.mxu0 0
        %9039 = vmatpush1.bf16.xpose.msra.mxu0 0
        %9040 = vmatprep.subr.bf16.mxu0 0
        %9041 = vmatpush1.bf16.xpose.msra.mxu0 0
        %9042 = vmatprep.subr.bf16.mxu0 0
        %9043 = vmatpush1.bf16.xpose.msra.mxu0 0
        %9044 = vmatprep.subr.bf16.mxu0 0
        %9045 = vmatpush1.bf16.xpose.msra.mxu0 %v9028
        %9046 = vmatprep.subr.bf16.mxu0 0
        %9047 = vmatpush2.bf16.xpose.msra.mxu0 0
        %9048 = vmatprep.subr.bf16.mxu0 0
        %9049 = vmatpush2.bf16.xpose.msra.mxu0 0
        %9050 = vmatprep.subr.bf16.mxu0 0
        %9051 = vmatpush2.bf16.xpose.msra.mxu0 0
        %9052 = vmatprep.subr.bf16.mxu0 0
        %9053 = vmatpush2.bf16.xpose.msra.mxu0 0
        %9054 = vmatprep.subr.bf16.mxu0 0
        %9055 = vmatpush2.bf16.xpose.msra.mxu0 0
        %9056 = vmatprep.subr.bf16.mxu0 0
        %9057 = vmatpush2.bf16.xpose.msra.mxu0 0
        %9058 = vmatprep.subr.bf16.mxu0 0
        %9059 = vmatpush2.bf16.xpose.msra.mxu0 0
        %9060 = vmatprep.subr.bf16.mxu0 0
        %9061 = vmatpush2.bf16.xpose.msra.mxu0 0
        %9062 = vmatprep.mubr.bf16.mxu0 0
        %9063 = vmatmul.mubr.bf16.gmra.mxu0 %v9025
        %v9064 = vpop.f32.mrf.mxu0
        %v9065 = vadd.f32 0.0, %v9064
        %v9066 = vpop.f32.mrf.mxu0
        %v9067 = vpop.f32.mrf.mxu0
        %v9068 = vpop.f32.mrf.mxu0
        %9069 = vdwg.mxu0
        %9070 = vrot.lane.b32.xlu0 %v5877, 104
        %v9071 = vpop.permute.xlu0 %9070
        %9072 = vrot.lane.b32.xlu0 %v5877, 72
        %v9073 = vpop.permute.xlu0 %9072
        %v9075 = vsel %vm1233, %v9071, 0
        %v9078 = vsel %vm1233, %v9073, 0
        %9080 = vmatprep.subr.bf16.mxu0 0
        %9081 = vmatpush1.bf16.xpose.msra.mxu0 0
        %9082 = vmatprep.subr.bf16.mxu0 0
        %9083 = vmatpush1.bf16.xpose.msra.mxu0 0
        %9084 = vmatprep.subr.bf16.mxu0 0
        %9085 = vmatpush1.bf16.xpose.msra.mxu0 0
        %9086 = vmatprep.subr.bf16.mxu0 0
        %9087 = vmatpush1.bf16.xpose.msra.mxu0 0
        %9088 = vmatprep.subr.bf16.mxu0 0
        %9089 = vmatpush1.bf16.xpose.msra.mxu0 0
        %9090 = vmatprep.subr.bf16.mxu0 0
        %9091 = vmatpush1.bf16.xpose.msra.mxu0 0
        %9092 = vmatprep.subr.bf16.mxu0 0
        %9093 = vmatpush1.bf16.xpose.msra.mxu0 0
        %9094 = vmatprep.subr.bf16.mxu0 0
        %9095 = vmatpush1.bf16.xpose.msra.mxu0 %v9078
        %9096 = vmatprep.subr.bf16.mxu0 0
        %9097 = vmatpush2.bf16.xpose.msra.mxu0 0
        %9098 = vmatprep.subr.bf16.mxu0 0
        %9099 = vmatpush2.bf16.xpose.msra.mxu0 0
        %9100 = vmatprep.subr.bf16.mxu0 0
        %9101 = vmatpush2.bf16.xpose.msra.mxu0 0
        %9102 = vmatprep.subr.bf16.mxu0 0
        %9103 = vmatpush2.bf16.xpose.msra.mxu0 0
        %9104 = vmatprep.subr.bf16.mxu0 0
        %9105 = vmatpush2.bf16.xpose.msra.mxu0 0
        %9106 = vmatprep.subr.bf16.mxu0 0
        %9107 = vmatpush2.bf16.xpose.msra.mxu0 0
        %9108 = vmatprep.subr.bf16.mxu0 0
        %9109 = vmatpush2.bf16.xpose.msra.mxu0 0
        %9110 = vmatprep.subr.bf16.mxu0 0
        %9111 = vmatpush2.bf16.xpose.msra.mxu0 0
        %9112 = vmatprep.mubr.bf16.mxu0 0
        %9113 = vmatmul.mubr.bf16.gmra.mxu0 %v9075
        %v9114 = vpop.f32.mrf.mxu0
        %v9115 = vadd.f32 0.0, %v9114
        %v9116 = vpop.f32.mrf.mxu0
        %v9117 = vpop.f32.mrf.mxu0
        %v9118 = vpop.f32.mrf.mxu0
        %9119 = vdwg.mxu0
        %9120 = vrot.lane.b32.xlu0 %v5878, 104
        %v9121 = vpop.permute.xlu0 %9120
        %9122 = vrot.lane.b32.xlu0 %v5878, 72
        %v9123 = vpop.permute.xlu0 %9122
        %v9125 = vsel %vm1233, %v9121, 0
        %v9128 = vsel %vm1233, %v9123, 0
        %9130 = vmatprep.subr.bf16.mxu0 0
        %9131 = vmatpush1.bf16.xpose.msra.mxu0 0
        %9132 = vmatprep.subr.bf16.mxu0 0
        %9133 = vmatpush1.bf16.xpose.msra.mxu0 0
        %9134 = vmatprep.subr.bf16.mxu0 0
        %9135 = vmatpush1.bf16.xpose.msra.mxu0 0
        %9136 = vmatprep.subr.bf16.mxu0 0
        %9137 = vmatpush1.bf16.xpose.msra.mxu0 0
        %9138 = vmatprep.subr.bf16.mxu0 0
        %9139 = vmatpush1.bf16.xpose.msra.mxu0 0
        %9140 = vmatprep.subr.bf16.mxu0 0
        %9141 = vmatpush1.bf16.xpose.msra.mxu0 0
        %9142 = vmatprep.subr.bf16.mxu0 0
        %9143 = vmatpush1.bf16.xpose.msra.mxu0 0
        %9144 = vmatprep.subr.bf16.mxu0 0
        %9145 = vmatpush1.bf16.xpose.msra.mxu0 %v9128
        %9146 = vmatprep.subr.bf16.mxu0 0
        %9147 = vmatpush2.bf16.xpose.msra.mxu0 0
        %9148 = vmatprep.subr.bf16.mxu0 0
        %9149 = vmatpush2.bf16.xpose.msra.mxu0 0
        %9150 = vmatprep.subr.bf16.mxu0 0
        %9151 = vmatpush2.bf16.xpose.msra.mxu0 0
        %9152 = vmatprep.subr.bf16.mxu0 0
        %9153 = vmatpush2.bf16.xpose.msra.mxu0 0
        %9154 = vmatprep.subr.bf16.mxu0 0
        %9155 = vmatpush2.bf16.xpose.msra.mxu0 0
        %9156 = vmatprep.subr.bf16.mxu0 0
        %9157 = vmatpush2.bf16.xpose.msra.mxu0 0
        %9158 = vmatprep.subr.bf16.mxu0 0
        %9159 = vmatpush2.bf16.xpose.msra.mxu0 0
        %9160 = vmatprep.subr.bf16.mxu0 0
        %9161 = vmatpush2.bf16.xpose.msra.mxu0 0
        %9162 = vmatprep.mubr.bf16.mxu0 0
        %9163 = vmatmul.mubr.bf16.gmra.mxu0 %v9125
        %v9164 = vpop.f32.mrf.mxu0
        %v9165 = vadd.f32 0.0, %v9164
        %v9166 = vpop.f32.mrf.mxu0
        %v9167 = vpop.f32.mrf.mxu0
        %v9168 = vpop.f32.mrf.mxu0
        %9169 = vdwg.mxu0
        %9170 = vrot.lane.b32.xlu0 %v5879, 104
        %v9171 = vpop.permute.xlu0 %9170
        %9172 = vrot.lane.b32.xlu0 %v5879, 72
        %v9173 = vpop.permute.xlu0 %9172
        %v9175 = vsel %vm1233, %v9171, 0
        %v9178 = vsel %vm1233, %v9173, 0
        %9180 = vmatprep.subr.bf16.mxu0 0
        %9181 = vmatpush1.bf16.xpose.msra.mxu0 0
        %9182 = vmatprep.subr.bf16.mxu0 0
        %9183 = vmatpush1.bf16.xpose.msra.mxu0 0
        %9184 = vmatprep.subr.bf16.mxu0 0
        %9185 = vmatpush1.bf16.xpose.msra.mxu0 0
        %9186 = vmatprep.subr.bf16.mxu0 0
        %9187 = vmatpush1.bf16.xpose.msra.mxu0 0
        %9188 = vmatprep.subr.bf16.mxu0 0
        %9189 = vmatpush1.bf16.xpose.msra.mxu0 0
        %9190 = vmatprep.subr.bf16.mxu0 0
        %9191 = vmatpush1.bf16.xpose.msra.mxu0 0
        %9192 = vmatprep.subr.bf16.mxu0 0
        %9193 = vmatpush1.bf16.xpose.msra.mxu0 0
        %9194 = vmatprep.subr.bf16.mxu0 0
        %9195 = vmatpush1.bf16.xpose.msra.mxu0 %v9178
        %9196 = vmatprep.subr.bf16.mxu0 0
        %9197 = vmatpush2.bf16.xpose.msra.mxu0 0
        %9198 = vmatprep.subr.bf16.mxu0 0
        %9199 = vmatpush2.bf16.xpose.msra.mxu0 0
        %9200 = vmatprep.subr.bf16.mxu0 0
        %9201 = vmatpush2.bf16.xpose.msra.mxu0 0
        %9202 = vmatprep.subr.bf16.mxu0 0
        %9203 = vmatpush2.bf16.xpose.msra.mxu0 0
        %9204 = vmatprep.subr.bf16.mxu0 0
        %9205 = vmatpush2.bf16.xpose.msra.mxu0 0
        %9206 = vmatprep.subr.bf16.mxu0 0
        %9207 = vmatpush2.bf16.xpose.msra.mxu0 0
        %9208 = vmatprep.subr.bf16.mxu0 0
        %9209 = vmatpush2.bf16.xpose.msra.mxu0 0
        %9210 = vmatprep.subr.bf16.mxu0 0
        %9211 = vmatpush2.bf16.xpose.msra.mxu0 0
        %9212 = vmatprep.mubr.bf16.mxu0 0
        %9213 = vmatmul.mubr.bf16.gmra.mxu0 %v9175
        %v9214 = vpop.f32.mrf.mxu0
        %v9215 = vadd.f32 0.0, %v9214
        %v9216 = vpop.f32.mrf.mxu0
        %v9217 = vpop.f32.mrf.mxu0
        %v9218 = vpop.f32.mrf.mxu0
        %9219 = vdwg.mxu0
        %v9220 = vmul.f32 %v8865, 0.35355338
        %v9221 = vmul.f32 %v8915, 0.35355338
        %v9222 = vmul.f32 %v8965, 0.35355338
        %v9223 = vmul.f32 %v9015, 0.35355338
        %v9224 = vmul.f32 %v9065, 0.35355338
        %v9225 = vmul.f32 %v9115, 0.35355338
        %v9226 = vmul.f32 %v9165, 0.35355338
        %v9227 = vmul.f32 %v9215, 0.35355338
        %v9228 = vadd.f32 %v9220, %v979
        %v9229 = vadd.f32 %v9221, %v979
        %v9230 = vadd.f32 %v9222, %v979
        %v9231 = vadd.f32 %v9223, %v979
        %v9232 = vadd.f32 %v9224, %v979
        %v9233 = vadd.f32 %v9225, %v979
        %v9234 = vadd.f32 %v9226, %v979
        %v9235 = vadd.f32 %v9227, %v979
        %v9236 = vsel %vm1233, %v9228, -inf
        %9237 = vmax.xlane.f32.xlu0 %v9236
        %v9238 = vpop.xlane.xlu0 %9237
        %v9239 = vsel %vm1233, %v9229, -inf
        %9240 = vmax.xlane.f32.xlu0 %v9239
        %v9241 = vpop.xlane.xlu0 %9240
        %v9242 = vsel %vm1233, %v9230, -inf
        %9243 = vmax.xlane.f32.xlu0 %v9242
        %v9244 = vpop.xlane.xlu0 %9243
        %v9245 = vsel %vm1233, %v9231, -inf
        %9246 = vmax.xlane.f32.xlu0 %v9245
        %v9247 = vpop.xlane.xlu0 %9246
        %v9248 = vsel %vm1233, %v9232, -inf
        %9249 = vmax.xlane.f32.xlu0 %v9248
        %v9250 = vpop.xlane.xlu0 %9249
        %v9251 = vsel %vm1233, %v9233, -inf
        %9252 = vmax.xlane.f32.xlu0 %v9251
        %v9253 = vpop.xlane.xlu0 %9252
        %v9254 = vsel %vm1233, %v9234, -inf
        %9255 = vmax.xlane.f32.xlu0 %v9254
        %v9256 = vpop.xlane.xlu0 %9255
        %v9257 = vsel %vm1233, %v9235, -inf
        %9258 = vmax.xlane.f32.xlu0 %v9257
        %v9259 = vpop.xlane.xlu0 %9258
        %v9260 = vsub.f32 %v9228, %v9238
        %v9261 = vsub.f32 %v9229, %v9241
        %v9262 = vsub.f32 %v9230, %v9244
        %v9263 = vsub.f32 %v9231, %v9247
        %v9264 = vsub.f32 %v9232, %v9250
        %v9265 = vsub.f32 %v9233, %v9253
        %v9266 = vsub.f32 %v9234, %v9256
        %v9267 = vsub.f32 %v9235, %v9259
        %v9268 = vmul.f32 %v9260, 1.442695
        %v9269 = vpow.pop %v9268
        %v9270 = vmul.f32 %v9261, 1.442695
        %v9271 = vpow.pop %v9270
        %v9272 = vmul.f32 %v9262, 1.442695
        %v9273 = vpow.pop %v9272
        %v9274 = vmul.f32 %v9263, 1.442695
        %v9275 = vpow.pop %v9274
        %v9276 = vmul.f32 %v9264, 1.442695
        %v9277 = vpow.pop %v9276
        %v9278 = vmul.f32 %v9265, 1.442695
        %v9279 = vpow.pop %v9278
        %v9280 = vmul.f32 %v9266, 1.442695
        %v9281 = vpow.pop %v9280
        %v9282 = vmul.f32 %v9267, 1.442695
        %v9283 = vpow.pop %v9282
        %v9284 = vsel %vm1233, %v9269, 0.0
        %9285 = vadd.xlane.f32.xlu0 %v9284
        %v9286 = vpop.xlane.xlu0 %9285
        %v9287 = vsel %vm1233, %v9271, 0.0
        %9288 = vadd.xlane.f32.xlu0 %v9287
        %v9289 = vpop.xlane.xlu0 %9288
        %v9290 = vsel %vm1233, %v9273, 0.0
        %9291 = vadd.xlane.f32.xlu0 %v9290
        %v9292 = vpop.xlane.xlu0 %9291
        %v9293 = vsel %vm1233, %v9275, 0.0
        %9294 = vadd.xlane.f32.xlu0 %v9293
        %v9295 = vpop.xlane.xlu0 %9294
        %v9296 = vsel %vm1233, %v9277, 0.0
        %9297 = vadd.xlane.f32.xlu0 %v9296
        %v9298 = vpop.xlane.xlu0 %9297
        %v9299 = vsel %vm1233, %v9279, 0.0
        %9300 = vadd.xlane.f32.xlu0 %v9299
        %v9301 = vpop.xlane.xlu0 %9300
        %v9302 = vsel %vm1233, %v9281, 0.0
        %9303 = vadd.xlane.f32.xlu0 %v9302
        %v9304 = vpop.xlane.xlu0 %9303
        %v9305 = vsel %vm1233, %v9283, 0.0
        %9306 = vadd.xlane.f32.xlu0 %v9305
        %v9307 = vpop.xlane.xlu0 %9306
        %v9308 = vrcp.pop %v9286
        %v9309 = vrcp.pop %v9289
        %v9310 = vrcp.pop %v9292
        %v9311 = vrcp.pop %v9295
        %v9312 = vrcp.pop %v9298
        %v9313 = vrcp.pop %v9301
        %v9314 = vrcp.pop %v9304
        %v9315 = vrcp.pop %v9307
        %v9316 = vmul.f32 %v9269, %v9308
        %v9317 = vmul.f32 %v9271, %v9309
        %v9318 = vmul.f32 %v9273, %v9310
        %v9319 = vmul.f32 %v9275, %v9311
        %v9320 = vmul.f32 %v9277, %v9312
        %v9321 = vmul.f32 %v9279, %v9313
        %v9322 = vmul.f32 %v9281, %v9314
        %v9323 = vmul.f32 %v9283, %v9315
        %v9324 = vpack.c.bf16 %v9316, %v9316
        %v9325 = vpack.c.bf16 %v9317, %v9317
        %v9326 = vpack.c.bf16 %v9318, %v9318
        %v9327 = vpack.c.bf16 %v9319, %v9319
        %v9328 = vpack.c.bf16 %v9320, %v9320
        %v9329 = vpack.c.bf16 %v9321, %v9321
        %v9330 = vpack.c.bf16 %v9322, %v9322
        %v9331 = vpack.c.bf16 %v9323, %v9323
        %9332 = vrot.lane.b32.xlu0 %v5872, 40
        %v9333 = vpop.permute.xlu0 %9332
        %v9335 = vsel %vm1233, %v9324, 0
        %v9338 = vsel %vm1740, %v9333, 0
        %9340 = vmatprep.subr.bf16.mxu0 0
        %9341 = vmatpush1.bf16.msra.mxu0 0
        %9342 = vmatprep.subr.bf16.mxu0 0
        %9343 = vmatpush1.bf16.msra.mxu0 0
        %9344 = vmatprep.subr.bf16.mxu0 0
        %9345 = vmatpush1.bf16.msra.mxu0 0
        %9346 = vmatprep.subr.bf16.mxu0 0
        %9347 = vmatpush1.bf16.msra.mxu0 0
        %9348 = vmatprep.subr.bf16.mxu0 0
        %9349 = vmatpush1.bf16.msra.mxu0 0
        %9350 = vmatprep.subr.bf16.mxu0 0
        %9351 = vmatpush1.bf16.msra.mxu0 0
        %9352 = vmatprep.subr.bf16.mxu0 0
        %9353 = vmatpush1.bf16.msra.mxu0 0
        %9354 = vmatprep.subr.bf16.mxu0 0
        %9355 = vmatpush1.bf16.msra.mxu0 %v9338
        %9356 = vmatprep.subr.bf16.mxu0 0
        %9357 = vmatpush2.bf16.msra.mxu0 0
        %9358 = vmatprep.subr.bf16.mxu0 0
        %9359 = vmatpush2.bf16.msra.mxu0 0
        %9360 = vmatprep.subr.bf16.mxu0 0
        %9361 = vmatpush2.bf16.msra.mxu0 0
        %9362 = vmatprep.subr.bf16.mxu0 0
        %9363 = vmatpush2.bf16.msra.mxu0 0
        %9364 = vmatprep.subr.bf16.mxu0 0
        %9365 = vmatpush2.bf16.msra.mxu0 0
        %9366 = vmatprep.subr.bf16.mxu0 0
        %9367 = vmatpush2.bf16.msra.mxu0 0
        %9368 = vmatprep.subr.bf16.mxu0 0
        %9369 = vmatpush2.bf16.msra.mxu0 0
        %9370 = vmatprep.subr.bf16.mxu0 0
        %9371 = vmatpush2.bf16.msra.mxu0 0
        %9372 = vmatprep.mubr.bf16.mxu0 0
        %9373 = vmatmul.mubr.bf16.gmra.mxu0 %v9335
        %v9374 = vpop.f32.mrf.mxu0
        %v9375 = vadd.f32 0.0, %v9374
        %v9376 = vpop.f32.mrf.mxu0
        %v9377 = vpop.f32.mrf.mxu0
        %v9378 = vpop.f32.mrf.mxu0
        %9379 = vdwg.mxu0
        %9380 = vrot.lane.b32.xlu0 %v5873, 40
        %v9381 = vpop.permute.xlu0 %9380
        %v9383 = vsel %vm1233, %v9325, 0
        %v9386 = vsel %vm1740, %v9381, 0
        %9388 = vmatprep.subr.bf16.mxu0 0
        %9389 = vmatpush1.bf16.msra.mxu0 0
        %9390 = vmatprep.subr.bf16.mxu0 0
        %9391 = vmatpush1.bf16.msra.mxu0 0
        %9392 = vmatprep.subr.bf16.mxu0 0
        %9393 = vmatpush1.bf16.msra.mxu0 0
        %9394 = vmatprep.subr.bf16.mxu0 0
        %9395 = vmatpush1.bf16.msra.mxu0 0
        %9396 = vmatprep.subr.bf16.mxu0 0
        %9397 = vmatpush1.bf16.msra.mxu0 0
        %9398 = vmatprep.subr.bf16.mxu0 0
        %9399 = vmatpush1.bf16.msra.mxu0 0
        %9400 = vmatprep.subr.bf16.mxu0 0
        %9401 = vmatpush1.bf16.msra.mxu0 0
        %9402 = vmatprep.subr.bf16.mxu0 0
        %9403 = vmatpush1.bf16.msra.mxu0 %v9386
        %9404 = vmatprep.subr.bf16.mxu0 0
        %9405 = vmatpush2.bf16.msra.mxu0 0
        %9406 = vmatprep.subr.bf16.mxu0 0
        %9407 = vmatpush2.bf16.msra.mxu0 0
        %9408 = vmatprep.subr.bf16.mxu0 0
        %9409 = vmatpush2.bf16.msra.mxu0 0
        %9410 = vmatprep.subr.bf16.mxu0 0
        %9411 = vmatpush2.bf16.msra.mxu0 0
        %9412 = vmatprep.subr.bf16.mxu0 0
        %9413 = vmatpush2.bf16.msra.mxu0 0
        %9414 = vmatprep.subr.bf16.mxu0 0
        %9415 = vmatpush2.bf16.msra.mxu0 0
        %9416 = vmatprep.subr.bf16.mxu0 0
        %9417 = vmatpush2.bf16.msra.mxu0 0
        %9418 = vmatprep.subr.bf16.mxu0 0
        %9419 = vmatpush2.bf16.msra.mxu0 0
        %9420 = vmatprep.mubr.bf16.mxu0 0
        %9421 = vmatmul.mubr.bf16.gmra.mxu0 %v9383
        %v9422 = vpop.f32.mrf.mxu0
        %v9423 = vadd.f32 0.0, %v9422
        %v9424 = vpop.f32.mrf.mxu0
        %v9425 = vpop.f32.mrf.mxu0
        %v9426 = vpop.f32.mrf.mxu0
        %9427 = vdwg.mxu0
        %9428 = vrot.lane.b32.xlu0 %v5874, 40
        %v9429 = vpop.permute.xlu0 %9428
        %v9431 = vsel %vm1233, %v9326, 0
        %v9434 = vsel %vm1740, %v9429, 0
        %9436 = vmatprep.subr.bf16.mxu0 0
        %9437 = vmatpush1.bf16.msra.mxu0 0
        %9438 = vmatprep.subr.bf16.mxu0 0
        %9439 = vmatpush1.bf16.msra.mxu0 0
        %9440 = vmatprep.subr.bf16.mxu0 0
        %9441 = vmatpush1.bf16.msra.mxu0 0
        %9442 = vmatprep.subr.bf16.mxu0 0
        %9443 = vmatpush1.bf16.msra.mxu0 0
        %9444 = vmatprep.subr.bf16.mxu0 0
        %9445 = vmatpush1.bf16.msra.mxu0 0
        %9446 = vmatprep.subr.bf16.mxu0 0
        %9447 = vmatpush1.bf16.msra.mxu0 0
        %9448 = vmatprep.subr.bf16.mxu0 0
        %9449 = vmatpush1.bf16.msra.mxu0 0
        %9450 = vmatprep.subr.bf16.mxu0 0
        %9451 = vmatpush1.bf16.msra.mxu0 %v9434
        %9452 = vmatprep.subr.bf16.mxu0 0
        %9453 = vmatpush2.bf16.msra.mxu0 0
        %9454 = vmatprep.subr.bf16.mxu0 0
        %9455 = vmatpush2.bf16.msra.mxu0 0
        %9456 = vmatprep.subr.bf16.mxu0 0
        %9457 = vmatpush2.bf16.msra.mxu0 0
        %9458 = vmatprep.subr.bf16.mxu0 0
        %9459 = vmatpush2.bf16.msra.mxu0 0
        %9460 = vmatprep.subr.bf16.mxu0 0
        %9461 = vmatpush2.bf16.msra.mxu0 0
        %9462 = vmatprep.subr.bf16.mxu0 0
        %9463 = vmatpush2.bf16.msra.mxu0 0
        %9464 = vmatprep.subr.bf16.mxu0 0
        %9465 = vmatpush2.bf16.msra.mxu0 0
        %9466 = vmatprep.subr.bf16.mxu0 0
        %9467 = vmatpush2.bf16.msra.mxu0 0
        %9468 = vmatprep.mubr.bf16.mxu0 0
        %9469 = vmatmul.mubr.bf16.gmra.mxu0 %v9431
        %v9470 = vpop.f32.mrf.mxu0
        %v9471 = vadd.f32 0.0, %v9470
        %v9472 = vpop.f32.mrf.mxu0
        %v9473 = vpop.f32.mrf.mxu0
        %v9474 = vpop.f32.mrf.mxu0
        %9475 = vdwg.mxu0
        %9476 = vrot.lane.b32.xlu0 %v5875, 40
        %v9477 = vpop.permute.xlu0 %9476
        %v9479 = vsel %vm1233, %v9327, 0
        %v9482 = vsel %vm1740, %v9477, 0
        %9484 = vmatprep.subr.bf16.mxu0 0
        %9485 = vmatpush1.bf16.msra.mxu0 0
        %9486 = vmatprep.subr.bf16.mxu0 0
        %9487 = vmatpush1.bf16.msra.mxu0 0
        %9488 = vmatprep.subr.bf16.mxu0 0
        %9489 = vmatpush1.bf16.msra.mxu0 0
        %9490 = vmatprep.subr.bf16.mxu0 0
        %9491 = vmatpush1.bf16.msra.mxu0 0
        %9492 = vmatprep.subr.bf16.mxu0 0
        %9493 = vmatpush1.bf16.msra.mxu0 0
        %9494 = vmatprep.subr.bf16.mxu0 0
        %9495 = vmatpush1.bf16.msra.mxu0 0
        %9496 = vmatprep.subr.bf16.mxu0 0
        %9497 = vmatpush1.bf16.msra.mxu0 0
        %9498 = vmatprep.subr.bf16.mxu0 0
        %9499 = vmatpush1.bf16.msra.mxu0 %v9482
        %9500 = vmatprep.subr.bf16.mxu0 0
        %9501 = vmatpush2.bf16.msra.mxu0 0
        %9502 = vmatprep.subr.bf16.mxu0 0
        %9503 = vmatpush2.bf16.msra.mxu0 0
        %9504 = vmatprep.subr.bf16.mxu0 0
        %9505 = vmatpush2.bf16.msra.mxu0 0
        %9506 = vmatprep.subr.bf16.mxu0 0
        %9507 = vmatpush2.bf16.msra.mxu0 0
        %9508 = vmatprep.subr.bf16.mxu0 0
        %9509 = vmatpush2.bf16.msra.mxu0 0
        %9510 = vmatprep.subr.bf16.mxu0 0
        %9511 = vmatpush2.bf16.msra.mxu0 0
        %9512 = vmatprep.subr.bf16.mxu0 0
        %9513 = vmatpush2.bf16.msra.mxu0 0
        %9514 = vmatprep.subr.bf16.mxu0 0
        %9515 = vmatpush2.bf16.msra.mxu0 0
        %9516 = vmatprep.mubr.bf16.mxu0 0
        %9517 = vmatmul.mubr.bf16.gmra.mxu0 %v9479
        %v9518 = vpop.f32.mrf.mxu0
        %v9519 = vadd.f32 0.0, %v9518
        %v9520 = vpop.f32.mrf.mxu0
        %v9521 = vpop.f32.mrf.mxu0
        %v9522 = vpop.f32.mrf.mxu0
        %9523 = vdwg.mxu0
        %9524 = vrot.lane.b32.xlu0 %v5876, 40
        %v9525 = vpop.permute.xlu0 %9524
        %v9527 = vsel %vm1233, %v9328, 0
        %v9530 = vsel %vm1740, %v9525, 0
        %9532 = vmatprep.subr.bf16.mxu0 0
        %9533 = vmatpush1.bf16.msra.mxu0 0
        %9534 = vmatprep.subr.bf16.mxu0 0
        %9535 = vmatpush1.bf16.msra.mxu0 0
        %9536 = vmatprep.subr.bf16.mxu0 0
        %9537 = vmatpush1.bf16.msra.mxu0 0
        %9538 = vmatprep.subr.bf16.mxu0 0
        %9539 = vmatpush1.bf16.msra.mxu0 0
        %9540 = vmatprep.subr.bf16.mxu0 0
        %9541 = vmatpush1.bf16.msra.mxu0 0
        %9542 = vmatprep.subr.bf16.mxu0 0
        %9543 = vmatpush1.bf16.msra.mxu0 0
        %9544 = vmatprep.subr.bf16.mxu0 0
        %9545 = vmatpush1.bf16.msra.mxu0 0
        %9546 = vmatprep.subr.bf16.mxu0 0
        %9547 = vmatpush1.bf16.msra.mxu0 %v9530
        %9548 = vmatprep.subr.bf16.mxu0 0
        %9549 = vmatpush2.bf16.msra.mxu0 0
        %9550 = vmatprep.subr.bf16.mxu0 0
        %9551 = vmatpush2.bf16.msra.mxu0 0
        %9552 = vmatprep.subr.bf16.mxu0 0
        %9553 = vmatpush2.bf16.msra.mxu0 0
        %9554 = vmatprep.subr.bf16.mxu0 0
        %9555 = vmatpush2.bf16.msra.mxu0 0
        %9556 = vmatprep.subr.bf16.mxu0 0
        %9557 = vmatpush2.bf16.msra.mxu0 0
        %9558 = vmatprep.subr.bf16.mxu0 0
        %9559 = vmatpush2.bf16.msra.mxu0 0
        %9560 = vmatprep.subr.bf16.mxu0 0
        %9561 = vmatpush2.bf16.msra.mxu0 0
        %9562 = vmatprep.subr.bf16.mxu0 0
        %9563 = vmatpush2.bf16.msra.mxu0 0
        %9564 = vmatprep.mubr.bf16.mxu0 0
        %9565 = vmatmul.mubr.bf16.gmra.mxu0 %v9527
        %v9566 = vpop.f32.mrf.mxu0
        %v9567 = vadd.f32 0.0, %v9566
        %v9568 = vpop.f32.mrf.mxu0
        %v9569 = vpop.f32.mrf.mxu0
        %v9570 = vpop.f32.mrf.mxu0
        %9571 = vdwg.mxu0
        %9572 = vrot.lane.b32.xlu0 %v5877, 40
        %v9573 = vpop.permute.xlu0 %9572
        %v9575 = vsel %vm1233, %v9329, 0
        %v9578 = vsel %vm1740, %v9573, 0
        %9580 = vmatprep.subr.bf16.mxu0 0
        %9581 = vmatpush1.bf16.msra.mxu0 0
        %9582 = vmatprep.subr.bf16.mxu0 0
        %9583 = vmatpush1.bf16.msra.mxu0 0
        %9584 = vmatprep.subr.bf16.mxu0 0
        %9585 = vmatpush1.bf16.msra.mxu0 0
        %9586 = vmatprep.subr.bf16.mxu0 0
        %9587 = vmatpush1.bf16.msra.mxu0 0
        %9588 = vmatprep.subr.bf16.mxu0 0
        %9589 = vmatpush1.bf16.msra.mxu0 0
        %9590 = vmatprep.subr.bf16.mxu0 0
        %9591 = vmatpush1.bf16.msra.mxu0 0
        %9592 = vmatprep.subr.bf16.mxu0 0
        %9593 = vmatpush1.bf16.msra.mxu0 0
        %9594 = vmatprep.subr.bf16.mxu0 0
        %9595 = vmatpush1.bf16.msra.mxu0 %v9578
        %9596 = vmatprep.subr.bf16.mxu0 0
        %9597 = vmatpush2.bf16.msra.mxu0 0
        %9598 = vmatprep.subr.bf16.mxu0 0
        %9599 = vmatpush2.bf16.msra.mxu0 0
        %9600 = vmatprep.subr.bf16.mxu0 0
        %9601 = vmatpush2.bf16.msra.mxu0 0
        %9602 = vmatprep.subr.bf16.mxu0 0
        %9603 = vmatpush2.bf16.msra.mxu0 0
        %9604 = vmatprep.subr.bf16.mxu0 0
        %9605 = vmatpush2.bf16.msra.mxu0 0
        %9606 = vmatprep.subr.bf16.mxu0 0
        %9607 = vmatpush2.bf16.msra.mxu0 0
        %9608 = vmatprep.subr.bf16.mxu0 0
        %9609 = vmatpush2.bf16.msra.mxu0 0
        %9610 = vmatprep.subr.bf16.mxu0 0
        %9611 = vmatpush2.bf16.msra.mxu0 0
        %9612 = vmatprep.mubr.bf16.mxu0 0
        %9613 = vmatmul.mubr.bf16.gmra.mxu0 %v9575
        %v9614 = vpop.f32.mrf.mxu0
        %v9615 = vadd.f32 0.0, %v9614
        %v9616 = vpop.f32.mrf.mxu0
        %v9617 = vpop.f32.mrf.mxu0
        %v9618 = vpop.f32.mrf.mxu0
        %9619 = vdwg.mxu0
        %9620 = vrot.lane.b32.xlu0 %v5878, 40
        %v9621 = vpop.permute.xlu0 %9620
        %v9623 = vsel %vm1233, %v9330, 0
        %v9626 = vsel %vm1740, %v9621, 0
        %9628 = vmatprep.subr.bf16.mxu0 0
        %9629 = vmatpush1.bf16.msra.mxu0 0
        %9630 = vmatprep.subr.bf16.mxu0 0
        %9631 = vmatpush1.bf16.msra.mxu0 0
        %9632 = vmatprep.subr.bf16.mxu0 0
        %9633 = vmatpush1.bf16.msra.mxu0 0
        %9634 = vmatprep.subr.bf16.mxu0 0
        %9635 = vmatpush1.bf16.msra.mxu0 0
        %9636 = vmatprep.subr.bf16.mxu0 0
        %9637 = vmatpush1.bf16.msra.mxu0 0
        %9638 = vmatprep.subr.bf16.mxu0 0
        %9639 = vmatpush1.bf16.msra.mxu0 0
        %9640 = vmatprep.subr.bf16.mxu0 0
        %9641 = vmatpush1.bf16.msra.mxu0 0
        %9642 = vmatprep.subr.bf16.mxu0 0
        %9643 = vmatpush1.bf16.msra.mxu0 %v9626
        %9644 = vmatprep.subr.bf16.mxu0 0
        %9645 = vmatpush2.bf16.msra.mxu0 0
        %9646 = vmatprep.subr.bf16.mxu0 0
        %9647 = vmatpush2.bf16.msra.mxu0 0
        %9648 = vmatprep.subr.bf16.mxu0 0
        %9649 = vmatpush2.bf16.msra.mxu0 0
        %9650 = vmatprep.subr.bf16.mxu0 0
        %9651 = vmatpush2.bf16.msra.mxu0 0
        %9652 = vmatprep.subr.bf16.mxu0 0
        %9653 = vmatpush2.bf16.msra.mxu0 0
        %9654 = vmatprep.subr.bf16.mxu0 0
        %9655 = vmatpush2.bf16.msra.mxu0 0
        %9656 = vmatprep.subr.bf16.mxu0 0
        %9657 = vmatpush2.bf16.msra.mxu0 0
        %9658 = vmatprep.subr.bf16.mxu0 0
        %9659 = vmatpush2.bf16.msra.mxu0 0
        %9660 = vmatprep.mubr.bf16.mxu0 0
        %9661 = vmatmul.mubr.bf16.gmra.mxu0 %v9623
        %v9662 = vpop.f32.mrf.mxu0
        %v9663 = vadd.f32 0.0, %v9662
        %v9664 = vpop.f32.mrf.mxu0
        %v9665 = vpop.f32.mrf.mxu0
        %v9666 = vpop.f32.mrf.mxu0
        %9667 = vdwg.mxu0
        %9668 = vrot.lane.b32.xlu0 %v5879, 40
        %v9669 = vpop.permute.xlu0 %9668
        %v9671 = vsel %vm1233, %v9331, 0
        %v9674 = vsel %vm1740, %v9669, 0
        %9676 = vmatprep.subr.bf16.mxu0 0
        %9677 = vmatpush1.bf16.msra.mxu0 0
        %9678 = vmatprep.subr.bf16.mxu0 0
        %9679 = vmatpush1.bf16.msra.mxu0 0
        %9680 = vmatprep.subr.bf16.mxu0 0
        %9681 = vmatpush1.bf16.msra.mxu0 0
        %9682 = vmatprep.subr.bf16.mxu0 0
        %9683 = vmatpush1.bf16.msra.mxu0 0
        %9684 = vmatprep.subr.bf16.mxu0 0
        %9685 = vmatpush1.bf16.msra.mxu0 0
        %9686 = vmatprep.subr.bf16.mxu0 0
        %9687 = vmatpush1.bf16.msra.mxu0 0
        %9688 = vmatprep.subr.bf16.mxu0 0
        %9689 = vmatpush1.bf16.msra.mxu0 0
        %9690 = vmatprep.subr.bf16.mxu0 0
        %9691 = vmatpush1.bf16.msra.mxu0 %v9674
        %9692 = vmatprep.subr.bf16.mxu0 0
        %9693 = vmatpush2.bf16.msra.mxu0 0
        %9694 = vmatprep.subr.bf16.mxu0 0
        %9695 = vmatpush2.bf16.msra.mxu0 0
        %9696 = vmatprep.subr.bf16.mxu0 0
        %9697 = vmatpush2.bf16.msra.mxu0 0
        %9698 = vmatprep.subr.bf16.mxu0 0
        %9699 = vmatpush2.bf16.msra.mxu0 0
        %9700 = vmatprep.subr.bf16.mxu0 0
        %9701 = vmatpush2.bf16.msra.mxu0 0
        %9702 = vmatprep.subr.bf16.mxu0 0
        %9703 = vmatpush2.bf16.msra.mxu0 0
        %9704 = vmatprep.subr.bf16.mxu0 0
        %9705 = vmatpush2.bf16.msra.mxu0 0
        %9706 = vmatprep.subr.bf16.mxu0 0
        %9707 = vmatpush2.bf16.msra.mxu0 0
        %9708 = vmatprep.mubr.bf16.mxu0 0
        %9709 = vmatmul.mubr.bf16.gmra.mxu0 %v9671
        %v9710 = vpop.f32.mrf.mxu0
        %v9711 = vadd.f32 0.0, %v9710
        %v9712 = vpop.f32.mrf.mxu0
        %v9713 = vpop.f32.mrf.mxu0
        %v9714 = vpop.f32.mrf.mxu0
        %9715 = vdwg.mxu0
        %v9716 = vpack.c.bf16 %v9423, %v9375
        %v9717 = vpack.c.bf16 %v9519, %v9471
        %v9718 = vpack.c.bf16 %v9615, %v9567
        %v9719 = vpack.c.bf16 %v9711, %v9663
        %v9721 = vsel %vm1233, %v9716, 0
        %v9724 = vsel %vm1233, %v9717, 0
        %v9727 = vsel %vm1233, %v9718, 0
        %v9730 = vsel %vm1233, %v9719, 0
        %v9733 = vsel %vm1740, %v5871, 0
        %9735 = vmatprep.subr.bf16.mxu0 0
        %9736 = vmatpush1.bf16.msra.mxu0 0
        %9737 = vmatprep.subr.bf16.mxu0 0
        %9738 = vmatpush1.bf16.msra.mxu0 0
        %9739 = vmatprep.subr.bf16.mxu0 0
        %9740 = vmatpush1.bf16.msra.mxu0 0
        %9741 = vmatprep.subr.bf16.mxu0 0
        %9742 = vmatpush1.bf16.msra.mxu0 0
        %9743 = vmatprep.subr.bf16.mxu0 0
        %9744 = vmatpush1.bf16.msra.mxu0 0
        %9745 = vmatprep.subr.bf16.mxu0 0
        %9746 = vmatpush1.bf16.msra.mxu0 0
        %9747 = vmatprep.subr.bf16.mxu0 0
        %9748 = vmatpush1.bf16.msra.mxu0 0
        %9749 = vmatprep.subr.bf16.mxu0 0
        %9750 = vmatpush1.bf16.msra.mxu0 %v9733
        %9751 = vmatprep.subr.bf16.mxu0 0
        %9752 = vmatpush2.bf16.msra.mxu0 0
        %9753 = vmatprep.subr.bf16.mxu0 0
        %9754 = vmatpush2.bf16.msra.mxu0 0
        %9755 = vmatprep.subr.bf16.mxu0 0
        %9756 = vmatpush2.bf16.msra.mxu0 0
        %9757 = vmatprep.subr.bf16.mxu0 0
        %9758 = vmatpush2.bf16.msra.mxu0 0
        %9759 = vmatprep.subr.bf16.mxu0 0
        %9760 = vmatpush2.bf16.msra.mxu0 0
        %9761 = vmatprep.subr.bf16.mxu0 0
        %9762 = vmatpush2.bf16.msra.mxu0 0
        %9763 = vmatprep.subr.bf16.mxu0 0
        %9764 = vmatpush2.bf16.msra.mxu0 0
        %9765 = vmatprep.subr.bf16.mxu0 0
        %9766 = vmatpush2.bf16.msra.mxu0 0
        %9767 = vmatprep.mubr.bf16.mxu0 0
        %9768 = vmatmul.mubr.bf16.gmra.mxu0 %v9721
        %v9769 = vpop.f32.mrf.mxu0
        %v9770 = vadd.f32 0.0, %v9769
        %v9771 = vpop.f32.mrf.mxu0
        %v9772 = vpop.f32.mrf.mxu0
        %v9773 = vadd.f32 0.0, %v9772
        %v9774 = vpop.f32.mrf.mxu0
        %9775 = vmatprep.mubr.bf16.mxu0 0
        %9776 = vmatmul.mubr.bf16.gmra.mxu0 %v9724
        %v9777 = vpop.f32.mrf.mxu0
        %v9778 = vadd.f32 0.0, %v9777
        %v9779 = vpop.f32.mrf.mxu0
        %v9780 = vpop.f32.mrf.mxu0
        %v9781 = vadd.f32 0.0, %v9780
        %v9782 = vpop.f32.mrf.mxu0
        %9783 = vmatprep.mubr.bf16.mxu0 0
        %9784 = vmatmul.mubr.bf16.gmra.mxu0 %v9727
        %v9785 = vpop.f32.mrf.mxu0
        %v9786 = vadd.f32 0.0, %v9785
        %v9787 = vpop.f32.mrf.mxu0
        %v9788 = vpop.f32.mrf.mxu0
        %v9789 = vadd.f32 0.0, %v9788
        %v9790 = vpop.f32.mrf.mxu0
        %9791 = vmatprep.mubr.bf16.mxu0 0
        %9792 = vmatmul.mubr.bf16.gmra.mxu0 %v9730
        %v9793 = vpop.f32.mrf.mxu0
        %v9794 = vadd.f32 0.0, %v9793
        %v9795 = vpop.f32.mrf.mxu0
        %v9796 = vpop.f32.mrf.mxu0
        %v9797 = vadd.f32 0.0, %v9796
        %v9798 = vpop.f32.mrf.mxu0
        %9799 = vdwg.mxu0
        %v9800 = vadd.f32 %v8812, %v9770
        %v9801 = vadd.f32 %v8813, %v9773
        %v9802 = vadd.f32 %v8814, %v9778
        %v9803 = vadd.f32 %v8815, %v9781
        %v9804 = vadd.f32 %v8816, %v9786
        %v9805 = vadd.f32 %v8817, %v9789
        %v9806 = vadd.f32 %v8818, %v9794
        %v9807 = vadd.f32 %v8819, %v9797
        %v9808 = vadd.f32 %v5617, %v9800
        %v9809 = vadd.f32 %v5618, %v9801
        %v9810 = vadd.f32 %v5619, %v9802
        %v9811 = vadd.f32 %v5620, %v9803
        %v9812 = vadd.f32 %v5621, %v9804
        %v9813 = vadd.f32 %v5622, %v9805
        %v9814 = vadd.f32 %v5623, %v9806
        %v9815 = vadd.f32 %v5624, %v9807
        %s9816 = scalar_lea.vmem %s10, 1
        %v9817 = vld [vmem:[%s9816] sm:$0x1]
        %v9819 = vlaneseq
        %v9820 = vshrl.u32 %v9819, 7
        %v9821 = vsub.s32 0, %v9820
        %v9822 = vrot.slane %v9817, %v9821
        %v9824 = vadd.f32 %v9808, %v9822
        %v9825 = vadd.f32 %v9809, %v9822
        %v9826 = vadd.f32 %v9810, %v9822
        %v9827 = vadd.f32 %v9811, %v9822
        %v9828 = vadd.f32 %v9812, %v9822
        %v9829 = vadd.f32 %v9813, %v9822
        %v9830 = vadd.f32 %v9814, %v9822
        %v9831 = vadd.f32 %v9815, %v9822
        %s9832 = scalar_lea.vmem %s11, 1
        %v9833 = vld [vmem:[%s9832] sm:$0x1]
        %s9834 = scalar_lea.vmem %s12, 1
        %v9835 = vld [vmem:[%s9834] sm:$0x1]
        %v9836 = vsel %vm842, %v9824, 0.0
        %9837 = vadd.xlane.f32.xlu0 %v9836
        %v9838 = vpop.xlane.xlu0 %9837
        %v9839 = vsel %vm842, %v9825, 0.0
        %9840 = vadd.xlane.f32.xlu0 %v9839
        %v9841 = vpop.xlane.xlu0 %9840
        %v9842 = vsel %vm842, %v9826, 0.0
        %9843 = vadd.xlane.f32.xlu0 %v9842
        %v9844 = vpop.xlane.xlu0 %9843
        %v9845 = vsel %vm842, %v9827, 0.0
        %9846 = vadd.xlane.f32.xlu0 %v9845
        %v9847 = vpop.xlane.xlu0 %9846
        %v9848 = vsel %vm842, %v9828, 0.0
        %9849 = vadd.xlane.f32.xlu0 %v9848
        %v9850 = vpop.xlane.xlu0 %9849
        %v9851 = vsel %vm842, %v9829, 0.0
        %9852 = vadd.xlane.f32.xlu0 %v9851
        %v9853 = vpop.xlane.xlu0 %9852
        %v9854 = vsel %vm842, %v9830, 0.0
        %9855 = vadd.xlane.f32.xlu0 %v9854
        %v9856 = vpop.xlane.xlu0 %9855
        %v9857 = vsel %vm842, %v9831, 0.0
        %9858 = vadd.xlane.f32.xlu0 %v9857
        %v9859 = vpop.xlane.xlu0 %9858
        %v9860 = vmul.f32 %v9838, %v867
        %v9861 = vmul.f32 %v9841, %v867
        %v9862 = vmul.f32 %v9844, %v867
        %v9863 = vmul.f32 %v9847, %v867
        %v9864 = vmul.f32 %v9850, %v867
        %v9865 = vmul.f32 %v9853, %v867
        %v9866 = vmul.f32 %v9856, %v867
        %v9867 = vmul.f32 %v9859, %v867
        %v9868 = vsub.f32 %v9824, %v9860
        %v9869 = vsub.f32 %v9825, %v9861
        %v9870 = vsub.f32 %v9826, %v9862
        %v9871 = vsub.f32 %v9827, %v9863
        %v9872 = vsub.f32 %v9828, %v9864
        %v9873 = vsub.f32 %v9829, %v9865
        %v9874 = vsub.f32 %v9830, %v9866
        %v9875 = vsub.f32 %v9831, %v9867
        %v9876 = vmul.f32 %v9868, %v9868
        %v9877 = vmul.f32 %v9869, %v9869
        %v9878 = vmul.f32 %v9870, %v9870
        %v9879 = vmul.f32 %v9871, %v9871
        %v9880 = vmul.f32 %v9872, %v9872
        %v9881 = vmul.f32 %v9873, %v9873
        %v9882 = vmul.f32 %v9874, %v9874
        %v9883 = vmul.f32 %v9875, %v9875
        %v9884 = vsel %vm842, %v9876, 0.0
        %9885 = vadd.xlane.f32.xlu0 %v9884
        %v9886 = vpop.xlane.xlu0 %9885
        %v9887 = vsel %vm842, %v9877, 0.0
        %9888 = vadd.xlane.f32.xlu0 %v9887
        %v9889 = vpop.xlane.xlu0 %9888
        %v9890 = vsel %vm842, %v9878, 0.0
        %9891 = vadd.xlane.f32.xlu0 %v9890
        %v9892 = vpop.xlane.xlu0 %9891
        %v9893 = vsel %vm842, %v9879, 0.0
        %9894 = vadd.xlane.f32.xlu0 %v9893
        %v9895 = vpop.xlane.xlu0 %9894
        %v9896 = vsel %vm842, %v9880, 0.0
        %9897 = vadd.xlane.f32.xlu0 %v9896
        %v9898 = vpop.xlane.xlu0 %9897
        %v9899 = vsel %vm842, %v9881, 0.0
        %9900 = vadd.xlane.f32.xlu0 %v9899
        %v9901 = vpop.xlane.xlu0 %9900
        %v9902 = vsel %vm842, %v9882, 0.0
        %9903 = vadd.xlane.f32.xlu0 %v9902
        %v9904 = vpop.xlane.xlu0 %9903
        %v9905 = vsel %vm842, %v9883, 0.0
        %9906 = vadd.xlane.f32.xlu0 %v9905
        %v9907 = vpop.xlane.xlu0 %9906
        %v9908 = vmul.f32 %v9886, %v867
        %v9909 = vmul.f32 %v9889, %v867
        %v9910 = vmul.f32 %v9892, %v867
        %v9911 = vmul.f32 %v9895, %v867
        %v9912 = vmul.f32 %v9898, %v867
        %v9913 = vmul.f32 %v9901, %v867
        %v9914 = vmul.f32 %v9904, %v867
        %v9915 = vmul.f32 %v9907, %v867
        %v9916 = vadd.f32 %v9908, 1e-05
        %v9917 = vadd.f32 %v9909, 1e-05
        %v9918 = vadd.f32 %v9910, 1e-05
        %v9919 = vadd.f32 %v9911, 1e-05
        %v9920 = vadd.f32 %v9912, 1e-05
        %v9921 = vadd.f32 %v9913, 1e-05
        %v9922 = vadd.f32 %v9914, 1e-05
        %v9923 = vadd.f32 %v9915, 1e-05
        %v9924 = vrsqrt.pop %v9916
        %v9925 = vrsqrt.pop %v9917
        %v9926 = vrsqrt.pop %v9918
        %v9927 = vrsqrt.pop %v9919
        %v9928 = vrsqrt.pop %v9920
        %v9929 = vrsqrt.pop %v9921
        %v9930 = vrsqrt.pop %v9922
        %v9931 = vrsqrt.pop %v9923
        %v9932 = vmul.f32 %v9868, %v9924
        %v9933 = vmul.f32 %v9869, %v9925
        %v9934 = vmul.f32 %v9870, %v9926
        %v9935 = vmul.f32 %v9871, %v9927
        %v9936 = vmul.f32 %v9872, %v9928
        %v9937 = vmul.f32 %v9873, %v9929
        %v9938 = vmul.f32 %v9874, %v9930
        %v9939 = vmul.f32 %v9875, %v9931
        %v9941 = vlaneseq
        %v9942 = vshrl.u32 %v9941, 7
        %v9943 = vsub.s32 0, %v9942
        %v9944 = vrot.slane %v9833, %v9943
        %v9946 = vmul.f32 %v9932, %v9944
        %v9947 = vmul.f32 %v9933, %v9944
        %v9948 = vmul.f32 %v9934, %v9944
        %v9949 = vmul.f32 %v9935, %v9944
        %v9950 = vmul.f32 %v9936, %v9944
        %v9951 = vmul.f32 %v9937, %v9944
        %v9952 = vmul.f32 %v9938, %v9944
        %v9953 = vmul.f32 %v9939, %v9944
        %v9955 = vlaneseq
        %v9956 = vshrl.u32 %v9955, 7
        %v9957 = vsub.s32 0, %v9956
        %v9958 = vrot.slane %v9835, %v9957
        %v9960 = vadd.f32 %v9946, %v9958
        %v9961 = vadd.f32 %v9947, %v9958
        %v9962 = vadd.f32 %v9948, %v9958
        %v9963 = vadd.f32 %v9949, %v9958
        %v9964 = vadd.f32 %v9950, %v9958
        %v9965 = vadd.f32 %v9951, %v9958
        %v9966 = vadd.f32 %v9952, %v9958
        %v9967 = vadd.f32 %v9953, %v9958
        %v9968 = vpack.c.bf16 %v9961, %v9960
        %v9969 = vpack.c.bf16 %v9963, %v9962
        %v9970 = vpack.c.bf16 %v9965, %v9964
        %v9971 = vpack.c.bf16 %v9967, %v9966
        %s9972 = scalar_lea.vmem %s13, 16
        %v9973 = vld [vmem:[%s9972] sm:$0xf]
        %v9974 = vld [vmem:[%s9972 + $0x4] sm:$0xf]
        %v9975 = vld [vmem:[%s9972 + $0x8] sm:$0xf]
        %v9976 = vld [vmem:[%s9972 + $0xc] sm:$0xf]
        %s9977 = scalar_lea.vmem %s14, 1
        %v9978 = vld [vmem:[%s9977] sm:$0x1]
        %v9980 = vlaneseq
        %v9981 = vshrl.u32 %v9980, 7
        %v9982 = vsub.s32 0, %v9981
        %v9983 = vrot.slane %v9978, %v9982
        %v9989 = vunpack.c.l.b16 %v9973
        %v9990 = vunpack.c.l.b16 %v9974
        %v9991 = vunpack.c.l.b16 %v9975
        %v9992 = vunpack.c.l.b16 %v9976
        %v9993 = vpack.c.b16 %v9990, %v9989
        %v9994 = vpack.c.b16 %v9992, %v9991
        %v9998 = vsel %vm842, %v9968, 0
        %v10001 = vsel %vm842, %v9969, 0
        %v10004 = vsel %vm842, %v9970, 0
        %v10007 = vsel %vm842, %v9971, 0
        %10009 = vmatprep.subr.bf16.mxu0 0
        %10010 = vmatpush1.bf16.msra.mxu0 0
        %10011 = vmatprep.subr.bf16.mxu0 0
        %10012 = vmatpush1.bf16.msra.mxu0 0
        %10013 = vmatprep.subr.bf16.mxu0 0
        %10014 = vmatpush1.bf16.msra.mxu0 0
        %10015 = vmatprep.subr.bf16.mxu0 0
        %10016 = vmatpush1.bf16.msra.mxu0 0
        %10017 = vmatprep.subr.bf16.mxu0 0
        %10018 = vmatpush1.bf16.msra.mxu0 0
        %10019 = vmatprep.subr.bf16.mxu0 0
        %10020 = vmatpush1.bf16.msra.mxu0 0
        %10021 = vmatprep.subr.bf16.mxu0 0
        %10022 = vmatpush1.bf16.msra.mxu0 %v9994
        %10023 = vmatprep.subr.bf16.mxu0 0
        %10024 = vmatpush1.bf16.msra.mxu0 %v9993
        %10025 = vmatprep.subr.bf16.mxu0 0
        %10026 = vmatpush2.bf16.msra.mxu0 0
        %10027 = vmatprep.subr.bf16.mxu0 0
        %10028 = vmatpush2.bf16.msra.mxu0 0
        %10029 = vmatprep.subr.bf16.mxu0 0
        %10030 = vmatpush2.bf16.msra.mxu0 0
        %10031 = vmatprep.subr.bf16.mxu0 0
        %10032 = vmatpush2.bf16.msra.mxu0 0
        %10033 = vmatprep.subr.bf16.mxu0 0
        %10034 = vmatpush2.bf16.msra.mxu0 0
        %10035 = vmatprep.subr.bf16.mxu0 0
        %10036 = vmatpush2.bf16.msra.mxu0 0
        %10037 = vmatprep.subr.bf16.mxu0 0
        %10038 = vmatpush2.bf16.msra.mxu0 0
        %10039 = vmatprep.subr.bf16.mxu0 0
        %10040 = vmatpush2.bf16.msra.mxu0 0
        %10041 = vmatprep.mubr.bf16.mxu0 0
        %10042 = vmatmul.mubr.bf16.gmra.mxu0 %v9998
        %v10043 = vpop.f32.mrf.mxu0
        %v10044 = vadd.f32 %v9983, %v10043
        %v10045 = vpop.f32.mrf.mxu0
        %v10046 = vpop.f32.mrf.mxu0
        %v10047 = vadd.f32 %v9983, %v10046
        %v10048 = vpop.f32.mrf.mxu0
        %10049 = vmatprep.mubr.bf16.mxu0 0
        %10050 = vmatmul.mubr.bf16.gmra.mxu0 %v10001
        %v10051 = vpop.f32.mrf.mxu0
        %v10052 = vadd.f32 %v9983, %v10051
        %v10053 = vpop.f32.mrf.mxu0
        %v10054 = vpop.f32.mrf.mxu0
        %v10055 = vadd.f32 %v9983, %v10054
        %v10056 = vpop.f32.mrf.mxu0
        %10057 = vmatprep.mubr.bf16.mxu0 0
        %10058 = vmatmul.mubr.bf16.gmra.mxu0 %v10004
        %v10059 = vpop.f32.mrf.mxu0
        %v10060 = vadd.f32 %v9983, %v10059
        %v10061 = vpop.f32.mrf.mxu0
        %v10062 = vpop.f32.mrf.mxu0
        %v10063 = vadd.f32 %v9983, %v10062
        %v10064 = vpop.f32.mrf.mxu0
        %10065 = vmatprep.mubr.bf16.mxu0 0
        %10066 = vmatmul.mubr.bf16.gmra.mxu0 %v10007
        %v10067 = vpop.f32.mrf.mxu0
        %v10068 = vadd.f32 %v9983, %v10067
        %v10069 = vpop.f32.mrf.mxu0
        %v10070 = vpop.f32.mrf.mxu0
        %v10071 = vadd.f32 %v9983, %v10070
        %v10072 = vpop.f32.mrf.mxu0
        %10073 = vdwg.mxu0
        %v10074 = vmul.f32 %v10044, -1.702
        %v10075 = vmul.f32 %v10047, -1.702
        %v10076 = vmul.f32 %v10052, -1.702
        %v10077 = vmul.f32 %v10055, -1.702
        %v10078 = vmul.f32 %v10060, -1.702
        %v10079 = vmul.f32 %v10063, -1.702
        %v10080 = vmul.f32 %v10068, -1.702
        %v10081 = vmul.f32 %v10071, -1.702
        %v10082 = vmul.f32 %v10074, 1.442695
        %v10083 = vpow.pop %v10082
        %v10084 = vmul.f32 %v10075, 1.442695
        %v10085 = vpow.pop %v10084
        %v10086 = vmul.f32 %v10076, 1.442695
        %v10087 = vpow.pop %v10086
        %v10088 = vmul.f32 %v10077, 1.442695
        %v10089 = vpow.pop %v10088
        %v10090 = vmul.f32 %v10078, 1.442695
        %v10091 = vpow.pop %v10090
        %v10092 = vmul.f32 %v10079, 1.442695
        %v10093 = vpow.pop %v10092
        %v10094 = vmul.f32 %v10080, 1.442695
        %v10095 = vpow.pop %v10094
        %v10096 = vmul.f32 %v10081, 1.442695
        %v10097 = vpow.pop %v10096
        %v10098 = vadd.f32 %v10083, 1.0
        %v10099 = vadd.f32 %v10085, 1.0
        %v10100 = vadd.f32 %v10087, 1.0
        %v10101 = vadd.f32 %v10089, 1.0
        %v10102 = vadd.f32 %v10091, 1.0
        %v10103 = vadd.f32 %v10093, 1.0
        %v10104 = vadd.f32 %v10095, 1.0
        %v10105 = vadd.f32 %v10097, 1.0
        %v10106 = vrcp.pop %v10098
        %v10107 = vrcp.pop %v10099
        %v10108 = vrcp.pop %v10100
        %v10109 = vrcp.pop %v10101
        %v10110 = vrcp.pop %v10102
        %v10111 = vrcp.pop %v10103
        %v10112 = vrcp.pop %v10104
        %v10113 = vrcp.pop %v10105
        %v10114 = vmul.f32 %v10044, %v10106
        %v10115 = vmul.f32 %v10047, %v10107
        %v10116 = vmul.f32 %v10052, %v10108
        %v10117 = vmul.f32 %v10055, %v10109
        %v10118 = vmul.f32 %v10060, %v10110
        %v10119 = vmul.f32 %v10063, %v10111
        %v10120 = vmul.f32 %v10068, %v10112
        %v10121 = vmul.f32 %v10071, %v10113
        %v10122 = vpack.c.bf16 %v10115, %v10114
        %v10123 = vpack.c.bf16 %v10117, %v10116
        %v10124 = vpack.c.bf16 %v10119, %v10118
        %v10125 = vpack.c.bf16 %v10121, %v10120
        %s10126 = scalar_lea.vmem %s15, 64
        %v10127 = vld [vmem:[%s10126] sm:$0xf]
        %v10128 = vld [vmem:[%s10126 + $0x4] sm:$0xf]
        %v10129 = vld [vmem:[%s10126 + $0x8] sm:$0xf]
        %v10130 = vld [vmem:[%s10126 + $0xc] sm:$0xf]
        %v10131 = vld [vmem:[%s10126 + $0x10] sm:$0xf]
        %v10132 = vld [vmem:[%s10126 + $0x14] sm:$0xf]
        %v10133 = vld [vmem:[%s10126 + $0x18] sm:$0xf]
        %v10134 = vld [vmem:[%s10126 + $0x1c] sm:$0xf]
        %v10135 = vld [vmem:[%s10126 + $0x20] sm:$0xf]
        %v10136 = vld [vmem:[%s10126 + $0x24] sm:$0xf]
        %v10137 = vld [vmem:[%s10126 + $0x28] sm:$0xf]
        %v10138 = vld [vmem:[%s10126 + $0x2c] sm:$0xf]
        %v10139 = vld [vmem:[%s10126 + $0x30] sm:$0xf]
        %v10140 = vld [vmem:[%s10126 + $0x34] sm:$0xf]
        %v10141 = vld [vmem:[%s10126 + $0x38] sm:$0xf]
        %v10142 = vld [vmem:[%s10126 + $0x3c] sm:$0xf]
        %v10159 = vunpack.c.l.b16 %v10127
        %v10160 = vunpack.c.l.b16 %v10128
        %v10161 = vunpack.c.l.b16 %v10129
        %v10162 = vunpack.c.l.b16 %v10130
        %v10163 = vunpack.c.l.b16 %v10131
        %v10164 = vunpack.c.l.b16 %v10132
        %v10165 = vunpack.c.l.b16 %v10133
        %v10166 = vunpack.c.l.b16 %v10134
        %v10167 = vunpack.c.l.b16 %v10135
        %v10168 = vunpack.c.l.b16 %v10136
        %v10169 = vunpack.c.l.b16 %v10137
        %v10170 = vunpack.c.l.b16 %v10138
        %v10171 = vunpack.c.l.b16 %v10139
        %v10172 = vunpack.c.l.b16 %v10140
        %v10173 = vunpack.c.l.b16 %v10141
        %v10174 = vunpack.c.l.b16 %v10142
        %v10175 = vpack.c.b16 %v10160, %v10159
        %v10176 = vpack.c.b16 %v10162, %v10161
        %v10177 = vpack.c.b16 %v10164, %v10163
        %v10178 = vpack.c.b16 %v10166, %v10165
        %v10179 = vpack.c.b16 %v10168, %v10167
        %v10180 = vpack.c.b16 %v10170, %v10169
        %v10181 = vpack.c.b16 %v10172, %v10171
        %v10182 = vpack.c.b16 %v10174, %v10173
        %10191 = vmatprep.subr.bf16.mxu0 0
        %10192 = vmatpush1.bf16.msra.mxu0 %v10182
        %10193 = vmatprep.subr.bf16.mxu0 0
        %10194 = vmatpush1.bf16.msra.mxu0 %v10181
        %10195 = vmatprep.subr.bf16.mxu0 0
        %10196 = vmatpush1.bf16.msra.mxu0 %v10180
        %10197 = vmatprep.subr.bf16.mxu0 0
        %10198 = vmatpush1.bf16.msra.mxu0 %v10179
        %10199 = vmatprep.subr.bf16.mxu0 0
        %10200 = vmatpush1.bf16.msra.mxu0 %v10178
        %10201 = vmatprep.subr.bf16.mxu0 0
        %10202 = vmatpush1.bf16.msra.mxu0 %v10177
        %10203 = vmatprep.subr.bf16.mxu0 0
        %10204 = vmatpush1.bf16.msra.mxu0 %v10176
        %10205 = vmatprep.subr.bf16.mxu0 0
        %10206 = vmatpush1.bf16.msra.mxu0 %v10175
        %10207 = vmatprep.subr.bf16.mxu0 0
        %10208 = vmatpush2.bf16.msra.mxu0 0
        %10209 = vmatprep.subr.bf16.mxu0 0
        %10210 = vmatpush2.bf16.msra.mxu0 0
        %10211 = vmatprep.subr.bf16.mxu0 0
        %10212 = vmatpush2.bf16.msra.mxu0 0
        %10213 = vmatprep.subr.bf16.mxu0 0
        %10214 = vmatpush2.bf16.msra.mxu0 0
        %10215 = vmatprep.subr.bf16.mxu0 0
        %10216 = vmatpush2.bf16.msra.mxu0 0
        %10217 = vmatprep.subr.bf16.mxu0 0
        %10218 = vmatpush2.bf16.msra.mxu0 0
        %10219 = vmatprep.subr.bf16.mxu0 0
        %10220 = vmatpush2.bf16.msra.mxu0 0
        %10221 = vmatprep.subr.bf16.mxu0 0
        %10222 = vmatpush2.bf16.msra.mxu0 0
        %10223 = vmatprep.mubr.bf16.mxu0 0
        %10224 = vmatmul.mubr.bf16.gmra.mxu0 %v10122
        %v10225 = vpop.f32.mrf.mxu0
        %v10226 = vadd.f32 0.0, %v10225
        %v10227 = vpop.f32.mrf.mxu0
        %v10228 = vpop.f32.mrf.mxu0
        %v10229 = vadd.f32 0.0, %v10228
        %v10230 = vpop.f32.mrf.mxu0
        %10231 = vmatprep.mubr.bf16.mxu0 0
        %10232 = vmatmul.mubr.bf16.gmra.mxu0 %v10123
        %v10233 = vpop.f32.mrf.mxu0
        %v10234 = vadd.f32 0.0, %v10233
        %v10235 = vpop.f32.mrf.mxu0
        %v10236 = vpop.f32.mrf.mxu0
        %v10237 = vadd.f32 0.0, %v10236
        %v10238 = vpop.f32.mrf.mxu0
        %10239 = vmatprep.mubr.bf16.mxu0 0
        %10240 = vmatmul.mubr.bf16.gmra.mxu0 %v10124
        %v10241 = vpop.f32.mrf.mxu0
        %v10242 = vadd.f32 0.0, %v10241
        %v10243 = vpop.f32.mrf.mxu0
        %v10244 = vpop.f32.mrf.mxu0
        %v10245 = vadd.f32 0.0, %v10244
        %v10246 = vpop.f32.mrf.mxu0
        %10247 = vmatprep.mubr.bf16.mxu0 0
        %10248 = vmatmul.mubr.bf16.gmra.mxu0 %v10125
        %v10249 = vpop.f32.mrf.mxu0
        %v10250 = vadd.f32 0.0, %v10249
        %v10251 = vpop.f32.mrf.mxu0
        %v10252 = vpop.f32.mrf.mxu0
        %v10253 = vadd.f32 0.0, %v10252
        %v10254 = vpop.f32.mrf.mxu0
        %10255 = vdwg.mxu0
        %v10256 = vadd.f32 %v9824, %v10226
        %v10257 = vadd.f32 %v9825, %v10229
        %v10258 = vadd.f32 %v9826, %v10234
        %v10259 = vadd.f32 %v9827, %v10237
        %v10260 = vadd.f32 %v9828, %v10242
        %v10261 = vadd.f32 %v9829, %v10245
        %v10262 = vadd.f32 %v9830, %v10250
        %v10263 = vadd.f32 %v9831, %v10253
        %s10264 = scalar_lea.vmem %s16, 1
        %v10265 = vld [vmem:[%s10264] sm:$0x1]
        %v10267 = vlaneseq
        %v10268 = vshrl.u32 %v10267, 7
        %v10269 = vsub.s32 0, %v10268
        %v10270 = vrot.slane %v10265, %v10269
        %v10272 = vadd.f32 %v10256, %v10270
        %v10273 = vadd.f32 %v10257, %v10270
        %v10274 = vadd.f32 %v10258, %v10270
        %v10275 = vadd.f32 %v10259, %v10270
        %v10276 = vadd.f32 %v10260, %v10270
        %v10277 = vadd.f32 %v10261, %v10270
        %v10278 = vadd.f32 %v10262, %v10270
        %v10279 = vadd.f32 %v10263, %v10270
        %v10280 = vld [vmem:[%s17] sm:$0x1]
        %v10281 = vld [vmem:[%s18] sm:$0x1]
        %v10290 = vrot.slane %v10273, 7
        %vm10291 = vcmask 1041409
        %v10292 = vsel %vm10291, %v10290, %v10272
        %v10293 = vrot.slane %v10274, 6
        %vm10294 = vcmask 1042434
        %v10295 = vsel %vm10294, %v10293, %v10292
        %v10296 = vrot.slane %v10275, 5
        %vm10297 = vcmask 1043459
        %v10298 = vsel %vm10297, %v10296, %v10295
        %v10299 = vrot.slane %v10276, 4
        %vm10300 = vcmask 1044484
        %v10301 = vsel %vm10300, %v10299, %v10298
        %v10302 = vrot.slane %v10277, 3
        %vm10303 = vcmask 1045509
        %v10304 = vsel %vm10303, %v10302, %v10301
        %v10305 = vrot.slane %v10278, 2
        %vm10306 = vcmask 1046534
        %v10307 = vsel %vm10306, %v10305, %v10304
        %v10308 = vrot.slane %v10279, 1
        %vm10309 = vcmask 1047559
        %v10310 = vsel %vm10309, %v10308, %v10307
        %v10312 = vsel %vm842, %v10310, 0.0
        %10313 = vadd.xlane.f32.xlu0 %v10312
        %v10314 = vpop.xlane.xlu0 %10313
        %v10315 = vmul.f32 %v10314, %v867
        %v10317 = vrot.slane %v10315, 1
        %v10318 = vrot.slane %v10315, 2
        %v10319 = vrot.slane %v10315, 3
        %v10320 = vrot.slane %v10315, 4
        %v10321 = vrot.slane %v10315, 5
        %v10322 = vrot.slane %v10315, 6
        %v10323 = vrot.slane %v10315, 7
        %v10332 = vsub.f32 %v10272, %v10315
        %v10333 = vsub.f32 %v10273, %v10317
        %v10334 = vsub.f32 %v10274, %v10318
        %v10335 = vsub.f32 %v10275, %v10319
        %v10336 = vsub.f32 %v10276, %v10320
        %v10337 = vsub.f32 %v10277, %v10321
        %v10338 = vsub.f32 %v10278, %v10322
        %v10339 = vsub.f32 %v10279, %v10323
        %v10340 = vmul.f32 %v10332, %v10332
        %v10341 = vmul.f32 %v10333, %v10333
        %v10342 = vmul.f32 %v10334, %v10334
        %v10343 = vmul.f32 %v10335, %v10335
        %v10344 = vmul.f32 %v10336, %v10336
        %v10345 = vmul.f32 %v10337, %v10337
        %v10346 = vmul.f32 %v10338, %v10338
        %v10347 = vmul.f32 %v10339, %v10339
        %v10356 = vrot.slane %v10341, 7
        %v10357 = vsel %vm10291, %v10356, %v10340
        %v10358 = vrot.slane %v10342, 6
        %v10359 = vsel %vm10294, %v10358, %v10357
        %v10360 = vrot.slane %v10343, 5
        %v10361 = vsel %vm10297, %v10360, %v10359
        %v10362 = vrot.slane %v10344, 4
        %v10363 = vsel %vm10300, %v10362, %v10361
        %v10364 = vrot.slane %v10345, 3
        %v10365 = vsel %vm10303, %v10364, %v10363
        %v10366 = vrot.slane %v10346, 2
        %v10367 = vsel %vm10306, %v10366, %v10365
        %v10368 = vrot.slane %v10347, 1
        %v10369 = vsel %vm10309, %v10368, %v10367
        %v10371 = vsel %vm842, %v10369, 0.0
        %10372 = vadd.xlane.f32.xlu0 %v10371
        %v10373 = vpop.xlane.xlu0 %10372
        %v10374 = vmul.f32 %v10373, %v867
        %v10375 = vadd.f32 %v10374, 1e-05
        %v10376 = vrsqrt.pop %v10375
        %v10378 = vrot.slane %v10376, 1
        %v10379 = vrot.slane %v10376, 2
        %v10380 = vrot.slane %v10376, 3
        %v10381 = vrot.slane %v10376, 4
        %v10382 = vrot.slane %v10376, 5
        %v10383 = vrot.slane %v10376, 6
        %v10384 = vrot.slane %v10376, 7
        %v10393 = vmul.f32 %v10332, %v10376
        %v10394 = vmul.f32 %v10333, %v10378
        %v10395 = vmul.f32 %v10334, %v10379
        %v10396 = vmul.f32 %v10335, %v10380
        %v10397 = vmul.f32 %v10336, %v10381
        %v10398 = vmul.f32 %v10337, %v10382
        %v10399 = vmul.f32 %v10338, %v10383
        %v10400 = vmul.f32 %v10339, %v10384
        %v10402 = vlaneseq
        %v10403 = vshrl.u32 %v10402, 7
        %v10404 = vsub.s32 0, %v10403
        %v10405 = vrot.slane %v10280, %v10404
        %v10407 = vmul.f32 %v10393, %v10405
        %v10408 = vmul.f32 %v10394, %v10405
        %v10409 = vmul.f32 %v10395, %v10405
        %v10410 = vmul.f32 %v10396, %v10405
        %v10411 = vmul.f32 %v10397, %v10405
        %v10412 = vmul.f32 %v10398, %v10405
        %v10413 = vmul.f32 %v10399, %v10405
        %v10414 = vmul.f32 %v10400, %v10405
        %v10416 = vlaneseq
        %v10417 = vshrl.u32 %v10416, 7
        %v10418 = vsub.s32 0, %v10417
        %v10419 = vrot.slane %v10281, %v10418
        %v10421 = vadd.f32 %v10407, %v10419
        %v10422 = vadd.f32 %v10408, %v10419
        %v10423 = vadd.f32 %v10409, %v10419
        %v10424 = vadd.f32 %v10410, %v10419
        %v10425 = vadd.f32 %v10411, %v10419
        %v10426 = vadd.f32 %v10412, %v10419
        %v10427 = vadd.f32 %v10413, %v10419
        %v10428 = vadd.f32 %v10414, %v10419
        %v10429 = vpack.c.bf16 %v10421, %v10421
        %v10430 = vpack.c.bf16 %v10422, %v10422
        %v10431 = vpack.c.bf16 %v10423, %v10423
        %v10432 = vpack.c.bf16 %v10424, %v10424
        %v10433 = vpack.c.bf16 %v10425, %v10425
        %v10434 = vpack.c.bf16 %v10426, %v10426
        %v10435 = vpack.c.bf16 %v10427, %v10427
        %v10436 = vpack.c.bf16 %v10428, %v10428
        %v10437 = vld [vmem:[%s19] sm:$0xf]
        %v10438 = vld [vmem:[%s19 + $0x4] sm:$0xf]
        %v10439 = vld [vmem:[%s19 + $0x8] sm:$0xf]
        %v10440 = vld [vmem:[%s19 + $0xc] sm:$0xf]
        %v10449 = vunpack.c.l.b16 %v10429
        %v10450 = vunpack.c.l.b16 %v10430
        %v10451 = vunpack.c.l.b16 %v10431
        %v10452 = vunpack.c.l.b16 %v10432
        %v10453 = vunpack.c.l.b16 %v10433
        %v10454 = vunpack.c.l.b16 %v10434
        %v10455 = vunpack.c.l.b16 %v10435
        %v10456 = vunpack.c.l.b16 %v10436
        %v10457 = vrot.slane %v10450, 7
        %v10458 = vsel %vm10291, %v10457, %v10449
        %v10459 = vrot.slane %v10451, 6
        %v10460 = vsel %vm10294, %v10459, %v10458
        %v10461 = vrot.slane %v10452, 5
        %v10462 = vsel %vm10297, %v10461, %v10460
        %v10463 = vrot.slane %v10453, 4
        %v10464 = vsel %vm10300, %v10463, %v10462
        %v10465 = vrot.slane %v10454, 3
        %v10466 = vsel %vm10303, %v10465, %v10464
        %v10467 = vrot.slane %v10455, 2
        %v10468 = vsel %vm10306, %v10467, %v10466
        %v10469 = vrot.slane %v10456, 1
        %v10470 = vsel %vm10309, %v10469, %v10468
        %v10471 = vpack.c.b16 %v10470, %v10470
        %v10476 = vunpack.c.l.b16 %v10437
        %v10477 = vunpack.c.l.b16 %v10438
        %v10478 = vunpack.c.l.b16 %v10439
        %v10479 = vunpack.c.l.b16 %v10440
        %v10480 = vpack.c.b16 %v10477, %v10476
        %v10481 = vpack.c.b16 %v10479, %v10478
        %v10485 = vsel %vm842, %v10471, 0
        %10487 = vmatprep.subr.bf16.mxu0 0
        %10488 = vmatpush1.bf16.msra.mxu0 0
        %10489 = vmatprep.subr.bf16.mxu0 0
        %10490 = vmatpush1.bf16.msra.mxu0 0
        %10491 = vmatprep.subr.bf16.mxu0 0
        %10492 = vmatpush1.bf16.msra.mxu0 0
        %10493 = vmatprep.subr.bf16.mxu0 0
        %10494 = vmatpush1.bf16.msra.mxu0 0
        %10495 = vmatprep.subr.bf16.mxu0 0
        %10496 = vmatpush1.bf16.msra.mxu0 0
        %10497 = vmatprep.subr.bf16.mxu0 0
        %10498 = vmatpush1.bf16.msra.mxu0 0
        %10499 = vmatprep.subr.bf16.mxu0 0
        %10500 = vmatpush1.bf16.msra.mxu0 %v10481
        %10501 = vmatprep.subr.bf16.mxu0 0
        %10502 = vmatpush1.bf16.msra.mxu0 %v10480
        %10503 = vmatprep.subr.bf16.mxu0 0
        %10504 = vmatpush2.bf16.msra.mxu0 0
        %10505 = vmatprep.subr.bf16.mxu0 0
        %10506 = vmatpush2.bf16.msra.mxu0 0
        %10507 = vmatprep.subr.bf16.mxu0 0
        %10508 = vmatpush2.bf16.msra.mxu0 0
        %10509 = vmatprep.subr.bf16.mxu0 0
        %10510 = vmatpush2.bf16.msra.mxu0 0
        %10511 = vmatprep.subr.bf16.mxu0 0
        %10512 = vmatpush2.bf16.msra.mxu0 0
        %10513 = vmatprep.subr.bf16.mxu0 0
        %10514 = vmatpush2.bf16.msra.mxu0 0
        %10515 = vmatprep.subr.bf16.mxu0 0
        %10516 = vmatpush2.bf16.msra.mxu0 0
        %10517 = vmatprep.subr.bf16.mxu0 0
        %10518 = vmatpush2.bf16.msra.mxu0 0
        %10519 = vmatprep.mubr.bf16.mxu0 0
        %10520 = vmatmul.mubr.bf16.gmra.mxu0 %v10485
        %v10521 = vpop.f32.mrf.mxu0
        %v10522 = vadd.f32 0.0, %v10521
        %v10523 = vpop.f32.mrf.mxu0
        %v10524 = vpop.f32.mrf.mxu0
        %v10525 = vpop.f32.mrf.mxu0
        %10526 = vdwg.mxu0
        %10527 = vst.msk [vmem:[%s625] sm:$0xff] %vm842, %v10522
        %s10528 = sand.u32 %s467, 1
        %s10529 = scalar_lea.sflag [#allocation3], %s10528
        %s10530 = sand.u32 %s467, 1
        %s10531 = smul.addr %s10530, 8
        %s10532 = scalar_lea.vmem [#allocation2], %s10531
        // Predicated region
        $region101: #{tpu_custom_call.1} parent=99 // pred_check
          %p10533 = pneg %p477
        $region102: #{tpu_custom_call.1} parent=99 // pred_check_branch
          %10535 = sbr.rel (%p10533) target = $region104
        $region103: #{tpu_custom_call.1} parent=99 // pred_region
          %s10537 = ssub.s32 128, 128
          %10538 = vsyncadd %s10529, %s10537
          %s10539 = smul.addr %s34, 128
          %s10540 = scalar_lea.hbm %s20, %s10539
          %s10542 = sshll.u32 %s10532, 4
          %s10543 = int_to_ptr.vmem [resolvable:$true] %s10542
          %10545 = dma.vmem_to_hbm [thread:$0]  %s10543, 128, %s10540, %s10529
        $region104: #{tpu_custom_call.1} parent=99 // pred_fallthru
          _
      $region100: #{tpu_custom_call.1} parent=5 // pred_fallthru
        _
      %p10546 = scmp.le.s32.totalorder 2, %s29
      // Predicated region
      $region105: #{tpu_custom_call.1} parent=5 // pred_check
        %p10547 = pneg %p10546
      $region106: #{tpu_custom_call.1} parent=5 // pred_check_branch
        %10549 = sbr.rel (%p10547) target = $region108
      $region107: #{tpu_custom_call.1} parent=5 // pred_region
        %s10550 = ssub.s32 %s29, 2
        // Predicated region
        $region109: #{tpu_custom_call.1} parent=107 // pred_check
          %p10551 = pneg %p483
        $region110: #{tpu_custom_call.1} parent=107 // pred_check_branch
          %10553 = sbr.rel (%p10551) target = $region112
        $region111: #{tpu_custom_call.1} parent=107 // pred_region
          %s10554 = sand.u32 %s468, 1
          %s10555 = scalar_lea.sflag [#allocation3], %s10554
          %s10556 = sand.u32 %s468, 1
          %s10557 = smul.addr %s10556, 8
          %s10558 = scalar_lea.vmem [#allocation2], %s10557
          %10559 = dma.done %s10555, 128
        $region112: #{tpu_custom_call.1} parent=107 // pred_fallthru
          _
      $region108: #{tpu_custom_call.1} parent=5 // pred_fallthru
        _
    $region6: #{tpu_custom_call.1} parent=1 // loop_footer
      %s33 = sadd.s32 1, %s29
    $region7: #{tpu_custom_call.1} parent=1 // loop_footer_branch
      %28 = sbr.rel target = $region3
    $region8: #{tpu_custom_call.1} parent=1 // loop_exit
      _
    %10560 = vsyncpa [#allocation3], 1
    %s10561 = scalar_lea.sflag [#allocation3], 1
    %10562 = vsyncpa %s10561, 1

</llo_original>
